<compile_context>
chip_gen: v5e
topology: v5e:2x2
jax: 0.10.0
libtpu: 0.0.40
codegen_flags: <defaults>
</compile_context>

<pallas_src>
import functools

import jax
import jax.numpy as jnp
from jax.experimental import pallas as pl
from jax.experimental.pallas import tpu as pltpu


# ----------------------------------------------------------------- helpers

def _round_up(x, m):
    return (x + m - 1) // m * m


def _pick_tile(dim, candidates):
    for c in candidates:
        if dim % c == 0:
            return c
    return dim


# ------------------------------------------------------ fused matmul kernel

def _fused_matmul_kernel(*refs, act_in, bias_tanh):
    """Batched tiled matmul:  out[p] = act_in(a[p]) @ b[p]  (+bias, tanh).

    Grid = (P, M_tiles, N_tiles, K_tiles); K innermost (reduction).
    Accumulates directly into the f32 output block (no scratch).
    """
    if bias_tanh:
        a_ref, b_ref, bias_ref, o_ref = refs
    else:
        a_ref, b_ref, o_ref = refs

    k = pl.program_id(3)

    @pl.when(k == 0)
    def _():
        o_ref[...] = jnp.zeros_like(o_ref)

    a = a_ref[0]
    if act_in == "leaky":           # LeakyReLU(0.2) fused prologue
        a = jnp.where(a > 0, a, a * 0.2)
    elif act_in == "relu":          # ReLU fused prologue
        a = jnp.maximum(a, 0.0)

    o_ref[0] += jnp.dot(a, b_ref[0], preferred_element_type=jnp.float32)

    if bias_tanh:                   # bias + Tanh fused epilogue (outermost)
        @pl.when(k == pl.num_programs(3) - 1)
        def _():
            o_ref[0] = jnp.tanh(o_ref[0] + bias_ref[...])


def fused_matmul(a, b, bias=None, act_in=None, bias_tanh=False):
    """a: (P, M, K) bf16, b: (P, K, N) bf16, bias: (N,) f32 -> (P, M, N) f32."""
    p_, m, kdim = a.shape
    n = b.shape[2]

    mp = _round_up(m, 8)
    if mp != m:
        a = jnp.pad(a, ((0, 0), (0, mp - m), (0, 0)))

    tm = _pick_tile(mp, (512, 256, 128, 64, 32, 16, 8))
    if mp // tm == 1 and tm >= 16:
        tm //= 2                     # keep >=2 parallel M blocks (2-TC chips)
    tk = _pick_tile(kdim, (512, 256, 128)) if kdim % 128 == 0 else kdim
    tn = _pick_tile(n, (256, 128)) if n % 128 == 0 else n

    grid = (p_, mp // tm, n // tn, kdim // tk)

    in_specs = [pl.BlockSpec((1, tm, tk), lambda p, i, j, k: (p, i, k)),
                pl.BlockSpec((1, tk, tn), lambda p, i, j, k: (p, k, j))]
    args = [a, b]
    if bias_tanh:
        in_specs.append(pl.BlockSpec((1, tn), lambda p, i, j, k: (0, j)))
        args.append(bias.astype(jnp.float32).reshape(1, n))

    out = pl.pallas_call(
        functools.partial(_fused_matmul_kernel, act_in=act_in,
                          bias_tanh=bias_tanh),
        out_shape=jax.ShapeDtypeStruct((p_, mp, n), jnp.float32),
        grid_spec=pltpu.PrefetchScalarGridSpec(
            num_scalar_prefetch=0,
            grid=grid,
            in_specs=in_specs,
            out_specs=pl.BlockSpec((1, tm, tn), lambda p, i, j, k: (p, i, j))),
        compiler_params=pltpu.CompilerParams(
            dimension_semantics=("parallel", "parallel", "parallel",
                                 "arbitrary")),
    )(*args)
    return out[:, :m, :] if mp != m else out


# ------------------------------------------------- BatchNorm stats reduction

def _bn_stats_kernel(y_ref, g_ref, b_ref, scale_ref, shift_ref,
                     sum_ref, sq_ref, *, count):
    i = pl.program_id(0)

    @pl.when(i == 0)
    def _():
        sum_ref[...] = jnp.zeros_like(sum_ref)
        sq_ref[...] = jnp.zeros_like(sq_ref)

    y = y_ref[...]
    sum_ref[...] += jnp.sum(y, axis=0, keepdims=True)
    sq_ref[...] += jnp.sum(y * y, axis=0, keepdims=True)

    @pl.when(i == pl.num_programs(0) - 1)
    def _():
        inv = 1.0 / count
        mean = sum_ref[...] * inv
        var = jnp.maximum(sq_ref[...] * inv - mean * mean, 0.0)
        scale = g_ref[...] * jax.lax.rsqrt(var + 1e-5)
        scale_ref[...] = scale
        shift_ref[...] = b_ref[...] - mean * scale


def bn_stats(y, gamma, beta):
    """Training-mode BatchNorm2d folded into per-channel (scale, shift):
    BN(y) == y * scale + shift  (batch mean, biased variance, eps=1e-5)."""
    n, h, w, c = y.shape
    m = n * h * w
    y2 = y.reshape(m, c)
    mp = _round_up(m, 8)
    if mp != m:
        y2 = jnp.pad(y2, ((0, mp - m), (0, 0)))  # zero rows don't change sums
    tr = _pick_tile(mp, (1024, 512, 256, 128, 64, 32, 16, 8))

    scale, shift = pl.pallas_call(
        functools.partial(_bn_stats_kernel, count=float(m)),
        out_shape=(jax.ShapeDtypeStruct((1, c), jnp.float32),
                   jax.ShapeDtypeStruct((1, c), jnp.float32)),
        grid_spec=pltpu.PrefetchScalarGridSpec(
            num_scalar_prefetch=0,
            grid=(mp // tr,),
            in_specs=[pl.BlockSpec((tr, c), lambda i: (i, 0)),
                      pl.BlockSpec((1, c), lambda i: (0, 0)),
                      pl.BlockSpec((1, c), lambda i: (0, 0))],
            out_specs=[pl.BlockSpec((1, c), lambda i: (0, 0)),
                       pl.BlockSpec((1, c), lambda i: (0, 0))],
            scratch_shapes=[pltpu.VMEM((1, c), jnp.float32),
                            pltpu.VMEM((1, c), jnp.float32)]),
        compiler_params=pltpu.CompilerParams(
            dimension_semantics=("arbitrary",)),
    )(y2, gamma.reshape(1, c), beta.reshape(1, c))
    return scale.reshape(c), shift.reshape(c)


# --------------------------------------------------------- conv lowerings

def conv2d_s2(x, scale, shift, w, act_in):
    """Conv2d(k=4, s=2, p=1, bias=False) of act_in(x*scale + shift).

    x: (N,H,W,Cin) raw f32 with pending per-channel affine (scale, shift);
    w: (Cout, Cin, 4, 4). Padding zeros are applied before the in-kernel
    activation (act(0)=0), matching PyTorch's pad-after-activation semantics.
    """
    n, h, wd, cin = x.shape
    cout = w.shape[0]
    ho, wo = h // 2, wd // 2
    x_eff = (x * scale + shift).astype(jnp.bfloat16)
    xp = jnp.pad(x_eff, ((0, 0), (1, 1), (1, 1), (0, 0)))
    slabs = [xp[:, kh:kh + 2 * ho - 1:2, kw:kw + 2 * wo - 1:2, :]
             for kh in range(4) for kw in range(4)]
    patches = jnp.stack(slabs, axis=-1).reshape(n * ho * wo, cin * 16)
    wmat = jnp.transpose(w, (1, 2, 3, 0)).reshape(cin * 16, cout)
    y = fused_matmul(patches[None], wmat.astype(jnp.bfloat16)[None],
                     act_in=act_in)
    return y[0].reshape(n, ho, wo, cout)


def conv_transpose2d_s2(x, scale, shift, w, act_in, bias=None, tanh_out=False):
    """ConvTranspose2d(k=4, s=2, p=1) of act_in(x*scale + shift), via sub-pixel
    decomposition: 4 output phases, each a 4-tap matmul at input resolution
    (no zero-insertion -> 4x fewer MACs). x: (N,H,W,Cin), w: (Cin,Cout,4,4)."""
    n, h, wd, cin = x.shape
    cout = w.shape[1]
    x_eff = (x * scale + shift).astype(jnp.bfloat16)
    xp = jnp.pad(x_eff, ((0, 0), (1, 1), (1, 1), (0, 0)))
    wb = w.astype(jnp.bfloat16)

    a_list, b_list = [], []
    for pr in range(2):
        for pc in range(2):
            slabs = [xp[:, pr + dh:pr + dh + h, pc + dw:pc + dw + wd, :]
                     for dh in range(2) for dw in range(2)]
            a_list.append(jnp.stack(slabs, axis=3).reshape(n * h * wd, 4 * cin))
            taps = [wb[:, :, 3 - pr - 2 * dh, 3 - pc - 2 * dw]
                    for dh in range(2) for dw in range(2)]
            b_list.append(jnp.stack(taps, axis=0).reshape(4 * cin, cout))
    a3 = jnp.stack(a_list)                    # (4, N*H*W, 4*Cin)
    b3 = jnp.stack(b_list)                    # (4, 4*Cin, Cout)

    y = fused_matmul(a3, b3, bias=bias, act_in=act_in, bias_tanh=tanh_out)
    y = y.reshape(2, 2, n, h, wd, cout)
    # out[:, 2m+pr, 2q+pc, :] = y[pr, pc, :, m, q, :]
    return jnp.transpose(y, (2, 3, 0, 4, 1, 5)).reshape(n, 2 * h, 2 * wd, cout)


# ----------------------------------------------------------------- generator

def init_unet_block(key, n1, n2, submodule=None, input_c=None,
                    outermost=False, innermost=False, dropout=False):
    if input_c is None:
        input_c = n1
    k0, k1, k2 = jax.random.split(key, 3)
    p = {"outermost": outermost, "innermost": innermost, "dropout": dropout,
         "submodule": submodule}
    p["downconv_w"] = 0.02 * jax.random.normal(k0, (n2, input_c, 4, 4),
                                               jnp.float32)
    if innermost:
        p["upconv_w"] = 0.02 * jax.random.normal(k1, (n2, n1, 4, 4), jnp.float32)
        p["upnorm"] = (jnp.ones((n1,), jnp.float32), jnp.zeros((n1,), jnp.float32))
    elif outermost:
        p["upconv_w"] = 0.02 * jax.random.normal(k1, (n2 * 2, n1, 4, 4),
                                                 jnp.float32)
        p["upconv_b"] = 0.01 * jax.random.normal(k2, (n1,), jnp.float32)
    else:
        p["downnorm"] = (jnp.ones((n2,), jnp.float32), jnp.zeros((n2,), jnp.float32))
        p["upconv_w"] = 0.02 * jax.random.normal(k1, (n2 * 2, n1, 4, 4),
                                                 jnp.float32)
        p["upnorm"] = (jnp.ones((n1,), jnp.float32), jnp.zeros((n1,), jnp.float32))
    return p


def _identity_affine(c):
    return jnp.ones((c,), jnp.float32), jnp.zeros((c,), jnp.float32)


def unet_block_forward(p, x, scale_in, shift_in):
    """x: raw NHWC input with a pending per-channel affine (scale_in, shift_in)
    (the not-yet-applied BatchNorm of the producer). Non-outermost blocks return
    (raw_concat, pending_scale, pending_shift)."""
    if p["outermost"]:
        d = conv2d_s2(x, scale_in, shift_in, p["downconv_w"], act_in=None)
        sc0, sh0 = _identity_affine(d.shape[-1])
        s, sc_s, sh_s = unet_block_forward(p["submodule"], d, sc0, sh0)
        return conv_transpose2d_s2(s, sc_s, sh_s, p["upconv_w"], act_in="relu",
                                   bias=p["upconv_b"], tanh_out=True)
    elif p["innermost"]:
        d = conv2d_s2(x, scale_in, shift_in, p["downconv_w"], act_in="leaky")
        sc0, sh0 = _identity_affine(d.shape[-1])
        u = conv_transpose2d_s2(d, sc0, sh0, p["upconv_w"], act_in="relu")
        sc_u, sh_u = bn_stats(u, *p["upnorm"])
        return (jnp.concatenate([x, u], axis=-1),
                jnp.concatenate([scale_in, sc_u]),
                jnp.concatenate([shift_in, sh_u]))
    else:
        d = conv2d_s2(x, scale_in, shift_in, p["downconv_w"], act_in="leaky")
        sc_d, sh_d = bn_stats(d, *p["downnorm"])
        s, sc_s, sh_s = unet_block_forward(p["submodule"], d, sc_d, sh_d)
        u = conv_transpose2d_s2(s, sc_s, sh_s, p["upconv_w"], act_in="relu")
        sc_u, sh_u = bn_stats(u, *p["upnorm"])
        # TODO(synk): nn.Dropout(0.5) (training mode) is stochastic; treated as
        # identity (eval-mode) here.
        return (jnp.concatenate([x, u], axis=-1),
                jnp.concatenate([scale_in, sc_u]),
                jnp.concatenate([shift_in, sh_u]))


def init_generator(key, input_c=1, output_c=2, n_down=8, num_filters=64):
    assert n_down >= 5
    keys = iter(jax.random.split(key, n_down + 1))
    blk = init_unet_block(next(keys), num_filters * 8, num_filters * 8,
                          innermost=True)
    for _ in range(n_down - 5):
        blk = init_unet_block(next(keys), num_filters * 8, num_filters * 8,
                              submodule=blk, dropout=True)
    nf = num_filters * 8
    for _ in range(3):
        blk = init_unet_block(next(keys), nf // 2, nf, submodule=blk)
        nf //= 2
    return init_unet_block(next(keys), output_c, nf, outermost=True,
                           input_c=input_c, submodule=blk)


def generator_forward(params, x_nchw):
    x = jnp.transpose(x_nchw, (0, 2, 3, 1))        # NCHW -> NHWC
    sc, sh = _identity_affine(x.shape[-1])
    y = unet_block_forward(params, x, sc, sh)
    return jnp.transpose(y, (0, 3, 1, 2))          # NHWC -> NCHW


# ---------------------------------------------------------------------- main

if __name__ == "__main__":
    key = jax.random.PRNGKey(0)
    k_param, k_data = jax.random.split(key)

    # Small config consistent with the module: n_down=5 -> spatial 32
    # (divisible by 2**5), num_filters=8, 1 input channel, 2 output channels.
    input_c, output_c, n_down, num_filters = 1, 2, 5, 8
    params = init_generator(k_param, input_c=input_c, output_c=output_c,
                            n_down=n_down, num_filters=num_filters)

    x = jax.random.normal(k_data, (2, input_c, 32, 32), jnp.float32)  # NCHW

    fwd = jax.jit(lambda inp: generator_forward(params, inp))
    y = jax.block_until_ready(fwd(x))

    assert y.shape == (2, output_c, 32, 32), y.shape
    assert bool(jnp.all(jnp.isfinite(y)))
    print("KERNEL_OK")
</pallas_src>

<mosaic_0001>
module attributes {stable_mosaic.version = 11 : i64} {
  func.func @_fused_matmul_kernel(%arg0: i32, %arg1: i32, %arg2: i32, %arg3: i32, %arg4: memref<1x256x16xbf16, #tpu.memory_space<vmem>>, %arg5: memref<1x16x8xbf16, #tpu.memory_space<vmem>>, %arg6: memref<1x256x8xf32, #tpu.memory_space<vmem>>) attributes {dimension_semantics = [#tpu.dimension_semantics<parallel>, #tpu.dimension_semantics<parallel>, #tpu.dimension_semantics<parallel>, #tpu.dimension_semantics<arbitrary>], iteration_bounds = array<i64: 1, 2, 1, 1>, scalar_prefetch = 0 : i64, scratch_operands = 0 : i64, tpu.core_type = #tpu.core_type<tc>, window_params = [{transform_indices = @transform_0, window_bounds = array<i64: 1, 256, 16>}, {transform_indices = @transform_1, window_bounds = array<i64: 1, 16, 8>}, {transform_indices = @transform_2, window_bounds = array<i64: 1, 256, 8>}]} {
    %c0_i32 = arith.constant 0 : i32
    %0 = arith.cmpi eq, %arg3, %c0_i32 : i32
    %1 = arith.extui %0 : i1 to i32
    %c0_i32_0 = arith.constant 0 : i32
    %2 = arith.cmpi ne, %1, %c0_i32_0 : i32
    scf.if %2 {
      %cst_12 = arith.constant 0.000000e+00 : f32
      %14 = vector.broadcast %cst_12 : f32 to vector<1x256x8xf32>
      %c0_13 = arith.constant 0 : index
      %c0_14 = arith.constant 0 : index
      %c0_15 = arith.constant 0 : index
      %15 = vector.load %arg6[%c0_13, %c0_14, %c0_15] : memref<1x256x8xf32, #tpu.memory_space<vmem>>, vector<1x256x8xf32>
      tpu.vector_store %arg6[%c0_13, %c0_14, %c0_15], %14 {strides = array<i32>} : memref<1x256x8xf32, #tpu.memory_space<vmem>>, vector<1x256x8xf32>,
    } else {
    }
    %c0 = arith.constant 0 : index
    %c0_1 = arith.constant 0 : index
    %c0_2 = arith.constant 0 : index
    %3 = vector.load %arg4[%c0, %c0_1, %c0_2] : memref<1x256x16xbf16, #tpu.memory_space<vmem>>, vector<1x256x16xbf16>
    %4 = vector.shape_cast %3 : vector<1x256x16xbf16> to vector<256x16xbf16>
    %c0_3 = arith.constant 0 : index
    %c0_4 = arith.constant 0 : index
    %c0_5 = arith.constant 0 : index
    %5 = vector.load %arg6[%c0_3, %c0_4, %c0_5] : memref<1x256x8xf32, #tpu.memory_space<vmem>>, vector<1x256x8xf32>
    %6 = vector.shape_cast %5 : vector<1x256x8xf32> to vector<256x8xf32>
    %c0_6 = arith.constant 0 : index
    %c0_7 = arith.constant 0 : index
    %c0_8 = arith.constant 0 : index
    %7 = vector.load %arg5[%c0_6, %c0_7, %c0_8] : memref<1x16x8xbf16, #tpu.memory_space<vmem>>, vector<1x16x8xbf16>
    %8 = vector.shape_cast %7 : vector<1x16x8xbf16> to vector<16x8xbf16>
    %cst = arith.constant dense<0.000000e+00> : vector<256x8xf32>
    %9 = tpu.matmul %4, %8, %cst {dimension_numbers = #tpu.dot_dimension_numbers<[1], [0], [0], [1], [0, 0, 1, 1], [], []>} : vector<256x16xbf16>, vector<16x8xbf16>, vector<256x8xf32> -> vector<256x8xf32>
    %10 = arith.addf %6, %9 : vector<256x8xf32>
    %c0_9 = arith.constant 0 : index
    %c0_10 = arith.constant 0 : index
    %c0_11 = arith.constant 0 : index
    %11 = vector.load %arg6[%c0_9, %c0_10, %c0_11] : memref<1x256x8xf32, #tpu.memory_space<vmem>>, vector<1x256x8xf32>
    %12 = vector.shape_cast %11 : vector<1x256x8xf32> to vector<256x8xf32>
    %13 = vector.shape_cast %10 : vector<256x8xf32> to vector<1x256x8xf32>
    tpu.vector_store %arg6[%c0_9, %c0_10, %c0_11], %13 {strides = array<i32>} : memref<1x256x8xf32, #tpu.memory_space<vmem>>, vector<1x256x8xf32>,
    return
  }
  func.func @transform_0(%arg0: i32, %arg1: i32, %arg2: i32, %arg3: i32) -> (i32, i32, i32) {
    %c0_i32 = arith.constant 0 : i32
    return %arg0, %arg1, %arg3 : i32, i32, i32
  }
  func.func @transform_1(%arg0: i32, %arg1: i32, %arg2: i32, %arg3: i32) -> (i32, i32, i32) {
    %c0_i32 = arith.constant 0 : i32
    return %arg0, %arg3, %arg2 : i32, i32, i32
  }
  func.func @transform_2(%arg0: i32, %arg1: i32, %arg2: i32, %arg3: i32) -> (i32, i32, i32) {
    %c0_i32 = arith.constant 0 : i32
    return %arg0, %arg1, %arg2 : i32, i32, i32
  }
}

module attributes {stable_mosaic.version = 11 : i64} {
  func.func @_fused_matmul_kernel(%arg0: i32, %arg1: i32, %arg2: i32, %arg3: i32, %arg4: memref<1x64x128xbf16, #tpu.memory_space<vmem>>, %arg5: memref<1x128x16xbf16, #tpu.memory_space<vmem>>, %arg6: memref<1x64x16xf32, #tpu.memory_space<vmem>>) attributes {dimension_semantics = [#tpu.dimension_semantics<parallel>, #tpu.dimension_semantics<parallel>, #tpu.dimension_semantics<parallel>, #tpu.dimension_semantics<arbitrary>], iteration_bounds = array<i64: 1, 2, 1, 1>, scalar_prefetch = 0 : i64, scratch_operands = 0 : i64, tpu.core_type = #tpu.core_type<tc>, window_params = [{transform_indices = @transform_0, window_bounds = array<i64: 1, 64, 128>}, {transform_indices = @transform_1, window_bounds = array<i64: 1, 128, 16>}, {transform_indices = @transform_2, window_bounds = array<i64: 1, 64, 16>}]} {
    %c0_i32 = arith.constant 0 : i32
    %0 = arith.cmpi eq, %arg3, %c0_i32 : i32
    %1 = arith.extui %0 : i1 to i32
    %c0_i32_0 = arith.constant 0 : i32
    %2 = arith.cmpi ne, %1, %c0_i32_0 : i32
    scf.if %2 {
      %cst_14 = arith.constant 0.000000e+00 : f32
      %19 = vector.broadcast %cst_14 : f32 to vector<1x64x16xf32>
      %c0_15 = arith.constant 0 : index
      %c0_16 = arith.constant 0 : index
      %c0_17 = arith.constant 0 : index
      %20 = vector.load %arg6[%c0_15, %c0_16, %c0_17] : memref<1x64x16xf32, #tpu.memory_space<vmem>>, vector<1x64x16xf32>
      tpu.vector_store %arg6[%c0_15, %c0_16, %c0_17], %19 {strides = array<i32>} : memref<1x64x16xf32, #tpu.memory_space<vmem>>, vector<1x64x16xf32>,
    } else {
    }
    %c0 = arith.constant 0 : index
    %c0_1 = arith.constant 0 : index
    %c0_2 = arith.constant 0 : index
    %3 = vector.load %arg4[%c0, %c0_1, %c0_2] : memref<1x64x128xbf16, #tpu.memory_space<vmem>>, vector<1x64x128xbf16>
    %4 = vector.shape_cast %3 : vector<1x64x128xbf16> to vector<64x128xbf16>
    %cst = arith.constant 0.000000e+00 : bf16
    %5 = vector.broadcast %cst : bf16 to vector<64x128xbf16>
    %6 = arith.cmpf ogt, %4, %5 : vector<64x128xbf16>
    %cst_3 = arith.constant 2.001950e-01 : bf16
    %7 = vector.broadcast %cst_3 : bf16 to vector<64x128xbf16>
    %8 = arith.mulf %4, %7 : vector<64x128xbf16>
    %9 = arith.select %6, %4, %8 : vector<64x128xi1>, vector<64x128xbf16>
    %c0_4 = arith.constant 0 : index
    %c0_5 = arith.constant 0 : index
    %c0_6 = arith.constant 0 : index
    %10 = vector.load %arg6[%c0_4, %c0_5, %c0_6] : memref<1x64x16xf32, #tpu.memory_space<vmem>>, vector<1x64x16xf32>
    %11 = vector.shape_cast %10 : vector<1x64x16xf32> to vector<64x16xf32>
    %c0_7 = arith.constant 0 : index
    %c0_8 = arith.constant 0 : index
    %c0_9 = arith.constant 0 : index
    %12 = vector.load %arg5[%c0_7, %c0_8, %c0_9] : memref<1x128x16xbf16, #tpu.memory_space<vmem>>, vector<1x128x16xbf16>
    %13 = vector.shape_cast %12 : vector<1x128x16xbf16> to vector<128x16xbf16>
    %cst_10 = arith.constant dense<0.000000e+00> : vector<64x16xf32>
    %14 = tpu.matmul %9, %13, %cst_10 {dimension_numbers = #tpu.dot_dimension_numbers<[1], [0], [0], [1], [0, 0, 1, 1], [], []>} : vector<64x128xbf16>, vector<128x16xbf16>, vector<64x16xf32> -> vector<64x16xf32>
    %15 = arith.addf %11, %14 : vector<64x16xf32>
    %c0_11 = arith.constant 0 : index
    %c0_12 = arith.constant 0 : index
    %c0_13 = arith.constant 0 : index
    %16 = vector.load %arg6[%c0_11, %c0_12, %c0_13] : memref<1x64x16xf32, #tpu.memory_space<vmem>>, vector<1x64x16xf32>
    %17 = vector.shape_cast %16 : vector<1x64x16xf32> to vector<64x16xf32>
    %18 = vector.shape_cast %15 : vector<64x16xf32> to vector<1x64x16xf32>
    tpu.vector_store %arg6[%c0_11, %c0_12, %c0_13], %18 {strides = array<i32>} : memref<1x64x16xf32, #tpu.memory_space<vmem>>, vector<1x64x16xf32>,
    return
  }
  func.func @transform_0(%arg0: i32, %arg1: i32, %arg2: i32, %arg3: i32) -> (i32, i32, i32) {
    %c0_i32 = arith.constant 0 : i32
    return %arg0, %arg1, %arg3 : i32, i32, i32
  }
  func.func @transform_1(%arg0: i32, %arg1: i32, %arg2: i32, %arg3: i32) -> (i32, i32, i32) {
    %c0_i32 = arith.constant 0 : i32
    return %arg0, %arg3, %arg2 : i32, i32, i32
  }
  func.func @transform_2(%arg0: i32, %arg1: i32, %arg2: i32, %arg3: i32) -> (i32, i32, i32) {
    %c0_i32 = arith.constant 0 : i32
    return %arg0, %arg1, %arg2 : i32, i32, i32
  }
}

module attributes {stable_mosaic.version = 11 : i64} {
  func.func @_bn_stats_kernel(%arg0: i32, %arg1: memref<128x16xf32, #tpu.memory_space<vmem>>, %arg2: memref<1x16xf32, #tpu.memory_space<vmem>>, %arg3: memref<1x16xf32, #tpu.memory_space<vmem>>, %arg4: memref<1x16xf32, #tpu.memory_space<vmem>>, %arg5: memref<1x16xf32, #tpu.memory_space<vmem>>, %arg6: memref<1x16xf32, #tpu.memory_space<vmem>>, %arg7: memref<1x16xf32, #tpu.memory_space<vmem>>) attributes {dimension_semantics = [#tpu.dimension_semantics<arbitrary>], iteration_bounds = array<i64: 1>, scalar_prefetch = 0 : i64, scratch_operands = 2 : i64, tpu.core_type = #tpu.core_type<tc>, window_params = [{transform_indices = @transform_0, window_bounds = array<i64: 128, 16>}, {pipeline_mode = #tpu.pipeline_mode<synchronous>, transform_indices = @transform_1, window_bounds = array<i64: 1, 16>}, {pipeline_mode = #tpu.pipeline_mode<synchronous>, transform_indices = @transform_2, window_bounds = array<i64: 1, 16>}, {pipeline_mode = #tpu.pipeline_mode<synchronous>, transform_indices = @transform_3, window_bounds = array<i64: 1, 16>}, {pipeline_mode = #tpu.pipeline_mode<synchronous>, transform_indices = @transform_4, window_bounds = array<i64: 1, 16>}]} {
    %c0_i32 = arith.constant 0 : i32
    %0 = arith.cmpi eq, %arg0, %c0_i32 : i32
    %1 = arith.extui %0 : i1 to i32
    %c0_i32_0 = arith.constant 0 : i32
    %2 = arith.cmpi ne, %1, %c0_i32_0 : i32
    scf.if %2 {
      %cst_13 = arith.constant 0.000000e+00 : f32
      %18 = vector.broadcast %cst_13 : f32 to vector<1x16xf32>
      %c0_14 = arith.constant 0 : index
      %c0_15 = arith.constant 0 : index
      %19 = vector.load %arg6[%c0_14, %c0_15] : memref<1x16xf32, #tpu.memory_space<vmem>>, vector<1x16xf32>
      tpu.vector_store %arg6[%c0_14, %c0_15], %18 {strides = array<i32>} : memref<1x16xf32, #tpu.memory_space<vmem>>, vector<1x16xf32>,
      %cst_16 = arith.constant 0.000000e+00 : f32
      %20 = vector.broadcast %cst_16 : f32 to vector<1x16xf32>
      %c0_17 = arith.constant 0 : index
      %c0_18 = arith.constant 0 : index
      %21 = vector.load %arg7[%c0_17, %c0_18] : memref<1x16xf32, #tpu.memory_space<vmem>>, vector<1x16xf32>
      tpu.vector_store %arg7[%c0_17, %c0_18], %20 {strides = array<i32>} : memref<1x16xf32, #tpu.memory_space<vmem>>, vector<1x16xf32>,
    } else {
    }
    %c0 = arith.constant 0 : index
    %c0_1 = arith.constant 0 : index
    %3 = vector.load %arg1[%c0, %c0_1] : memref<128x16xf32, #tpu.memory_space<vmem>>, vector<128x16xf32>
    %c0_2 = arith.constant 0 : index
    %c0_3 = arith.constant 0 : index
    %4 = vector.load %arg6[%c0_2, %c0_3] : memref<1x16xf32, #tpu.memory_space<vmem>>, vector<1x16xf32>
    %cst = arith.constant dense<0.000000e+00> : vector<16xf32>
    %5 = vector.multi_reduction <add>, %3, %cst [0] : vector<128x16xf32> to vector<16xf32>
    %6 = vector.shape_cast %5 : vector<16xf32> to vector<1x16xf32>
    %7 = arith.addf %4, %6 : vector<1x16xf32>
    %c0_4 = arith.constant 0 : index
    %c0_5 = arith.constant 0 : index
    %8 = vector.load %arg6[%c0_4, %c0_5] : memref<1x16xf32, #tpu.memory_space<vmem>>, vector<1x16xf32>
    tpu.vector_store %arg6[%c0_4, %c0_5], %7 {strides = array<i32>} : memref<1x16xf32, #tpu.memory_space<vmem>>, vector<1x16xf32>,
    %c0_6 = arith.constant 0 : index
    %c0_7 = arith.constant 0 : index
    %9 = vector.load %arg7[%c0_6, %c0_7] : memref<1x16xf32, #tpu.memory_space<vmem>>, vector<1x16xf32>
    %10 = arith.mulf %3, %3 : vector<128x16xf32>
    %cst_8 = arith.constant dense<0.000000e+00> : vector<16xf32>
    %11 = vector.multi_reduction <add>, %10, %cst_8 [0] : vector<128x16xf32> to vector<16xf32>
    %12 = vector.shape_cast %11 : vector<16xf32> to vector<1x16xf32>
    %13 = arith.addf %9, %12 : vector<1x16xf32>
    %c0_9 = arith.constant 0 : index
    %c0_10 = arith.constant 0 : index
    %14 = vector.load %arg7[%c0_9, %c0_10] : memref<1x16xf32, #tpu.memory_space<vmem>>, vector<1x16xf32>
    tpu.vector_store %arg7[%c0_9, %c0_10], %13 {strides = array<i32>} : memref<1x16xf32, #tpu.memory_space<vmem>>, vector<1x16xf32>,
    %c0_i32_11 = arith.constant 0 : i32
    %15 = arith.cmpi eq, %arg0, %c0_i32_11 : i32
    %16 = arith.extui %15 : i1 to i32
    %c0_i32_12 = arith.constant 0 : i32
    %17 = arith.cmpi ne, %16, %c0_i32_12 : i32
    scf.if %17 {
      %c0_13 = arith.constant 0 : index
      %c0_14 = arith.constant 0 : index
      %18 = vector.load %arg6[%c0_13, %c0_14] : memref<1x16xf32, #tpu.memory_space<vmem>>, vector<1x16xf32>
      %cst_15 = arith.constant 7.812500e-03 : f32
      %19 = vector.broadcast %cst_15 : f32 to vector<1x16xf32>
      %20 = arith.mulf %18, %19 : vector<1x16xf32>
      %c0_16 = arith.constant 0 : index
      %c0_17 = arith.constant 0 : index
      %21 = vector.load %arg7[%c0_16, %c0_17] : memref<1x16xf32, #tpu.memory_space<vmem>>, vector<1x16xf32>
      %cst_18 = arith.constant 7.812500e-03 : f32
      %22 = vector.broadcast %cst_18 : f32 to vector<1x16xf32>
      %23 = arith.mulf %21, %22 : vector<1x16xf32>
      %24 = arith.mulf %20, %20 : vector<1x16xf32>
      %25 = arith.subf %23, %24 : vector<1x16xf32>
      %cst_19 = arith.constant 0.000000e+00 : f32
      %26 = vector.broadcast %cst_19 : f32 to vector<1x16xf32>
      %27 = arith.maximumf %25, %26 : vector<1x16xf32>
      %c0_20 = arith.constant 0 : index
      %c0_21 = arith.constant 0 : index
      %28 = vector.load %arg2[%c0_20, %c0_21] : memref<1x16xf32, #tpu.memory_space<vmem>>, vector<1x16xf32>
      %cst_22 = arith.constant 9.99999974E-6 : f32
      %29 = vector.broadcast %cst_22 : f32 to vector<1x16xf32>
      %30 = arith.addf %27, %29 : vector<1x16xf32>
      %31 = math.rsqrt %30 : vector<1x16xf32>
      %32 = arith.mulf %28, %31 : vector<1x16xf32>
      %c0_23 = arith.constant 0 : index
      %c0_24 = arith.constant 0 : index
      %33 = vector.load %arg4[%c0_23, %c0_24] : memref<1x16xf32, #tpu.memory_space<vmem>>, vector<1x16xf32>
      tpu.vector_store %arg4[%c0_23, %c0_24], %32 {strides = array<i32>} : memref<1x16xf32, #tpu.memory_space<vmem>>, vector<1x16xf32>,
      %c0_25 = arith.constant 0 : index
      %c0_26 = arith.constant 0 : index
      %34 = vector.load %arg3[%c0_25, %c0_26] : memref<1x16xf32, #tpu.memory_space<vmem>>, vector<1x16xf32>
      %35 = arith.mulf %20, %32 : vector<1x16xf32>
      %36 = arith.subf %34, %35 : vector<1x16xf32>
      %c0_27 = arith.constant 0 : index
      %c0_28 = arith.constant 0 : index
      %37 = vector.load %arg5[%c0_27, %c0_28] : memref<1x16xf32, #tpu.memory_space<vmem>>, vector<1x16xf32>
      tpu.vector_store %arg5[%c0_27, %c0_28], %36 {strides = array<i32>} : memref<1x16xf32, #tpu.memory_space<vmem>>, vector<1x16xf32>,
    } else {
    }
    return
  }
  func.func @transform_0(%arg0: i32) -> (i32, i32) {
    %c0_i32 = arith.constant 0 : i32
    %c0_i32_0 = arith.constant 0 : i32
    return %arg0, %c0_i32 : i32, i32
  }
  func.func @transform_1(%arg0: i32) -> (i32, i32) {
    %c0_i32 = arith.constant 0 : i32
    %c0_i32_0 = arith.constant 0 : i32
    %c0_i32_1 = arith.constant 0 : i32
    return %c0_i32, %c0_i32_0 : i32, i32
  }
  func.func @transform_2(%arg0: i32) -> (i32, i32) {
    %c0_i32 = arith.constant 0 : i32
    %c0_i32_0 = arith.constant 0 : i32
    %c0_i32_1 = arith.constant 0 : i32
    return %c0_i32, %c0_i32_0 : i32, i32
  }
  func.func @transform_3(%arg0: i32) -> (i32, i32) {
    %c0_i32 = arith.constant 0 : i32
    %c0_i32_0 = arith.constant 0 : i32
    %c0_i32_1 = arith.constant 0 : i32
    return %c0_i32, %c0_i32_0 : i32, i32
  }
  func.func @transform_4(%arg0: i32) -> (i32, i32) {
    %c0_i32 = arith.constant 0 : i32
    %c0_i32_0 = arith.constant 0 : i32
    %c0_i32_1 = arith.constant 0 : i32
    return %c0_i32, %c0_i32_0 : i32, i32
  }
}

module attributes {stable_mosaic.version = 11 : i64} {
  func.func @_fused_matmul_kernel(%arg0: i32, %arg1: i32, %arg2: i32, %arg3: i32, %arg4: memref<1x16x256xbf16, #tpu.memory_space<vmem>>, %arg5: memref<1x256x32xbf16, #tpu.memory_space<vmem>>, %arg6: memref<1x16x32xf32, #tpu.memory_space<vmem>>) attributes {dimension_semantics = [#tpu.dimension_semantics<parallel>, #tpu.dimension_semantics<parallel>, #tpu.dimension_semantics<parallel>, #tpu.dimension_semantics<arbitrary>], iteration_bounds = array<i64: 1, 2, 1, 1>, scalar_prefetch = 0 : i64, scratch_operands = 0 : i64, tpu.core_type = #tpu.core_type<tc>, window_params = [{transform_indices = @transform_0, window_bounds = array<i64: 1, 16, 256>}, {transform_indices = @transform_1, window_bounds = array<i64: 1, 256, 32>}, {transform_indices = @transform_2, window_bounds = array<i64: 1, 16, 32>}]} {
    %c0_i32 = arith.constant 0 : i32
    %0 = arith.cmpi eq, %arg3, %c0_i32 : i32
    %1 = arith.extui %0 : i1 to i32
    %c0_i32_0 = arith.constant 0 : i32
    %2 = arith.cmpi ne, %1, %c0_i32_0 : i32
    scf.if %2 {
      %cst_14 = arith.constant 0.000000e+00 : f32
      %19 = vector.broadcast %cst_14 : f32 to vector<1x16x32xf32>
      %c0_15 = arith.constant 0 : index
      %c0_16 = arith.constant 0 : index
      %c0_17 = arith.constant 0 : index
      %20 = vector.load %arg6[%c0_15, %c0_16, %c0_17] : memref<1x16x32xf32, #tpu.memory_space<vmem>>, vector<1x16x32xf32>
      tpu.vector_store %arg6[%c0_15, %c0_16, %c0_17], %19 {strides = array<i32>} : memref<1x16x32xf32, #tpu.memory_space<vmem>>, vector<1x16x32xf32>,
    } else {
    }
    %c0 = arith.constant 0 : index
    %c0_1 = arith.constant 0 : index
    %c0_2 = arith.constant 0 : index
    %3 = vector.load %arg4[%c0, %c0_1, %c0_2] : memref<1x16x256xbf16, #tpu.memory_space<vmem>>, vector<1x16x256xbf16>
    %4 = vector.shape_cast %3 : vector<1x16x256xbf16> to vector<16x256xbf16>
    %cst = arith.constant 0.000000e+00 : bf16
    %5 = vector.broadcast %cst : bf16 to vector<16x256xbf16>
    %6 = arith.cmpf ogt, %4, %5 : vector<16x256xbf16>
    %cst_3 = arith.constant 2.001950e-01 : bf16
    %7 = vector.broadcast %cst_3 : bf16 to vector<16x256xbf16>
    %8 = arith.mulf %4, %7 : vector<16x256xbf16>
    %9 = arith.select %6, %4, %8 : vector<16x256xi1>, vector<16x256xbf16>
    %c0_4 = arith.constant 0 : index
    %c0_5 = arith.constant 0 : index
    %c0_6 = arith.constant 0 : index
    %10 = vector.load %arg6[%c0_4, %c0_5, %c0_6] : memref<1x16x32xf32, #tpu.memory_space<vmem>>, vector<1x16x32xf32>
    %11 = vector.shape_cast %10 : vector<1x16x32xf32> to vector<16x32xf32>
    %c0_7 = arith.constant 0 : index
    %c0_8 = arith.constant 0 : index
    %c0_9 = arith.constant 0 : index
    %12 = vector.load %arg5[%c0_7, %c0_8, %c0_9] : memref<1x256x32xbf16, #tpu.memory_space<vmem>>, vector<1x256x32xbf16>
    %13 = vector.shape_cast %12 : vector<1x256x32xbf16> to vector<256x32xbf16>
    %cst_10 = arith.constant dense<0.000000e+00> : vector<16x32xf32>
    %14 = tpu.matmul %9, %13, %cst_10 {dimension_numbers = #tpu.dot_dimension_numbers<[1], [0], [0], [1], [0, 0, 1, 1], [], []>} : vector<16x256xbf16>, vector<256x32xbf16>, vector<16x32xf32> -> vector<16x32xf32>
    %15 = arith.addf %11, %14 : vector<16x32xf32>
    %c0_11 = arith.constant 0 : index
    %c0_12 = arith.constant 0 : index
    %c0_13 = arith.constant 0 : index
    %16 = vector.load %arg6[%c0_11, %c0_12, %c0_13] : memref<1x16x32xf32, #tpu.memory_space<vmem>>, vector<1x16x32xf32>
    %17 = vector.shape_cast %16 : vector<1x16x32xf32> to vector<16x32xf32>
    %18 = vector.shape_cast %15 : vector<16x32xf32> to vector<1x16x32xf32>
    tpu.vector_store %arg6[%c0_11, %c0_12, %c0_13], %18 {strides = array<i32>} : memref<1x16x32xf32, #tpu.memory_space<vmem>>, vector<1x16x32xf32>,
    return
  }
  func.func @transform_0(%arg0: i32, %arg1: i32, %arg2: i32, %arg3: i32) -> (i32, i32, i32) {
    %c0_i32 = arith.constant 0 : i32
    return %arg0, %arg1, %arg3 : i32, i32, i32
  }
  func.func @transform_1(%arg0: i32, %arg1: i32, %arg2: i32, %arg3: i32) -> (i32, i32, i32) {
    %c0_i32 = arith.constant 0 : i32
    return %arg0, %arg3, %arg2 : i32, i32, i32
  }
  func.func @transform_2(%arg0: i32, %arg1: i32, %arg2: i32, %arg3: i32) -> (i32, i32, i32) {
    %c0_i32 = arith.constant 0 : i32
    return %arg0, %arg1, %arg2 : i32, i32, i32
  }
}

module attributes {stable_mosaic.version = 11 : i64} {
  func.func @_bn_stats_kernel(%arg0: i32, %arg1: memref<32x32xf32, #tpu.memory_space<vmem>>, %arg2: memref<1x32xf32, #tpu.memory_space<vmem>>, %arg3: memref<1x32xf32, #tpu.memory_space<vmem>>, %arg4: memref<1x32xf32, #tpu.memory_space<vmem>>, %arg5: memref<1x32xf32, #tpu.memory_space<vmem>>, %arg6: memref<1x32xf32, #tpu.memory_space<vmem>>, %arg7: memref<1x32xf32, #tpu.memory_space<vmem>>) attributes {dimension_semantics = [#tpu.dimension_semantics<arbitrary>], iteration_bounds = array<i64: 1>, scalar_prefetch = 0 : i64, scratch_operands = 2 : i64, tpu.core_type = #tpu.core_type<tc>, window_params = [{transform_indices = @transform_0, window_bounds = array<i64: 32, 32>}, {pipeline_mode = #tpu.pipeline_mode<synchronous>, transform_indices = @transform_1, window_bounds = array<i64: 1, 32>}, {pipeline_mode = #tpu.pipeline_mode<synchronous>, transform_indices = @transform_2, window_bounds = array<i64: 1, 32>}, {pipeline_mode = #tpu.pipeline_mode<synchronous>, transform_indices = @transform_3, window_bounds = array<i64: 1, 32>}, {pipeline_mode = #tpu.pipeline_mode<synchronous>, transform_indices = @transform_4, window_bounds = array<i64: 1, 32>}]} {
    %c0_i32 = arith.constant 0 : i32
    %0 = arith.cmpi eq, %arg0, %c0_i32 : i32
    %1 = arith.extui %0 : i1 to i32
    %c0_i32_0 = arith.constant 0 : i32
    %2 = arith.cmpi ne, %1, %c0_i32_0 : i32
    scf.if %2 {
      %cst_13 = arith.constant 0.000000e+00 : f32
      %18 = vector.broadcast %cst_13 : f32 to vector<1x32xf32>
      %c0_14 = arith.constant 0 : index
      %c0_15 = arith.constant 0 : index
      %19 = vector.load %arg6[%c0_14, %c0_15] : memref<1x32xf32, #tpu.memory_space<vmem>>, vector<1x32xf32>
      tpu.vector_store %arg6[%c0_14, %c0_15], %18 {strides = array<i32>} : memref<1x32xf32, #tpu.memory_space<vmem>>, vector<1x32xf32>,
      %cst_16 = arith.constant 0.000000e+00 : f32
      %20 = vector.broadcast %cst_16 : f32 to vector<1x32xf32>
      %c0_17 = arith.constant 0 : index
      %c0_18 = arith.constant 0 : index
      %21 = vector.load %arg7[%c0_17, %c0_18] : memref<1x32xf32, #tpu.memory_space<vmem>>, vector<1x32xf32>
      tpu.vector_store %arg7[%c0_17, %c0_18], %20 {strides = array<i32>} : memref<1x32xf32, #tpu.memory_space<vmem>>, vector<1x32xf32>,
    } else {
    }
    %c0 = arith.constant 0 : index
    %c0_1 = arith.constant 0 : index
    %3 = vector.load %arg1[%c0, %c0_1] : memref<32x32xf32, #tpu.memory_space<vmem>>, vector<32x32xf32>
    %c0_2 = arith.constant 0 : index
    %c0_3 = arith.constant 0 : index
    %4 = vector.load %arg6[%c0_2, %c0_3] : memref<1x32xf32, #tpu.memory_space<vmem>>, vector<1x32xf32>
    %cst = arith.constant dense<0.000000e+00> : vector<32xf32>
    %5 = vector.multi_reduction <add>, %3, %cst [0] : vector<32x32xf32> to vector<32xf32>
    %6 = vector.shape_cast %5 : vector<32xf32> to vector<1x32xf32>
    %7 = arith.addf %4, %6 : vector<1x32xf32>
    %c0_4 = arith.constant 0 : index
    %c0_5 = arith.constant 0 : index
    %8 = vector.load %arg6[%c0_4, %c0_5] : memref<1x32xf32, #tpu.memory_space<vmem>>, vector<1x32xf32>
    tpu.vector_store %arg6[%c0_4, %c0_5], %7 {strides = array<i32>} : memref<1x32xf32, #tpu.memory_space<vmem>>, vector<1x32xf32>,
    %c0_6 = arith.constant 0 : index
    %c0_7 = arith.constant 0 : index
    %9 = vector.load %arg7[%c0_6, %c0_7] : memref<1x32xf32, #tpu.memory_space<vmem>>, vector<1x32xf32>
    %10 = arith.mulf %3, %3 : vector<32x32xf32>
    %cst_8 = arith.constant dense<0.000000e+00> : vector<32xf32>
    %11 = vector.multi_reduction <add>, %10, %cst_8 [0] : vector<32x32xf32> to vector<32xf32>
    %12 = vector.shape_cast %11 : vector<32xf32> to vector<1x32xf32>
    %13 = arith.addf %9, %12 : vector<1x32xf32>
    %c0_9 = arith.constant 0 : index
    %c0_10 = arith.constant 0 : index
    %14 = vector.load %arg7[%c0_9, %c0_10] : memref<1x32xf32, #tpu.memory_space<vmem>>, vector<1x32xf32>
    tpu.vector_store %arg7[%c0_9, %c0_10], %13 {strides = array<i32>} : memref<1x32xf32, #tpu.memory_space<vmem>>, vector<1x32xf32>,
    %c0_i32_11 = arith.constant 0 : i32
    %15 = arith.cmpi eq, %arg0, %c0_i32_11 : i32
    %16 = arith.extui %15 : i1 to i32
    %c0_i32_12 = arith.constant 0 : i32
    %17 = arith.cmpi ne, %16, %c0_i32_12 : i32
    scf.if %17 {
      %c0_13 = arith.constant 0 : index
      %c0_14 = arith.constant 0 : index
      %18 = vector.load %arg6[%c0_13, %c0_14] : memref<1x32xf32, #tpu.memory_space<vmem>>, vector<1x32xf32>
      %cst_15 = arith.constant 3.125000e-02 : f32
      %19 = vector.broadcast %cst_15 : f32 to vector<1x32xf32>
      %20 = arith.mulf %18, %19 : vector<1x32xf32>
      %c0_16 = arith.constant 0 : index
      %c0_17 = arith.constant 0 : index
      %21 = vector.load %arg7[%c0_16, %c0_17] : memref<1x32xf32, #tpu.memory_space<vmem>>, vector<1x32xf32>
      %cst_18 = arith.constant 3.125000e-02 : f32
      %22 = vector.broadcast %cst_18 : f32 to vector<1x32xf32>
      %23 = arith.mulf %21, %22 : vector<1x32xf32>
      %24 = arith.mulf %20, %20 : vector<1x32xf32>
      %25 = arith.subf %23, %24 : vector<1x32xf32>
      %cst_19 = arith.constant 0.000000e+00 : f32
      %26 = vector.broadcast %cst_19 : f32 to vector<1x32xf32>
      %27 = arith.maximumf %25, %26 : vector<1x32xf32>
      %c0_20 = arith.constant 0 : index
      %c0_21 = arith.constant 0 : index
      %28 = vector.load %arg2[%c0_20, %c0_21] : memref<1x32xf32, #tpu.memory_space<vmem>>, vector<1x32xf32>
      %cst_22 = arith.constant 9.99999974E-6 : f32
      %29 = vector.broadcast %cst_22 : f32 to vector<1x32xf32>
      %30 = arith.addf %27, %29 : vector<1x32xf32>
      %31 = math.rsqrt %30 : vector<1x32xf32>
      %32 = arith.mulf %28, %31 : vector<1x32xf32>
      %c0_23 = arith.constant 0 : index
      %c0_24 = arith.constant 0 : index
      %33 = vector.load %arg4[%c0_23, %c0_24] : memref<1x32xf32, #tpu.memory_space<vmem>>, vector<1x32xf32>
      tpu.vector_store %arg4[%c0_23, %c0_24], %32 {strides = array<i32>} : memref<1x32xf32, #tpu.memory_space<vmem>>, vector<1x32xf32>,
      %c0_25 = arith.constant 0 : index
      %c0_26 = arith.constant 0 : index
      %34 = vector.load %arg3[%c0_25, %c0_26] : memref<1x32xf32, #tpu.memory_space<vmem>>, vector<1x32xf32>
      %35 = arith.mulf %20, %32 : vector<1x32xf32>
      %36 = arith.subf %34, %35 : vector<1x32xf32>
      %c0_27 = arith.constant 0 : index
      %c0_28 = arith.constant 0 : index
      %37 = vector.load %arg5[%c0_27, %c0_28] : memref<1x32xf32, #tpu.memory_space<vmem>>, vector<1x32xf32>
      tpu.vector_store %arg5[%c0_27, %c0_28], %36 {strides = array<i32>} : memref<1x32xf32, #tpu.memory_space<vmem>>, vector<1x32xf32>,
    } else {
    }
    return
  }
  func.func @transform_0(%arg0: i32) -> (i32, i32) {
    %c0_i32 = arith.constant 0 : i32
    %c0_i32_0 = arith.constant 0 : i32
    return %arg0, %c0_i32 : i32, i32
  }
  func.func @transform_1(%arg0: i32) -> (i32, i32) {
    %c0_i32 = arith.constant 0 : i32
    %c0_i32_0 = arith.constant 0 : i32
    %c0_i32_1 = arith.constant 0 : i32
    return %c0_i32, %c0_i32_0 : i32, i32
  }
  func.func @transform_2(%arg0: i32) -> (i32, i32) {
    %c0_i32 = arith.constant 0 : i32
    %c0_i32_0 = arith.constant 0 : i32
    %c0_i32_1 = arith.constant 0 : i32
    return %c0_i32, %c0_i32_0 : i32, i32
  }
  func.func @transform_3(%arg0: i32) -> (i32, i32) {
    %c0_i32 = arith.constant 0 : i32
    %c0_i32_0 = arith.constant 0 : i32
    %c0_i32_1 = arith.constant 0 : i32
    return %c0_i32, %c0_i32_0 : i32, i32
  }
  func.func @transform_4(%arg0: i32) -> (i32, i32) {
    %c0_i32 = arith.constant 0 : i32
    %c0_i32_0 = arith.constant 0 : i32
    %c0_i32_1 = arith.constant 0 : i32
    return %c0_i32, %c0_i32_0 : i32, i32
  }
}

module attributes {stable_mosaic.version = 11 : i64} {
  func.func @_fused_matmul_kernel(%arg0: i32, %arg1: i32, %arg2: i32, %arg3: i32, %arg4: memref<1x8x512xbf16, #tpu.memory_space<vmem>>, %arg5: memref<1x512x64xbf16, #tpu.memory_space<vmem>>, %arg6: memref<1x8x64xf32, #tpu.memory_space<vmem>>) attributes {dimension_semantics = [#tpu.dimension_semantics<parallel>, #tpu.dimension_semantics<parallel>, #tpu.dimension_semantics<parallel>, #tpu.dimension_semantics<arbitrary>], iteration_bounds = array<i64: 1, 1, 1, 1>, scalar_prefetch = 0 : i64, scratch_operands = 0 : i64, tpu.core_type = #tpu.core_type<tc>, window_params = [{transform_indices = @transform_0, window_bounds = array<i64: 1, 8, 512>}, {transform_indices = @transform_1, window_bounds = array<i64: 1, 512, 64>}, {transform_indices = @transform_2, window_bounds = array<i64: 1, 8, 64>}]} {
    %c0_i32 = arith.constant 0 : i32
    %0 = arith.cmpi eq, %arg3, %c0_i32 : i32
    %1 = arith.extui %0 : i1 to i32
    %c0_i32_0 = arith.constant 0 : i32
    %2 = arith.cmpi ne, %1, %c0_i32_0 : i32
    scf.if %2 {
      %cst_14 = arith.constant 0.000000e+00 : f32
      %19 = vector.broadcast %cst_14 : f32 to vector<1x8x64xf32>
      %c0_15 = arith.constant 0 : index
      %c0_16 = arith.constant 0 : index
      %c0_17 = arith.constant 0 : index
      %20 = vector.load %arg6[%c0_15, %c0_16, %c0_17] : memref<1x8x64xf32, #tpu.memory_space<vmem>>, vector<1x8x64xf32>
      tpu.vector_store %arg6[%c0_15, %c0_16, %c0_17], %19 {strides = array<i32>} : memref<1x8x64xf32, #tpu.memory_space<vmem>>, vector<1x8x64xf32>,
    } else {
    }
    %c0 = arith.constant 0 : index
    %c0_1 = arith.constant 0 : index
    %c0_2 = arith.constant 0 : index
    %3 = vector.load %arg4[%c0, %c0_1, %c0_2] : memref<1x8x512xbf16, #tpu.memory_space<vmem>>, vector<1x8x512xbf16>
    %4 = vector.shape_cast %3 : vector<1x8x512xbf16> to vector<8x512xbf16>
    %cst = arith.constant 0.000000e+00 : bf16
    %5 = vector.broadcast %cst : bf16 to vector<8x512xbf16>
    %6 = arith.cmpf ogt, %4, %5 : vector<8x512xbf16>
    %cst_3 = arith.constant 2.001950e-01 : bf16
    %7 = vector.broadcast %cst_3 : bf16 to vector<8x512xbf16>
    %8 = arith.mulf %4, %7 : vector<8x512xbf16>
    %9 = arith.select %6, %4, %8 : vector<8x512xi1>, vector<8x512xbf16>
    %c0_4 = arith.constant 0 : index
    %c0_5 = arith.constant 0 : index
    %c0_6 = arith.constant 0 : index
    %10 = vector.load %arg6[%c0_4, %c0_5, %c0_6] : memref<1x8x64xf32, #tpu.memory_space<vmem>>, vector<1x8x64xf32>
    %11 = vector.shape_cast %10 : vector<1x8x64xf32> to vector<8x64xf32>
    %c0_7 = arith.constant 0 : index
    %c0_8 = arith.constant 0 : index
    %c0_9 = arith.constant 0 : index
    %12 = vector.load %arg5[%c0_7, %c0_8, %c0_9] : memref<1x512x64xbf16, #tpu.memory_space<vmem>>, vector<1x512x64xbf16>
    %13 = vector.shape_cast %12 : vector<1x512x64xbf16> to vector<512x64xbf16>
    %cst_10 = arith.constant dense<0.000000e+00> : vector<8x64xf32>
    %14 = tpu.matmul %9, %13, %cst_10 {dimension_numbers = #tpu.dot_dimension_numbers<[1], [0], [0], [1], [0, 0, 1, 1], [], []>} : vector<8x512xbf16>, vector<512x64xbf16>, vector<8x64xf32> -> vector<8x64xf32>
    %15 = arith.addf %11, %14 : vector<8x64xf32>
    %c0_11 = arith.constant 0 : index
    %c0_12 = arith.constant 0 : index
    %c0_13 = arith.constant 0 : index
    %16 = vector.load %arg6[%c0_11, %c0_12, %c0_13] : memref<1x8x64xf32, #tpu.memory_space<vmem>>, vector<1x8x64xf32>
    %17 = vector.shape_cast %16 : vector<1x8x64xf32> to vector<8x64xf32>
    %18 = vector.shape_cast %15 : vector<8x64xf32> to vector<1x8x64xf32>
    tpu.vector_store %arg6[%c0_11, %c0_12, %c0_13], %18 {strides = array<i32>} : memref<1x8x64xf32, #tpu.memory_space<vmem>>, vector<1x8x64xf32>,
    return
  }
  func.func @transform_0(%arg0: i32, %arg1: i32, %arg2: i32, %arg3: i32) -> (i32, i32, i32) {
    %c0_i32 = arith.constant 0 : i32
    return %arg0, %arg1, %arg3 : i32, i32, i32
  }
  func.func @transform_1(%arg0: i32, %arg1: i32, %arg2: i32, %arg3: i32) -> (i32, i32, i32) {
    %c0_i32 = arith.constant 0 : i32
    return %arg0, %arg3, %arg2 : i32, i32, i32
  }
  func.func @transform_2(%arg0: i32, %arg1: i32, %arg2: i32, %arg3: i32) -> (i32, i32, i32) {
    %c0_i32 = arith.constant 0 : i32
    return %arg0, %arg1, %arg2 : i32, i32, i32
  }
}

module attributes {stable_mosaic.version = 11 : i64} {
  func.func @_bn_stats_kernel(%arg0: i32, %arg1: memref<8x64xf32, #tpu.memory_space<vmem>>, %arg2: memref<1x64xf32, #tpu.memory_space<vmem>>, %arg3: memref<1x64xf32, #tpu.memory_space<vmem>>, %arg4: memref<1x64xf32, #tpu.memory_space<vmem>>, %arg5: memref<1x64xf32, #tpu.memory_space<vmem>>, %arg6: memref<1x64xf32, #tpu.memory_space<vmem>>, %arg7: memref<1x64xf32, #tpu.memory_space<vmem>>) attributes {dimension_semantics = [#tpu.dimension_semantics<arbitrary>], iteration_bounds = array<i64: 1>, scalar_prefetch = 0 : i64, scratch_operands = 2 : i64, tpu.core_type = #tpu.core_type<tc>, window_params = [{transform_indices = @transform_0, window_bounds = array<i64: 8, 64>}, {pipeline_mode = #tpu.pipeline_mode<synchronous>, transform_indices = @transform_1, window_bounds = array<i64: 1, 64>}, {pipeline_mode = #tpu.pipeline_mode<synchronous>, transform_indices = @transform_2, window_bounds = array<i64: 1, 64>}, {pipeline_mode = #tpu.pipeline_mode<synchronous>, transform_indices = @transform_3, window_bounds = array<i64: 1, 64>}, {pipeline_mode = #tpu.pipeline_mode<synchronous>, transform_indices = @transform_4, window_bounds = array<i64: 1, 64>}]} {
    %c0_i32 = arith.constant 0 : i32
    %0 = arith.cmpi eq, %arg0, %c0_i32 : i32
    %1 = arith.extui %0 : i1 to i32
    %c0_i32_0 = arith.constant 0 : i32
    %2 = arith.cmpi ne, %1, %c0_i32_0 : i32
    scf.if %2 {
      %cst_13 = arith.constant 0.000000e+00 : f32
      %18 = vector.broadcast %cst_13 : f32 to vector<1x64xf32>
      %c0_14 = arith.constant 0 : index
      %c0_15 = arith.constant 0 : index
      %19 = vector.load %arg6[%c0_14, %c0_15] : memref<1x64xf32, #tpu.memory_space<vmem>>, vector<1x64xf32>
      tpu.vector_store %arg6[%c0_14, %c0_15], %18 {strides = array<i32>} : memref<1x64xf32, #tpu.memory_space<vmem>>, vector<1x64xf32>,
      %cst_16 = arith.constant 0.000000e+00 : f32
      %20 = vector.broadcast %cst_16 : f32 to vector<1x64xf32>
      %c0_17 = arith.constant 0 : index
      %c0_18 = arith.constant 0 : index
      %21 = vector.load %arg7[%c0_17, %c0_18] : memref<1x64xf32, #tpu.memory_space<vmem>>, vector<1x64xf32>
      tpu.vector_store %arg7[%c0_17, %c0_18], %20 {strides = array<i32>} : memref<1x64xf32, #tpu.memory_space<vmem>>, vector<1x64xf32>,
    } else {
    }
    %c0 = arith.constant 0 : index
    %c0_1 = arith.constant 0 : index
    %3 = vector.load %arg1[%c0, %c0_1] : memref<8x64xf32, #tpu.memory_space<vmem>>, vector<8x64xf32>
    %c0_2 = arith.constant 0 : index
    %c0_3 = arith.constant 0 : index
    %4 = vector.load %arg6[%c0_2, %c0_3] : memref<1x64xf32, #tpu.memory_space<vmem>>, vector<1x64xf32>
    %cst = arith.constant dense<0.000000e+00> : vector<64xf32>
    %5 = vector.multi_reduction <add>, %3, %cst [0] : vector<8x64xf32> to vector<64xf32>
    %6 = vector.shape_cast %5 : vector<64xf32> to vector<1x64xf32>
    %7 = arith.addf %4, %6 : vector<1x64xf32>
    %c0_4 = arith.constant 0 : index
    %c0_5 = arith.constant 0 : index
    %8 = vector.load %arg6[%c0_4, %c0_5] : memref<1x64xf32, #tpu.memory_space<vmem>>, vector<1x64xf32>
    tpu.vector_store %arg6[%c0_4, %c0_5], %7 {strides = array<i32>} : memref<1x64xf32, #tpu.memory_space<vmem>>, vector<1x64xf32>,
    %c0_6 = arith.constant 0 : index
    %c0_7 = arith.constant 0 : index
    %9 = vector.load %arg7[%c0_6, %c0_7] : memref<1x64xf32, #tpu.memory_space<vmem>>, vector<1x64xf32>
    %10 = arith.mulf %3, %3 : vector<8x64xf32>
    %cst_8 = arith.constant dense<0.000000e+00> : vector<64xf32>
    %11 = vector.multi_reduction <add>, %10, %cst_8 [0] : vector<8x64xf32> to vector<64xf32>
    %12 = vector.shape_cast %11 : vector<64xf32> to vector<1x64xf32>
    %13 = arith.addf %9, %12 : vector<1x64xf32>
    %c0_9 = arith.constant 0 : index
    %c0_10 = arith.constant 0 : index
    %14 = vector.load %arg7[%c0_9, %c0_10] : memref<1x64xf32, #tpu.memory_space<vmem>>, vector<1x64xf32>
    tpu.vector_store %arg7[%c0_9, %c0_10], %13 {strides = array<i32>} : memref<1x64xf32, #tpu.memory_space<vmem>>, vector<1x64xf32>,
    %c0_i32_11 = arith.constant 0 : i32
    %15 = arith.cmpi eq, %arg0, %c0_i32_11 : i32
    %16 = arith.extui %15 : i1 to i32
    %c0_i32_12 = arith.constant 0 : i32
    %17 = arith.cmpi ne, %16, %c0_i32_12 : i32
    scf.if %17 {
      %c0_13 = arith.constant 0 : index
      %c0_14 = arith.constant 0 : index
      %18 = vector.load %arg6[%c0_13, %c0_14] : memref<1x64xf32, #tpu.memory_space<vmem>>, vector<1x64xf32>
      %cst_15 = arith.constant 1.250000e-01 : f32
      %19 = vector.broadcast %cst_15 : f32 to vector<1x64xf32>
      %20 = arith.mulf %18, %19 : vector<1x64xf32>
      %c0_16 = arith.constant 0 : index
      %c0_17 = arith.constant 0 : index
      %21 = vector.load %arg7[%c0_16, %c0_17] : memref<1x64xf32, #tpu.memory_space<vmem>>, vector<1x64xf32>
      %cst_18 = arith.constant 1.250000e-01 : f32
      %22 = vector.broadcast %cst_18 : f32 to vector<1x64xf32>
      %23 = arith.mulf %21, %22 : vector<1x64xf32>
      %24 = arith.mulf %20, %20 : vector<1x64xf32>
      %25 = arith.subf %23, %24 : vector<1x64xf32>
      %cst_19 = arith.constant 0.000000e+00 : f32
      %26 = vector.broadcast %cst_19 : f32 to vector<1x64xf32>
      %27 = arith.maximumf %25, %26 : vector<1x64xf32>
      %c0_20 = arith.constant 0 : index
      %c0_21 = arith.constant 0 : index
      %28 = vector.load %arg2[%c0_20, %c0_21] : memref<1x64xf32, #tpu.memory_space<vmem>>, vector<1x64xf32>
      %cst_22 = arith.constant 9.99999974E-6 : f32
      %29 = vector.broadcast %cst_22 : f32 to vector<1x64xf32>
      %30 = arith.addf %27, %29 : vector<1x64xf32>
      %31 = math.rsqrt %30 : vector<1x64xf32>
      %32 = arith.mulf %28, %31 : vector<1x64xf32>
      %c0_23 = arith.constant 0 : index
      %c0_24 = arith.constant 0 : index
      %33 = vector.load %arg4[%c0_23, %c0_24] : memref<1x64xf32, #tpu.memory_space<vmem>>, vector<1x64xf32>
      tpu.vector_store %arg4[%c0_23, %c0_24], %32 {strides = array<i32>} : memref<1x64xf32, #tpu.memory_space<vmem>>, vector<1x64xf32>,
      %c0_25 = arith.constant 0 : index
      %c0_26 = arith.constant 0 : index
      %34 = vector.load %arg3[%c0_25, %c0_26] : memref<1x64xf32, #tpu.memory_space<vmem>>, vector<1x64xf32>
      %35 = arith.mulf %20, %32 : vector<1x64xf32>
      %36 = arith.subf %34, %35 : vector<1x64xf32>
      %c0_27 = arith.constant 0 : index
      %c0_28 = arith.constant 0 : index
      %37 = vector.load %arg5[%c0_27, %c0_28] : memref<1x64xf32, #tpu.memory_space<vmem>>, vector<1x64xf32>
      tpu.vector_store %arg5[%c0_27, %c0_28], %36 {strides = array<i32>} : memref<1x64xf32, #tpu.memory_space<vmem>>, vector<1x64xf32>,
    } else {
    }
    return
  }
  func.func @transform_0(%arg0: i32) -> (i32, i32) {
    %c0_i32 = arith.constant 0 : i32
    %c0_i32_0 = arith.constant 0 : i32
    return %arg0, %c0_i32 : i32, i32
  }
  func.func @transform_1(%arg0: i32) -> (i32, i32) {
    %c0_i32 = arith.constant 0 : i32
    %c0_i32_0 = arith.constant 0 : i32
    %c0_i32_1 = arith.constant 0 : i32
    return %c0_i32, %c0_i32_0 : i32, i32
  }
  func.func @transform_2(%arg0: i32) -> (i32, i32) {
    %c0_i32 = arith.constant 0 : i32
    %c0_i32_0 = arith.constant 0 : i32
    %c0_i32_1 = arith.constant 0 : i32
    return %c0_i32, %c0_i32_0 : i32, i32
  }
  func.func @transform_3(%arg0: i32) -> (i32, i32) {
    %c0_i32 = arith.constant 0 : i32
    %c0_i32_0 = arith.constant 0 : i32
    %c0_i32_1 = arith.constant 0 : i32
    return %c0_i32, %c0_i32_0 : i32, i32
  }
  func.func @transform_4(%arg0: i32) -> (i32, i32) {
    %c0_i32 = arith.constant 0 : i32
    %c0_i32_0 = arith.constant 0 : i32
    %c0_i32_1 = arith.constant 0 : i32
    return %c0_i32, %c0_i32_0 : i32, i32
  }
}

module attributes {stable_mosaic.version = 11 : i64} {
  func.func @_fused_matmul_kernel(%arg0: i32, %arg1: i32, %arg2: i32, %arg3: i32, %arg4: memref<1x8x512xbf16, #tpu.memory_space<vmem>>, %arg5: memref<1x512x64xbf16, #tpu.memory_space<vmem>>, %arg6: memref<1x8x64xf32, #tpu.memory_space<vmem>>) attributes {dimension_semantics = [#tpu.dimension_semantics<parallel>, #tpu.dimension_semantics<parallel>, #tpu.dimension_semantics<parallel>, #tpu.dimension_semantics<arbitrary>], iteration_bounds = array<i64: 1, 1, 1, 2>, scalar_prefetch = 0 : i64, scratch_operands = 0 : i64, tpu.core_type = #tpu.core_type<tc>, window_params = [{transform_indices = @transform_0, window_bounds = array<i64: 1, 8, 512>}, {transform_indices = @transform_1, window_bounds = array<i64: 1, 512, 64>}, {transform_indices = @transform_2, window_bounds = array<i64: 1, 8, 64>}]} {
    %c0_i32 = arith.constant 0 : i32
    %0 = arith.cmpi eq, %arg3, %c0_i32 : i32
    %1 = arith.extui %0 : i1 to i32
    %c0_i32_0 = arith.constant 0 : i32
    %2 = arith.cmpi ne, %1, %c0_i32_0 : i32
    scf.if %2 {
      %cst_14 = arith.constant 0.000000e+00 : f32
      %19 = vector.broadcast %cst_14 : f32 to vector<1x8x64xf32>
      %c0_15 = arith.constant 0 : index
      %c0_16 = arith.constant 0 : index
      %c0_17 = arith.constant 0 : index
      %20 = vector.load %arg6[%c0_15, %c0_16, %c0_17] : memref<1x8x64xf32, #tpu.memory_space<vmem>>, vector<1x8x64xf32>
      tpu.vector_store %arg6[%c0_15, %c0_16, %c0_17], %19 {strides = array<i32>} : memref<1x8x64xf32, #tpu.memory_space<vmem>>, vector<1x8x64xf32>,
    } else {
    }
    %c0 = arith.constant 0 : index
    %c0_1 = arith.constant 0 : index
    %c0_2 = arith.constant 0 : index
    %3 = vector.load %arg4[%c0, %c0_1, %c0_2] : memref<1x8x512xbf16, #tpu.memory_space<vmem>>, vector<1x8x512xbf16>
    %4 = vector.shape_cast %3 : vector<1x8x512xbf16> to vector<8x512xbf16>
    %cst = arith.constant 0.000000e+00 : bf16
    %5 = vector.broadcast %cst : bf16 to vector<8x512xbf16>
    %6 = arith.cmpf ogt, %4, %5 : vector<8x512xbf16>
    %cst_3 = arith.constant 2.001950e-01 : bf16
    %7 = vector.broadcast %cst_3 : bf16 to vector<8x512xbf16>
    %8 = arith.mulf %4, %7 : vector<8x512xbf16>
    %9 = arith.select %6, %4, %8 : vector<8x512xi1>, vector<8x512xbf16>
    %c0_4 = arith.constant 0 : index
    %c0_5 = arith.constant 0 : index
    %c0_6 = arith.constant 0 : index
    %10 = vector.load %arg6[%c0_4, %c0_5, %c0_6] : memref<1x8x64xf32, #tpu.memory_space<vmem>>, vector<1x8x64xf32>
    %11 = vector.shape_cast %10 : vector<1x8x64xf32> to vector<8x64xf32>
    %c0_7 = arith.constant 0 : index
    %c0_8 = arith.constant 0 : index
    %c0_9 = arith.constant 0 : index
    %12 = vector.load %arg5[%c0_7, %c0_8, %c0_9] : memref<1x512x64xbf16, #tpu.memory_space<vmem>>, vector<1x512x64xbf16>
    %13 = vector.shape_cast %12 : vector<1x512x64xbf16> to vector<512x64xbf16>
    %cst_10 = arith.constant dense<0.000000e+00> : vector<8x64xf32>
    %14 = tpu.matmul %9, %13, %cst_10 {dimension_numbers = #tpu.dot_dimension_numbers<[1], [0], [0], [1], [0, 0, 1, 1], [], []>} : vector<8x512xbf16>, vector<512x64xbf16>, vector<8x64xf32> -> vector<8x64xf32>
    %15 = arith.addf %11, %14 : vector<8x64xf32>
    %c0_11 = arith.constant 0 : index
    %c0_12 = arith.constant 0 : index
    %c0_13 = arith.constant 0 : index
    %16 = vector.load %arg6[%c0_11, %c0_12, %c0_13] : memref<1x8x64xf32, #tpu.memory_space<vmem>>, vector<1x8x64xf32>
    %17 = vector.shape_cast %16 : vector<1x8x64xf32> to vector<8x64xf32>
    %18 = vector.shape_cast %15 : vector<8x64xf32> to vector<1x8x64xf32>
    tpu.vector_store %arg6[%c0_11, %c0_12, %c0_13], %18 {strides = array<i32>} : memref<1x8x64xf32, #tpu.memory_space<vmem>>, vector<1x8x64xf32>,
    return
  }
  func.func @transform_0(%arg0: i32, %arg1: i32, %arg2: i32, %arg3: i32) -> (i32, i32, i32) {
    %c0_i32 = arith.constant 0 : i32
    return %arg0, %arg1, %arg3 : i32, i32, i32
  }
  func.func @transform_1(%arg0: i32, %arg1: i32, %arg2: i32, %arg3: i32) -> (i32, i32, i32) {
    %c0_i32 = arith.constant 0 : i32
    return %arg0, %arg3, %arg2 : i32, i32, i32
  }
  func.func @transform_2(%arg0: i32, %arg1: i32, %arg2: i32, %arg3: i32) -> (i32, i32, i32) {
    %c0_i32 = arith.constant 0 : i32
    return %arg0, %arg1, %arg2 : i32, i32, i32
  }
}

module attributes {stable_mosaic.version = 11 : i64} {
  func.func @_fused_matmul_kernel(%arg0: i32, %arg1: i32, %arg2: i32, %arg3: i32, %arg4: memref<1x8x256xbf16, #tpu.memory_space<vmem>>, %arg5: memref<1x256x64xbf16, #tpu.memory_space<vmem>>, %arg6: memref<1x8x64xf32, #tpu.memory_space<vmem>>) attributes {dimension_semantics = [#tpu.dimension_semantics<parallel>, #tpu.dimension_semantics<parallel>, #tpu.dimension_semantics<parallel>, #tpu.dimension_semantics<arbitrary>], iteration_bounds = array<i64: 4, 1, 1, 1>, scalar_prefetch = 0 : i64, scratch_operands = 0 : i64, tpu.core_type = #tpu.core_type<tc>, window_params = [{transform_indices = @transform_0, window_bounds = array<i64: 1, 8, 256>}, {transform_indices = @transform_1, window_bounds = array<i64: 1, 256, 64>}, {transform_indices = @transform_2, window_bounds = array<i64: 1, 8, 64>}]} {
    %c0_i32 = arith.constant 0 : i32
    %0 = arith.cmpi eq, %arg3, %c0_i32 : i32
    %1 = arith.extui %0 : i1 to i32
    %c0_i32_0 = arith.constant 0 : i32
    %2 = arith.cmpi ne, %1, %c0_i32_0 : i32
    scf.if %2 {
      %cst_13 = arith.constant 0.000000e+00 : f32
      %16 = vector.broadcast %cst_13 : f32 to vector<1x8x64xf32>
      %c0_14 = arith.constant 0 : index
      %c0_15 = arith.constant 0 : index
      %c0_16 = arith.constant 0 : index
      %17 = vector.load %arg6[%c0_14, %c0_15, %c0_16] : memref<1x8x64xf32, #tpu.memory_space<vmem>>, vector<1x8x64xf32>
      tpu.vector_store %arg6[%c0_14, %c0_15, %c0_16], %16 {strides = array<i32>} : memref<1x8x64xf32, #tpu.memory_space<vmem>>, vector<1x8x64xf32>,
    } else {
    }
    %c0 = arith.constant 0 : index
    %c0_1 = arith.constant 0 : index
    %c0_2 = arith.constant 0 : index
    %3 = vector.load %arg4[%c0, %c0_1, %c0_2] : memref<1x8x256xbf16, #tpu.memory_space<vmem>>, vector<1x8x256xbf16>
    %4 = vector.shape_cast %3 : vector<1x8x256xbf16> to vector<8x256xbf16>
    %cst = arith.constant 0.000000e+00 : bf16
    %5 = vector.broadcast %cst : bf16 to vector<8x256xbf16>
    %6 = arith.maximumf %4, %5 : vector<8x256xbf16>
    %c0_3 = arith.constant 0 : index
    %c0_4 = arith.constant 0 : index
    %c0_5 = arith.constant 0 : index
    %7 = vector.load %arg6[%c0_3, %c0_4, %c0_5] : memref<1x8x64xf32, #tpu.memory_space<vmem>>, vector<1x8x64xf32>
    %8 = vector.shape_cast %7 : vector<1x8x64xf32> to vector<8x64xf32>
    %c0_6 = arith.constant 0 : index
    %c0_7 = arith.constant 0 : index
    %c0_8 = arith.constant 0 : index
    %9 = vector.load %arg5[%c0_6, %c0_7, %c0_8] : memref<1x256x64xbf16, #tpu.memory_space<vmem>>, vector<1x256x64xbf16>
    %10 = vector.shape_cast %9 : vector<1x256x64xbf16> to vector<256x64xbf16>
    %cst_9 = arith.constant dense<0.000000e+00> : vector<8x64xf32>
    %11 = tpu.matmul %6, %10, %cst_9 {dimension_numbers = #tpu.dot_dimension_numbers<[1], [0], [0], [1], [0, 0, 1, 1], [], []>} : vector<8x256xbf16>, vector<256x64xbf16>, vector<8x64xf32> -> vector<8x64xf32>
    %12 = arith.addf %8, %11 : vector<8x64xf32>
    %c0_10 = arith.constant 0 : index
    %c0_11 = arith.constant 0 : index
    %c0_12 = arith.constant 0 : index
    %13 = vector.load %arg6[%c0_10, %c0_11, %c0_12] : memref<1x8x64xf32, #tpu.memory_space<vmem>>, vector<1x8x64xf32>
    %14 = vector.shape_cast %13 : vector<1x8x64xf32> to vector<8x64xf32>
    %15 = vector.shape_cast %12 : vector<8x64xf32> to vector<1x8x64xf32>
    tpu.vector_store %arg6[%c0_10, %c0_11, %c0_12], %15 {strides = array<i32>} : memref<1x8x64xf32, #tpu.memory_space<vmem>>, vector<1x8x64xf32>,
    return
  }
  func.func @transform_0(%arg0: i32, %arg1: i32, %arg2: i32, %arg3: i32) -> (i32, i32, i32) {
    %c0_i32 = arith.constant 0 : i32
    return %arg0, %arg1, %arg3 : i32, i32, i32
  }
  func.func @transform_1(%arg0: i32, %arg1: i32, %arg2: i32, %arg3: i32) -> (i32, i32, i32) {
    %c0_i32 = arith.constant 0 : i32
    return %arg0, %arg3, %arg2 : i32, i32, i32
  }
  func.func @transform_2(%arg0: i32, %arg1: i32, %arg2: i32, %arg3: i32) -> (i32, i32, i32) {
    %c0_i32 = arith.constant 0 : i32
    return %arg0, %arg1, %arg2 : i32, i32, i32
  }
}

module attributes {stable_mosaic.version = 11 : i64} {
  func.func @_fused_matmul_kernel(%arg0: i32, %arg1: i32, %arg2: i32, %arg3: i32, %arg4: memref<1x8x512xbf16, #tpu.memory_space<vmem>>, %arg5: memref<1x512x32xbf16, #tpu.memory_space<vmem>>, %arg6: memref<1x8x32xf32, #tpu.memory_space<vmem>>) attributes {dimension_semantics = [#tpu.dimension_semantics<parallel>, #tpu.dimension_semantics<parallel>, #tpu.dimension_semantics<parallel>, #tpu.dimension_semantics<arbitrary>], iteration_bounds = array<i64: 4, 1, 1, 1>, scalar_prefetch = 0 : i64, scratch_operands = 0 : i64, tpu.core_type = #tpu.core_type<tc>, window_params = [{transform_indices = @transform_0, window_bounds = array<i64: 1, 8, 512>}, {transform_indices = @transform_1, window_bounds = array<i64: 1, 512, 32>}, {transform_indices = @transform_2, window_bounds = array<i64: 1, 8, 32>}]} {
    %c0_i32 = arith.constant 0 : i32
    %0 = arith.cmpi eq, %arg3, %c0_i32 : i32
    %1 = arith.extui %0 : i1 to i32
    %c0_i32_0 = arith.constant 0 : i32
    %2 = arith.cmpi ne, %1, %c0_i32_0 : i32
    scf.if %2 {
      %cst_13 = arith.constant 0.000000e+00 : f32
      %16 = vector.broadcast %cst_13 : f32 to vector<1x8x32xf32>
      %c0_14 = arith.constant 0 : index
      %c0_15 = arith.constant 0 : index
      %c0_16 = arith.constant 0 : index
      %17 = vector.load %arg6[%c0_14, %c0_15, %c0_16] : memref<1x8x32xf32, #tpu.memory_space<vmem>>, vector<1x8x32xf32>
      tpu.vector_store %arg6[%c0_14, %c0_15, %c0_16], %16 {strides = array<i32>} : memref<1x8x32xf32, #tpu.memory_space<vmem>>, vector<1x8x32xf32>,
    } else {
    }
    %c0 = arith.constant 0 : index
    %c0_1 = arith.constant 0 : index
    %c0_2 = arith.constant 0 : index
    %3 = vector.load %arg4[%c0, %c0_1, %c0_2] : memref<1x8x512xbf16, #tpu.memory_space<vmem>>, vector<1x8x512xbf16>
    %4 = vector.shape_cast %3 : vector<1x8x512xbf16> to vector<8x512xbf16>
    %cst = arith.constant 0.000000e+00 : bf16
    %5 = vector.broadcast %cst : bf16 to vector<8x512xbf16>
    %6 = arith.maximumf %4, %5 : vector<8x512xbf16>
    %c0_3 = arith.constant 0 : index
    %c0_4 = arith.constant 0 : index
    %c0_5 = arith.constant 0 : index
    %7 = vector.load %arg6[%c0_3, %c0_4, %c0_5] : memref<1x8x32xf32, #tpu.memory_space<vmem>>, vector<1x8x32xf32>
    %8 = vector.shape_cast %7 : vector<1x8x32xf32> to vector<8x32xf32>
    %c0_6 = arith.constant 0 : index
    %c0_7 = arith.constant 0 : index
    %c0_8 = arith.constant 0 : index
    %9 = vector.load %arg5[%c0_6, %c0_7, %c0_8] : memref<1x512x32xbf16, #tpu.memory_space<vmem>>, vector<1x512x32xbf16>
    %10 = vector.shape_cast %9 : vector<1x512x32xbf16> to vector<512x32xbf16>
    %cst_9 = arith.constant dense<0.000000e+00> : vector<8x32xf32>
    %11 = tpu.matmul %6, %10, %cst_9 {dimension_numbers = #tpu.dot_dimension_numbers<[1], [0], [0], [1], [0, 0, 1, 1], [], []>} : vector<8x512xbf16>, vector<512x32xbf16>, vector<8x32xf32> -> vector<8x32xf32>
    %12 = arith.addf %8, %11 : vector<8x32xf32>
    %c0_10 = arith.constant 0 : index
    %c0_11 = arith.constant 0 : index
    %c0_12 = arith.constant 0 : index
    %13 = vector.load %arg6[%c0_10, %c0_11, %c0_12] : memref<1x8x32xf32, #tpu.memory_space<vmem>>, vector<1x8x32xf32>
    %14 = vector.shape_cast %13 : vector<1x8x32xf32> to vector<8x32xf32>
    %15 = vector.shape_cast %12 : vector<8x32xf32> to vector<1x8x32xf32>
    tpu.vector_store %arg6[%c0_10, %c0_11, %c0_12], %15 {strides = array<i32>} : memref<1x8x32xf32, #tpu.memory_space<vmem>>, vector<1x8x32xf32>,
    return
  }
  func.func @transform_0(%arg0: i32, %arg1: i32, %arg2: i32, %arg3: i32) -> (i32, i32, i32) {
    %c0_i32 = arith.constant 0 : i32
    return %arg0, %arg1, %arg3 : i32, i32, i32
  }
  func.func @transform_1(%arg0: i32, %arg1: i32, %arg2: i32, %arg3: i32) -> (i32, i32, i32) {
    %c0_i32 = arith.constant 0 : i32
    return %arg0, %arg3, %arg2 : i32, i32, i32
  }
  func.func @transform_2(%arg0: i32, %arg1: i32, %arg2: i32, %arg3: i32) -> (i32, i32, i32) {
    %c0_i32 = arith.constant 0 : i32
    return %arg0, %arg1, %arg2 : i32, i32, i32
  }
}

module attributes {stable_mosaic.version = 11 : i64} {
  func.func @_fused_matmul_kernel(%arg0: i32, %arg1: i32, %arg2: i32, %arg3: i32, %arg4: memref<1x16x256xbf16, #tpu.memory_space<vmem>>, %arg5: memref<1x256x16xbf16, #tpu.memory_space<vmem>>, %arg6: memref<1x16x16xf32, #tpu.memory_space<vmem>>) attributes {dimension_semantics = [#tpu.dimension_semantics<parallel>, #tpu.dimension_semantics<parallel>, #tpu.dimension_semantics<parallel>, #tpu.dimension_semantics<arbitrary>], iteration_bounds = array<i64: 4, 2, 1, 1>, scalar_prefetch = 0 : i64, scratch_operands = 0 : i64, tpu.core_type = #tpu.core_type<tc>, window_params = [{transform_indices = @transform_0, window_bounds = array<i64: 1, 16, 256>}, {transform_indices = @transform_1, window_bounds = array<i64: 1, 256, 16>}, {transform_indices = @transform_2, window_bounds = array<i64: 1, 16, 16>}]} {
    %c0_i32 = arith.constant 0 : i32
    %0 = arith.cmpi eq, %arg3, %c0_i32 : i32
    %1 = arith.extui %0 : i1 to i32
    %c0_i32_0 = arith.constant 0 : i32
    %2 = arith.cmpi ne, %1, %c0_i32_0 : i32
    scf.if %2 {
      %cst_13 = arith.constant 0.000000e+00 : f32
      %16 = vector.broadcast %cst_13 : f32 to vector<1x16x16xf32>
      %c0_14 = arith.constant 0 : index
      %c0_15 = arith.constant 0 : index
      %c0_16 = arith.constant 0 : index
      %17 = vector.load %arg6[%c0_14, %c0_15, %c0_16] : memref<1x16x16xf32, #tpu.memory_space<vmem>>, vector<1x16x16xf32>
      tpu.vector_store %arg6[%c0_14, %c0_15, %c0_16], %16 {strides = array<i32>} : memref<1x16x16xf32, #tpu.memory_space<vmem>>, vector<1x16x16xf32>,
    } else {
    }
    %c0 = arith.constant 0 : index
    %c0_1 = arith.constant 0 : index
    %c0_2 = arith.constant 0 : index
    %3 = vector.load %arg4[%c0, %c0_1, %c0_2] : memref<1x16x256xbf16, #tpu.memory_space<vmem>>, vector<1x16x256xbf16>
    %4 = vector.shape_cast %3 : vector<1x16x256xbf16> to vector<16x256xbf16>
    %cst = arith.constant 0.000000e+00 : bf16
    %5 = vector.broadcast %cst : bf16 to vector<16x256xbf16>
    %6 = arith.maximumf %4, %5 : vector<16x256xbf16>
    %c0_3 = arith.constant 0 : index
    %c0_4 = arith.constant 0 : index
    %c0_5 = arith.constant 0 : index
    %7 = vector.load %arg6[%c0_3, %c0_4, %c0_5] : memref<1x16x16xf32, #tpu.memory_space<vmem>>, vector<1x16x16xf32>
    %8 = vector.shape_cast %7 : vector<1x16x16xf32> to vector<16x16xf32>
    %c0_6 = arith.constant 0 : index
    %c0_7 = arith.constant 0 : index
    %c0_8 = arith.constant 0 : index
    %9 = vector.load %arg5[%c0_6, %c0_7, %c0_8] : memref<1x256x16xbf16, #tpu.memory_space<vmem>>, vector<1x256x16xbf16>
    %10 = vector.shape_cast %9 : vector<1x256x16xbf16> to vector<256x16xbf16>
    %cst_9 = arith.constant dense<0.000000e+00> : vector<16x16xf32>
    %11 = tpu.matmul %6, %10, %cst_9 {dimension_numbers = #tpu.dot_dimension_numbers<[1], [0], [0], [1], [0, 0, 1, 1], [], []>} : vector<16x256xbf16>, vector<256x16xbf16>, vector<16x16xf32> -> vector<16x16xf32>
    %12 = arith.addf %8, %11 : vector<16x16xf32>
    %c0_10 = arith.constant 0 : index
    %c0_11 = arith.constant 0 : index
    %c0_12 = arith.constant 0 : index
    %13 = vector.load %arg6[%c0_10, %c0_11, %c0_12] : memref<1x16x16xf32, #tpu.memory_space<vmem>>, vector<1x16x16xf32>
    %14 = vector.shape_cast %13 : vector<1x16x16xf32> to vector<16x16xf32>
    %15 = vector.shape_cast %12 : vector<16x16xf32> to vector<1x16x16xf32>
    tpu.vector_store %arg6[%c0_10, %c0_11, %c0_12], %15 {strides = array<i32>} : memref<1x16x16xf32, #tpu.memory_space<vmem>>, vector<1x16x16xf32>,
    return
  }
  func.func @transform_0(%arg0: i32, %arg1: i32, %arg2: i32, %arg3: i32) -> (i32, i32, i32) {
    %c0_i32 = arith.constant 0 : i32
    return %arg0, %arg1, %arg3 : i32, i32, i32
  }
  func.func @transform_1(%arg0: i32, %arg1: i32, %arg2: i32, %arg3: i32) -> (i32, i32, i32) {
    %c0_i32 = arith.constant 0 : i32
    return %arg0, %arg3, %arg2 : i32, i32, i32
  }
  func.func @transform_2(%arg0: i32, %arg1: i32, %arg2: i32, %arg3: i32) -> (i32, i32, i32) {
    %c0_i32 = arith.constant 0 : i32
    return %arg0, %arg1, %arg2 : i32, i32, i32
  }
}

module attributes {stable_mosaic.version = 11 : i64} {
  func.func @_fused_matmul_kernel(%arg0: i32, %arg1: i32, %arg2: i32, %arg3: i32, %arg4: memref<1x64x128xbf16, #tpu.memory_space<vmem>>, %arg5: memref<1x128x8xbf16, #tpu.memory_space<vmem>>, %arg6: memref<1x64x8xf32, #tpu.memory_space<vmem>>) attributes {dimension_semantics = [#tpu.dimension_semantics<parallel>, #tpu.dimension_semantics<parallel>, #tpu.dimension_semantics<parallel>, #tpu.dimension_semantics<arbitrary>], iteration_bounds = array<i64: 4, 2, 1, 1>, scalar_prefetch = 0 : i64, scratch_operands = 0 : i64, tpu.core_type = #tpu.core_type<tc>, window_params = [{transform_indices = @transform_0, window_bounds = array<i64: 1, 64, 128>}, {transform_indices = @transform_1, window_bounds = array<i64: 1, 128, 8>}, {transform_indices = @transform_2, window_bounds = array<i64: 1, 64, 8>}]} {
    %c0_i32 = arith.constant 0 : i32
    %0 = arith.cmpi eq, %arg3, %c0_i32 : i32
    %1 = arith.extui %0 : i1 to i32
    %c0_i32_0 = arith.constant 0 : i32
    %2 = arith.cmpi ne, %1, %c0_i32_0 : i32
    scf.if %2 {
      %cst_13 = arith.constant 0.000000e+00 : f32
      %16 = vector.broadcast %cst_13 : f32 to vector<1x64x8xf32>
      %c0_14 = arith.constant 0 : index
      %c0_15 = arith.constant 0 : index
      %c0_16 = arith.constant 0 : index
      %17 = vector.load %arg6[%c0_14, %c0_15, %c0_16] : memref<1x64x8xf32, #tpu.memory_space<vmem>>, vector<1x64x8xf32>
      tpu.vector_store %arg6[%c0_14, %c0_15, %c0_16], %16 {strides = array<i32>} : memref<1x64x8xf32, #tpu.memory_space<vmem>>, vector<1x64x8xf32>,
    } else {
    }
    %c0 = arith.constant 0 : index
    %c0_1 = arith.constant 0 : index
    %c0_2 = arith.constant 0 : index
    %3 = vector.load %arg4[%c0, %c0_1, %c0_2] : memref<1x64x128xbf16, #tpu.memory_space<vmem>>, vector<1x64x128xbf16>
    %4 = vector.shape_cast %3 : vector<1x64x128xbf16> to vector<64x128xbf16>
    %cst = arith.constant 0.000000e+00 : bf16
    %5 = vector.broadcast %cst : bf16 to vector<64x128xbf16>
    %6 = arith.maximumf %4, %5 : vector<64x128xbf16>
    %c0_3 = arith.constant 0 : index
    %c0_4 = arith.constant 0 : index
    %c0_5 = arith.constant 0 : index
    %7 = vector.load %arg6[%c0_3, %c0_4, %c0_5] : memref<1x64x8xf32, #tpu.memory_space<vmem>>, vector<1x64x8xf32>
    %8 = vector.shape_cast %7 : vector<1x64x8xf32> to vector<64x8xf32>
    %c0_6 = arith.constant 0 : index
    %c0_7 = arith.constant 0 : index
    %c0_8 = arith.constant 0 : index
    %9 = vector.load %arg5[%c0_6, %c0_7, %c0_8] : memref<1x128x8xbf16, #tpu.memory_space<vmem>>, vector<1x128x8xbf16>
    %10 = vector.shape_cast %9 : vector<1x128x8xbf16> to vector<128x8xbf16>
    %cst_9 = arith.constant dense<0.000000e+00> : vector<64x8xf32>
    %11 = tpu.matmul %6, %10, %cst_9 {dimension_numbers = #tpu.dot_dimension_numbers<[1], [0], [0], [1], [0, 0, 1, 1], [], []>} : vector<64x128xbf16>, vector<128x8xbf16>, vector<64x8xf32> -> vector<64x8xf32>
    %12 = arith.addf %8, %11 : vector<64x8xf32>
    %c0_10 = arith.constant 0 : index
    %c0_11 = arith.constant 0 : index
    %c0_12 = arith.constant 0 : index
    %13 = vector.load %arg6[%c0_10, %c0_11, %c0_12] : memref<1x64x8xf32, #tpu.memory_space<vmem>>, vector<1x64x8xf32>
    %14 = vector.shape_cast %13 : vector<1x64x8xf32> to vector<64x8xf32>
    %15 = vector.shape_cast %12 : vector<64x8xf32> to vector<1x64x8xf32>
    tpu.vector_store %arg6[%c0_10, %c0_11, %c0_12], %15 {strides = array<i32>} : memref<1x64x8xf32, #tpu.memory_space<vmem>>, vector<1x64x8xf32>,
    return
  }
  func.func @transform_0(%arg0: i32, %arg1: i32, %arg2: i32, %arg3: i32) -> (i32, i32, i32) {
    %c0_i32 = arith.constant 0 : i32
    return %arg0, %arg1, %arg3 : i32, i32, i32
  }
  func.func @transform_1(%arg0: i32, %arg1: i32, %arg2: i32, %arg3: i32) -> (i32, i32, i32) {
    %c0_i32 = arith.constant 0 : i32
    return %arg0, %arg3, %arg2 : i32, i32, i32
  }
  func.func @transform_2(%arg0: i32, %arg1: i32, %arg2: i32, %arg3: i32) -> (i32, i32, i32) {
    %c0_i32 = arith.constant 0 : i32
    return %arg0, %arg1, %arg2 : i32, i32, i32
  }
}

module attributes {stable_mosaic.version = 11 : i64} {
  func.func @_bn_stats_kernel(%arg0: i32, %arg1: memref<512x8xf32, #tpu.memory_space<vmem>>, %arg2: memref<1x8xf32, #tpu.memory_space<vmem>>, %arg3: memref<1x8xf32, #tpu.memory_space<vmem>>, %arg4: memref<1x8xf32, #tpu.memory_space<vmem>>, %arg5: memref<1x8xf32, #tpu.memory_space<vmem>>, %arg6: memref<1x8xf32, #tpu.memory_space<vmem>>, %arg7: memref<1x8xf32, #tpu.memory_space<vmem>>) attributes {dimension_semantics = [#tpu.dimension_semantics<arbitrary>], iteration_bounds = array<i64: 1>, scalar_prefetch = 0 : i64, scratch_operands = 2 : i64, tpu.core_type = #tpu.core_type<tc>, window_params = [{transform_indices = @transform_0, window_bounds = array<i64: 512, 8>}, {pipeline_mode = #tpu.pipeline_mode<synchronous>, transform_indices = @transform_1, window_bounds = array<i64: 1, 8>}, {pipeline_mode = #tpu.pipeline_mode<synchronous>, transform_indices = @transform_2, window_bounds = array<i64: 1, 8>}, {pipeline_mode = #tpu.pipeline_mode<synchronous>, transform_indices = @transform_3, window_bounds = array<i64: 1, 8>}, {pipeline_mode = #tpu.pipeline_mode<synchronous>, transform_indices = @transform_4, window_bounds = array<i64: 1, 8>}]} {
    %c0_i32 = arith.constant 0 : i32
    %0 = arith.cmpi eq, %arg0, %c0_i32 : i32
    %1 = arith.extui %0 : i1 to i32
    %c0_i32_0 = arith.constant 0 : i32
    %2 = arith.cmpi ne, %1, %c0_i32_0 : i32
    scf.if %2 {
      %cst_13 = arith.constant 0.000000e+00 : f32
      %18 = vector.broadcast %cst_13 : f32 to vector<1x8xf32>
      %c0_14 = arith.constant 0 : index
      %c0_15 = arith.constant 0 : index
      %19 = vector.load %arg6[%c0_14, %c0_15] : memref<1x8xf32, #tpu.memory_space<vmem>>, vector<1x8xf32>
      tpu.vector_store %arg6[%c0_14, %c0_15], %18 {strides = array<i32>} : memref<1x8xf32, #tpu.memory_space<vmem>>, vector<1x8xf32>,
      %cst_16 = arith.constant 0.000000e+00 : f32
      %20 = vector.broadcast %cst_16 : f32 to vector<1x8xf32>
      %c0_17 = arith.constant 0 : index
      %c0_18 = arith.constant 0 : index
      %21 = vector.load %arg7[%c0_17, %c0_18] : memref<1x8xf32, #tpu.memory_space<vmem>>, vector<1x8xf32>
      tpu.vector_store %arg7[%c0_17, %c0_18], %20 {strides = array<i32>} : memref<1x8xf32, #tpu.memory_space<vmem>>, vector<1x8xf32>,
    } else {
    }
    %c0 = arith.constant 0 : index
    %c0_1 = arith.constant 0 : index
    %3 = vector.load %arg1[%c0, %c0_1] : memref<512x8xf32, #tpu.memory_space<vmem>>, vector<512x8xf32>
    %c0_2 = arith.constant 0 : index
    %c0_3 = arith.constant 0 : index
    %4 = vector.load %arg6[%c0_2, %c0_3] : memref<1x8xf32, #tpu.memory_space<vmem>>, vector<1x8xf32>
    %cst = arith.constant dense<0.000000e+00> : vector<8xf32>
    %5 = vector.multi_reduction <add>, %3, %cst [0] : vector<512x8xf32> to vector<8xf32>
    %6 = vector.shape_cast %5 : vector<8xf32> to vector<1x8xf32>
    %7 = arith.addf %4, %6 : vector<1x8xf32>
    %c0_4 = arith.constant 0 : index
    %c0_5 = arith.constant 0 : index
    %8 = vector.load %arg6[%c0_4, %c0_5] : memref<1x8xf32, #tpu.memory_space<vmem>>, vector<1x8xf32>
    tpu.vector_store %arg6[%c0_4, %c0_5], %7 {strides = array<i32>} : memref<1x8xf32, #tpu.memory_space<vmem>>, vector<1x8xf32>,
    %c0_6 = arith.constant 0 : index
    %c0_7 = arith.constant 0 : index
    %9 = vector.load %arg7[%c0_6, %c0_7] : memref<1x8xf32, #tpu.memory_space<vmem>>, vector<1x8xf32>
    %10 = arith.mulf %3, %3 : vector<512x8xf32>
    %cst_8 = arith.constant dense<0.000000e+00> : vector<8xf32>
    %11 = vector.multi_reduction <add>, %10, %cst_8 [0] : vector<512x8xf32> to vector<8xf32>
    %12 = vector.shape_cast %11 : vector<8xf32> to vector<1x8xf32>
    %13 = arith.addf %9, %12 : vector<1x8xf32>
    %c0_9 = arith.constant 0 : index
    %c0_10 = arith.constant 0 : index
    %14 = vector.load %arg7[%c0_9, %c0_10] : memref<1x8xf32, #tpu.memory_space<vmem>>, vector<1x8xf32>
    tpu.vector_store %arg7[%c0_9, %c0_10], %13 {strides = array<i32>} : memref<1x8xf32, #tpu.memory_space<vmem>>, vector<1x8xf32>,
    %c0_i32_11 = arith.constant 0 : i32
    %15 = arith.cmpi eq, %arg0, %c0_i32_11 : i32
    %16 = arith.extui %15 : i1 to i32
    %c0_i32_12 = arith.constant 0 : i32
    %17 = arith.cmpi ne, %16, %c0_i32_12 : i32
    scf.if %17 {
      %c0_13 = arith.constant 0 : index
      %c0_14 = arith.constant 0 : index
      %18 = vector.load %arg6[%c0_13, %c0_14] : memref<1x8xf32, #tpu.memory_space<vmem>>, vector<1x8xf32>
      %cst_15 = arith.constant 0.001953125 : f32
      %19 = vector.broadcast %cst_15 : f32 to vector<1x8xf32>
      %20 = arith.mulf %18, %19 : vector<1x8xf32>
      %c0_16 = arith.constant 0 : index
      %c0_17 = arith.constant 0 : index
      %21 = vector.load %arg7[%c0_16, %c0_17] : memref<1x8xf32, #tpu.memory_space<vmem>>, vector<1x8xf32>
      %cst_18 = arith.constant 0.001953125 : f32
      %22 = vector.broadcast %cst_18 : f32 to vector<1x8xf32>
      %23 = arith.mulf %21, %22 : vector<1x8xf32>
      %24 = arith.mulf %20, %20 : vector<1x8xf32>
      %25 = arith.subf %23, %24 : vector<1x8xf32>
      %cst_19 = arith.constant 0.000000e+00 : f32
      %26 = vector.broadcast %cst_19 : f32 to vector<1x8xf32>
      %27 = arith.maximumf %25, %26 : vector<1x8xf32>
      %c0_20 = arith.constant 0 : index
      %c0_21 = arith.constant 0 : index
      %28 = vector.load %arg2[%c0_20, %c0_21] : memref<1x8xf32, #tpu.memory_space<vmem>>, vector<1x8xf32>
      %cst_22 = arith.constant 9.99999974E-6 : f32
      %29 = vector.broadcast %cst_22 : f32 to vector<1x8xf32>
      %30 = arith.addf %27, %29 : vector<1x8xf32>
      %31 = math.rsqrt %30 : vector<1x8xf32>
      %32 = arith.mulf %28, %31 : vector<1x8xf32>
      %c0_23 = arith.constant 0 : index
      %c0_24 = arith.constant 0 : index
      %33 = vector.load %arg4[%c0_23, %c0_24] : memref<1x8xf32, #tpu.memory_space<vmem>>, vector<1x8xf32>
      tpu.vector_store %arg4[%c0_23, %c0_24], %32 {strides = array<i32>} : memref<1x8xf32, #tpu.memory_space<vmem>>, vector<1x8xf32>,
      %c0_25 = arith.constant 0 : index
      %c0_26 = arith.constant 0 : index
      %34 = vector.load %arg3[%c0_25, %c0_26] : memref<1x8xf32, #tpu.memory_space<vmem>>, vector<1x8xf32>
      %35 = arith.mulf %20, %32 : vector<1x8xf32>
      %36 = arith.subf %34, %35 : vector<1x8xf32>
      %c0_27 = arith.constant 0 : index
      %c0_28 = arith.constant 0 : index
      %37 = vector.load %arg5[%c0_27, %c0_28] : memref<1x8xf32, #tpu.memory_space<vmem>>, vector<1x8xf32>
      tpu.vector_store %arg5[%c0_27, %c0_28], %36 {strides = array<i32>} : memref<1x8xf32, #tpu.memory_space<vmem>>, vector<1x8xf32>,
    } else {
    }
    return
  }
  func.func @transform_0(%arg0: i32) -> (i32, i32) {
    %c0_i32 = arith.constant 0 : i32
    %c0_i32_0 = arith.constant 0 : i32
    return %arg0, %c0_i32 : i32, i32
  }
  func.func @transform_1(%arg0: i32) -> (i32, i32) {
    %c0_i32 = arith.constant 0 : i32
    %c0_i32_0 = arith.constant 0 : i32
    %c0_i32_1 = arith.constant 0 : i32
    return %c0_i32, %c0_i32_0 : i32, i32
  }
  func.func @transform_2(%arg0: i32) -> (i32, i32) {
    %c0_i32 = arith.constant 0 : i32
    %c0_i32_0 = arith.constant 0 : i32
    %c0_i32_1 = arith.constant 0 : i32
    return %c0_i32, %c0_i32_0 : i32, i32
  }
  func.func @transform_3(%arg0: i32) -> (i32, i32) {
    %c0_i32 = arith.constant 0 : i32
    %c0_i32_0 = arith.constant 0 : i32
    %c0_i32_1 = arith.constant 0 : i32
    return %c0_i32, %c0_i32_0 : i32, i32
  }
  func.func @transform_4(%arg0: i32) -> (i32, i32) {
    %c0_i32 = arith.constant 0 : i32
    %c0_i32_0 = arith.constant 0 : i32
    %c0_i32_1 = arith.constant 0 : i32
    return %c0_i32, %c0_i32_0 : i32, i32
  }
}

module attributes {stable_mosaic.version = 11 : i64} {
  func.func @_fused_matmul_kernel(%arg0: i32, %arg1: i32, %arg2: i32, %arg3: i32, %arg4: memref<1x256x64xbf16, #tpu.memory_space<vmem>>, %arg5: memref<1x64x2xbf16, #tpu.memory_space<vmem>>, %arg6: memref<1x2xf32, #tpu.memory_space<vmem>>, %arg7: memref<1x256x2xf32, #tpu.memory_space<vmem>>) attributes {dimension_semantics = [#tpu.dimension_semantics<parallel>, #tpu.dimension_semantics<parallel>, #tpu.dimension_semantics<parallel>, #tpu.dimension_semantics<arbitrary>], iteration_bounds = array<i64: 4, 2, 1, 1>, scalar_prefetch = 0 : i64, scratch_operands = 0 : i64, tpu.core_type = #tpu.core_type<tc>, window_params = [{transform_indices = @transform_0, window_bounds = array<i64: 1, 256, 64>}, {transform_indices = @transform_1, window_bounds = array<i64: 1, 64, 2>}, {transform_indices = @transform_2, window_bounds = array<i64: 1, 2>}, {transform_indices = @transform_3, window_bounds = array<i64: 1, 256, 2>}]} {
    %c0_i32 = arith.constant 0 : i32
    %0 = arith.cmpi eq, %arg3, %c0_i32 : i32
    %1 = arith.extui %0 : i1 to i32
    %c0_i32_0 = arith.constant 0 : i32
    %2 = arith.cmpi ne, %1, %c0_i32_0 : i32
    scf.if %2 {
      %cst_15 = arith.constant 0.000000e+00 : f32
      %19 = vector.broadcast %cst_15 : f32 to vector<1x256x2xf32>
      %c0_16 = arith.constant 0 : index
      %c0_17 = arith.constant 0 : index
      %c0_18 = arith.constant 0 : index
      %20 = vector.load %arg7[%c0_16, %c0_17, %c0_18] : memref<1x256x2xf32, #tpu.memory_space<vmem>>, vector<1x256x2xf32>
      tpu.vector_store %arg7[%c0_16, %c0_17, %c0_18], %19 {strides = array<i32>} : memref<1x256x2xf32, #tpu.memory_space<vmem>>, vector<1x256x2xf32>,
    } else {
    }
    %c0 = arith.constant 0 : index
    %c0_1 = arith.constant 0 : index
    %c0_2 = arith.constant 0 : index
    %3 = vector.load %arg4[%c0, %c0_1, %c0_2] : memref<1x256x64xbf16, #tpu.memory_space<vmem>>, vector<1x256x64xbf16>
    %4 = vector.shape_cast %3 : vector<1x256x64xbf16> to vector<256x64xbf16>
    %cst = arith.constant 0.000000e+00 : bf16
    %5 = vector.broadcast %cst : bf16 to vector<256x64xbf16>
    %6 = arith.maximumf %4, %5 : vector<256x64xbf16>
    %c0_3 = arith.constant 0 : index
    %c0_4 = arith.constant 0 : index
    %c0_5 = arith.constant 0 : index
    %7 = vector.load %arg7[%c0_3, %c0_4, %c0_5] : memref<1x256x2xf32, #tpu.memory_space<vmem>>, vector<1x256x2xf32>
    %8 = vector.shape_cast %7 : vector<1x256x2xf32> to vector<256x2xf32>
    %c0_6 = arith.constant 0 : index
    %c0_7 = arith.constant 0 : index
    %c0_8 = arith.constant 0 : index
    %9 = vector.load %arg5[%c0_6, %c0_7, %c0_8] : memref<1x64x2xbf16, #tpu.memory_space<vmem>>, vector<1x64x2xbf16>
    %10 = vector.shape_cast %9 : vector<1x64x2xbf16> to vector<64x2xbf16>
    %cst_9 = arith.constant dense<0.000000e+00> : vector<256x2xf32>
    %11 = tpu.matmul %6, %10, %cst_9 {dimension_numbers = #tpu.dot_dimension_numbers<[1], [0], [0], [1], [0, 0, 1, 1], [], []>} : vector<256x64xbf16>, vector<64x2xbf16>, vector<256x2xf32> -> vector<256x2xf32>
    %12 = arith.addf %8, %11 : vector<256x2xf32>
    %c0_10 = arith.constant 0 : index
    %c0_11 = arith.constant 0 : index
    %c0_12 = arith.constant 0 : index
    %13 = vector.load %arg7[%c0_10, %c0_11, %c0_12] : memref<1x256x2xf32, #tpu.memory_space<vmem>>, vector<1x256x2xf32>
    %14 = vector.shape_cast %13 : vector<1x256x2xf32> to vector<256x2xf32>
    %15 = vector.shape_cast %12 : vector<256x2xf32> to vector<1x256x2xf32>
    tpu.vector_store %arg7[%c0_10, %c0_11, %c0_12], %15 {strides = array<i32>} : memref<1x256x2xf32, #tpu.memory_space<vmem>>, vector<1x256x2xf32>,
    %c0_i32_13 = arith.constant 0 : i32
    %16 = arith.cmpi eq, %arg3, %c0_i32_13 : i32
    %17 = arith.extui %16 : i1 to i32
    %c0_i32_14 = arith.constant 0 : i32
    %18 = arith.cmpi ne, %17, %c0_i32_14 : i32
    scf.if %18 {
      %c0_15 = arith.constant 0 : index
      %c0_16 = arith.constant 0 : index
      %c0_17 = arith.constant 0 : index
      %19 = vector.load %arg7[%c0_15, %c0_16, %c0_17] : memref<1x256x2xf32, #tpu.memory_space<vmem>>, vector<1x256x2xf32>
      %20 = vector.shape_cast %19 : vector<1x256x2xf32> to vector<256x2xf32>
      %c0_18 = arith.constant 0 : index
      %c0_19 = arith.constant 0 : index
      %21 = vector.load %arg6[%c0_18, %c0_19] : memref<1x2xf32, #tpu.memory_space<vmem>>, vector<1x2xf32>
      %22 = vector.broadcast %21 : vector<1x2xf32> to vector<256x2xf32>
      %23 = arith.addf %20, %22 : vector<256x2xf32>
      %24 = math.tanh %23 : vector<256x2xf32>
      %c0_20 = arith.constant 0 : index
      %c0_21 = arith.constant 0 : index
      %c0_22 = arith.constant 0 : index
      %25 = vector.load %arg7[%c0_20, %c0_21, %c0_22] : memref<1x256x2xf32, #tpu.memory_space<vmem>>, vector<1x256x2xf32>
      %26 = vector.shape_cast %25 : vector<1x256x2xf32> to vector<256x2xf32>
      %27 = vector.shape_cast %24 : vector<256x2xf32> to vector<1x256x2xf32>
      tpu.vector_store %arg7[%c0_20, %c0_21, %c0_22], %27 {strides = array<i32>} : memref<1x256x2xf32, #tpu.memory_space<vmem>>, vector<1x256x2xf32>,
    } else {
    }
    return
  }
  func.func @transform_0(%arg0: i32, %arg1: i32, %arg2: i32, %arg3: i32) -> (i32, i32, i32) {
    %c0_i32 = arith.constant 0 : i32
    return %arg0, %arg1, %arg3 : i32, i32, i32
  }
  func.func @transform_1(%arg0: i32, %arg1: i32, %arg2: i32, %arg3: i32) -> (i32, i32, i32) {
    %c0_i32 = arith.constant 0 : i32
    return %arg0, %arg3, %arg2 : i32, i32, i32
  }
  func.func @transform_2(%arg0: i32, %arg1: i32, %arg2: i32, %arg3: i32) -> (i32, i32) {
    %c0_i32 = arith.constant 0 : i32
    %c0_i32_0 = arith.constant 0 : i32
    return %c0_i32, %arg2 : i32, i32
  }
  func.func @transform_3(%arg0: i32, %arg1: i32, %arg2: i32, %arg3: i32) -> (i32, i32, i32) {
    %c0_i32 = arith.constant 0 : i32
    return %arg0, %arg1, %arg2 : i32, i32, i32
  }
}

</mosaic_0001>

<llo_original>
// kernel: _lambda_.17
$region0: #{_lambda_.17}
  #allocation0 [shape = 'u32[]', space=smem, size = 0x4, offset = 0x4, fixed_abs, tag = 'smem constant byte address 0x4 - core index']
  #allocation1 [shape = 'u32[72,128]{1,0:T(1,128)}', space=vmem, size = 0x9000, scoped, tag = 'internal scratch']
  %s0 = inlined_call_operand.vmem [shape: bf16[1,512,16], index: 0, kind: input, shape index: {}]
  %s1 = inlined_call_operand.vmem [shape: bf16[1,16,8], index: 1, kind: input, shape index: {}]
  %s2 = inlined_call_operand.vmem [shape: f32[1,512,8], index: 2, kind: output, shape index: {}]
  %s3 = sld [smem:[#allocation0]]
  $region45: #{_lambda_.17} parent=0
    _
  %s5 = ssub.s32 1, %s3
  %s6 = scalar_select 0, %s5, %s3
  loop: start=0, step=1, limit=4
  $region2: #{_lambda_.17} parent=0 // loop_pre_header
    _
  $region3: #{_lambda_.17} parent=0 // loop_header
    %s8 = sphi 0, %s12
    %p9 = scmp.ge.s32.totalorder %s8, 4
    %s15 = sphi 0, %s41
    %s16 = sphi 0, %s37
    %s17 = sphi 0, %s33
    %s18 = sphi 0, %s29
    %s19 = sphi 0, %s15
    %s20 = sphi 0, %s16
    %s21 = sphi 0, %s17
    %s22 = sphi 0, %s18
    %s23 = sphi 0, %s19
    %s24 = sphi 0, %s20
    %s25 = sphi 0, %s21
    %s26 = sphi 0, %s22
    %s48 = sphi 0, %s50
    %s51 = sphi 0, %s48
    %s52 = sphi 0, %s51
    %s68 = sphi 0, %s52
    %s78 = sphi 0, %s80
    %s81 = sphi 0, %s78
    %s82 = sphi 0, %s81
    %s98 = sphi 0, %s82
    %s108 = sphi 0, %s110
    %s111 = sphi 0, %s108
    %s112 = sphi 0, %s111
    %s128 = sphi 0, %s112
  $region4: #{_lambda_.17} parent=0 // loop_header_branch
    %11 = sbr.rel (%p9) target = $region8
  $region5: #{_lambda_.17} parent=0 // loop_body
    %s13 = ssub.s32 %s8, 1
    %s14 = ssub.s32 %s8, 2
    %s27 = sadd.s32 1, %s18
    %p28 = scmp.ge.s32.totalorder %s27, 1
    %s29 = scalar_select %p28, 0, %s27
    %s30 = sadd.s32 1, %s17
    %s31 = scalar_select %p28, %s30, %s17
    %p32 = scmp.ge.s32.totalorder %s31, 1
    %s33 = scalar_select %p32, 0, %s31
    %s34 = sadd.s32 1, %s16
    %s35 = scalar_select %p32, %s34, %s16
    %p36 = scmp.ge.s32.totalorder %s35, 2
    %s37 = scalar_select %p36, 0, %s35
    %s38 = sadd.s32 1, %s15
    %s39 = scalar_select %p36, %s38, %s15
    %p40 = scmp.ge.s32.totalorder %s39, 1
    %s41 = scalar_select %p40, 0, %s39
    %s42 = ssub.s32 %s15, %s41
    %s43 = ssub.s32 %s16, %s37
    %s44 = sor.u32 %s42, %s43
    %s45 = ssub.s32 %s18, %s29
    %s46 = sor.u32 %s44, %s45
    %p47 = scmp.eq.s32.totalorder %s46, 0
    %s49 = sadd.s32 %s48, 1
    %s50 = scalar_select %p47, %s48, %s49
    %p53 = pneg %p47
    %p54 = scmp.eq.s32.totalorder %s8, 1
    %p55 = por %p53, %p54
    %p56 = scmp.ne.s32.totalorder %s48, %s51
    %p57 = scmp.eq.s32.totalorder %s8, 0
    %p58 = por %p56, %p57
    %p59 = scmp.ne.s32.totalorder %s48, %s51
    %p60 = scmp.eq.s32.totalorder %s13, 1
    %p61 = por %p59, %p60
    %p62 = scmp.ne.s32.totalorder %s51, %s52
    %p63 = scmp.eq.s32.totalorder %s13, 0
    %p64 = por %p62, %p63
    %p65 = scmp.ne.s32.totalorder %s51, %s52
    %p66 = scmp.eq.s32.totalorder %s14, 1
    %p67 = por %p65, %p66
    %p69 = scmp.ne.s32.totalorder %s52, %s68
    %p70 = scmp.eq.s32.totalorder %s14, 0
    %p71 = por %p69, %p70
    %s72 = ssub.s32 %s15, %s41
    %s73 = ssub.s32 %s18, %s29
    %s74 = sor.u32 %s72, %s73
    %s75 = ssub.s32 %s17, %s33
    %s76 = sor.u32 %s74, %s75
    %p77 = scmp.eq.s32.totalorder %s76, 0
    %s79 = sadd.s32 %s78, 1
    %s80 = scalar_select %p77, %s78, %s79
    %p83 = pneg %p77
    %p84 = scmp.eq.s32.totalorder %s8, 1
    %p85 = por %p83, %p84
    %p86 = scmp.ne.s32.totalorder %s78, %s81
    %p87 = scmp.eq.s32.totalorder %s8, 0
    %p88 = por %p86, %p87
    %p89 = scmp.ne.s32.totalorder %s78, %s81
    %p90 = scmp.eq.s32.totalorder %s13, 1
    %p91 = por %p89, %p90
    %p92 = scmp.ne.s32.totalorder %s81, %s82
    %p93 = scmp.eq.s32.totalorder %s13, 0
    %p94 = por %p92, %p93
    %p95 = scmp.ne.s32.totalorder %s81, %s82
    %p96 = scmp.eq.s32.totalorder %s14, 1
    %p97 = por %p95, %p96
    %p99 = scmp.ne.s32.totalorder %s82, %s98
    %p100 = scmp.eq.s32.totalorder %s14, 0
    %p101 = por %p99, %p100
    %s102 = ssub.s32 %s15, %s41
    %s103 = ssub.s32 %s16, %s37
    %s104 = sor.u32 %s102, %s103
    %s105 = ssub.s32 %s17, %s33
    %s106 = sor.u32 %s104, %s105
    %p107 = scmp.eq.s32.totalorder %s106, 0
    %s109 = sadd.s32 %s108, 1
    %s110 = scalar_select %p107, %s108, %s109
    %p113 = pneg %p107
    %p114 = scmp.eq.s32.totalorder %s8, 1
    %p115 = por %p113, %p114
    %p116 = scmp.ne.s32.totalorder %s108, %s111
    %p117 = scmp.eq.s32.totalorder %s8, 0
    %p118 = por %p116, %p117
    %p119 = scmp.ne.s32.totalorder %s108, %s111
    %p120 = scmp.eq.s32.totalorder %s13, 1
    %p121 = por %p119, %p120
    %p122 = scmp.ne.s32.totalorder %s111, %s112
    %p123 = scmp.eq.s32.totalorder %s13, 0
    %p124 = por %p122, %p123
    %p125 = scmp.ne.s32.totalorder %s111, %s112
    %p126 = scmp.eq.s32.totalorder %s14, 1
    %p127 = por %p125, %p126
    %p129 = scmp.ne.s32.totalorder %s112, %s128
    %p130 = scmp.eq.s32.totalorder %s14, 0
    %p131 = por %p129, %p130
    %p132 = scmp.le.s32.totalorder 1, %s8
    %p133 = scmp.lt.s32.totalorder %s8, 3
    %p134 = pnand %p132, %p133
    %p135 = pneg %p134
    // Predicated region
    $region9: #{_lambda_.17} parent=5 // pred_check
      _
    $region10: #{_lambda_.17} parent=5 // pred_check_branch
      %137 = sbr.rel (%p134) target = $region12
    $region11: #{_lambda_.17} parent=5 // pred_region
      %s138 = ssub.s32 %s8, 1
      // Predicated region
      $region13: #{_lambda_.17} parent=11 // pred_check
        %p139 = pneg %p94
      $region14: #{_lambda_.17} parent=11 // pred_check_branch
        %141 = sbr.rel (%p139) target = $region16
      $region15: #{_lambda_.17} parent=11 // pred_region
        %s142 = smul.u32 2, %s22
        %p143 = scmp.lt.s32.totalorder %s19, 0
        %s144 = scalar_select %p143, %s19, 0
        %p145 = scmp.lt.s32.totalorder %s142, 1
        %s146 = scalar_select %p145, %s142, 1
        %p147 = scmp.lt.s32.totalorder %s21, 0
        %s148 = scalar_select %p147, %s21, 0
        %s149 = sadd.s32 %s148, %s146
        %s150 = smul.addr %s144, 2
        %s151 = sadd.s32 %s149, %s150
        %s152 = smul.addr %s151, 4
        %s153 = scalar_lea.vmem %s1, %s152
        %s154 = smul.u32 2, %s22
      $region16: #{_lambda_.17} parent=11 // pred_fallthru
        _
    $region12: #{_lambda_.17} parent=5 // pred_fallthru
      _
    %p155 = scmp.lt.s32.totalorder %s8, 2
    // Predicated region
    $region17: #{_lambda_.17} parent=5 // pred_check
      %p156 = pneg %p155
    $region18: #{_lambda_.17} parent=5 // pred_check_branch
      %158 = sbr.rel (%p156) target = $region20
    $region19: #{_lambda_.17} parent=5 // pred_region
      // Predicated region
      $region21: #{_lambda_.17} parent=19 // pred_check
        %p159 = pneg %p58
      $region22: #{_lambda_.17} parent=19 // pred_check_branch
        %161 = sbr.rel (%p159) target = $region24
      $region23: #{_lambda_.17} parent=19 // pred_region
        %s162 = smul.u32 32, %s16
        %p163 = scmp.lt.s32.totalorder %s15, 0
        %s164 = scalar_select %p163, %s15, 0
        %p165 = scmp.lt.s32.totalorder %s162, 63
        %s166 = scalar_select %p165, %s162, 63
        %p167 = scmp.lt.s32.totalorder %s18, 0
        %s168 = scalar_select %p167, %s18, 0
        %s169 = sadd.s32 %s168, %s166
        %s170 = smul.addr %s164, 64
        %s171 = sadd.s32 %s169, %s170
        %s172 = smul.addr %s171, 4
        %s173 = scalar_lea.vmem %s0, %s172
        %s174 = smul.u32 32, %s16
      $region24: #{_lambda_.17} parent=19 // pred_fallthru
        _
    $region20: #{_lambda_.17} parent=5 // pred_fallthru
      _
    %p175 = scmp.le.s32.totalorder 1, %s8
    %p176 = scmp.lt.s32.totalorder %s8, 3
    %p177 = pnand %p175, %p176
    %p178 = pneg %p177
    // Predicated region
    $region25: #{_lambda_.17} parent=5 // pred_check
      _
    $region26: #{_lambda_.17} parent=5 // pred_check_branch
      %180 = sbr.rel (%p177) target = $region28
    $region27: #{_lambda_.17} parent=5 // pred_region
      %s181 = ssub.s32 %s8, 1
      %s182 = smul.u32 32, %s20
      %p183 = scmp.lt.s32.totalorder %s19, 0
      %s184 = scalar_select %p183, %s19, 0
      %p185 = scmp.lt.s32.totalorder %s182, 63
      %s186 = scalar_select %p185, %s182, 63
      %p187 = scmp.lt.s32.totalorder %s22, 0
      %s188 = scalar_select %p187, %s22, 0
      %s189 = sadd.s32 %s188, %s186
      %s190 = smul.addr %s184, 64
      %s191 = sadd.s32 %s189, %s190
      %s192 = smul.addr %s191, 4
      %s193 = scalar_lea.vmem %s0, %s192
      %p194 = pneg %p64
      %p195 = pneg %p61
      %s196 = smul.u32 2, %s22
      %p197 = scmp.lt.s32.totalorder %s19, 0
      %s198 = scalar_select %p197, %s19, 0
      %p199 = scmp.lt.s32.totalorder %s196, 1
      %s200 = scalar_select %p199, %s196, 1
      %p201 = scmp.lt.s32.totalorder %s21, 0
      %s202 = scalar_select %p201, %s21, 0
      %s203 = sadd.s32 %s202, %s200
      %s204 = smul.addr %s198, 2
      %s205 = sadd.s32 %s203, %s204
      %s206 = smul.addr %s205, 4
      %s207 = scalar_lea.vmem %s1, %s206
      %p208 = pneg %p94
      %p209 = pneg %p91
      %p210 = pneg %p124
      %p211 = pneg %p121
      %s212 = smul.u32 32, %s20
      %p213 = scmp.lt.s32.totalorder %s19, 0
      %s214 = scalar_select %p213, %s19, 0
      %p215 = scmp.lt.s32.totalorder %s212, 63
      %s216 = scalar_select %p215, %s212, 63
      %p217 = scmp.lt.s32.totalorder %s21, 0
      %s218 = scalar_select %p217, %s21, 0
      %s219 = sadd.s32 %s218, %s216
      %s220 = smul.addr %s214, 64
      %s221 = sadd.s32 %s219, %s220
      %s222 = smul.addr %s221, 8
      %s223 = scalar_lea.vmem %s2, %s222
      %s224 = smul.u32 32, %s20
      %p225 = scmp.lt.s32.totalorder %s19, 0
      %s226 = scalar_select %p225, %s19, 0
      %p227 = scmp.lt.s32.totalorder %s224, 63
      %s228 = scalar_select %p227, %s224, 63
      %p229 = scmp.lt.s32.totalorder %s22, 0
      %s230 = scalar_select %p229, %s22, 0
      %s231 = sadd.s32 %s230, %s228
      %s232 = smul.addr %s226, 64
      %s233 = sadd.s32 %s231, %s232
      %s234 = smul.addr %s233, 4
      %s235 = scalar_lea.vmem %s0, %s234
      %s236 = smul.u32 32, %s20
      %s237 = smul.u32 2, %s22
      %p238 = scmp.lt.s32.totalorder %s19, 0
      %s239 = scalar_select %p238, %s19, 0
      %p240 = scmp.lt.s32.totalorder %s237, 1
      %s241 = scalar_select %p240, %s237, 1
      %p242 = scmp.lt.s32.totalorder %s21, 0
      %s243 = scalar_select %p242, %s21, 0
      %s244 = sadd.s32 %s243, %s241
      %s245 = smul.addr %s239, 2
      %s246 = sadd.s32 %s244, %s245
      %s247 = smul.addr %s246, 4
      %s248 = scalar_lea.vmem %s1, %s247
      %s249 = smul.u32 2, %s22
      %s250 = smul.u32 32, %s20
      %p251 = scmp.lt.s32.totalorder %s19, 0
      %s252 = scalar_select %p251, %s19, 0
      %p253 = scmp.lt.s32.totalorder %s250, 63
      %s254 = scalar_select %p253, %s250, 63
      %p255 = scmp.lt.s32.totalorder %s21, 0
      %s256 = scalar_select %p255, %s21, 0
      %s257 = sadd.s32 %s256, %s254
      %s258 = smul.addr %s252, 64
      %s259 = sadd.s32 %s257, %s258
      %s260 = smul.addr %s259, 8
      %s261 = scalar_lea.vmem %s2, %s260
      %s262 = smul.u32 32, %s20
      %p264 = scmp.eq.s32.totalorder %s22, 0
      // Predicated region
      $region29: #{_lambda_.17} parent=27 // pred_check
        %p265 = pneg %p264
      $region30: #{_lambda_.17} parent=27 // pred_check_branch
        %267 = sbr.rel (%p265) target = $region32
      $region31: #{_lambda_.17} parent=27 // pred_region
        %vm268 = vcmask 64512
        %269 = vst.msk [vmem:[%s261] sm:$0xff] %vm268, 0.0
        %270 = vst.msk [vmem:[%s261 + $0x8] sm:$0xff] %vm268, 0.0
        %271 = vst.msk [vmem:[%s261 + $0x10] sm:$0xff] %vm268, 0.0
        %272 = vst.msk [vmem:[%s261 + $0x18] sm:$0xff] %vm268, 0.0
        %273 = vst.msk [vmem:[%s261 + $0x20] sm:$0xff] %vm268, 0.0
        %274 = vst.msk [vmem:[%s261 + $0x28] sm:$0xff] %vm268, 0.0
        %275 = vst.msk [vmem:[%s261 + $0x30] sm:$0xff] %vm268, 0.0
        %276 = vst.msk [vmem:[%s261 + $0x38] sm:$0xff] %vm268, 0.0
        %277 = vst.msk [vmem:[%s261 + $0x40] sm:$0xff] %vm268, 0.0
        %278 = vst.msk [vmem:[%s261 + $0x48] sm:$0xff] %vm268, 0.0
        %279 = vst.msk [vmem:[%s261 + $0x50] sm:$0xff] %vm268, 0.0
        %280 = vst.msk [vmem:[%s261 + $0x58] sm:$0xff] %vm268, 0.0
        %281 = vst.msk [vmem:[%s261 + $0x60] sm:$0xff] %vm268, 0.0
        %282 = vst.msk [vmem:[%s261 + $0x68] sm:$0xff] %vm268, 0.0
        %283 = vst.msk [vmem:[%s261 + $0x70] sm:$0xff] %vm268, 0.0
        %284 = vst.msk [vmem:[%s261 + $0x78] sm:$0xff] %vm268, 0.0
        %285 = vst.msk [vmem:[%s261 + $0x80] sm:$0xff] %vm268, 0.0
        %286 = vst.msk [vmem:[%s261 + $0x88] sm:$0xff] %vm268, 0.0
        %287 = vst.msk [vmem:[%s261 + $0x90] sm:$0xff] %vm268, 0.0
        %288 = vst.msk [vmem:[%s261 + $0x98] sm:$0xff] %vm268, 0.0
        %289 = vst.msk [vmem:[%s261 + $0xa0] sm:$0xff] %vm268, 0.0
        %290 = vst.msk [vmem:[%s261 + $0xa8] sm:$0xff] %vm268, 0.0
        %291 = vst.msk [vmem:[%s261 + $0xb0] sm:$0xff] %vm268, 0.0
        %292 = vst.msk [vmem:[%s261 + $0xb8] sm:$0xff] %vm268, 0.0
        %293 = vst.msk [vmem:[%s261 + $0xc0] sm:$0xff] %vm268, 0.0
        %294 = vst.msk [vmem:[%s261 + $0xc8] sm:$0xff] %vm268, 0.0
        %295 = vst.msk [vmem:[%s261 + $0xd0] sm:$0xff] %vm268, 0.0
        %296 = vst.msk [vmem:[%s261 + $0xd8] sm:$0xff] %vm268, 0.0
        %297 = vst.msk [vmem:[%s261 + $0xe0] sm:$0xff] %vm268, 0.0
        %298 = vst.msk [vmem:[%s261 + $0xe8] sm:$0xff] %vm268, 0.0
        %299 = vst.msk [vmem:[%s261 + $0xf0] sm:$0xff] %vm268, 0.0
        %300 = vst.msk [vmem:[%s261 + $0xf8] sm:$0xff] %vm268, 0.0
      $region32: #{_lambda_.17} parent=27 // pred_fallthru
        _
      %v301 = vld [vmem:[%s235] sm:$0xf]
      %v302 = vld [vmem:[%s235 + $0x4] sm:$0xf]
      %v303 = vld [vmem:[%s235 + $0x8] sm:$0xf]
      %v304 = vld [vmem:[%s235 + $0xc] sm:$0xf]
      %v305 = vld [vmem:[%s235 + $0x10] sm:$0xf]
      %v306 = vld [vmem:[%s235 + $0x14] sm:$0xf]
      %v307 = vld [vmem:[%s235 + $0x18] sm:$0xf]
      %v308 = vld [vmem:[%s235 + $0x1c] sm:$0xf]
      %v309 = vld [vmem:[%s235 + $0x20] sm:$0xf]
      %v310 = vld [vmem:[%s235 + $0x24] sm:$0xf]
      %v311 = vld [vmem:[%s235 + $0x28] sm:$0xf]
      %v312 = vld [vmem:[%s235 + $0x2c] sm:$0xf]
      %v313 = vld [vmem:[%s235 + $0x30] sm:$0xf]
      %v314 = vld [vmem:[%s235 + $0x34] sm:$0xf]
      %v315 = vld [vmem:[%s235 + $0x38] sm:$0xf]
      %v316 = vld [vmem:[%s235 + $0x3c] sm:$0xf]
      %v317 = vld [vmem:[%s235 + $0x40] sm:$0xf]
      %v318 = vld [vmem:[%s235 + $0x44] sm:$0xf]
      %v319 = vld [vmem:[%s235 + $0x48] sm:$0xf]
      %v320 = vld [vmem:[%s235 + $0x4c] sm:$0xf]
      %v321 = vld [vmem:[%s235 + $0x50] sm:$0xf]
      %v322 = vld [vmem:[%s235 + $0x54] sm:$0xf]
      %v323 = vld [vmem:[%s235 + $0x58] sm:$0xf]
      %v324 = vld [vmem:[%s235 + $0x5c] sm:$0xf]
      %v325 = vld [vmem:[%s235 + $0x60] sm:$0xf]
      %v326 = vld [vmem:[%s235 + $0x64] sm:$0xf]
      %v327 = vld [vmem:[%s235 + $0x68] sm:$0xf]
      %v328 = vld [vmem:[%s235 + $0x6c] sm:$0xf]
      %v329 = vld [vmem:[%s235 + $0x70] sm:$0xf]
      %v330 = vld [vmem:[%s235 + $0x74] sm:$0xf]
      %v331 = vld [vmem:[%s235 + $0x78] sm:$0xf]
      %v332 = vld [vmem:[%s235 + $0x7c] sm:$0xf]
      %v333 = vld [vmem:[%s261] sm:$0xff]
      %v334 = vld [vmem:[%s261 + $0x8] sm:$0xff]
      %v335 = vld [vmem:[%s261 + $0x10] sm:$0xff]
      %v336 = vld [vmem:[%s261 + $0x18] sm:$0xff]
      %v337 = vld [vmem:[%s261 + $0x20] sm:$0xff]
      %v338 = vld [vmem:[%s261 + $0x28] sm:$0xff]
      %v339 = vld [vmem:[%s261 + $0x30] sm:$0xff]
      %v340 = vld [vmem:[%s261 + $0x38] sm:$0xff]
      %v341 = vld [vmem:[%s261 + $0x40] sm:$0xff]
      %v342 = vld [vmem:[%s261 + $0x48] sm:$0xff]
      %v343 = vld [vmem:[%s261 + $0x50] sm:$0xff]
      %v344 = vld [vmem:[%s261 + $0x58] sm:$0xff]
      %v345 = vld [vmem:[%s261 + $0x60] sm:$0xff]
      %v346 = vld [vmem:[%s261 + $0x68] sm:$0xff]
      %v347 = vld [vmem:[%s261 + $0x70] sm:$0xff]
      %v348 = vld [vmem:[%s261 + $0x78] sm:$0xff]
      %v349 = vld [vmem:[%s261 + $0x80] sm:$0xff]
      %v350 = vld [vmem:[%s261 + $0x88] sm:$0xff]
      %v351 = vld [vmem:[%s261 + $0x90] sm:$0xff]
      %v352 = vld [vmem:[%s261 + $0x98] sm:$0xff]
      %v353 = vld [vmem:[%s261 + $0xa0] sm:$0xff]
      %v354 = vld [vmem:[%s261 + $0xa8] sm:$0xff]
      %v355 = vld [vmem:[%s261 + $0xb0] sm:$0xff]
      %v356 = vld [vmem:[%s261 + $0xb8] sm:$0xff]
      %v357 = vld [vmem:[%s261 + $0xc0] sm:$0xff]
      %v358 = vld [vmem:[%s261 + $0xc8] sm:$0xff]
      %v359 = vld [vmem:[%s261 + $0xd0] sm:$0xff]
      %v360 = vld [vmem:[%s261 + $0xd8] sm:$0xff]
      %v361 = vld [vmem:[%s261 + $0xe0] sm:$0xff]
      %v362 = vld [vmem:[%s261 + $0xe8] sm:$0xff]
      %v363 = vld [vmem:[%s261 + $0xf0] sm:$0xff]
      %v364 = vld [vmem:[%s261 + $0xf8] sm:$0xff]
      %v365 = vld [vmem:[%s248] sm:$0xf]
      %v366 = vld [vmem:[%s248 + $0x4] sm:$0xf]
      %v399 = vunpack.c.l.b16 %v301
      %v400 = vunpack.c.l.b16 %v302
      %v401 = vunpack.c.l.b16 %v303
      %v402 = vunpack.c.l.b16 %v304
      %v403 = vunpack.c.l.b16 %v305
      %v404 = vunpack.c.l.b16 %v306
      %v405 = vunpack.c.l.b16 %v307
      %v406 = vunpack.c.l.b16 %v308
      %v407 = vunpack.c.l.b16 %v309
      %v408 = vunpack.c.l.b16 %v310
      %v409 = vunpack.c.l.b16 %v311
      %v410 = vunpack.c.l.b16 %v312
      %v411 = vunpack.c.l.b16 %v313
      %v412 = vunpack.c.l.b16 %v314
      %v413 = vunpack.c.l.b16 %v315
      %v414 = vunpack.c.l.b16 %v316
      %v415 = vunpack.c.l.b16 %v317
      %v416 = vunpack.c.l.b16 %v318
      %v417 = vunpack.c.l.b16 %v319
      %v418 = vunpack.c.l.b16 %v320
      %v419 = vunpack.c.l.b16 %v321
      %v420 = vunpack.c.l.b16 %v322
      %v421 = vunpack.c.l.b16 %v323
      %v422 = vunpack.c.l.b16 %v324
      %v423 = vunpack.c.l.b16 %v325
      %v424 = vunpack.c.l.b16 %v326
      %v425 = vunpack.c.l.b16 %v327
      %v426 = vunpack.c.l.b16 %v328
      %v427 = vunpack.c.l.b16 %v329
      %v428 = vunpack.c.l.b16 %v330
      %v429 = vunpack.c.l.b16 %v331
      %v430 = vunpack.c.l.b16 %v332
      %v431 = vpack.c.b16 %v400, %v399
      %v432 = vpack.c.b16 %v402, %v401
      %v433 = vpack.c.b16 %v404, %v403
      %v434 = vpack.c.b16 %v406, %v405
      %v435 = vpack.c.b16 %v408, %v407
      %v436 = vpack.c.b16 %v410, %v409
      %v437 = vpack.c.b16 %v412, %v411
      %v438 = vpack.c.b16 %v414, %v413
      %v439 = vpack.c.b16 %v416, %v415
      %v440 = vpack.c.b16 %v418, %v417
      %v441 = vpack.c.b16 %v420, %v419
      %v442 = vpack.c.b16 %v422, %v421
      %v443 = vpack.c.b16 %v424, %v423
      %v444 = vpack.c.b16 %v426, %v425
      %v445 = vpack.c.b16 %v428, %v427
      %v446 = vpack.c.b16 %v430, %v429
      %v449 = vunpack.c.l.b16 %v365
      %v450 = vunpack.c.l.b16 %v366
      %v451 = vpack.c.b16 %v450, %v449
      %vm453 = vcmask 130048
      %v455 = vsel %vm453, %v431, 0
      %v458 = vsel %vm453, %v432, 0
      %v461 = vsel %vm453, %v433, 0
      %v464 = vsel %vm453, %v434, 0
      %v467 = vsel %vm453, %v435, 0
      %v470 = vsel %vm453, %v436, 0
      %v473 = vsel %vm453, %v437, 0
      %v476 = vsel %vm453, %v438, 0
      %v479 = vsel %vm453, %v439, 0
      %v482 = vsel %vm453, %v440, 0
      %v485 = vsel %vm453, %v441, 0
      %v488 = vsel %vm453, %v442, 0
      %v491 = vsel %vm453, %v443, 0
      %v494 = vsel %vm453, %v444, 0
      %v497 = vsel %vm453, %v445, 0
      %v500 = vsel %vm453, %v446, 0
      %502 = vmatpush.bf16.msra.mxu0 0
      %503 = vmatpush.bf16.msra.mxu0 0
      %504 = vmatpush.bf16.msra.mxu0 0
      %505 = vmatpush.bf16.msra.mxu0 0
      %506 = vmatpush.bf16.msra.mxu0 0
      %507 = vmatpush.bf16.msra.mxu0 0
      %508 = vmatpush.bf16.msra.mxu0 0
      %509 = vmatpush.bf16.msra.mxu0 %v451
      %510 = vmatmul.bf16.gmra.mxu0 %v455
      %v511 = vpop.f32.mrf.mxu0
      %v512 = vadd.f32 0.0, %v511
      %v513 = vpop.f32.mrf.mxu0
      %v514 = vadd.f32 0.0, %v513
      %515 = vmatmul.bf16.gmra.mxu0 %v458
      %v516 = vpop.f32.mrf.mxu0
      %v517 = vadd.f32 0.0, %v516
      %v518 = vpop.f32.mrf.mxu0
      %v519 = vadd.f32 0.0, %v518
      %520 = vmatmul.bf16.gmra.mxu0 %v461
      %v521 = vpop.f32.mrf.mxu0
      %v522 = vadd.f32 0.0, %v521
      %v523 = vpop.f32.mrf.mxu0
      %v524 = vadd.f32 0.0, %v523
      %525 = vmatmul.bf16.gmra.mxu0 %v464
      %v526 = vpop.f32.mrf.mxu0
      %v527 = vadd.f32 0.0, %v526
      %v528 = vpop.f32.mrf.mxu0
      %v529 = vadd.f32 0.0, %v528
      %530 = vmatmul.bf16.gmra.mxu0 %v467
      %v531 = vpop.f32.mrf.mxu0
      %v532 = vadd.f32 0.0, %v531
      %v533 = vpop.f32.mrf.mxu0
      %v534 = vadd.f32 0.0, %v533
      %535 = vmatmul.bf16.gmra.mxu0 %v470
      %v536 = vpop.f32.mrf.mxu0
      %v537 = vadd.f32 0.0, %v536
      %v538 = vpop.f32.mrf.mxu0
      %v539 = vadd.f32 0.0, %v538
      %540 = vmatmul.bf16.gmra.mxu0 %v473
      %v541 = vpop.f32.mrf.mxu0
      %v542 = vadd.f32 0.0, %v541
      %v543 = vpop.f32.mrf.mxu0
      %v544 = vadd.f32 0.0, %v543
      %545 = vmatmul.bf16.gmra.mxu0 %v476
      %v546 = vpop.f32.mrf.mxu0
      %v547 = vadd.f32 0.0, %v546
      %v548 = vpop.f32.mrf.mxu0
      %v549 = vadd.f32 0.0, %v548
      %550 = vmatmul.bf16.gmra.mxu0 %v479
      %v551 = vpop.f32.mrf.mxu0
      %v552 = vadd.f32 0.0, %v551
      %v553 = vpop.f32.mrf.mxu0
      %v554 = vadd.f32 0.0, %v553
      %555 = vmatmul.bf16.gmra.mxu0 %v482
      %v556 = vpop.f32.mrf.mxu0
      %v557 = vadd.f32 0.0, %v556
      %v558 = vpop.f32.mrf.mxu0
      %v559 = vadd.f32 0.0, %v558
      %560 = vmatmul.bf16.gmra.mxu0 %v485
      %v561 = vpop.f32.mrf.mxu0
      %v562 = vadd.f32 0.0, %v561
      %v563 = vpop.f32.mrf.mxu0
      %v564 = vadd.f32 0.0, %v563
      %565 = vmatmul.bf16.gmra.mxu0 %v488
      %v566 = vpop.f32.mrf.mxu0
      %v567 = vadd.f32 0.0, %v566
      %v568 = vpop.f32.mrf.mxu0
      %v569 = vadd.f32 0.0, %v568
      %570 = vmatmul.bf16.gmra.mxu0 %v491
      %v571 = vpop.f32.mrf.mxu0
      %v572 = vadd.f32 0.0, %v571
      %v573 = vpop.f32.mrf.mxu0
      %v574 = vadd.f32 0.0, %v573
      %575 = vmatmul.bf16.gmra.mxu0 %v494
      %v576 = vpop.f32.mrf.mxu0
      %v577 = vadd.f32 0.0, %v576
      %v578 = vpop.f32.mrf.mxu0
      %v579 = vadd.f32 0.0, %v578
      %580 = vmatmul.bf16.gmra.mxu0 %v497
      %v581 = vpop.f32.mrf.mxu0
      %v582 = vadd.f32 0.0, %v581
      %v583 = vpop.f32.mrf.mxu0
      %v584 = vadd.f32 0.0, %v583
      %585 = vmatmul.bf16.gmra.mxu0 %v500
      %v586 = vpop.f32.mrf.mxu0
      %v587 = vadd.f32 0.0, %v586
      %v588 = vpop.f32.mrf.mxu0
      %v589 = vadd.f32 0.0, %v588
      %590 = vdwg.mxu0
      %v591 = vadd.f32 %v333, %v512
      %v592 = vadd.f32 %v334, %v514
      %v593 = vadd.f32 %v335, %v517
      %v594 = vadd.f32 %v336, %v519
      %v595 = vadd.f32 %v337, %v522
      %v596 = vadd.f32 %v338, %v524
      %v597 = vadd.f32 %v339, %v527
      %v598 = vadd.f32 %v340, %v529
      %v599 = vadd.f32 %v341, %v532
      %v600 = vadd.f32 %v342, %v534
      %v601 = vadd.f32 %v343, %v537
      %v602 = vadd.f32 %v344, %v539
      %v603 = vadd.f32 %v345, %v542
      %v604 = vadd.f32 %v346, %v544
      %v605 = vadd.f32 %v347, %v547
      %v606 = vadd.f32 %v348, %v549
      %v607 = vadd.f32 %v349, %v552
      %v608 = vadd.f32 %v350, %v554
      %v609 = vadd.f32 %v351, %v557
      %v610 = vadd.f32 %v352, %v559
      %v611 = vadd.f32 %v353, %v562
      %v612 = vadd.f32 %v354, %v564
      %v613 = vadd.f32 %v355, %v567
      %v614 = vadd.f32 %v356, %v569
      %v615 = vadd.f32 %v357, %v572
      %v616 = vadd.f32 %v358, %v574
      %v617 = vadd.f32 %v359, %v577
      %v618 = vadd.f32 %v360, %v579
      %v619 = vadd.f32 %v361, %v582
      %v620 = vadd.f32 %v362, %v584
      %v621 = vadd.f32 %v363, %v587
      %v622 = vadd.f32 %v364, %v589
      %vm623 = vcmask 64512
      %624 = vst.msk [vmem:[%s261] sm:$0xff] %vm623, %v591
      %625 = vst.msk [vmem:[%s261 + $0x8] sm:$0xff] %vm623, %v592
      %626 = vst.msk [vmem:[%s261 + $0x10] sm:$0xff] %vm623, %v593
      %627 = vst.msk [vmem:[%s261 + $0x18] sm:$0xff] %vm623, %v594
      %628 = vst.msk [vmem:[%s261 + $0x20] sm:$0xff] %vm623, %v595
      %629 = vst.msk [vmem:[%s261 + $0x28] sm:$0xff] %vm623, %v596
      %630 = vst.msk [vmem:[%s261 + $0x30] sm:$0xff] %vm623, %v597
      %631 = vst.msk [vmem:[%s261 + $0x38] sm:$0xff] %vm623, %v598
      %632 = vst.msk [vmem:[%s261 + $0x40] sm:$0xff] %vm623, %v599
      %633 = vst.msk [vmem:[%s261 + $0x48] sm:$0xff] %vm623, %v600
      %634 = vst.msk [vmem:[%s261 + $0x50] sm:$0xff] %vm623, %v601
      %635 = vst.msk [vmem:[%s261 + $0x58] sm:$0xff] %vm623, %v602
      %636 = vst.msk [vmem:[%s261 + $0x60] sm:$0xff] %vm623, %v603
      %637 = vst.msk [vmem:[%s261 + $0x68] sm:$0xff] %vm623, %v604
      %638 = vst.msk [vmem:[%s261 + $0x70] sm:$0xff] %vm623, %v605
      %639 = vst.msk [vmem:[%s261 + $0x78] sm:$0xff] %vm623, %v606
      %640 = vst.msk [vmem:[%s261 + $0x80] sm:$0xff] %vm623, %v607
      %641 = vst.msk [vmem:[%s261 + $0x88] sm:$0xff] %vm623, %v608
      %642 = vst.msk [vmem:[%s261 + $0x90] sm:$0xff] %vm623, %v609
      %643 = vst.msk [vmem:[%s261 + $0x98] sm:$0xff] %vm623, %v610
      %644 = vst.msk [vmem:[%s261 + $0xa0] sm:$0xff] %vm623, %v611
      %645 = vst.msk [vmem:[%s261 + $0xa8] sm:$0xff] %vm623, %v612
      %646 = vst.msk [vmem:[%s261 + $0xb0] sm:$0xff] %vm623, %v613
      %647 = vst.msk [vmem:[%s261 + $0xb8] sm:$0xff] %vm623, %v614
      %648 = vst.msk [vmem:[%s261 + $0xc0] sm:$0xff] %vm623, %v615
      %649 = vst.msk [vmem:[%s261 + $0xc8] sm:$0xff] %vm623, %v616
      %650 = vst.msk [vmem:[%s261 + $0xd0] sm:$0xff] %vm623, %v617
      %651 = vst.msk [vmem:[%s261 + $0xd8] sm:$0xff] %vm623, %v618
      %652 = vst.msk [vmem:[%s261 + $0xe0] sm:$0xff] %vm623, %v619
      %653 = vst.msk [vmem:[%s261 + $0xe8] sm:$0xff] %vm623, %v620
      %654 = vst.msk [vmem:[%s261 + $0xf0] sm:$0xff] %vm623, %v621
      %655 = vst.msk [vmem:[%s261 + $0xf8] sm:$0xff] %vm623, %v622
      %s656 = smul.u32 32, %s20
      %p657 = scmp.lt.s32.totalorder %s19, 0
      %s658 = scalar_select %p657, %s19, 0
      %p659 = scmp.lt.s32.totalorder %s656, 63
      %s660 = scalar_select %p659, %s656, 63
      %p661 = scmp.lt.s32.totalorder %s21, 0
      %s662 = scalar_select %p661, %s21, 0
      %s663 = sadd.s32 %s662, %s660
      %s664 = smul.addr %s658, 64
      %s665 = sadd.s32 %s663, %s664
      %s666 = smul.addr %s665, 8
      %s667 = scalar_lea.vmem %s2, %s666
      // Predicated region
      $region33: #{_lambda_.17} parent=27 // pred_check
        %p668 = pneg %p121
      $region34: #{_lambda_.17} parent=27 // pred_check_branch
        %670 = sbr.rel (%p668) target = $region36
      $region35: #{_lambda_.17} parent=27 // pred_region
        %s671 = smul.u32 32, %s20
      $region36: #{_lambda_.17} parent=27 // pred_fallthru
        _
    $region28: #{_lambda_.17} parent=5 // pred_fallthru
      _
    %p672 = scmp.le.s32.totalorder 2, %s8
    // Predicated region
    $region37: #{_lambda_.17} parent=5 // pred_check
      %p673 = pneg %p672
    $region38: #{_lambda_.17} parent=5 // pred_check_branch
      %675 = sbr.rel (%p673) target = $region40
    $region39: #{_lambda_.17} parent=5 // pred_region
      %s676 = ssub.s32 %s8, 2
      // Predicated region
      $region41: #{_lambda_.17} parent=39 // pred_check
        %p677 = pneg %p127
      $region42: #{_lambda_.17} parent=39 // pred_check_branch
        %679 = sbr.rel (%p677) target = $region44
      $region43: #{_lambda_.17} parent=39 // pred_region
        %s680 = smul.u32 32, %s24
        %p681 = scmp.lt.s32.totalorder %s23, 0
        %s682 = scalar_select %p681, %s23, 0
        %p683 = scmp.lt.s32.totalorder %s680, 63
        %s684 = scalar_select %p683, %s680, 63
        %p685 = scmp.lt.s32.totalorder %s25, 0
        %s686 = scalar_select %p685, %s25, 0
        %s687 = sadd.s32 %s686, %s684
        %s688 = smul.addr %s682, 64
        %s689 = sadd.s32 %s687, %s688
        %s690 = smul.addr %s689, 8
        %s691 = scalar_lea.vmem %s2, %s690
      $region44: #{_lambda_.17} parent=39 // pred_fallthru
        _
    $region40: #{_lambda_.17} parent=5 // pred_fallthru
      _
  $region6: #{_lambda_.17} parent=0 // loop_footer
    %s12 = sadd.s32 1, %s8
  $region7: #{_lambda_.17} parent=0 // loop_footer_branch
    %7 = sbr.rel target = $region3
  $region8: #{_lambda_.17} parent=0 // loop_exit
    _

// kernel: _lambda_.19
$region0: #{_lambda_.19}
  #allocation0 [shape = 'u32[]', space=smem, size = 0x4, offset = 0x4, fixed_abs, tag = 'smem constant byte address 0x4 - core index']
  #allocation1 [shape = 'u32[72,128]{1,0:T(1,128)}', space=vmem, size = 0x9000, scoped, tag = 'internal scratch']
  #allocation2 [shape = 'f32[1,16]{1,0:T(1,128)}', space=vmem, size = 0x200, scoped, tag = 'scratch operand']
  #allocation3 [shape = 'f32[1,16]{1,0:T(1,128)}', space=vmem, size = 0x200, scoped, tag = 'scratch operand']
  %s0 = inlined_call_operand.vmem [shape: f32[128,16], index: 0, kind: input, shape index: {}]
  %s1 = inlined_call_operand.vmem [shape: f32[1,16], index: 1, kind: input, shape index: {}]
  %s2 = inlined_call_operand.vmem [shape: f32[1,16], index: 2, kind: input, shape index: {}]
  %s3 = inlined_call_operand.vmem [shape: f32[1,16], index: 3, kind: output, shape index: {0}]
  %s4 = inlined_call_operand.vmem [shape: f32[1,16], index: 4, kind: output, shape index: {1}]
  %5 = xla_tuple %s3, %s4
  %s6 = sld [smem:[#allocation0]]
  $region38: #{_lambda_.19} parent=0
    _
  %s8 = ssub.s32 1, %s6
  %s9 = scalar_select 0, %s8, %s6
  // Predicated region
  $region2: #{_lambda_.19} parent=0 // pred_check
    _
  $region3: #{_lambda_.19} parent=0 // pred_check_branch
    %11 = sbr.rel (0) target = $region5
  $region4: #{_lambda_.19} parent=0 // pred_region
    _
  $region5: #{_lambda_.19} parent=0 // pred_fallthru
    _
  // Predicated region
  $region6: #{_lambda_.19} parent=0 // pred_check
    _
  $region7: #{_lambda_.19} parent=0 // pred_check_branch
    %13 = sbr.rel (0) target = $region9
  $region8: #{_lambda_.19} parent=0 // pred_region
    _
  $region9: #{_lambda_.19} parent=0 // pred_fallthru
    _
  // Predicated region
  $region10: #{_lambda_.19} parent=0 // pred_check
    _
  $region11: #{_lambda_.19} parent=0 // pred_check_branch
    %15 = sbr.rel (0) target = $region13
  $region12: #{_lambda_.19} parent=0 // pred_region
    _
  $region13: #{_lambda_.19} parent=0 // pred_fallthru
    _
  %p16 = scmp.eq.s32.totalorder 0, 0
  // Predicated region
  $region14: #{_lambda_.19} parent=0 // pred_check
    %p17 = pneg %p16
  $region15: #{_lambda_.19} parent=0 // pred_check_branch
    %19 = sbr.rel (%p17) target = $region17
  $region16: #{_lambda_.19} parent=0 // pred_region
    %vm20 = vcmask 122880
    %21 = vst.msk [vmem:[#allocation2] sm:$0x1] %vm20, 0.0
    %22 = vst.msk [vmem:[#allocation3] sm:$0x1] %vm20, 0.0
  $region17: #{_lambda_.19} parent=0 // pred_fallthru
    _
  %v23 = vld [vmem:[%s0] sm:$0xff]
  %v24 = vld [vmem:[%s0 + $0x8] sm:$0xff]
  %v25 = vld [vmem:[%s0 + $0x10] sm:$0xff]
  %v26 = vld [vmem:[%s0 + $0x18] sm:$0xff]
  %v27 = vld [vmem:[%s0 + $0x20] sm:$0xff]
  %v28 = vld [vmem:[%s0 + $0x28] sm:$0xff]
  %v29 = vld [vmem:[%s0 + $0x30] sm:$0xff]
  %v30 = vld [vmem:[%s0 + $0x38] sm:$0xff]
  %v31 = vld [vmem:[%s0 + $0x40] sm:$0xff]
  %v32 = vld [vmem:[%s0 + $0x48] sm:$0xff]
  %v33 = vld [vmem:[%s0 + $0x50] sm:$0xff]
  %v34 = vld [vmem:[%s0 + $0x58] sm:$0xff]
  %v35 = vld [vmem:[%s0 + $0x60] sm:$0xff]
  %v36 = vld [vmem:[%s0 + $0x68] sm:$0xff]
  %v37 = vld [vmem:[%s0 + $0x70] sm:$0xff]
  %v38 = vld [vmem:[%s0 + $0x78] sm:$0xff]
  %v39 = vld [vmem:[#allocation2] sm:$0x1]
  %vm40 = vcmask 130048
  %v41 = vsel %vm40, %v23, 0.0
  %v42 = vsel %vm40, %v24, 0.0
  %v43 = vadd.f32 %v41, %v42
  %v44 = vsel %vm40, %v25, 0.0
  %v45 = vadd.f32 %v43, %v44
  %v46 = vsel %vm40, %v26, 0.0
  %v47 = vadd.f32 %v45, %v46
  %v48 = vsel %vm40, %v27, 0.0
  %v49 = vadd.f32 %v47, %v48
  %v50 = vsel %vm40, %v28, 0.0
  %v51 = vadd.f32 %v49, %v50
  %v52 = vsel %vm40, %v29, 0.0
  %v53 = vadd.f32 %v51, %v52
  %v54 = vsel %vm40, %v30, 0.0
  %v55 = vadd.f32 %v53, %v54
  %v56 = vsel %vm40, %v31, 0.0
  %v57 = vadd.f32 %v55, %v56
  %v58 = vsel %vm40, %v32, 0.0
  %v59 = vadd.f32 %v57, %v58
  %v60 = vsel %vm40, %v33, 0.0
  %v61 = vadd.f32 %v59, %v60
  %v62 = vsel %vm40, %v34, 0.0
  %v63 = vadd.f32 %v61, %v62
  %v64 = vsel %vm40, %v35, 0.0
  %v65 = vadd.f32 %v63, %v64
  %v66 = vsel %vm40, %v36, 0.0
  %v67 = vadd.f32 %v65, %v66
  %v68 = vsel %vm40, %v37, 0.0
  %v69 = vadd.f32 %v67, %v68
  %v70 = vsel %vm40, %v38, 0.0
  %v71 = vadd.f32 %v69, %v70
  %v72 = vrot.slane %v71, 4
  %v73 = vadd.f32 %v71, %v72
  %v74 = vrot.slane %v73, 2
  %v75 = vadd.f32 %v73, %v74
  %v76 = vrot.slane %v75, 1
  %v77 = vadd.f32 %v75, %v76
  %v78 = vadd.f32 %v39, %v77
  %vm79 = vcmask 122880
  %80 = vst.msk [vmem:[#allocation2] sm:$0x1] %vm79, %v78
  %v81 = vld [vmem:[#allocation3] sm:$0x1]
  %v82 = vmul.f32 %v23, %v23
  %v83 = vmul.f32 %v24, %v24
  %v84 = vmul.f32 %v25, %v25
  %v85 = vmul.f32 %v26, %v26
  %v86 = vmul.f32 %v27, %v27
  %v87 = vmul.f32 %v28, %v28
  %v88 = vmul.f32 %v29, %v29
  %v89 = vmul.f32 %v30, %v30
  %v90 = vmul.f32 %v31, %v31
  %v91 = vmul.f32 %v32, %v32
  %v92 = vmul.f32 %v33, %v33
  %v93 = vmul.f32 %v34, %v34
  %v94 = vmul.f32 %v35, %v35
  %v95 = vmul.f32 %v36, %v36
  %v96 = vmul.f32 %v37, %v37
  %v97 = vmul.f32 %v38, %v38
  %v98 = vsel %vm40, %v82, 0.0
  %v99 = vsel %vm40, %v83, 0.0
  %v100 = vadd.f32 %v98, %v99
  %v101 = vsel %vm40, %v84, 0.0
  %v102 = vadd.f32 %v100, %v101
  %v103 = vsel %vm40, %v85, 0.0
  %v104 = vadd.f32 %v102, %v103
  %v105 = vsel %vm40, %v86, 0.0
  %v106 = vadd.f32 %v104, %v105
  %v107 = vsel %vm40, %v87, 0.0
  %v108 = vadd.f32 %v106, %v107
  %v109 = vsel %vm40, %v88, 0.0
  %v110 = vadd.f32 %v108, %v109
  %v111 = vsel %vm40, %v89, 0.0
  %v112 = vadd.f32 %v110, %v111
  %v113 = vsel %vm40, %v90, 0.0
  %v114 = vadd.f32 %v112, %v113
  %v115 = vsel %vm40, %v91, 0.0
  %v116 = vadd.f32 %v114, %v115
  %v117 = vsel %vm40, %v92, 0.0
  %v118 = vadd.f32 %v116, %v117
  %v119 = vsel %vm40, %v93, 0.0
  %v120 = vadd.f32 %v118, %v119
  %v121 = vsel %vm40, %v94, 0.0
  %v122 = vadd.f32 %v120, %v121
  %v123 = vsel %vm40, %v95, 0.0
  %v124 = vadd.f32 %v122, %v123
  %v125 = vsel %vm40, %v96, 0.0
  %v126 = vadd.f32 %v124, %v125
  %v127 = vsel %vm40, %v97, 0.0
  %v128 = vadd.f32 %v126, %v127
  %v129 = vrot.slane %v128, 4
  %v130 = vadd.f32 %v128, %v129
  %v131 = vrot.slane %v130, 2
  %v132 = vadd.f32 %v130, %v131
  %v133 = vrot.slane %v132, 1
  %v134 = vadd.f32 %v132, %v133
  %v135 = vadd.f32 %v81, %v134
  %136 = vst.msk [vmem:[#allocation3] sm:$0x1] %vm79, %v135
  // Predicated region
  $region18: #{_lambda_.19} parent=0 // pred_check
    %p137 = pneg %p16
  $region19: #{_lambda_.19} parent=0 // pred_check_branch
    %139 = sbr.rel (%p137) target = $region21
  $region20: #{_lambda_.19} parent=0 // pred_region
    %v140 = vld [vmem:[#allocation2] sm:$0x1]
    %v141 = vmul.f32 %v140, 0.0078125
    %v142 = vld [vmem:[#allocation3] sm:$0x1]
    %v143 = vmul.f32 %v142, 0.0078125
    %v144 = vmul.f32 %v141, %v141
    %v145 = vsub.f32 %v143, %v144
    %v146 = vmax.f32 %v145, 0.0
    %v147 = vld [vmem:[%s1] sm:$0x1]
    %v148 = vadd.f32 %v146, 1e-05
    %v149 = vrsqrt.pop %v148
    %v150 = vmul.f32 %v149, %v148
    %v151 = vmul.f32 %v150, %v149
    %v152 = vmul.f32 0.5, %v151
    %v153 = vsub.f32 1.5, %v152
    %v154 = vmul.f32 %v149, %v153
    %vm155 = vweird.f32 %v148
    %vm156 = vweird.f32 %v149
    %vm157 = vmor %vm155, %vm156
    %v158 = vsel %vm157, %v149, %v154
    %v159 = vmul.f32 %v147, %v158
    %160 = vst.msk [vmem:[%s3] sm:$0x1] %vm79, %v159
    %v161 = vld [vmem:[%s2] sm:$0x1]
    %v162 = vmul.f32 %v141, %v159
    %v163 = vsub.f32 %v161, %v162
    %164 = vst.msk [vmem:[%s4] sm:$0x1] %vm79, %v163
  $region21: #{_lambda_.19} parent=0 // pred_fallthru
    _
  // Predicated region
  $region22: #{_lambda_.19} parent=0 // pred_check
    _
  $region23: #{_lambda_.19} parent=0 // pred_check_branch
    %166 = sbr.rel (0) target = $region25
  $region24: #{_lambda_.19} parent=0 // pred_region
    _
  $region25: #{_lambda_.19} parent=0 // pred_fallthru
    _
  // Predicated region
  $region26: #{_lambda_.19} parent=0 // pred_check
    _
  $region27: #{_lambda_.19} parent=0 // pred_check_branch
    %168 = sbr.rel (0) target = $region29
  $region28: #{_lambda_.19} parent=0 // pred_region
    _
  $region29: #{_lambda_.19} parent=0 // pred_fallthru
    _
  // Predicated region
  $region30: #{_lambda_.19} parent=0 // pred_check
    _
  $region31: #{_lambda_.19} parent=0 // pred_check_branch
    %170 = sbr.rel (0) target = $region33
  $region32: #{_lambda_.19} parent=0 // pred_region
    _
  $region33: #{_lambda_.19} parent=0 // pred_fallthru
    _
  // Predicated region
  $region34: #{_lambda_.19} parent=0 // pred_check
    _
  $region35: #{_lambda_.19} parent=0 // pred_check_branch
    %172 = sbr.rel (0) target = $region37
  $region36: #{_lambda_.19} parent=0 // pred_region
    _
  $region37: #{_lambda_.19} parent=0 // pred_fallthru
    _

// kernel: _lambda_.18
$region0: #{_lambda_.18}
  #allocation0 [shape = 'u32[]', space=smem, size = 0x4, offset = 0x4, fixed_abs, tag = 'smem constant byte address 0x4 - core index']
  #allocation1 [shape = 'u32[72,128]{1,0:T(1,128)}', space=vmem, size = 0x9000, scoped, tag = 'internal scratch']
  %s0 = inlined_call_operand.vmem [shape: bf16[1,128,128], index: 0, kind: input, shape index: {}]
  %s1 = inlined_call_operand.vmem [shape: bf16[1,128,16], index: 1, kind: input, shape index: {}]
  %s2 = inlined_call_operand.vmem [shape: f32[1,128,16], index: 2, kind: output, shape index: {}]
  %s3 = sld [smem:[#allocation0]]
  $region45: #{_lambda_.18} parent=0
    _
  %s5 = ssub.s32 1, %s3
  %s6 = scalar_select 0, %s5, %s3
  loop: start=0, step=1, limit=4
  $region2: #{_lambda_.18} parent=0 // loop_pre_header
    _
  $region3: #{_lambda_.18} parent=0 // loop_header
    %s8 = sphi 0, %s12
    %p9 = scmp.ge.s32.totalorder %s8, 4
    %s15 = sphi 0, %s41
    %s16 = sphi 0, %s37
    %s17 = sphi 0, %s33
    %s18 = sphi 0, %s29
    %s19 = sphi 0, %s15
    %s20 = sphi 0, %s16
    %s21 = sphi 0, %s17
    %s22 = sphi 0, %s18
    %s23 = sphi 0, %s19
    %s24 = sphi 0, %s20
    %s25 = sphi 0, %s21
    %s26 = sphi 0, %s22
    %s48 = sphi 0, %s50
    %s51 = sphi 0, %s48
    %s52 = sphi 0, %s51
    %s68 = sphi 0, %s52
    %s78 = sphi 0, %s80
    %s81 = sphi 0, %s78
    %s82 = sphi 0, %s81
    %s98 = sphi 0, %s82
    %s108 = sphi 0, %s110
    %s111 = sphi 0, %s108
    %s112 = sphi 0, %s111
    %s128 = sphi 0, %s112
  $region4: #{_lambda_.18} parent=0 // loop_header_branch
    %11 = sbr.rel (%p9) target = $region8
  $region5: #{_lambda_.18} parent=0 // loop_body
    %s13 = ssub.s32 %s8, 1
    %s14 = ssub.s32 %s8, 2
    %s27 = sadd.s32 1, %s18
    %p28 = scmp.ge.s32.totalorder %s27, 1
    %s29 = scalar_select %p28, 0, %s27
    %s30 = sadd.s32 1, %s17
    %s31 = scalar_select %p28, %s30, %s17
    %p32 = scmp.ge.s32.totalorder %s31, 1
    %s33 = scalar_select %p32, 0, %s31
    %s34 = sadd.s32 1, %s16
    %s35 = scalar_select %p32, %s34, %s16
    %p36 = scmp.ge.s32.totalorder %s35, 2
    %s37 = scalar_select %p36, 0, %s35
    %s38 = sadd.s32 1, %s15
    %s39 = scalar_select %p36, %s38, %s15
    %p40 = scmp.ge.s32.totalorder %s39, 1
    %s41 = scalar_select %p40, 0, %s39
    %s42 = ssub.s32 %s15, %s41
    %s43 = ssub.s32 %s16, %s37
    %s44 = sor.u32 %s42, %s43
    %s45 = ssub.s32 %s18, %s29
    %s46 = sor.u32 %s44, %s45
    %p47 = scmp.eq.s32.totalorder %s46, 0
    %s49 = sadd.s32 %s48, 1
    %s50 = scalar_select %p47, %s48, %s49
    %p53 = pneg %p47
    %p54 = scmp.eq.s32.totalorder %s8, 1
    %p55 = por %p53, %p54
    %p56 = scmp.ne.s32.totalorder %s48, %s51
    %p57 = scmp.eq.s32.totalorder %s8, 0
    %p58 = por %p56, %p57
    %p59 = scmp.ne.s32.totalorder %s48, %s51
    %p60 = scmp.eq.s32.totalorder %s13, 1
    %p61 = por %p59, %p60
    %p62 = scmp.ne.s32.totalorder %s51, %s52
    %p63 = scmp.eq.s32.totalorder %s13, 0
    %p64 = por %p62, %p63
    %p65 = scmp.ne.s32.totalorder %s51, %s52
    %p66 = scmp.eq.s32.totalorder %s14, 1
    %p67 = por %p65, %p66
    %p69 = scmp.ne.s32.totalorder %s52, %s68
    %p70 = scmp.eq.s32.totalorder %s14, 0
    %p71 = por %p69, %p70
    %s72 = ssub.s32 %s15, %s41
    %s73 = ssub.s32 %s18, %s29
    %s74 = sor.u32 %s72, %s73
    %s75 = ssub.s32 %s17, %s33
    %s76 = sor.u32 %s74, %s75
    %p77 = scmp.eq.s32.totalorder %s76, 0
    %s79 = sadd.s32 %s78, 1
    %s80 = scalar_select %p77, %s78, %s79
    %p83 = pneg %p77
    %p84 = scmp.eq.s32.totalorder %s8, 1
    %p85 = por %p83, %p84
    %p86 = scmp.ne.s32.totalorder %s78, %s81
    %p87 = scmp.eq.s32.totalorder %s8, 0
    %p88 = por %p86, %p87
    %p89 = scmp.ne.s32.totalorder %s78, %s81
    %p90 = scmp.eq.s32.totalorder %s13, 1
    %p91 = por %p89, %p90
    %p92 = scmp.ne.s32.totalorder %s81, %s82
    %p93 = scmp.eq.s32.totalorder %s13, 0
    %p94 = por %p92, %p93
    %p95 = scmp.ne.s32.totalorder %s81, %s82
    %p96 = scmp.eq.s32.totalorder %s14, 1
    %p97 = por %p95, %p96
    %p99 = scmp.ne.s32.totalorder %s82, %s98
    %p100 = scmp.eq.s32.totalorder %s14, 0
    %p101 = por %p99, %p100
    %s102 = ssub.s32 %s15, %s41
    %s103 = ssub.s32 %s16, %s37
    %s104 = sor.u32 %s102, %s103
    %s105 = ssub.s32 %s17, %s33
    %s106 = sor.u32 %s104, %s105
    %p107 = scmp.eq.s32.totalorder %s106, 0
    %s109 = sadd.s32 %s108, 1
    %s110 = scalar_select %p107, %s108, %s109
    %p113 = pneg %p107
    %p114 = scmp.eq.s32.totalorder %s8, 1
    %p115 = por %p113, %p114
    %p116 = scmp.ne.s32.totalorder %s108, %s111
    %p117 = scmp.eq.s32.totalorder %s8, 0
    %p118 = por %p116, %p117
    %p119 = scmp.ne.s32.totalorder %s108, %s111
    %p120 = scmp.eq.s32.totalorder %s13, 1
    %p121 = por %p119, %p120
    %p122 = scmp.ne.s32.totalorder %s111, %s112
    %p123 = scmp.eq.s32.totalorder %s13, 0
    %p124 = por %p122, %p123
    %p125 = scmp.ne.s32.totalorder %s111, %s112
    %p126 = scmp.eq.s32.totalorder %s14, 1
    %p127 = por %p125, %p126
    %p129 = scmp.ne.s32.totalorder %s112, %s128
    %p130 = scmp.eq.s32.totalorder %s14, 0
    %p131 = por %p129, %p130
    %p132 = scmp.le.s32.totalorder 1, %s8
    %p133 = scmp.lt.s32.totalorder %s8, 3
    %p134 = pnand %p132, %p133
    %p135 = pneg %p134
    // Predicated region
    $region9: #{_lambda_.18} parent=5 // pred_check
      _
    $region10: #{_lambda_.18} parent=5 // pred_check_branch
      %137 = sbr.rel (%p134) target = $region12
    $region11: #{_lambda_.18} parent=5 // pred_region
      %s138 = ssub.s32 %s8, 1
      // Predicated region
      $region13: #{_lambda_.18} parent=11 // pred_check
        %p139 = pneg %p94
      $region14: #{_lambda_.18} parent=11 // pred_check_branch
        %141 = sbr.rel (%p139) target = $region16
      $region15: #{_lambda_.18} parent=11 // pred_region
        %s142 = smul.u32 16, %s22
        %p143 = scmp.lt.s32.totalorder %s19, 0
        %s144 = scalar_select %p143, %s19, 0
        %p145 = scmp.lt.s32.totalorder %s142, 15
        %s146 = scalar_select %p145, %s142, 15
        %p147 = scmp.lt.s32.totalorder %s21, 0
        %s148 = scalar_select %p147, %s21, 0
        %s149 = sadd.s32 %s148, %s146
        %s150 = smul.addr %s144, 16
        %s151 = sadd.s32 %s149, %s150
        %s152 = smul.addr %s151, 4
        %s153 = scalar_lea.vmem %s1, %s152
        %s154 = smul.u32 16, %s22
      $region16: #{_lambda_.18} parent=11 // pred_fallthru
        _
    $region12: #{_lambda_.18} parent=5 // pred_fallthru
      _
    %p155 = scmp.lt.s32.totalorder %s8, 2
    // Predicated region
    $region17: #{_lambda_.18} parent=5 // pred_check
      %p156 = pneg %p155
    $region18: #{_lambda_.18} parent=5 // pred_check_branch
      %158 = sbr.rel (%p156) target = $region20
    $region19: #{_lambda_.18} parent=5 // pred_region
      // Predicated region
      $region21: #{_lambda_.18} parent=19 // pred_check
        %p159 = pneg %p58
      $region22: #{_lambda_.18} parent=19 // pred_check_branch
        %161 = sbr.rel (%p159) target = $region24
      $region23: #{_lambda_.18} parent=19 // pred_region
        %s162 = smul.u32 8, %s16
        %p163 = scmp.lt.s32.totalorder %s15, 0
        %s164 = scalar_select %p163, %s15, 0
        %p165 = scmp.lt.s32.totalorder %s162, 15
        %s166 = scalar_select %p165, %s162, 15
        %p167 = scmp.lt.s32.totalorder %s18, 0
        %s168 = scalar_select %p167, %s18, 0
        %s169 = sadd.s32 %s168, %s166
        %s170 = smul.addr %s164, 16
        %s171 = sadd.s32 %s169, %s170
        %s172 = smul.addr %s171, 4
        %s173 = scalar_lea.vmem %s0, %s172
        %s174 = smul.u32 8, %s16
      $region24: #{_lambda_.18} parent=19 // pred_fallthru
        _
    $region20: #{_lambda_.18} parent=5 // pred_fallthru
      _
    %p175 = scmp.le.s32.totalorder 1, %s8
    %p176 = scmp.lt.s32.totalorder %s8, 3
    %p177 = pnand %p175, %p176
    %p178 = pneg %p177
    // Predicated region
    $region25: #{_lambda_.18} parent=5 // pred_check
      _
    $region26: #{_lambda_.18} parent=5 // pred_check_branch
      %180 = sbr.rel (%p177) target = $region28
    $region27: #{_lambda_.18} parent=5 // pred_region
      %s181 = ssub.s32 %s8, 1
      %s182 = smul.u32 8, %s20
      %p183 = scmp.lt.s32.totalorder %s19, 0
      %s184 = scalar_select %p183, %s19, 0
      %p185 = scmp.lt.s32.totalorder %s182, 15
      %s186 = scalar_select %p185, %s182, 15
      %p187 = scmp.lt.s32.totalorder %s22, 0
      %s188 = scalar_select %p187, %s22, 0
      %s189 = sadd.s32 %s188, %s186
      %s190 = smul.addr %s184, 16
      %s191 = sadd.s32 %s189, %s190
      %s192 = smul.addr %s191, 4
      %s193 = scalar_lea.vmem %s0, %s192
      %p194 = pneg %p64
      %p195 = pneg %p61
      %s196 = smul.u32 16, %s22
      %p197 = scmp.lt.s32.totalorder %s19, 0
      %s198 = scalar_select %p197, %s19, 0
      %p199 = scmp.lt.s32.totalorder %s196, 15
      %s200 = scalar_select %p199, %s196, 15
      %p201 = scmp.lt.s32.totalorder %s21, 0
      %s202 = scalar_select %p201, %s21, 0
      %s203 = sadd.s32 %s202, %s200
      %s204 = smul.addr %s198, 16
      %s205 = sadd.s32 %s203, %s204
      %s206 = smul.addr %s205, 4
      %s207 = scalar_lea.vmem %s1, %s206
      %p208 = pneg %p94
      %p209 = pneg %p91
      %p210 = pneg %p124
      %p211 = pneg %p121
      %s212 = smul.u32 8, %s20
      %p213 = scmp.lt.s32.totalorder %s19, 0
      %s214 = scalar_select %p213, %s19, 0
      %p215 = scmp.lt.s32.totalorder %s212, 15
      %s216 = scalar_select %p215, %s212, 15
      %p217 = scmp.lt.s32.totalorder %s21, 0
      %s218 = scalar_select %p217, %s21, 0
      %s219 = sadd.s32 %s218, %s216
      %s220 = smul.addr %s214, 16
      %s221 = sadd.s32 %s219, %s220
      %s222 = smul.addr %s221, 8
      %s223 = scalar_lea.vmem %s2, %s222
      %s224 = smul.u32 8, %s20
      %p225 = scmp.lt.s32.totalorder %s19, 0
      %s226 = scalar_select %p225, %s19, 0
      %p227 = scmp.lt.s32.totalorder %s224, 15
      %s228 = scalar_select %p227, %s224, 15
      %p229 = scmp.lt.s32.totalorder %s22, 0
      %s230 = scalar_select %p229, %s22, 0
      %s231 = sadd.s32 %s230, %s228
      %s232 = smul.addr %s226, 16
      %s233 = sadd.s32 %s231, %s232
      %s234 = smul.addr %s233, 4
      %s235 = scalar_lea.vmem %s0, %s234
      %s236 = smul.u32 8, %s20
      %s237 = smul.u32 16, %s22
      %p238 = scmp.lt.s32.totalorder %s19, 0
      %s239 = scalar_select %p238, %s19, 0
      %p240 = scmp.lt.s32.totalorder %s237, 15
      %s241 = scalar_select %p240, %s237, 15
      %p242 = scmp.lt.s32.totalorder %s21, 0
      %s243 = scalar_select %p242, %s21, 0
      %s244 = sadd.s32 %s243, %s241
      %s245 = smul.addr %s239, 16
      %s246 = sadd.s32 %s244, %s245
      %s247 = smul.addr %s246, 4
      %s248 = scalar_lea.vmem %s1, %s247
      %s249 = smul.u32 16, %s22
      %s250 = smul.u32 8, %s20
      %p251 = scmp.lt.s32.totalorder %s19, 0
      %s252 = scalar_select %p251, %s19, 0
      %p253 = scmp.lt.s32.totalorder %s250, 15
      %s254 = scalar_select %p253, %s250, 15
      %p255 = scmp.lt.s32.totalorder %s21, 0
      %s256 = scalar_select %p255, %s21, 0
      %s257 = sadd.s32 %s256, %s254
      %s258 = smul.addr %s252, 16
      %s259 = sadd.s32 %s257, %s258
      %s260 = smul.addr %s259, 8
      %s261 = scalar_lea.vmem %s2, %s260
      %s262 = smul.u32 8, %s20
      %p263 = scmp.eq.s32.totalorder %s22, 0
      // Predicated region
      $region29: #{_lambda_.18} parent=27 // pred_check
        %p264 = pneg %p263
      $region30: #{_lambda_.18} parent=27 // pred_check_branch
        %266 = sbr.rel (%p264) target = $region32
      $region31: #{_lambda_.18} parent=27 // pred_region
        %vm267 = vcmask 130048
        %268 = vst.msk [vmem:[%s261] sm:$0xff] %vm267, 0.0
        %269 = vst.msk [vmem:[%s261 + $0x8] sm:$0xff] %vm267, 0.0
        %270 = vst.msk [vmem:[%s261 + $0x10] sm:$0xff] %vm267, 0.0
        %271 = vst.msk [vmem:[%s261 + $0x18] sm:$0xff] %vm267, 0.0
        %272 = vst.msk [vmem:[%s261 + $0x20] sm:$0xff] %vm267, 0.0
        %273 = vst.msk [vmem:[%s261 + $0x28] sm:$0xff] %vm267, 0.0
        %274 = vst.msk [vmem:[%s261 + $0x30] sm:$0xff] %vm267, 0.0
        %275 = vst.msk [vmem:[%s261 + $0x38] sm:$0xff] %vm267, 0.0
      $region32: #{_lambda_.18} parent=27 // pred_fallthru
        _
      %v276 = vld [vmem:[%s235] sm:$0xf]
      %v277 = vld [vmem:[%s235 + $0x4] sm:$0xf]
      %v278 = vld [vmem:[%s235 + $0x8] sm:$0xf]
      %v279 = vld [vmem:[%s235 + $0xc] sm:$0xf]
      %v280 = vld [vmem:[%s235 + $0x10] sm:$0xf]
      %v281 = vld [vmem:[%s235 + $0x14] sm:$0xf]
      %v282 = vld [vmem:[%s235 + $0x18] sm:$0xf]
      %v283 = vld [vmem:[%s235 + $0x1c] sm:$0xf]
      %v284 = vunpack.c.l.bf16 %v276
      %v285 = vunpack.c.l.bf16 %v277
      %v286 = vunpack.c.l.bf16 %v278
      %v287 = vunpack.c.l.bf16 %v279
      %v288 = vunpack.c.l.bf16 %v280
      %v289 = vunpack.c.l.bf16 %v281
      %v290 = vunpack.c.l.bf16 %v282
      %v291 = vunpack.c.l.bf16 %v283
      %vm292 = vcmp.gt.f32.partialorder %v284, 0.0
      %vm293 = vcmp.gt.f32.partialorder %v285, 0.0
      %vm294 = vcmp.gt.f32.partialorder %v286, 0.0
      %vm295 = vcmp.gt.f32.partialorder %v287, 0.0
      %vm296 = vcmp.gt.f32.partialorder %v288, 0.0
      %vm297 = vcmp.gt.f32.partialorder %v289, 0.0
      %vm298 = vcmp.gt.f32.partialorder %v290, 0.0
      %vm299 = vcmp.gt.f32.partialorder %v291, 0.0
      %v300 = vmul.f32 %v284, 0.20019531
      %v301 = vmul.f32 %v285, 0.20019531
      %v302 = vmul.f32 %v286, 0.20019531
      %v303 = vmul.f32 %v287, 0.20019531
      %v304 = vmul.f32 %v288, 0.20019531
      %v305 = vmul.f32 %v289, 0.20019531
      %v306 = vmul.f32 %v290, 0.20019531
      %v307 = vmul.f32 %v291, 0.20019531
      %v308 = vpack.c.bf16 %v300, %v300
      %v309 = vpack.c.bf16 %v301, %v301
      %v310 = vpack.c.bf16 %v302, %v302
      %v311 = vpack.c.bf16 %v303, %v303
      %v312 = vpack.c.bf16 %v304, %v304
      %v313 = vpack.c.bf16 %v305, %v305
      %v314 = vpack.c.bf16 %v306, %v306
      %v315 = vpack.c.bf16 %v307, %v307
      %vm316 = vmpackc.low %vm292, %vm292
      %vm317 = vmpackc.low %vm293, %vm293
      %vm318 = vmpackc.low %vm294, %vm294
      %vm319 = vmpackc.low %vm295, %vm295
      %vm320 = vmpackc.low %vm296, %vm296
      %vm321 = vmpackc.low %vm297, %vm297
      %vm322 = vmpackc.low %vm298, %vm298
      %vm323 = vmpackc.low %vm299, %vm299
      %v324 = vsel %vm316, %v276, %v308
      %v325 = vsel %vm317, %v277, %v309
      %v326 = vsel %vm318, %v278, %v310
      %v327 = vsel %vm319, %v279, %v311
      %v328 = vsel %vm320, %v280, %v312
      %v329 = vsel %vm321, %v281, %v313
      %v330 = vsel %vm322, %v282, %v314
      %v331 = vsel %vm323, %v283, %v315
      %v332 = vld [vmem:[%s261] sm:$0xff]
      %v333 = vld [vmem:[%s261 + $0x8] sm:$0xff]
      %v334 = vld [vmem:[%s261 + $0x10] sm:$0xff]
      %v335 = vld [vmem:[%s261 + $0x18] sm:$0xff]
      %v336 = vld [vmem:[%s261 + $0x20] sm:$0xff]
      %v337 = vld [vmem:[%s261 + $0x28] sm:$0xff]
      %v338 = vld [vmem:[%s261 + $0x30] sm:$0xff]
      %v339 = vld [vmem:[%s261 + $0x38] sm:$0xff]
      %v340 = vld [vmem:[%s248] sm:$0xf]
      %v341 = vld [vmem:[%s248 + $0x4] sm:$0xf]
      %v342 = vld [vmem:[%s248 + $0x8] sm:$0xf]
      %v343 = vld [vmem:[%s248 + $0xc] sm:$0xf]
      %v344 = vld [vmem:[%s248 + $0x10] sm:$0xf]
      %v345 = vld [vmem:[%s248 + $0x14] sm:$0xf]
      %v346 = vld [vmem:[%s248 + $0x18] sm:$0xf]
      %v347 = vld [vmem:[%s248 + $0x1c] sm:$0xf]
      %v348 = vld [vmem:[%s248 + $0x20] sm:$0xf]
      %v349 = vld [vmem:[%s248 + $0x24] sm:$0xf]
      %v350 = vld [vmem:[%s248 + $0x28] sm:$0xf]
      %v351 = vld [vmem:[%s248 + $0x2c] sm:$0xf]
      %v352 = vld [vmem:[%s248 + $0x30] sm:$0xf]
      %v353 = vld [vmem:[%s248 + $0x34] sm:$0xf]
      %v354 = vld [vmem:[%s248 + $0x38] sm:$0xf]
      %v355 = vld [vmem:[%s248 + $0x3c] sm:$0xf]
      %v364 = vunpack.c.l.b16 %v324
      %v365 = vunpack.c.l.b16 %v325
      %v366 = vunpack.c.l.b16 %v326
      %v367 = vunpack.c.l.b16 %v327
      %v368 = vunpack.c.l.b16 %v328
      %v369 = vunpack.c.l.b16 %v329
      %v370 = vunpack.c.l.b16 %v330
      %v371 = vunpack.c.l.b16 %v331
      %v372 = vpack.c.b16 %v365, %v364
      %v373 = vpack.c.b16 %v367, %v366
      %v374 = vpack.c.b16 %v369, %v368
      %v375 = vpack.c.b16 %v371, %v370
      %v396 = vunpack.c.l.b16 %v340
      %v397 = vunpack.c.l.b16 %v341
      %v398 = vunpack.c.l.b16 %v342
      %v399 = vunpack.c.l.b16 %v343
      %v400 = vunpack.c.l.b16 %v344
      %v401 = vunpack.c.l.b16 %v345
      %v402 = vunpack.c.l.b16 %v346
      %v403 = vunpack.c.l.b16 %v347
      %v404 = vunpack.c.l.b16 %v348
      %v405 = vunpack.c.l.b16 %v349
      %v406 = vunpack.c.l.b16 %v350
      %v407 = vunpack.c.l.b16 %v351
      %v408 = vunpack.c.l.b16 %v352
      %v409 = vunpack.c.l.b16 %v353
      %v410 = vunpack.c.l.b16 %v354
      %v411 = vunpack.c.l.b16 %v355
      %v412 = vpack.c.b16 %v397, %v396
      %v413 = vpack.c.b16 %v399, %v398
      %v414 = vpack.c.b16 %v401, %v400
      %v415 = vpack.c.b16 %v403, %v402
      %v416 = vpack.c.b16 %v405, %v404
      %v417 = vpack.c.b16 %v407, %v406
      %v418 = vpack.c.b16 %v409, %v408
      %v419 = vpack.c.b16 %v411, %v410
      %428 = vmatpush.bf16.msra.mxu0 %v419
      %429 = vmatpush.bf16.msra.mxu0 %v418
      %430 = vmatpush.bf16.msra.mxu0 %v417
      %431 = vmatpush.bf16.msra.mxu0 %v416
      %432 = vmatpush.bf16.msra.mxu0 %v415
      %433 = vmatpush.bf16.msra.mxu0 %v414
      %434 = vmatpush.bf16.msra.mxu0 %v413
      %435 = vmatpush.bf16.msra.mxu0 %v412
      %436 = vmatmul.bf16.gmra.mxu0 %v372
      %v437 = vpop.f32.mrf.mxu0
      %v438 = vadd.f32 0.0, %v437
      %v439 = vpop.f32.mrf.mxu0
      %v440 = vadd.f32 0.0, %v439
      %441 = vmatmul.bf16.gmra.mxu0 %v373
      %v442 = vpop.f32.mrf.mxu0
      %v443 = vadd.f32 0.0, %v442
      %v444 = vpop.f32.mrf.mxu0
      %v445 = vadd.f32 0.0, %v444
      %446 = vmatmul.bf16.gmra.mxu0 %v374
      %v447 = vpop.f32.mrf.mxu0
      %v448 = vadd.f32 0.0, %v447
      %v449 = vpop.f32.mrf.mxu0
      %v450 = vadd.f32 0.0, %v449
      %451 = vmatmul.bf16.gmra.mxu0 %v375
      %v452 = vpop.f32.mrf.mxu0
      %v453 = vadd.f32 0.0, %v452
      %v454 = vpop.f32.mrf.mxu0
      %v455 = vadd.f32 0.0, %v454
      %456 = vdwg.mxu0
      %v457 = vadd.f32 %v332, %v438
      %v458 = vadd.f32 %v333, %v440
      %v459 = vadd.f32 %v334, %v443
      %v460 = vadd.f32 %v335, %v445
      %v461 = vadd.f32 %v336, %v448
      %v462 = vadd.f32 %v337, %v450
      %v463 = vadd.f32 %v338, %v453
      %v464 = vadd.f32 %v339, %v455
      %vm465 = vcmask 130048
      %466 = vst.msk [vmem:[%s261] sm:$0xff] %vm465, %v457
      %467 = vst.msk [vmem:[%s261 + $0x8] sm:$0xff] %vm465, %v458
      %468 = vst.msk [vmem:[%s261 + $0x10] sm:$0xff] %vm465, %v459
      %469 = vst.msk [vmem:[%s261 + $0x18] sm:$0xff] %vm465, %v460
      %470 = vst.msk [vmem:[%s261 + $0x20] sm:$0xff] %vm465, %v461
      %471 = vst.msk [vmem:[%s261 + $0x28] sm:$0xff] %vm465, %v462
      %472 = vst.msk [vmem:[%s261 + $0x30] sm:$0xff] %vm465, %v463
      %473 = vst.msk [vmem:[%s261 + $0x38] sm:$0xff] %vm465, %v464
      %s474 = smul.u32 8, %s20
      %p475 = scmp.lt.s32.totalorder %s19, 0
      %s476 = scalar_select %p475, %s19, 0
      %p477 = scmp.lt.s32.totalorder %s474, 15
      %s478 = scalar_select %p477, %s474, 15
      %p479 = scmp.lt.s32.totalorder %s21, 0
      %s480 = scalar_select %p479, %s21, 0
      %s481 = sadd.s32 %s480, %s478
      %s482 = smul.addr %s476, 16
      %s483 = sadd.s32 %s481, %s482
      %s484 = smul.addr %s483, 8
      %s485 = scalar_lea.vmem %s2, %s484
      // Predicated region
      $region33: #{_lambda_.18} parent=27 // pred_check
        %p486 = pneg %p121
      $region34: #{_lambda_.18} parent=27 // pred_check_branch
        %488 = sbr.rel (%p486) target = $region36
      $region35: #{_lambda_.18} parent=27 // pred_region
        %s489 = smul.u32 8, %s20
      $region36: #{_lambda_.18} parent=27 // pred_fallthru
        _
    $region28: #{_lambda_.18} parent=5 // pred_fallthru
      _
    %p490 = scmp.le.s32.totalorder 2, %s8
    // Predicated region
    $region37: #{_lambda_.18} parent=5 // pred_check
      %p491 = pneg %p490
    $region38: #{_lambda_.18} parent=5 // pred_check_branch
      %493 = sbr.rel (%p491) target = $region40
    $region39: #{_lambda_.18} parent=5 // pred_region
      %s494 = ssub.s32 %s8, 2
      // Predicated region
      $region41: #{_lambda_.18} parent=39 // pred_check
        %p495 = pneg %p127
      $region42: #{_lambda_.18} parent=39 // pred_check_branch
        %497 = sbr.rel (%p495) target = $region44
      $region43: #{_lambda_.18} parent=39 // pred_region
        %s498 = smul.u32 8, %s24
        %p499 = scmp.lt.s32.totalorder %s23, 0
        %s500 = scalar_select %p499, %s23, 0
        %p501 = scmp.lt.s32.totalorder %s498, 15
        %s502 = scalar_select %p501, %s498, 15
        %p503 = scmp.lt.s32.totalorder %s25, 0
        %s504 = scalar_select %p503, %s25, 0
        %s505 = sadd.s32 %s504, %s502
        %s506 = smul.addr %s500, 16
        %s507 = sadd.s32 %s505, %s506
        %s508 = smul.addr %s507, 8
        %s509 = scalar_lea.vmem %s2, %s508
      $region44: #{_lambda_.18} parent=39 // pred_fallthru
        _
    $region40: #{_lambda_.18} parent=5 // pred_fallthru
      _
  $region6: #{_lambda_.18} parent=0 // loop_footer
    %s12 = sadd.s32 1, %s8
  $region7: #{_lambda_.18} parent=0 // loop_footer_branch
    %7 = sbr.rel target = $region3
  $region8: #{_lambda_.18} parent=0 // loop_exit
    _

// kernel: _lambda_.20
$region0: #{_lambda_.20}
  #allocation0 [shape = 'u32[]', space=smem, size = 0x4, offset = 0x4, fixed_abs, tag = 'smem constant byte address 0x4 - core index']
  #allocation1 [shape = 'u32[72,128]{1,0:T(1,128)}', space=vmem, size = 0x9000, scoped, tag = 'internal scratch']
  %s0 = inlined_call_operand.vmem [shape: bf16[1,32,256], index: 0, kind: input, shape index: {}]
  %s1 = inlined_call_operand.vmem [shape: bf16[1,256,32], index: 1, kind: input, shape index: {}]
  %s2 = inlined_call_operand.vmem [shape: f32[1,32,32], index: 2, kind: output, shape index: {}]
  %s3 = sld [smem:[#allocation0]]
  $region45: #{_lambda_.20} parent=0
    _
  %s5 = ssub.s32 1, %s3
  %s6 = scalar_select 0, %s5, %s3
  loop: start=0, step=1, limit=4
  $region2: #{_lambda_.20} parent=0 // loop_pre_header
    _
  $region3: #{_lambda_.20} parent=0 // loop_header
    %s8 = sphi 0, %s12
    %p9 = scmp.ge.s32.totalorder %s8, 4
    %s15 = sphi 0, %s41
    %s16 = sphi 0, %s37
    %s17 = sphi 0, %s33
    %s18 = sphi 0, %s29
    %s19 = sphi 0, %s15
    %s20 = sphi 0, %s16
    %s21 = sphi 0, %s17
    %s22 = sphi 0, %s18
    %s23 = sphi 0, %s19
    %s24 = sphi 0, %s20
    %s25 = sphi 0, %s21
    %s26 = sphi 0, %s22
    %s48 = sphi 0, %s50
    %s51 = sphi 0, %s48
    %s52 = sphi 0, %s51
    %s68 = sphi 0, %s52
    %s78 = sphi 0, %s80
    %s81 = sphi 0, %s78
    %s82 = sphi 0, %s81
    %s98 = sphi 0, %s82
    %s108 = sphi 0, %s110
    %s111 = sphi 0, %s108
    %s112 = sphi 0, %s111
    %s128 = sphi 0, %s112
  $region4: #{_lambda_.20} parent=0 // loop_header_branch
    %11 = sbr.rel (%p9) target = $region8
  $region5: #{_lambda_.20} parent=0 // loop_body
    %s13 = ssub.s32 %s8, 1
    %s14 = ssub.s32 %s8, 2
    %s27 = sadd.s32 1, %s18
    %p28 = scmp.ge.s32.totalorder %s27, 1
    %s29 = scalar_select %p28, 0, %s27
    %s30 = sadd.s32 1, %s17
    %s31 = scalar_select %p28, %s30, %s17
    %p32 = scmp.ge.s32.totalorder %s31, 1
    %s33 = scalar_select %p32, 0, %s31
    %s34 = sadd.s32 1, %s16
    %s35 = scalar_select %p32, %s34, %s16
    %p36 = scmp.ge.s32.totalorder %s35, 2
    %s37 = scalar_select %p36, 0, %s35
    %s38 = sadd.s32 1, %s15
    %s39 = scalar_select %p36, %s38, %s15
    %p40 = scmp.ge.s32.totalorder %s39, 1
    %s41 = scalar_select %p40, 0, %s39
    %s42 = ssub.s32 %s15, %s41
    %s43 = ssub.s32 %s16, %s37
    %s44 = sor.u32 %s42, %s43
    %s45 = ssub.s32 %s18, %s29
    %s46 = sor.u32 %s44, %s45
    %p47 = scmp.eq.s32.totalorder %s46, 0
    %s49 = sadd.s32 %s48, 1
    %s50 = scalar_select %p47, %s48, %s49
    %p53 = pneg %p47
    %p54 = scmp.eq.s32.totalorder %s8, 1
    %p55 = por %p53, %p54
    %p56 = scmp.ne.s32.totalorder %s48, %s51
    %p57 = scmp.eq.s32.totalorder %s8, 0
    %p58 = por %p56, %p57
    %p59 = scmp.ne.s32.totalorder %s48, %s51
    %p60 = scmp.eq.s32.totalorder %s13, 1
    %p61 = por %p59, %p60
    %p62 = scmp.ne.s32.totalorder %s51, %s52
    %p63 = scmp.eq.s32.totalorder %s13, 0
    %p64 = por %p62, %p63
    %p65 = scmp.ne.s32.totalorder %s51, %s52
    %p66 = scmp.eq.s32.totalorder %s14, 1
    %p67 = por %p65, %p66
    %p69 = scmp.ne.s32.totalorder %s52, %s68
    %p70 = scmp.eq.s32.totalorder %s14, 0
    %p71 = por %p69, %p70
    %s72 = ssub.s32 %s15, %s41
    %s73 = ssub.s32 %s18, %s29
    %s74 = sor.u32 %s72, %s73
    %s75 = ssub.s32 %s17, %s33
    %s76 = sor.u32 %s74, %s75
    %p77 = scmp.eq.s32.totalorder %s76, 0
    %s79 = sadd.s32 %s78, 1
    %s80 = scalar_select %p77, %s78, %s79
    %p83 = pneg %p77
    %p84 = scmp.eq.s32.totalorder %s8, 1
    %p85 = por %p83, %p84
    %p86 = scmp.ne.s32.totalorder %s78, %s81
    %p87 = scmp.eq.s32.totalorder %s8, 0
    %p88 = por %p86, %p87
    %p89 = scmp.ne.s32.totalorder %s78, %s81
    %p90 = scmp.eq.s32.totalorder %s13, 1
    %p91 = por %p89, %p90
    %p92 = scmp.ne.s32.totalorder %s81, %s82
    %p93 = scmp.eq.s32.totalorder %s13, 0
    %p94 = por %p92, %p93
    %p95 = scmp.ne.s32.totalorder %s81, %s82
    %p96 = scmp.eq.s32.totalorder %s14, 1
    %p97 = por %p95, %p96
    %p99 = scmp.ne.s32.totalorder %s82, %s98
    %p100 = scmp.eq.s32.totalorder %s14, 0
    %p101 = por %p99, %p100
    %s102 = ssub.s32 %s15, %s41
    %s103 = ssub.s32 %s16, %s37
    %s104 = sor.u32 %s102, %s103
    %s105 = ssub.s32 %s17, %s33
    %s106 = sor.u32 %s104, %s105
    %p107 = scmp.eq.s32.totalorder %s106, 0
    %s109 = sadd.s32 %s108, 1
    %s110 = scalar_select %p107, %s108, %s109
    %p113 = pneg %p107
    %p114 = scmp.eq.s32.totalorder %s8, 1
    %p115 = por %p113, %p114
    %p116 = scmp.ne.s32.totalorder %s108, %s111
    %p117 = scmp.eq.s32.totalorder %s8, 0
    %p118 = por %p116, %p117
    %p119 = scmp.ne.s32.totalorder %s108, %s111
    %p120 = scmp.eq.s32.totalorder %s13, 1
    %p121 = por %p119, %p120
    %p122 = scmp.ne.s32.totalorder %s111, %s112
    %p123 = scmp.eq.s32.totalorder %s13, 0
    %p124 = por %p122, %p123
    %p125 = scmp.ne.s32.totalorder %s111, %s112
    %p126 = scmp.eq.s32.totalorder %s14, 1
    %p127 = por %p125, %p126
    %p129 = scmp.ne.s32.totalorder %s112, %s128
    %p130 = scmp.eq.s32.totalorder %s14, 0
    %p131 = por %p129, %p130
    %p132 = scmp.le.s32.totalorder 1, %s8
    %p133 = scmp.lt.s32.totalorder %s8, 3
    %p134 = pnand %p132, %p133
    %p135 = pneg %p134
    // Predicated region
    $region9: #{_lambda_.20} parent=5 // pred_check
      _
    $region10: #{_lambda_.20} parent=5 // pred_check_branch
      %137 = sbr.rel (%p134) target = $region12
    $region11: #{_lambda_.20} parent=5 // pred_region
      %s138 = ssub.s32 %s8, 1
      // Predicated region
      $region13: #{_lambda_.20} parent=11 // pred_check
        %p139 = pneg %p94
      $region14: #{_lambda_.20} parent=11 // pred_check_branch
        %141 = sbr.rel (%p139) target = $region16
      $region15: #{_lambda_.20} parent=11 // pred_region
        %s142 = smul.u32 32, %s22
        %p143 = scmp.lt.s32.totalorder %s19, 0
        %s144 = scalar_select %p143, %s19, 0
        %p145 = scmp.lt.s32.totalorder %s142, 31
        %s146 = scalar_select %p145, %s142, 31
        %p147 = scmp.lt.s32.totalorder %s21, 0
        %s148 = scalar_select %p147, %s21, 0
        %s149 = sadd.s32 %s148, %s146
        %s150 = smul.addr %s144, 32
        %s151 = sadd.s32 %s149, %s150
        %s152 = smul.addr %s151, 4
        %s153 = scalar_lea.vmem %s1, %s152
        %s154 = smul.u32 32, %s22
      $region16: #{_lambda_.20} parent=11 // pred_fallthru
        _
    $region12: #{_lambda_.20} parent=5 // pred_fallthru
      _
    %p155 = scmp.lt.s32.totalorder %s8, 2
    // Predicated region
    $region17: #{_lambda_.20} parent=5 // pred_check
      %p156 = pneg %p155
    $region18: #{_lambda_.20} parent=5 // pred_check_branch
      %158 = sbr.rel (%p156) target = $region20
    $region19: #{_lambda_.20} parent=5 // pred_region
      // Predicated region
      $region21: #{_lambda_.20} parent=19 // pred_check
        %p159 = pneg %p58
      $region22: #{_lambda_.20} parent=19 // pred_check_branch
        %161 = sbr.rel (%p159) target = $region24
      $region23: #{_lambda_.20} parent=19 // pred_region
        %s162 = smul.u32 2, %s16
        %s163 = smul.u32 2, %s18
        %p164 = scmp.lt.s32.totalorder %s15, 0
        %s165 = scalar_select %p164, %s15, 0
        %p166 = scmp.lt.s32.totalorder %s162, 3
        %s167 = scalar_select %p166, %s162, 3
        %p168 = scmp.lt.s32.totalorder %s163, 1
        %s169 = scalar_select %p168, %s163, 1
        %s170 = smul.addr %s167, 2
        %s171 = sadd.s32 %s169, %s170
        %s172 = smul.addr %s165, 8
        %s173 = sadd.s32 %s171, %s172
        %s174 = smul.addr %s173, 4
        %s175 = scalar_lea.vmem %s0, %s174
        %s176 = smul.u32 2, %s16
        %s177 = smul.u32 2, %s18
      $region24: #{_lambda_.20} parent=19 // pred_fallthru
        _
    $region20: #{_lambda_.20} parent=5 // pred_fallthru
      _
    %p178 = scmp.le.s32.totalorder 1, %s8
    %p179 = scmp.lt.s32.totalorder %s8, 3
    %p180 = pnand %p178, %p179
    %p181 = pneg %p180
    // Predicated region
    $region25: #{_lambda_.20} parent=5 // pred_check
      _
    $region26: #{_lambda_.20} parent=5 // pred_check_branch
      %183 = sbr.rel (%p180) target = $region28
    $region27: #{_lambda_.20} parent=5 // pred_region
      %s184 = ssub.s32 %s8, 1
      %s185 = smul.u32 2, %s20
      %s186 = smul.u32 2, %s22
      %p187 = scmp.lt.s32.totalorder %s19, 0
      %s188 = scalar_select %p187, %s19, 0
      %p189 = scmp.lt.s32.totalorder %s185, 3
      %s190 = scalar_select %p189, %s185, 3
      %p191 = scmp.lt.s32.totalorder %s186, 1
      %s192 = scalar_select %p191, %s186, 1
      %s193 = smul.addr %s190, 2
      %s194 = sadd.s32 %s192, %s193
      %s195 = smul.addr %s188, 8
      %s196 = sadd.s32 %s194, %s195
      %s197 = smul.addr %s196, 4
      %s198 = scalar_lea.vmem %s0, %s197
      %p199 = pneg %p64
      %p200 = pneg %p61
      %s201 = smul.u32 32, %s22
      %p202 = scmp.lt.s32.totalorder %s19, 0
      %s203 = scalar_select %p202, %s19, 0
      %p204 = scmp.lt.s32.totalorder %s201, 31
      %s205 = scalar_select %p204, %s201, 31
      %p206 = scmp.lt.s32.totalorder %s21, 0
      %s207 = scalar_select %p206, %s21, 0
      %s208 = sadd.s32 %s207, %s205
      %s209 = smul.addr %s203, 32
      %s210 = sadd.s32 %s208, %s209
      %s211 = smul.addr %s210, 4
      %s212 = scalar_lea.vmem %s1, %s211
      %p213 = pneg %p94
      %p214 = pneg %p91
      %p215 = pneg %p124
      %p216 = pneg %p121
      %s217 = smul.u32 2, %s20
      %p218 = scmp.lt.s32.totalorder %s19, 0
      %s219 = scalar_select %p218, %s19, 0
      %p220 = scmp.lt.s32.totalorder %s217, 3
      %s221 = scalar_select %p220, %s217, 3
      %p222 = scmp.lt.s32.totalorder %s21, 0
      %s223 = scalar_select %p222, %s21, 0
      %s224 = sadd.s32 %s223, %s221
      %s225 = smul.addr %s219, 4
      %s226 = sadd.s32 %s224, %s225
      %s227 = smul.addr %s226, 8
      %s228 = scalar_lea.vmem %s2, %s227
      %s229 = smul.u32 2, %s20
      %s230 = smul.u32 2, %s22
      %p231 = scmp.lt.s32.totalorder %s19, 0
      %s232 = scalar_select %p231, %s19, 0
      %p233 = scmp.lt.s32.totalorder %s229, 3
      %s234 = scalar_select %p233, %s229, 3
      %p235 = scmp.lt.s32.totalorder %s230, 1
      %s236 = scalar_select %p235, %s230, 1
      %s237 = smul.addr %s234, 2
      %s238 = sadd.s32 %s236, %s237
      %s239 = smul.addr %s232, 8
      %s240 = sadd.s32 %s238, %s239
      %s241 = smul.addr %s240, 4
      %s242 = scalar_lea.vmem %s0, %s241
      %s243 = smul.u32 2, %s20
      %s244 = smul.u32 2, %s22
      %s245 = smul.u32 32, %s22
      %p246 = scmp.lt.s32.totalorder %s19, 0
      %s247 = scalar_select %p246, %s19, 0
      %p248 = scmp.lt.s32.totalorder %s245, 31
      %s249 = scalar_select %p248, %s245, 31
      %p250 = scmp.lt.s32.totalorder %s21, 0
      %s251 = scalar_select %p250, %s21, 0
      %s252 = sadd.s32 %s251, %s249
      %s253 = smul.addr %s247, 32
      %s254 = sadd.s32 %s252, %s253
      %s255 = smul.addr %s254, 4
      %s256 = scalar_lea.vmem %s1, %s255
      %s257 = smul.u32 32, %s22
      %s258 = smul.u32 2, %s20
      %p259 = scmp.lt.s32.totalorder %s19, 0
      %s260 = scalar_select %p259, %s19, 0
      %p261 = scmp.lt.s32.totalorder %s258, 3
      %s262 = scalar_select %p261, %s258, 3
      %p263 = scmp.lt.s32.totalorder %s21, 0
      %s264 = scalar_select %p263, %s21, 0
      %s265 = sadd.s32 %s264, %s262
      %s266 = smul.addr %s260, 4
      %s267 = sadd.s32 %s265, %s266
      %s268 = smul.addr %s267, 8
      %s269 = scalar_lea.vmem %s2, %s268
      %s270 = smul.u32 2, %s20
      %p271 = scmp.eq.s32.totalorder %s22, 0
      // Predicated region
      $region29: #{_lambda_.20} parent=27 // pred_check
        %p272 = pneg %p271
      $region30: #{_lambda_.20} parent=27 // pred_check_branch
        %274 = sbr.rel (%p272) target = $region32
      $region31: #{_lambda_.20} parent=27 // pred_region
        %vm275 = vcmask 261120
        %276 = vst.msk [vmem:[%s269] sm:$0xff] %vm275, 0.0
        %277 = vst.msk [vmem:[%s269 + $0x8] sm:$0xff] %vm275, 0.0
      $region32: #{_lambda_.20} parent=27 // pred_fallthru
        _
      %v278 = vld [vmem:[%s242] sm:$0xff]
      %v279 = vld [vmem:[%s242 + $0x8] sm:$0xff]
      %v280 = vunpack.c.l.bf16 %v278
      %v281 = vunpack.c.h.bf16 %v278
      %v282 = vunpack.c.l.bf16 %v279
      %v283 = vunpack.c.h.bf16 %v279
      %vm284 = vcmp.gt.f32.partialorder %v280, 0.0
      %vm285 = vcmp.gt.f32.partialorder %v281, 0.0
      %vm286 = vcmp.gt.f32.partialorder %v282, 0.0
      %vm287 = vcmp.gt.f32.partialorder %v283, 0.0
      %v288 = vmul.f32 %v280, 0.20019531
      %v289 = vmul.f32 %v281, 0.20019531
      %v290 = vmul.f32 %v282, 0.20019531
      %v291 = vmul.f32 %v283, 0.20019531
      %v292 = vpack.c.bf16 %v289, %v288
      %v293 = vpack.c.bf16 %v291, %v290
      %vm294 = vmpackc.low %vm285, %vm284
      %vm295 = vmpackc.low %vm287, %vm286
      %v296 = vsel %vm294, %v278, %v292
      %v297 = vsel %vm295, %v279, %v293
      %v298 = vld [vmem:[%s269] sm:$0xff]
      %v299 = vld [vmem:[%s269 + $0x8] sm:$0xff]
      %v300 = vld [vmem:[%s256] sm:$0xf]
      %v301 = vld [vmem:[%s256 + $0x4] sm:$0xf]
      %v302 = vld [vmem:[%s256 + $0x8] sm:$0xf]
      %v303 = vld [vmem:[%s256 + $0xc] sm:$0xf]
      %v304 = vld [vmem:[%s256 + $0x10] sm:$0xf]
      %v305 = vld [vmem:[%s256 + $0x14] sm:$0xf]
      %v306 = vld [vmem:[%s256 + $0x18] sm:$0xf]
      %v307 = vld [vmem:[%s256 + $0x1c] sm:$0xf]
      %v308 = vld [vmem:[%s256 + $0x20] sm:$0xf]
      %v309 = vld [vmem:[%s256 + $0x24] sm:$0xf]
      %v310 = vld [vmem:[%s256 + $0x28] sm:$0xf]
      %v311 = vld [vmem:[%s256 + $0x2c] sm:$0xf]
      %v312 = vld [vmem:[%s256 + $0x30] sm:$0xf]
      %v313 = vld [vmem:[%s256 + $0x34] sm:$0xf]
      %v314 = vld [vmem:[%s256 + $0x38] sm:$0xf]
      %v315 = vld [vmem:[%s256 + $0x3c] sm:$0xf]
      %v316 = vld [vmem:[%s256 + $0x40] sm:$0xf]
      %v317 = vld [vmem:[%s256 + $0x44] sm:$0xf]
      %v318 = vld [vmem:[%s256 + $0x48] sm:$0xf]
      %v319 = vld [vmem:[%s256 + $0x4c] sm:$0xf]
      %v320 = vld [vmem:[%s256 + $0x50] sm:$0xf]
      %v321 = vld [vmem:[%s256 + $0x54] sm:$0xf]
      %v322 = vld [vmem:[%s256 + $0x58] sm:$0xf]
      %v323 = vld [vmem:[%s256 + $0x5c] sm:$0xf]
      %v324 = vld [vmem:[%s256 + $0x60] sm:$0xf]
      %v325 = vld [vmem:[%s256 + $0x64] sm:$0xf]
      %v326 = vld [vmem:[%s256 + $0x68] sm:$0xf]
      %v327 = vld [vmem:[%s256 + $0x6c] sm:$0xf]
      %v328 = vld [vmem:[%s256 + $0x70] sm:$0xf]
      %v329 = vld [vmem:[%s256 + $0x74] sm:$0xf]
      %v330 = vld [vmem:[%s256 + $0x78] sm:$0xf]
      %v331 = vld [vmem:[%s256 + $0x7c] sm:$0xf]
      %v334 = vunpack.c.l.b16 %v296
      %v335 = vunpack.c.h.b16 %v296
      %v336 = vunpack.c.l.b16 %v297
      %v337 = vunpack.c.h.b16 %v297
      %v338 = vpack.c.b16 %v336, %v334
      %v339 = vpack.c.b16 %v337, %v335
      %v374 = vunpack.c.l.b16 %v300
      %v375 = vunpack.c.l.b16 %v301
      %v376 = vunpack.c.l.b16 %v302
      %v377 = vunpack.c.l.b16 %v303
      %v378 = vunpack.c.l.b16 %v304
      %v379 = vunpack.c.l.b16 %v305
      %v380 = vunpack.c.l.b16 %v306
      %v381 = vunpack.c.l.b16 %v307
      %v382 = vunpack.c.l.b16 %v308
      %v383 = vunpack.c.l.b16 %v309
      %v384 = vunpack.c.l.b16 %v310
      %v385 = vunpack.c.l.b16 %v311
      %v386 = vunpack.c.l.b16 %v312
      %v387 = vunpack.c.l.b16 %v313
      %v388 = vunpack.c.l.b16 %v314
      %v389 = vunpack.c.l.b16 %v315
      %v390 = vunpack.c.l.b16 %v316
      %v391 = vunpack.c.l.b16 %v317
      %v392 = vunpack.c.l.b16 %v318
      %v393 = vunpack.c.l.b16 %v319
      %v394 = vunpack.c.l.b16 %v320
      %v395 = vunpack.c.l.b16 %v321
      %v396 = vunpack.c.l.b16 %v322
      %v397 = vunpack.c.l.b16 %v323
      %v398 = vunpack.c.l.b16 %v324
      %v399 = vunpack.c.l.b16 %v325
      %v400 = vunpack.c.l.b16 %v326
      %v401 = vunpack.c.l.b16 %v327
      %v402 = vunpack.c.l.b16 %v328
      %v403 = vunpack.c.l.b16 %v329
      %v404 = vunpack.c.l.b16 %v330
      %v405 = vunpack.c.l.b16 %v331
      %v406 = vpack.c.b16 %v375, %v374
      %v407 = vpack.c.b16 %v377, %v376
      %v408 = vpack.c.b16 %v379, %v378
      %v409 = vpack.c.b16 %v381, %v380
      %v410 = vpack.c.b16 %v383, %v382
      %v411 = vpack.c.b16 %v385, %v384
      %v412 = vpack.c.b16 %v387, %v386
      %v413 = vpack.c.b16 %v389, %v388
      %v414 = vpack.c.b16 %v391, %v390
      %v415 = vpack.c.b16 %v393, %v392
      %v416 = vpack.c.b16 %v395, %v394
      %v417 = vpack.c.b16 %v397, %v396
      %v418 = vpack.c.b16 %v399, %v398
      %v419 = vpack.c.b16 %v401, %v400
      %v420 = vpack.c.b16 %v403, %v402
      %v421 = vpack.c.b16 %v405, %v404
      %438 = vmatpush.bf16.msra.mxu0 %v413
      %439 = vmatpush.bf16.msra.mxu0 %v412
      %440 = vmatpush.bf16.msra.mxu0 %v411
      %441 = vmatpush.bf16.msra.mxu0 %v410
      %442 = vmatpush.bf16.msra.mxu0 %v409
      %443 = vmatpush.bf16.msra.mxu0 %v408
      %444 = vmatpush.bf16.msra.mxu0 %v407
      %445 = vmatpush.bf16.msra.mxu0 %v406
      %446 = vmatmul.bf16.gmra.mxu0 %v338
      %v447 = vpop.f32.mrf.mxu0
      %v448 = vadd.f32 0.0, %v447
      %v449 = vpop.f32.mrf.mxu0
      %v450 = vadd.f32 0.0, %v449
      %451 = vdwg.mxu0
      %452 = vmatpush.bf16.msra.mxu0 %v421
      %453 = vmatpush.bf16.msra.mxu0 %v420
      %454 = vmatpush.bf16.msra.mxu0 %v419
      %455 = vmatpush.bf16.msra.mxu0 %v418
      %456 = vmatpush.bf16.msra.mxu0 %v417
      %457 = vmatpush.bf16.msra.mxu0 %v416
      %458 = vmatpush.bf16.msra.mxu0 %v415
      %459 = vmatpush.bf16.msra.mxu0 %v414
      %460 = vmatmul.bf16.gmra.mxu0 %v339
      %v461 = vpop.f32.mrf.mxu0
      %v462 = vadd.f32 %v448, %v461
      %v463 = vpop.f32.mrf.mxu0
      %v464 = vadd.f32 %v450, %v463
      %465 = vdwg.mxu0
      %v466 = vadd.f32 %v298, %v462
      %v467 = vadd.f32 %v299, %v464
      %vm468 = vcmask 261120
      %469 = vst.msk [vmem:[%s269] sm:$0xff] %vm468, %v466
      %470 = vst.msk [vmem:[%s269 + $0x8] sm:$0xff] %vm468, %v467
      %s471 = smul.u32 2, %s20
      %p472 = scmp.lt.s32.totalorder %s19, 0
      %s473 = scalar_select %p472, %s19, 0
      %p474 = scmp.lt.s32.totalorder %s471, 3
      %s475 = scalar_select %p474, %s471, 3
      %p476 = scmp.lt.s32.totalorder %s21, 0
      %s477 = scalar_select %p476, %s21, 0
      %s478 = sadd.s32 %s477, %s475
      %s479 = smul.addr %s473, 4
      %s480 = sadd.s32 %s478, %s479
      %s481 = smul.addr %s480, 8
      %s482 = scalar_lea.vmem %s2, %s481
      // Predicated region
      $region33: #{_lambda_.20} parent=27 // pred_check
        %p483 = pneg %p121
      $region34: #{_lambda_.20} parent=27 // pred_check_branch
        %485 = sbr.rel (%p483) target = $region36
      $region35: #{_lambda_.20} parent=27 // pred_region
        %s486 = smul.u32 2, %s20
      $region36: #{_lambda_.20} parent=27 // pred_fallthru
        _
    $region28: #{_lambda_.20} parent=5 // pred_fallthru
      _
    %p487 = scmp.le.s32.totalorder 2, %s8
    // Predicated region
    $region37: #{_lambda_.20} parent=5 // pred_check
      %p488 = pneg %p487
    $region38: #{_lambda_.20} parent=5 // pred_check_branch
      %490 = sbr.rel (%p488) target = $region40
    $region39: #{_lambda_.20} parent=5 // pred_region
      %s491 = ssub.s32 %s8, 2
      // Predicated region
      $region41: #{_lambda_.20} parent=39 // pred_check
        %p492 = pneg %p127
      $region42: #{_lambda_.20} parent=39 // pred_check_branch
        %494 = sbr.rel (%p492) target = $region44
      $region43: #{_lambda_.20} parent=39 // pred_region
        %s495 = smul.u32 2, %s24
        %p496 = scmp.lt.s32.totalorder %s23, 0
        %s497 = scalar_select %p496, %s23, 0
        %p498 = scmp.lt.s32.totalorder %s495, 3
        %s499 = scalar_select %p498, %s495, 3
        %p500 = scmp.lt.s32.totalorder %s25, 0
        %s501 = scalar_select %p500, %s25, 0
        %s502 = sadd.s32 %s501, %s499
        %s503 = smul.addr %s497, 4
        %s504 = sadd.s32 %s502, %s503
        %s505 = smul.addr %s504, 8
        %s506 = scalar_lea.vmem %s2, %s505
      $region44: #{_lambda_.20} parent=39 // pred_fallthru
        _
    $region40: #{_lambda_.20} parent=5 // pred_fallthru
      _
  $region6: #{_lambda_.20} parent=0 // loop_footer
    %s12 = sadd.s32 1, %s8
  $region7: #{_lambda_.20} parent=0 // loop_footer_branch
    %7 = sbr.rel target = $region3
  $region8: #{_lambda_.20} parent=0 // loop_exit
    _

// kernel: _lambda_.21
$region0: #{_lambda_.21}
  #allocation0 [shape = 'u32[]', space=smem, size = 0x4, offset = 0x4, fixed_abs, tag = 'smem constant byte address 0x4 - core index']
  #allocation1 [shape = 'u32[72,128]{1,0:T(1,128)}', space=vmem, size = 0x9000, scoped, tag = 'internal scratch']
  #allocation2 [shape = 'f32[1,32]{1,0:T(1,128)}', space=vmem, size = 0x200, scoped, tag = 'scratch operand']
  #allocation3 [shape = 'f32[1,32]{1,0:T(1,128)}', space=vmem, size = 0x200, scoped, tag = 'scratch operand']
  %s0 = inlined_call_operand.vmem [shape: f32[32,32], index: 0, kind: input, shape index: {}]
  %s1 = inlined_call_operand.vmem [shape: f32[1,32], index: 1, kind: input, shape index: {}]
  %s2 = inlined_call_operand.vmem [shape: f32[1,32], index: 2, kind: input, shape index: {}]
  %s3 = inlined_call_operand.vmem [shape: f32[1,32], index: 3, kind: output, shape index: {0}]
  %s4 = inlined_call_operand.vmem [shape: f32[1,32], index: 4, kind: output, shape index: {1}]
  %5 = xla_tuple %s3, %s4
  %s6 = sld [smem:[#allocation0]]
  $region38: #{_lambda_.21} parent=0
    _
  %s8 = ssub.s32 1, %s6
  %s9 = scalar_select 0, %s8, %s6
  // Predicated region
  $region2: #{_lambda_.21} parent=0 // pred_check
    _
  $region3: #{_lambda_.21} parent=0 // pred_check_branch
    %11 = sbr.rel (0) target = $region5
  $region4: #{_lambda_.21} parent=0 // pred_region
    _
  $region5: #{_lambda_.21} parent=0 // pred_fallthru
    _
  // Predicated region
  $region6: #{_lambda_.21} parent=0 // pred_check
    _
  $region7: #{_lambda_.21} parent=0 // pred_check_branch
    %13 = sbr.rel (0) target = $region9
  $region8: #{_lambda_.21} parent=0 // pred_region
    _
  $region9: #{_lambda_.21} parent=0 // pred_fallthru
    _
  // Predicated region
  $region10: #{_lambda_.21} parent=0 // pred_check
    _
  $region11: #{_lambda_.21} parent=0 // pred_check_branch
    %15 = sbr.rel (0) target = $region13
  $region12: #{_lambda_.21} parent=0 // pred_region
    _
  $region13: #{_lambda_.21} parent=0 // pred_fallthru
    _
  %p16 = scmp.eq.s32.totalorder 0, 0
  // Predicated region
  $region14: #{_lambda_.21} parent=0 // pred_check
    %p17 = pneg %p16
  $region15: #{_lambda_.21} parent=0 // pred_check_branch
    %19 = sbr.rel (%p17) target = $region17
  $region16: #{_lambda_.21} parent=0 // pred_region
    %vm20 = vcmask 253952
    %21 = vst.msk [vmem:[#allocation2] sm:$0x1] %vm20, 0.0
    %22 = vst.msk [vmem:[#allocation3] sm:$0x1] %vm20, 0.0
  $region17: #{_lambda_.21} parent=0 // pred_fallthru
    _
  %v23 = vld [vmem:[%s0] sm:$0xff]
  %v24 = vld [vmem:[%s0 + $0x8] sm:$0xff]
  %v25 = vld [vmem:[%s0 + $0x10] sm:$0xff]
  %v26 = vld [vmem:[%s0 + $0x18] sm:$0xff]
  %v27 = vld [vmem:[#allocation2] sm:$0x1]
  %vm28 = vcmask 261120
  %v29 = vsel %vm28, %v23, 0.0
  %v30 = vsel %vm28, %v24, 0.0
  %v31 = vadd.f32 %v29, %v30
  %v32 = vsel %vm28, %v25, 0.0
  %v33 = vadd.f32 %v31, %v32
  %v34 = vsel %vm28, %v26, 0.0
  %v35 = vadd.f32 %v33, %v34
  %v36 = vrot.slane %v35, 4
  %v37 = vadd.f32 %v35, %v36
  %v38 = vrot.slane %v37, 2
  %v39 = vadd.f32 %v37, %v38
  %v40 = vrot.slane %v39, 1
  %v41 = vadd.f32 %v39, %v40
  %v42 = vadd.f32 %v27, %v41
  %vm43 = vcmask 253952
  %44 = vst.msk [vmem:[#allocation2] sm:$0x1] %vm43, %v42
  %v45 = vld [vmem:[#allocation3] sm:$0x1]
  %v46 = vmul.f32 %v23, %v23
  %v47 = vmul.f32 %v24, %v24
  %v48 = vmul.f32 %v25, %v25
  %v49 = vmul.f32 %v26, %v26
  %v50 = vsel %vm28, %v46, 0.0
  %v51 = vsel %vm28, %v47, 0.0
  %v52 = vadd.f32 %v50, %v51
  %v53 = vsel %vm28, %v48, 0.0
  %v54 = vadd.f32 %v52, %v53
  %v55 = vsel %vm28, %v49, 0.0
  %v56 = vadd.f32 %v54, %v55
  %v57 = vrot.slane %v56, 4
  %v58 = vadd.f32 %v56, %v57
  %v59 = vrot.slane %v58, 2
  %v60 = vadd.f32 %v58, %v59
  %v61 = vrot.slane %v60, 1
  %v62 = vadd.f32 %v60, %v61
  %v63 = vadd.f32 %v45, %v62
  %64 = vst.msk [vmem:[#allocation3] sm:$0x1] %vm43, %v63
  // Predicated region
  $region18: #{_lambda_.21} parent=0 // pred_check
    %p65 = pneg %p16
  $region19: #{_lambda_.21} parent=0 // pred_check_branch
    %67 = sbr.rel (%p65) target = $region21
  $region20: #{_lambda_.21} parent=0 // pred_region
    %v68 = vld [vmem:[#allocation2] sm:$0x1]
    %v69 = vmul.f32 %v68, 0.03125
    %v70 = vld [vmem:[#allocation3] sm:$0x1]
    %v71 = vmul.f32 %v70, 0.03125
    %v72 = vmul.f32 %v69, %v69
    %v73 = vsub.f32 %v71, %v72
    %v74 = vmax.f32 %v73, 0.0
    %v75 = vld [vmem:[%s1] sm:$0x1]
    %v76 = vadd.f32 %v74, 1e-05
    %v77 = vrsqrt.pop %v76
    %v78 = vmul.f32 %v77, %v76
    %v79 = vmul.f32 %v78, %v77
    %v80 = vmul.f32 0.5, %v79
    %v81 = vsub.f32 1.5, %v80
    %v82 = vmul.f32 %v77, %v81
    %vm83 = vweird.f32 %v76
    %vm84 = vweird.f32 %v77
    %vm85 = vmor %vm83, %vm84
    %v86 = vsel %vm85, %v77, %v82
    %v87 = vmul.f32 %v75, %v86
    %88 = vst.msk [vmem:[%s3] sm:$0x1] %vm43, %v87
    %v89 = vld [vmem:[%s2] sm:$0x1]
    %v90 = vmul.f32 %v69, %v87
    %v91 = vsub.f32 %v89, %v90
    %92 = vst.msk [vmem:[%s4] sm:$0x1] %vm43, %v91
  $region21: #{_lambda_.21} parent=0 // pred_fallthru
    _
  // Predicated region
  $region22: #{_lambda_.21} parent=0 // pred_check
    _
  $region23: #{_lambda_.21} parent=0 // pred_check_branch
    %94 = sbr.rel (0) target = $region25
  $region24: #{_lambda_.21} parent=0 // pred_region
    _
  $region25: #{_lambda_.21} parent=0 // pred_fallthru
    _
  // Predicated region
  $region26: #{_lambda_.21} parent=0 // pred_check
    _
  $region27: #{_lambda_.21} parent=0 // pred_check_branch
    %96 = sbr.rel (0) target = $region29
  $region28: #{_lambda_.21} parent=0 // pred_region
    _
  $region29: #{_lambda_.21} parent=0 // pred_fallthru
    _
  // Predicated region
  $region30: #{_lambda_.21} parent=0 // pred_check
    _
  $region31: #{_lambda_.21} parent=0 // pred_check_branch
    %98 = sbr.rel (0) target = $region33
  $region32: #{_lambda_.21} parent=0 // pred_region
    _
  $region33: #{_lambda_.21} parent=0 // pred_fallthru
    _
  // Predicated region
  $region34: #{_lambda_.21} parent=0 // pred_check
    _
  $region35: #{_lambda_.21} parent=0 // pred_check_branch
    %100 = sbr.rel (0) target = $region37
  $region36: #{_lambda_.21} parent=0 // pred_region
    _
  $region37: #{_lambda_.21} parent=0 // pred_fallthru
    _

// kernel: _lambda_.23
$region0: #{_lambda_.23}
  #allocation0 [shape = 'u32[]', space=smem, size = 0x4, offset = 0x4, fixed_abs, tag = 'smem constant byte address 0x4 - core index']
  #allocation1 [shape = 'u32[72,128]{1,0:T(1,128)}', space=vmem, size = 0x9000, scoped, tag = 'internal scratch']
  #allocation2 [shape = 'f32[1,64]{1,0:T(1,128)}', space=vmem, size = 0x200, scoped, tag = 'scratch operand']
  #allocation3 [shape = 'f32[1,64]{1,0:T(1,128)}', space=vmem, size = 0x200, scoped, tag = 'scratch operand']
  %s0 = inlined_call_operand.vmem [shape: f32[8,64], index: 0, kind: input, shape index: {}]
  %s1 = inlined_call_operand.vmem [shape: f32[1,64], index: 1, kind: input, shape index: {}]
  %s2 = inlined_call_operand.vmem [shape: f32[1,64], index: 2, kind: input, shape index: {}]
  %s3 = inlined_call_operand.vmem [shape: f32[1,64], index: 3, kind: output, shape index: {0}]
  %s4 = inlined_call_operand.vmem [shape: f32[1,64], index: 4, kind: output, shape index: {1}]
  %5 = xla_tuple %s3, %s4
  %s6 = sld [smem:[#allocation0]]
  $region38: #{_lambda_.23} parent=0
    _
  %s8 = ssub.s32 1, %s6
  %s9 = scalar_select 0, %s8, %s6
  // Predicated region
  $region2: #{_lambda_.23} parent=0 // pred_check
    _
  $region3: #{_lambda_.23} parent=0 // pred_check_branch
    %11 = sbr.rel (0) target = $region5
  $region4: #{_lambda_.23} parent=0 // pred_region
    _
  $region5: #{_lambda_.23} parent=0 // pred_fallthru
    _
  // Predicated region
  $region6: #{_lambda_.23} parent=0 // pred_check
    _
  $region7: #{_lambda_.23} parent=0 // pred_check_branch
    %13 = sbr.rel (0) target = $region9
  $region8: #{_lambda_.23} parent=0 // pred_region
    _
  $region9: #{_lambda_.23} parent=0 // pred_fallthru
    _
  // Predicated region
  $region10: #{_lambda_.23} parent=0 // pred_check
    _
  $region11: #{_lambda_.23} parent=0 // pred_check_branch
    %15 = sbr.rel (0) target = $region13
  $region12: #{_lambda_.23} parent=0 // pred_region
    _
  $region13: #{_lambda_.23} parent=0 // pred_fallthru
    _
  %p16 = scmp.eq.s32.totalorder 0, 0
  // Predicated region
  $region14: #{_lambda_.23} parent=0 // pred_check
    %p17 = pneg %p16
  $region15: #{_lambda_.23} parent=0 // pred_check_branch
    %19 = sbr.rel (%p17) target = $region17
  $region16: #{_lambda_.23} parent=0 // pred_region
    %vm20 = vcmask 516096
    %21 = vst.msk [vmem:[#allocation2] sm:$0x1] %vm20, 0.0
    %22 = vst.msk [vmem:[#allocation3] sm:$0x1] %vm20, 0.0
  $region17: #{_lambda_.23} parent=0 // pred_fallthru
    _
  %v23 = vld [vmem:[%s0] sm:$0xff]
  %v24 = vld [vmem:[#allocation2] sm:$0x1]
  %vm25 = vcmask 523264
  %v26 = vsel %vm25, %v23, 0.0
  %v27 = vrot.slane %v26, 4
  %v28 = vadd.f32 %v26, %v27
  %v29 = vrot.slane %v28, 2
  %v30 = vadd.f32 %v28, %v29
  %v31 = vrot.slane %v30, 1
  %v32 = vadd.f32 %v30, %v31
  %v33 = vadd.f32 %v24, %v32
  %vm34 = vcmask 516096
  %35 = vst.msk [vmem:[#allocation2] sm:$0x1] %vm34, %v33
  %v36 = vld [vmem:[#allocation3] sm:$0x1]
  %v37 = vmul.f32 %v23, %v23
  %v38 = vsel %vm25, %v37, 0.0
  %v39 = vrot.slane %v38, 4
  %v40 = vadd.f32 %v38, %v39
  %v41 = vrot.slane %v40, 2
  %v42 = vadd.f32 %v40, %v41
  %v43 = vrot.slane %v42, 1
  %v44 = vadd.f32 %v42, %v43
  %v45 = vadd.f32 %v36, %v44
  %46 = vst.msk [vmem:[#allocation3] sm:$0x1] %vm34, %v45
  // Predicated region
  $region18: #{_lambda_.23} parent=0 // pred_check
    %p47 = pneg %p16
  $region19: #{_lambda_.23} parent=0 // pred_check_branch
    %49 = sbr.rel (%p47) target = $region21
  $region20: #{_lambda_.23} parent=0 // pred_region
    %v50 = vld [vmem:[#allocation2] sm:$0x1]
    %v51 = vmul.f32 %v50, 0.125
    %v52 = vld [vmem:[#allocation3] sm:$0x1]
    %v53 = vmul.f32 %v52, 0.125
    %v54 = vmul.f32 %v51, %v51
    %v55 = vsub.f32 %v53, %v54
    %v56 = vmax.f32 %v55, 0.0
    %v57 = vld [vmem:[%s1] sm:$0x1]
    %v58 = vadd.f32 %v56, 1e-05
    %v59 = vrsqrt.pop %v58
    %v60 = vmul.f32 %v59, %v58
    %v61 = vmul.f32 %v60, %v59
    %v62 = vmul.f32 0.5, %v61
    %v63 = vsub.f32 1.5, %v62
    %v64 = vmul.f32 %v59, %v63
    %vm65 = vweird.f32 %v58
    %vm66 = vweird.f32 %v59
    %vm67 = vmor %vm65, %vm66
    %v68 = vsel %vm67, %v59, %v64
    %v69 = vmul.f32 %v57, %v68
    %70 = vst.msk [vmem:[%s3] sm:$0x1] %vm34, %v69
    %v71 = vld [vmem:[%s2] sm:$0x1]
    %v72 = vmul.f32 %v51, %v69
    %v73 = vsub.f32 %v71, %v72
    %74 = vst.msk [vmem:[%s4] sm:$0x1] %vm34, %v73
  $region21: #{_lambda_.23} parent=0 // pred_fallthru
    _
  // Predicated region
  $region22: #{_lambda_.23} parent=0 // pred_check
    _
  $region23: #{_lambda_.23} parent=0 // pred_check_branch
    %76 = sbr.rel (0) target = $region25
  $region24: #{_lambda_.23} parent=0 // pred_region
    _
  $region25: #{_lambda_.23} parent=0 // pred_fallthru
    _
  // Predicated region
  $region26: #{_lambda_.23} parent=0 // pred_check
    _
  $region27: #{_lambda_.23} parent=0 // pred_check_branch
    %78 = sbr.rel (0) target = $region29
  $region28: #{_lambda_.23} parent=0 // pred_region
    _
  $region29: #{_lambda_.23} parent=0 // pred_fallthru
    _
  // Predicated region
  $region30: #{_lambda_.23} parent=0 // pred_check
    _
  $region31: #{_lambda_.23} parent=0 // pred_check_branch
    %80 = sbr.rel (0) target = $region33
  $region32: #{_lambda_.23} parent=0 // pred_region
    _
  $region33: #{_lambda_.23} parent=0 // pred_fallthru
    _
  // Predicated region
  $region34: #{_lambda_.23} parent=0 // pred_check
    _
  $region35: #{_lambda_.23} parent=0 // pred_check_branch
    %82 = sbr.rel (0) target = $region37
  $region36: #{_lambda_.23} parent=0 // pred_region
    _
  $region37: #{_lambda_.23} parent=0 // pred_fallthru
    _

// kernel: _lambda_.22
$region0: #{_lambda_.22}
  #allocation0 [shape = 'u32[]', space=smem, size = 0x4, offset = 0x4, fixed_abs, tag = 'smem constant byte address 0x4 - core index']
  #allocation1 [shape = 'u32[72,128]{1,0:T(1,128)}', space=vmem, size = 0x9000, scoped, tag = 'internal scratch']
  %s0 = inlined_call_operand.vmem [shape: bf16[1,8,512], index: 0, kind: input, shape index: {}]
  %s1 = inlined_call_operand.vmem [shape: bf16[1,512,64], index: 1, kind: input, shape index: {}]
  %s2 = inlined_call_operand.vmem [shape: f32[1,8,64], index: 2, kind: output, shape index: {}]
  %s3 = sld [smem:[#allocation0]]
  $region22: #{_lambda_.22} parent=0
    _
  %s5 = ssub.s32 1, %s3
  %s6 = scalar_select 0, %s5, %s3
  // Predicated region
  $region2: #{_lambda_.22} parent=0 // pred_check
    _
  $region3: #{_lambda_.22} parent=0 // pred_check_branch
    %8 = sbr.rel (0) target = $region5
  $region4: #{_lambda_.22} parent=0 // pred_region
    _
  $region5: #{_lambda_.22} parent=0 // pred_fallthru
    _
  // Predicated region
  $region6: #{_lambda_.22} parent=0 // pred_check
    _
  $region7: #{_lambda_.22} parent=0 // pred_check_branch
    %10 = sbr.rel (0) target = $region9
  $region8: #{_lambda_.22} parent=0 // pred_region
    _
  $region9: #{_lambda_.22} parent=0 // pred_fallthru
    _
  %p11 = scmp.eq.s32.totalorder 0, 0
  // Predicated region
  $region10: #{_lambda_.22} parent=0 // pred_check
    %p12 = pneg %p11
  $region11: #{_lambda_.22} parent=0 // pred_check_branch
    %14 = sbr.rel (%p12) target = $region13
  $region12: #{_lambda_.22} parent=0 // pred_region
    %vm15 = vcmask 523264
    %16 = vst.msk [vmem:[%s2] sm:$0xff] %vm15, 0.0
  $region13: #{_lambda_.22} parent=0 // pred_fallthru
    _
  %v17 = vld [vmem:[%s0] sm:$0xff]
  %v18 = vld [vmem:[%s0 + $0x8] sm:$0xff]
  %v19 = vunpack.c.l.bf16 %v17
  %v20 = vunpack.c.h.bf16 %v17
  %v21 = vunpack.c.l.bf16 %v18
  %v22 = vunpack.c.h.bf16 %v18
  %vm23 = vcmp.gt.f32.partialorder %v19, 0.0
  %vm24 = vcmp.gt.f32.partialorder %v20, 0.0
  %vm25 = vcmp.gt.f32.partialorder %v21, 0.0
  %vm26 = vcmp.gt.f32.partialorder %v22, 0.0
  %v27 = vmul.f32 %v19, 0.20019531
  %v28 = vmul.f32 %v20, 0.20019531
  %v29 = vmul.f32 %v21, 0.20019531
  %v30 = vmul.f32 %v22, 0.20019531
  %v31 = vpack.c.bf16 %v28, %v27
  %v32 = vpack.c.bf16 %v30, %v29
  %vm33 = vmpackc.low %vm24, %vm23
  %vm34 = vmpackc.low %vm26, %vm25
  %v35 = vsel %vm33, %v17, %v31
  %v36 = vsel %vm34, %v18, %v32
  %v37 = vld [vmem:[%s2] sm:$0xff]
  %v38 = vld [vmem:[%s1] sm:$0xf]
  %v39 = vld [vmem:[%s1 + $0x4] sm:$0xf]
  %v40 = vld [vmem:[%s1 + $0x8] sm:$0xf]
  %v41 = vld [vmem:[%s1 + $0xc] sm:$0xf]
  %v42 = vld [vmem:[%s1 + $0x10] sm:$0xf]
  %v43 = vld [vmem:[%s1 + $0x14] sm:$0xf]
  %v44 = vld [vmem:[%s1 + $0x18] sm:$0xf]
  %v45 = vld [vmem:[%s1 + $0x1c] sm:$0xf]
  %v46 = vld [vmem:[%s1 + $0x20] sm:$0xf]
  %v47 = vld [vmem:[%s1 + $0x24] sm:$0xf]
  %v48 = vld [vmem:[%s1 + $0x28] sm:$0xf]
  %v49 = vld [vmem:[%s1 + $0x2c] sm:$0xf]
  %v50 = vld [vmem:[%s1 + $0x30] sm:$0xf]
  %v51 = vld [vmem:[%s1 + $0x34] sm:$0xf]
  %v52 = vld [vmem:[%s1 + $0x38] sm:$0xf]
  %v53 = vld [vmem:[%s1 + $0x3c] sm:$0xf]
  %v54 = vld [vmem:[%s1 + $0x40] sm:$0xf]
  %v55 = vld [vmem:[%s1 + $0x44] sm:$0xf]
  %v56 = vld [vmem:[%s1 + $0x48] sm:$0xf]
  %v57 = vld [vmem:[%s1 + $0x4c] sm:$0xf]
  %v58 = vld [vmem:[%s1 + $0x50] sm:$0xf]
  %v59 = vld [vmem:[%s1 + $0x54] sm:$0xf]
  %v60 = vld [vmem:[%s1 + $0x58] sm:$0xf]
  %v61 = vld [vmem:[%s1 + $0x5c] sm:$0xf]
  %v62 = vld [vmem:[%s1 + $0x60] sm:$0xf]
  %v63 = vld [vmem:[%s1 + $0x64] sm:$0xf]
  %v64 = vld [vmem:[%s1 + $0x68] sm:$0xf]
  %v65 = vld [vmem:[%s1 + $0x6c] sm:$0xf]
  %v66 = vld [vmem:[%s1 + $0x70] sm:$0xf]
  %v67 = vld [vmem:[%s1 + $0x74] sm:$0xf]
  %v68 = vld [vmem:[%s1 + $0x78] sm:$0xf]
  %v69 = vld [vmem:[%s1 + $0x7c] sm:$0xf]
  %v70 = vld [vmem:[%s1 + $0x80] sm:$0xf]
  %v71 = vld [vmem:[%s1 + $0x84] sm:$0xf]
  %v72 = vld [vmem:[%s1 + $0x88] sm:$0xf]
  %v73 = vld [vmem:[%s1 + $0x8c] sm:$0xf]
  %v74 = vld [vmem:[%s1 + $0x90] sm:$0xf]
  %v75 = vld [vmem:[%s1 + $0x94] sm:$0xf]
  %v76 = vld [vmem:[%s1 + $0x98] sm:$0xf]
  %v77 = vld [vmem:[%s1 + $0x9c] sm:$0xf]
  %v78 = vld [vmem:[%s1 + $0xa0] sm:$0xf]
  %v79 = vld [vmem:[%s1 + $0xa4] sm:$0xf]
  %v80 = vld [vmem:[%s1 + $0xa8] sm:$0xf]
  %v81 = vld [vmem:[%s1 + $0xac] sm:$0xf]
  %v82 = vld [vmem:[%s1 + $0xb0] sm:$0xf]
  %v83 = vld [vmem:[%s1 + $0xb4] sm:$0xf]
  %v84 = vld [vmem:[%s1 + $0xb8] sm:$0xf]
  %v85 = vld [vmem:[%s1 + $0xbc] sm:$0xf]
  %v86 = vld [vmem:[%s1 + $0xc0] sm:$0xf]
  %v87 = vld [vmem:[%s1 + $0xc4] sm:$0xf]
  %v88 = vld [vmem:[%s1 + $0xc8] sm:$0xf]
  %v89 = vld [vmem:[%s1 + $0xcc] sm:$0xf]
  %v90 = vld [vmem:[%s1 + $0xd0] sm:$0xf]
  %v91 = vld [vmem:[%s1 + $0xd4] sm:$0xf]
  %v92 = vld [vmem:[%s1 + $0xd8] sm:$0xf]
  %v93 = vld [vmem:[%s1 + $0xdc] sm:$0xf]
  %v94 = vld [vmem:[%s1 + $0xe0] sm:$0xf]
  %v95 = vld [vmem:[%s1 + $0xe4] sm:$0xf]
  %v96 = vld [vmem:[%s1 + $0xe8] sm:$0xf]
  %v97 = vld [vmem:[%s1 + $0xec] sm:$0xf]
  %v98 = vld [vmem:[%s1 + $0xf0] sm:$0xf]
  %v99 = vld [vmem:[%s1 + $0xf4] sm:$0xf]
  %v100 = vld [vmem:[%s1 + $0xf8] sm:$0xf]
  %v101 = vld [vmem:[%s1 + $0xfc] sm:$0xf]
  %v104 = vunpack.c.l.b16 %v35
  %v105 = vunpack.c.h.b16 %v35
  %v106 = vunpack.c.l.b16 %v36
  %v107 = vunpack.c.h.b16 %v36
  %v108 = vpack.c.b16 %v104, %v104
  %v109 = vpack.c.b16 %v105, %v105
  %v110 = vpack.c.b16 %v106, %v106
  %v111 = vpack.c.b16 %v107, %v107
  %v180 = vunpack.c.l.b16 %v38
  %v181 = vunpack.c.l.b16 %v39
  %v182 = vunpack.c.l.b16 %v40
  %v183 = vunpack.c.l.b16 %v41
  %v184 = vunpack.c.l.b16 %v42
  %v185 = vunpack.c.l.b16 %v43
  %v186 = vunpack.c.l.b16 %v44
  %v187 = vunpack.c.l.b16 %v45
  %v188 = vunpack.c.l.b16 %v46
  %v189 = vunpack.c.l.b16 %v47
  %v190 = vunpack.c.l.b16 %v48
  %v191 = vunpack.c.l.b16 %v49
  %v192 = vunpack.c.l.b16 %v50
  %v193 = vunpack.c.l.b16 %v51
  %v194 = vunpack.c.l.b16 %v52
  %v195 = vunpack.c.l.b16 %v53
  %v196 = vunpack.c.l.b16 %v54
  %v197 = vunpack.c.l.b16 %v55
  %v198 = vunpack.c.l.b16 %v56
  %v199 = vunpack.c.l.b16 %v57
  %v200 = vunpack.c.l.b16 %v58
  %v201 = vunpack.c.l.b16 %v59
  %v202 = vunpack.c.l.b16 %v60
  %v203 = vunpack.c.l.b16 %v61
  %v204 = vunpack.c.l.b16 %v62
  %v205 = vunpack.c.l.b16 %v63
  %v206 = vunpack.c.l.b16 %v64
  %v207 = vunpack.c.l.b16 %v65
  %v208 = vunpack.c.l.b16 %v66
  %v209 = vunpack.c.l.b16 %v67
  %v210 = vunpack.c.l.b16 %v68
  %v211 = vunpack.c.l.b16 %v69
  %v212 = vunpack.c.l.b16 %v70
  %v213 = vunpack.c.l.b16 %v71
  %v214 = vunpack.c.l.b16 %v72
  %v215 = vunpack.c.l.b16 %v73
  %v216 = vunpack.c.l.b16 %v74
  %v217 = vunpack.c.l.b16 %v75
  %v218 = vunpack.c.l.b16 %v76
  %v219 = vunpack.c.l.b16 %v77
  %v220 = vunpack.c.l.b16 %v78
  %v221 = vunpack.c.l.b16 %v79
  %v222 = vunpack.c.l.b16 %v80
  %v223 = vunpack.c.l.b16 %v81
  %v224 = vunpack.c.l.b16 %v82
  %v225 = vunpack.c.l.b16 %v83
  %v226 = vunpack.c.l.b16 %v84
  %v227 = vunpack.c.l.b16 %v85
  %v228 = vunpack.c.l.b16 %v86
  %v229 = vunpack.c.l.b16 %v87
  %v230 = vunpack.c.l.b16 %v88
  %v231 = vunpack.c.l.b16 %v89
  %v232 = vunpack.c.l.b16 %v90
  %v233 = vunpack.c.l.b16 %v91
  %v234 = vunpack.c.l.b16 %v92
  %v235 = vunpack.c.l.b16 %v93
  %v236 = vunpack.c.l.b16 %v94
  %v237 = vunpack.c.l.b16 %v95
  %v238 = vunpack.c.l.b16 %v96
  %v239 = vunpack.c.l.b16 %v97
  %v240 = vunpack.c.l.b16 %v98
  %v241 = vunpack.c.l.b16 %v99
  %v242 = vunpack.c.l.b16 %v100
  %v243 = vunpack.c.l.b16 %v101
  %v244 = vpack.c.b16 %v181, %v180
  %v245 = vpack.c.b16 %v183, %v182
  %v246 = vpack.c.b16 %v185, %v184
  %v247 = vpack.c.b16 %v187, %v186
  %v248 = vpack.c.b16 %v189, %v188
  %v249 = vpack.c.b16 %v191, %v190
  %v250 = vpack.c.b16 %v193, %v192
  %v251 = vpack.c.b16 %v195, %v194
  %v252 = vpack.c.b16 %v197, %v196
  %v253 = vpack.c.b16 %v199, %v198
  %v254 = vpack.c.b16 %v201, %v200
  %v255 = vpack.c.b16 %v203, %v202
  %v256 = vpack.c.b16 %v205, %v204
  %v257 = vpack.c.b16 %v207, %v206
  %v258 = vpack.c.b16 %v209, %v208
  %v259 = vpack.c.b16 %v211, %v210
  %v260 = vpack.c.b16 %v213, %v212
  %v261 = vpack.c.b16 %v215, %v214
  %v262 = vpack.c.b16 %v217, %v216
  %v263 = vpack.c.b16 %v219, %v218
  %v264 = vpack.c.b16 %v221, %v220
  %v265 = vpack.c.b16 %v223, %v222
  %v266 = vpack.c.b16 %v225, %v224
  %v267 = vpack.c.b16 %v227, %v226
  %v268 = vpack.c.b16 %v229, %v228
  %v269 = vpack.c.b16 %v231, %v230
  %v270 = vpack.c.b16 %v233, %v232
  %v271 = vpack.c.b16 %v235, %v234
  %v272 = vpack.c.b16 %v237, %v236
  %v273 = vpack.c.b16 %v239, %v238
  %v274 = vpack.c.b16 %v241, %v240
  %v275 = vpack.c.b16 %v243, %v242
  %308 = vmatpush.bf16.msra.mxu0 %v251
  %309 = vmatpush.bf16.msra.mxu0 %v250
  %310 = vmatpush.bf16.msra.mxu0 %v249
  %311 = vmatpush.bf16.msra.mxu0 %v248
  %312 = vmatpush.bf16.msra.mxu0 %v247
  %313 = vmatpush.bf16.msra.mxu0 %v246
  %314 = vmatpush.bf16.msra.mxu0 %v245
  %315 = vmatpush.bf16.msra.mxu0 %v244
  %316 = vmatmul.bf16.gmra.mxu0 %v108
  %v317 = vpop.f32.mrf.mxu0
  %v318 = vadd.f32 0.0, %v317
  %v319 = vpop.f32.mrf.mxu0
  %320 = vdwg.mxu0
  %321 = vmatpush.bf16.msra.mxu0 %v259
  %322 = vmatpush.bf16.msra.mxu0 %v258
  %323 = vmatpush.bf16.msra.mxu0 %v257
  %324 = vmatpush.bf16.msra.mxu0 %v256
  %325 = vmatpush.bf16.msra.mxu0 %v255
  %326 = vmatpush.bf16.msra.mxu0 %v254
  %327 = vmatpush.bf16.msra.mxu0 %v253
  %328 = vmatpush.bf16.msra.mxu0 %v252
  %329 = vmatmul.bf16.gmra.mxu0 %v109
  %v330 = vpop.f32.mrf.mxu0
  %v331 = vadd.f32 %v318, %v330
  %v332 = vpop.f32.mrf.mxu0
  %333 = vdwg.mxu0
  %334 = vmatpush.bf16.msra.mxu0 %v267
  %335 = vmatpush.bf16.msra.mxu0 %v266
  %336 = vmatpush.bf16.msra.mxu0 %v265
  %337 = vmatpush.bf16.msra.mxu0 %v264
  %338 = vmatpush.bf16.msra.mxu0 %v263
  %339 = vmatpush.bf16.msra.mxu0 %v262
  %340 = vmatpush.bf16.msra.mxu0 %v261
  %341 = vmatpush.bf16.msra.mxu0 %v260
  %342 = vmatmul.bf16.gmra.mxu0 %v110
  %v343 = vpop.f32.mrf.mxu0
  %v344 = vadd.f32 %v331, %v343
  %v345 = vpop.f32.mrf.mxu0
  %346 = vdwg.mxu0
  %347 = vmatpush.bf16.msra.mxu0 %v275
  %348 = vmatpush.bf16.msra.mxu0 %v274
  %349 = vmatpush.bf16.msra.mxu0 %v273
  %350 = vmatpush.bf16.msra.mxu0 %v272
  %351 = vmatpush.bf16.msra.mxu0 %v271
  %352 = vmatpush.bf16.msra.mxu0 %v270
  %353 = vmatpush.bf16.msra.mxu0 %v269
  %354 = vmatpush.bf16.msra.mxu0 %v268
  %355 = vmatmul.bf16.gmra.mxu0 %v111
  %v356 = vpop.f32.mrf.mxu0
  %v357 = vadd.f32 %v344, %v356
  %v358 = vpop.f32.mrf.mxu0
  %359 = vdwg.mxu0
  %v360 = vadd.f32 %v37, %v357
  %vm361 = vcmask 523264
  %362 = vst.msk [vmem:[%s2] sm:$0xff] %vm361, %v360
  // Predicated region
  $region14: #{_lambda_.22} parent=0 // pred_check
    _
  $region15: #{_lambda_.22} parent=0 // pred_check_branch
    %364 = sbr.rel (0) target = $region17
  $region16: #{_lambda_.22} parent=0 // pred_region
    _
  $region17: #{_lambda_.22} parent=0 // pred_fallthru
    _
  // Predicated region
  $region18: #{_lambda_.22} parent=0 // pred_check
    _
  $region19: #{_lambda_.22} parent=0 // pred_check_branch
    %366 = sbr.rel (0) target = $region21
  $region20: #{_lambda_.22} parent=0 // pred_region
    _
  $region21: #{_lambda_.22} parent=0 // pred_fallthru
    _

// kernel: _lambda_.24
$region0: #{_lambda_.24}
  #allocation0 [shape = 'u32[]', space=smem, size = 0x4, offset = 0x4, fixed_abs, tag = 'smem constant byte address 0x4 - core index']
  #allocation1 [shape = 'u32[72,128]{1,0:T(1,128)}', space=vmem, size = 0x9000, scoped, tag = 'internal scratch']
  %s0 = inlined_call_operand.vmem [shape: bf16[1,8,1024], index: 0, kind: input, shape index: {}]
  %s1 = inlined_call_operand.vmem [shape: bf16[1,1024,64], index: 1, kind: input, shape index: {}]
  %s2 = inlined_call_operand.vmem [shape: f32[1,8,64], index: 2, kind: output, shape index: {}]
  %s3 = sld [smem:[#allocation0]]
  $region45: #{_lambda_.24} parent=0
    _
  %s5 = ssub.s32 1, %s3
  %s6 = scalar_select 0, %s5, %s3
  loop: start=0, step=1, limit=4
  $region2: #{_lambda_.24} parent=0 // loop_pre_header
    _
  $region3: #{_lambda_.24} parent=0 // loop_header
    %s8 = sphi 0, %s12
    %p9 = scmp.ge.s32.totalorder %s8, 4
    %s15 = sphi 0, %s41
    %s16 = sphi 0, %s37
    %s17 = sphi 0, %s33
    %s18 = sphi 0, %s29
    %s19 = sphi 0, %s15
    %s20 = sphi 0, %s16
    %s21 = sphi 0, %s17
    %s22 = sphi 0, %s18
    %s23 = sphi 0, %s19
    %s24 = sphi 0, %s20
    %s25 = sphi 0, %s21
    %s26 = sphi 0, %s22
    %s48 = sphi 0, %s50
    %s51 = sphi 0, %s48
    %s52 = sphi 0, %s51
    %s68 = sphi 0, %s52
    %s78 = sphi 0, %s80
    %s81 = sphi 0, %s78
    %s82 = sphi 0, %s81
    %s98 = sphi 0, %s82
    %s108 = sphi 0, %s110
    %s111 = sphi 0, %s108
    %s112 = sphi 0, %s111
    %s128 = sphi 0, %s112
  $region4: #{_lambda_.24} parent=0 // loop_header_branch
    %11 = sbr.rel (%p9) target = $region8
  $region5: #{_lambda_.24} parent=0 // loop_body
    %s13 = ssub.s32 %s8, 1
    %s14 = ssub.s32 %s8, 2
    %s27 = sadd.s32 1, %s18
    %p28 = scmp.ge.s32.totalorder %s27, 2
    %s29 = scalar_select %p28, 0, %s27
    %s30 = sadd.s32 1, %s17
    %s31 = scalar_select %p28, %s30, %s17
    %p32 = scmp.ge.s32.totalorder %s31, 1
    %s33 = scalar_select %p32, 0, %s31
    %s34 = sadd.s32 1, %s16
    %s35 = scalar_select %p32, %s34, %s16
    %p36 = scmp.ge.s32.totalorder %s35, 1
    %s37 = scalar_select %p36, 0, %s35
    %s38 = sadd.s32 1, %s15
    %s39 = scalar_select %p36, %s38, %s15
    %p40 = scmp.ge.s32.totalorder %s39, 1
    %s41 = scalar_select %p40, 0, %s39
    %s42 = ssub.s32 %s15, %s41
    %s43 = ssub.s32 %s16, %s37
    %s44 = sor.u32 %s42, %s43
    %s45 = ssub.s32 %s18, %s29
    %s46 = sor.u32 %s44, %s45
    %p47 = scmp.eq.s32.totalorder %s46, 0
    %s49 = sadd.s32 %s48, 1
    %s50 = scalar_select %p47, %s48, %s49
    %p53 = pneg %p47
    %p54 = scmp.eq.s32.totalorder %s8, 1
    %p55 = por %p53, %p54
    %p56 = scmp.ne.s32.totalorder %s48, %s51
    %p57 = scmp.eq.s32.totalorder %s8, 0
    %p58 = por %p56, %p57
    %p59 = scmp.ne.s32.totalorder %s48, %s51
    %p60 = scmp.eq.s32.totalorder %s13, 1
    %p61 = por %p59, %p60
    %p62 = scmp.ne.s32.totalorder %s51, %s52
    %p63 = scmp.eq.s32.totalorder %s13, 0
    %p64 = por %p62, %p63
    %p65 = scmp.ne.s32.totalorder %s51, %s52
    %p66 = scmp.eq.s32.totalorder %s14, 1
    %p67 = por %p65, %p66
    %p69 = scmp.ne.s32.totalorder %s52, %s68
    %p70 = scmp.eq.s32.totalorder %s14, 0
    %p71 = por %p69, %p70
    %s72 = ssub.s32 %s15, %s41
    %s73 = ssub.s32 %s18, %s29
    %s74 = sor.u32 %s72, %s73
    %s75 = ssub.s32 %s17, %s33
    %s76 = sor.u32 %s74, %s75
    %p77 = scmp.eq.s32.totalorder %s76, 0
    %s79 = sadd.s32 %s78, 1
    %s80 = scalar_select %p77, %s78, %s79
    %p83 = pneg %p77
    %p84 = scmp.eq.s32.totalorder %s8, 1
    %p85 = por %p83, %p84
    %p86 = scmp.ne.s32.totalorder %s78, %s81
    %p87 = scmp.eq.s32.totalorder %s8, 0
    %p88 = por %p86, %p87
    %p89 = scmp.ne.s32.totalorder %s78, %s81
    %p90 = scmp.eq.s32.totalorder %s13, 1
    %p91 = por %p89, %p90
    %p92 = scmp.ne.s32.totalorder %s81, %s82
    %p93 = scmp.eq.s32.totalorder %s13, 0
    %p94 = por %p92, %p93
    %p95 = scmp.ne.s32.totalorder %s81, %s82
    %p96 = scmp.eq.s32.totalorder %s14, 1
    %p97 = por %p95, %p96
    %p99 = scmp.ne.s32.totalorder %s82, %s98
    %p100 = scmp.eq.s32.totalorder %s14, 0
    %p101 = por %p99, %p100
    %s102 = ssub.s32 %s15, %s41
    %s103 = ssub.s32 %s16, %s37
    %s104 = sor.u32 %s102, %s103
    %s105 = ssub.s32 %s17, %s33
    %s106 = sor.u32 %s104, %s105
    %p107 = scmp.eq.s32.totalorder %s106, 0
    %s109 = sadd.s32 %s108, 1
    %s110 = scalar_select %p107, %s108, %s109
    %p113 = pneg %p107
    %p114 = scmp.eq.s32.totalorder %s8, 1
    %p115 = por %p113, %p114
    %p116 = scmp.ne.s32.totalorder %s108, %s111
    %p117 = scmp.eq.s32.totalorder %s8, 0
    %p118 = por %p116, %p117
    %p119 = scmp.ne.s32.totalorder %s108, %s111
    %p120 = scmp.eq.s32.totalorder %s13, 1
    %p121 = por %p119, %p120
    %p122 = scmp.ne.s32.totalorder %s111, %s112
    %p123 = scmp.eq.s32.totalorder %s13, 0
    %p124 = por %p122, %p123
    %p125 = scmp.ne.s32.totalorder %s111, %s112
    %p126 = scmp.eq.s32.totalorder %s14, 1
    %p127 = por %p125, %p126
    %p129 = scmp.ne.s32.totalorder %s112, %s128
    %p130 = scmp.eq.s32.totalorder %s14, 0
    %p131 = por %p129, %p130
    %p132 = scmp.le.s32.totalorder 1, %s8
    %p133 = scmp.lt.s32.totalorder %s8, 3
    %p134 = pnand %p132, %p133
    %p135 = pneg %p134
    // Predicated region
    $region9: #{_lambda_.24} parent=5 // pred_check
      _
    $region10: #{_lambda_.24} parent=5 // pred_check_branch
      %137 = sbr.rel (%p134) target = $region12
    $region11: #{_lambda_.24} parent=5 // pred_region
      %s138 = ssub.s32 %s8, 1
    $region12: #{_lambda_.24} parent=5 // pred_fallthru
      _
    %p139 = scmp.lt.s32.totalorder %s8, 2
    // Predicated region
    $region13: #{_lambda_.24} parent=5 // pred_check
      %p140 = pneg %p139
    $region14: #{_lambda_.24} parent=5 // pred_check_branch
      %142 = sbr.rel (%p140) target = $region16
    $region15: #{_lambda_.24} parent=5 // pred_region
      // Predicated region
      $region17: #{_lambda_.24} parent=15 // pred_check
        %p143 = pneg %p58
      $region18: #{_lambda_.24} parent=15 // pred_check_branch
        %145 = sbr.rel (%p143) target = $region20
      $region19: #{_lambda_.24} parent=15 // pred_region
        %s146 = smul.u32 4, %s18
        %p147 = scmp.lt.s32.totalorder %s15, 0
        %s148 = scalar_select %p147, %s15, 0
        %p149 = scmp.lt.s32.totalorder %s16, 0
        %s150 = scalar_select %p149, %s16, 0
        %p151 = scmp.lt.s32.totalorder %s146, 7
        %s152 = scalar_select %p151, %s146, 7
        %s153 = smul.addr %s150, 8
        %s154 = sadd.s32 %s152, %s153
        %s155 = smul.addr %s148, 8
        %s156 = sadd.s32 %s154, %s155
        %s157 = smul.addr %s156, 4
        %s158 = scalar_lea.vmem %s0, %s157
        %s159 = smul.u32 4, %s18
      $region20: #{_lambda_.24} parent=15 // pred_fallthru
        _
      // Predicated region
      $region21: #{_lambda_.24} parent=15 // pred_check
        %p160 = pneg %p88
      $region22: #{_lambda_.24} parent=15 // pred_check_branch
        %162 = sbr.rel (%p160) target = $region24
      $region23: #{_lambda_.24} parent=15 // pred_region
        %s163 = smul.u32 64, %s18
        %p164 = scmp.lt.s32.totalorder %s15, 0
        %s165 = scalar_select %p164, %s15, 0
        %p166 = scmp.lt.s32.totalorder %s163, 127
        %s167 = scalar_select %p166, %s163, 127
        %p168 = scmp.lt.s32.totalorder %s17, 0
        %s169 = scalar_select %p168, %s17, 0
        %s170 = sadd.s32 %s169, %s167
        %s171 = smul.addr %s165, 128
        %s172 = sadd.s32 %s170, %s171
        %s173 = smul.addr %s172, 4
        %s174 = scalar_lea.vmem %s1, %s173
        %s175 = smul.u32 64, %s18
      $region24: #{_lambda_.24} parent=15 // pred_fallthru
        _
    $region16: #{_lambda_.24} parent=5 // pred_fallthru
      _
    %p176 = scmp.le.s32.totalorder 1, %s8
    %p177 = scmp.lt.s32.totalorder %s8, 3
    %p178 = pnand %p176, %p177
    %p179 = pneg %p178
    // Predicated region
    $region25: #{_lambda_.24} parent=5 // pred_check
      _
    $region26: #{_lambda_.24} parent=5 // pred_check_branch
      %181 = sbr.rel (%p178) target = $region28
    $region27: #{_lambda_.24} parent=5 // pred_region
      %s182 = ssub.s32 %s8, 1
      %s183 = smul.u32 4, %s22
      %p184 = scmp.lt.s32.totalorder %s19, 0
      %s185 = scalar_select %p184, %s19, 0
      %p186 = scmp.lt.s32.totalorder %s20, 0
      %s187 = scalar_select %p186, %s20, 0
      %p188 = scmp.lt.s32.totalorder %s183, 7
      %s189 = scalar_select %p188, %s183, 7
      %s190 = smul.addr %s187, 8
      %s191 = sadd.s32 %s189, %s190
      %s192 = smul.addr %s185, 8
      %s193 = sadd.s32 %s191, %s192
      %s194 = smul.addr %s193, 4
      %s195 = scalar_lea.vmem %s0, %s194
      %p196 = pneg %p64
      %p197 = pneg %p61
      %s198 = smul.u32 64, %s22
      %p199 = scmp.lt.s32.totalorder %s19, 0
      %s200 = scalar_select %p199, %s19, 0
      %p201 = scmp.lt.s32.totalorder %s198, 127
      %s202 = scalar_select %p201, %s198, 127
      %p203 = scmp.lt.s32.totalorder %s21, 0
      %s204 = scalar_select %p203, %s21, 0
      %s205 = sadd.s32 %s204, %s202
      %s206 = smul.addr %s200, 128
      %s207 = sadd.s32 %s205, %s206
      %s208 = smul.addr %s207, 4
      %s209 = scalar_lea.vmem %s1, %s208
      %p210 = pneg %p94
      %p211 = pneg %p91
      %p212 = pneg %p124
      %p213 = pneg %p121
      %p214 = scmp.lt.s32.totalorder %s19, 0
      %s215 = scalar_select %p214, %s19, 0
      %p216 = scmp.lt.s32.totalorder %s20, 0
      %s217 = scalar_select %p216, %s20, 0
      %p218 = scmp.lt.s32.totalorder %s21, 0
      %s219 = scalar_select %p218, %s21, 0
      %s220 = sadd.s32 %s219, %s217
      %s221 = sadd.s32 %s220, %s215
      %s222 = smul.addr %s221, 8
      %s223 = scalar_lea.vmem %s2, %s222
      %s224 = smul.u32 4, %s22
      %p225 = scmp.lt.s32.totalorder %s19, 0
      %s226 = scalar_select %p225, %s19, 0
      %p227 = scmp.lt.s32.totalorder %s20, 0
      %s228 = scalar_select %p227, %s20, 0
      %p229 = scmp.lt.s32.totalorder %s224, 7
      %s230 = scalar_select %p229, %s224, 7
      %s231 = smul.addr %s228, 8
      %s232 = sadd.s32 %s230, %s231
      %s233 = smul.addr %s226, 8
      %s234 = sadd.s32 %s232, %s233
      %s235 = smul.addr %s234, 4
      %s236 = scalar_lea.vmem %s0, %s235
      %s237 = smul.u32 4, %s22
      %s238 = smul.u32 64, %s22
      %p239 = scmp.lt.s32.totalorder %s19, 0
      %s240 = scalar_select %p239, %s19, 0
      %p241 = scmp.lt.s32.totalorder %s238, 127
      %s242 = scalar_select %p241, %s238, 127
      %p243 = scmp.lt.s32.totalorder %s21, 0
      %s244 = scalar_select %p243, %s21, 0
      %s245 = sadd.s32 %s244, %s242
      %s246 = smul.addr %s240, 128
      %s247 = sadd.s32 %s245, %s246
      %s248 = smul.addr %s247, 4
      %s249 = scalar_lea.vmem %s1, %s248
      %s250 = smul.u32 64, %s22
      %p251 = scmp.lt.s32.totalorder %s19, 0
      %s252 = scalar_select %p251, %s19, 0
      %p253 = scmp.lt.s32.totalorder %s20, 0
      %s254 = scalar_select %p253, %s20, 0
      %p255 = scmp.lt.s32.totalorder %s21, 0
      %s256 = scalar_select %p255, %s21, 0
      %s257 = sadd.s32 %s256, %s254
      %s258 = sadd.s32 %s257, %s252
      %s259 = smul.addr %s258, 8
      %s260 = scalar_lea.vmem %s2, %s259
      %p261 = scmp.eq.s32.totalorder %s22, 0
      // Predicated region
      $region29: #{_lambda_.24} parent=27 // pred_check
        %p262 = pneg %p261
      $region30: #{_lambda_.24} parent=27 // pred_check_branch
        %264 = sbr.rel (%p262) target = $region32
      $region31: #{_lambda_.24} parent=27 // pred_region
        %vm265 = vcmask 523264
        %266 = vst.msk [vmem:[%s260] sm:$0xff] %vm265, 0.0
      $region32: #{_lambda_.24} parent=27 // pred_fallthru
        _
      %v267 = vld [vmem:[%s236] sm:$0xff]
      %v268 = vld [vmem:[%s236 + $0x8] sm:$0xff]
      %v269 = vunpack.c.l.bf16 %v267
      %v270 = vunpack.c.h.bf16 %v267
      %v271 = vunpack.c.l.bf16 %v268
      %v272 = vunpack.c.h.bf16 %v268
      %vm273 = vcmp.gt.f32.partialorder %v269, 0.0
      %vm274 = vcmp.gt.f32.partialorder %v270, 0.0
      %vm275 = vcmp.gt.f32.partialorder %v271, 0.0
      %vm276 = vcmp.gt.f32.partialorder %v272, 0.0
      %v277 = vmul.f32 %v269, 0.20019531
      %v278 = vmul.f32 %v270, 0.20019531
      %v279 = vmul.f32 %v271, 0.20019531
      %v280 = vmul.f32 %v272, 0.20019531
      %v281 = vpack.c.bf16 %v278, %v277
      %v282 = vpack.c.bf16 %v280, %v279
      %vm283 = vmpackc.low %vm274, %vm273
      %vm284 = vmpackc.low %vm276, %vm275
      %v285 = vsel %vm283, %v267, %v281
      %v286 = vsel %vm284, %v268, %v282
      %v287 = vld [vmem:[%s260] sm:$0xff]
      %v288 = vld [vmem:[%s249] sm:$0xf]
      %v289 = vld [vmem:[%s249 + $0x4] sm:$0xf]
      %v290 = vld [vmem:[%s249 + $0x8] sm:$0xf]
      %v291 = vld [vmem:[%s249 + $0xc] sm:$0xf]
      %v292 = vld [vmem:[%s249 + $0x10] sm:$0xf]
      %v293 = vld [vmem:[%s249 + $0x14] sm:$0xf]
      %v294 = vld [vmem:[%s249 + $0x18] sm:$0xf]
      %v295 = vld [vmem:[%s249 + $0x1c] sm:$0xf]
      %v296 = vld [vmem:[%s249 + $0x20] sm:$0xf]
      %v297 = vld [vmem:[%s249 + $0x24] sm:$0xf]
      %v298 = vld [vmem:[%s249 + $0x28] sm:$0xf]
      %v299 = vld [vmem:[%s249 + $0x2c] sm:$0xf]
      %v300 = vld [vmem:[%s249 + $0x30] sm:$0xf]
      %v301 = vld [vmem:[%s249 + $0x34] sm:$0xf]
      %v302 = vld [vmem:[%s249 + $0x38] sm:$0xf]
      %v303 = vld [vmem:[%s249 + $0x3c] sm:$0xf]
      %v304 = vld [vmem:[%s249 + $0x40] sm:$0xf]
      %v305 = vld [vmem:[%s249 + $0x44] sm:$0xf]
      %v306 = vld [vmem:[%s249 + $0x48] sm:$0xf]
      %v307 = vld [vmem:[%s249 + $0x4c] sm:$0xf]
      %v308 = vld [vmem:[%s249 + $0x50] sm:$0xf]
      %v309 = vld [vmem:[%s249 + $0x54] sm:$0xf]
      %v310 = vld [vmem:[%s249 + $0x58] sm:$0xf]
      %v311 = vld [vmem:[%s249 + $0x5c] sm:$0xf]
      %v312 = vld [vmem:[%s249 + $0x60] sm:$0xf]
      %v313 = vld [vmem:[%s249 + $0x64] sm:$0xf]
      %v314 = vld [vmem:[%s249 + $0x68] sm:$0xf]
      %v315 = vld [vmem:[%s249 + $0x6c] sm:$0xf]
      %v316 = vld [vmem:[%s249 + $0x70] sm:$0xf]
      %v317 = vld [vmem:[%s249 + $0x74] sm:$0xf]
      %v318 = vld [vmem:[%s249 + $0x78] sm:$0xf]
      %v319 = vld [vmem:[%s249 + $0x7c] sm:$0xf]
      %v320 = vld [vmem:[%s249 + $0x80] sm:$0xf]
      %v321 = vld [vmem:[%s249 + $0x84] sm:$0xf]
      %v322 = vld [vmem:[%s249 + $0x88] sm:$0xf]
      %v323 = vld [vmem:[%s249 + $0x8c] sm:$0xf]
      %v324 = vld [vmem:[%s249 + $0x90] sm:$0xf]
      %v325 = vld [vmem:[%s249 + $0x94] sm:$0xf]
      %v326 = vld [vmem:[%s249 + $0x98] sm:$0xf]
      %v327 = vld [vmem:[%s249 + $0x9c] sm:$0xf]
      %v328 = vld [vmem:[%s249 + $0xa0] sm:$0xf]
      %v329 = vld [vmem:[%s249 + $0xa4] sm:$0xf]
      %v330 = vld [vmem:[%s249 + $0xa8] sm:$0xf]
      %v331 = vld [vmem:[%s249 + $0xac] sm:$0xf]
      %v332 = vld [vmem:[%s249 + $0xb0] sm:$0xf]
      %v333 = vld [vmem:[%s249 + $0xb4] sm:$0xf]
      %v334 = vld [vmem:[%s249 + $0xb8] sm:$0xf]
      %v335 = vld [vmem:[%s249 + $0xbc] sm:$0xf]
      %v336 = vld [vmem:[%s249 + $0xc0] sm:$0xf]
      %v337 = vld [vmem:[%s249 + $0xc4] sm:$0xf]
      %v338 = vld [vmem:[%s249 + $0xc8] sm:$0xf]
      %v339 = vld [vmem:[%s249 + $0xcc] sm:$0xf]
      %v340 = vld [vmem:[%s249 + $0xd0] sm:$0xf]
      %v341 = vld [vmem:[%s249 + $0xd4] sm:$0xf]
      %v342 = vld [vmem:[%s249 + $0xd8] sm:$0xf]
      %v343 = vld [vmem:[%s249 + $0xdc] sm:$0xf]
      %v344 = vld [vmem:[%s249 + $0xe0] sm:$0xf]
      %v345 = vld [vmem:[%s249 + $0xe4] sm:$0xf]
      %v346 = vld [vmem:[%s249 + $0xe8] sm:$0xf]
      %v347 = vld [vmem:[%s249 + $0xec] sm:$0xf]
      %v348 = vld [vmem:[%s249 + $0xf0] sm:$0xf]
      %v349 = vld [vmem:[%s249 + $0xf4] sm:$0xf]
      %v350 = vld [vmem:[%s249 + $0xf8] sm:$0xf]
      %v351 = vld [vmem:[%s249 + $0xfc] sm:$0xf]
      %v354 = vunpack.c.l.b16 %v285
      %v355 = vunpack.c.h.b16 %v285
      %v356 = vunpack.c.l.b16 %v286
      %v357 = vunpack.c.h.b16 %v286
      %v358 = vpack.c.b16 %v354, %v354
      %v359 = vpack.c.b16 %v355, %v355
      %v360 = vpack.c.b16 %v356, %v356
      %v361 = vpack.c.b16 %v357, %v357
      %v430 = vunpack.c.l.b16 %v288
      %v431 = vunpack.c.l.b16 %v289
      %v432 = vunpack.c.l.b16 %v290
      %v433 = vunpack.c.l.b16 %v291
      %v434 = vunpack.c.l.b16 %v292
      %v435 = vunpack.c.l.b16 %v293
      %v436 = vunpack.c.l.b16 %v294
      %v437 = vunpack.c.l.b16 %v295
      %v438 = vunpack.c.l.b16 %v296
      %v439 = vunpack.c.l.b16 %v297
      %v440 = vunpack.c.l.b16 %v298
      %v441 = vunpack.c.l.b16 %v299
      %v442 = vunpack.c.l.b16 %v300
      %v443 = vunpack.c.l.b16 %v301
      %v444 = vunpack.c.l.b16 %v302
      %v445 = vunpack.c.l.b16 %v303
      %v446 = vunpack.c.l.b16 %v304
      %v447 = vunpack.c.l.b16 %v305
      %v448 = vunpack.c.l.b16 %v306
      %v449 = vunpack.c.l.b16 %v307
      %v450 = vunpack.c.l.b16 %v308
      %v451 = vunpack.c.l.b16 %v309
      %v452 = vunpack.c.l.b16 %v310
      %v453 = vunpack.c.l.b16 %v311
      %v454 = vunpack.c.l.b16 %v312
      %v455 = vunpack.c.l.b16 %v313
      %v456 = vunpack.c.l.b16 %v314
      %v457 = vunpack.c.l.b16 %v315
      %v458 = vunpack.c.l.b16 %v316
      %v459 = vunpack.c.l.b16 %v317
      %v460 = vunpack.c.l.b16 %v318
      %v461 = vunpack.c.l.b16 %v319
      %v462 = vunpack.c.l.b16 %v320
      %v463 = vunpack.c.l.b16 %v321
      %v464 = vunpack.c.l.b16 %v322
      %v465 = vunpack.c.l.b16 %v323
      %v466 = vunpack.c.l.b16 %v324
      %v467 = vunpack.c.l.b16 %v325
      %v468 = vunpack.c.l.b16 %v326
      %v469 = vunpack.c.l.b16 %v327
      %v470 = vunpack.c.l.b16 %v328
      %v471 = vunpack.c.l.b16 %v329
      %v472 = vunpack.c.l.b16 %v330
      %v473 = vunpack.c.l.b16 %v331
      %v474 = vunpack.c.l.b16 %v332
      %v475 = vunpack.c.l.b16 %v333
      %v476 = vunpack.c.l.b16 %v334
      %v477 = vunpack.c.l.b16 %v335
      %v478 = vunpack.c.l.b16 %v336
      %v479 = vunpack.c.l.b16 %v337
      %v480 = vunpack.c.l.b16 %v338
      %v481 = vunpack.c.l.b16 %v339
      %v482 = vunpack.c.l.b16 %v340
      %v483 = vunpack.c.l.b16 %v341
      %v484 = vunpack.c.l.b16 %v342
      %v485 = vunpack.c.l.b16 %v343
      %v486 = vunpack.c.l.b16 %v344
      %v487 = vunpack.c.l.b16 %v345
      %v488 = vunpack.c.l.b16 %v346
      %v489 = vunpack.c.l.b16 %v347
      %v490 = vunpack.c.l.b16 %v348
      %v491 = vunpack.c.l.b16 %v349
      %v492 = vunpack.c.l.b16 %v350
      %v493 = vunpack.c.l.b16 %v351
      %v494 = vpack.c.b16 %v431, %v430
      %v495 = vpack.c.b16 %v433, %v432
      %v496 = vpack.c.b16 %v435, %v434
      %v497 = vpack.c.b16 %v437, %v436
      %v498 = vpack.c.b16 %v439, %v438
      %v499 = vpack.c.b16 %v441, %v440
      %v500 = vpack.c.b16 %v443, %v442
      %v501 = vpack.c.b16 %v445, %v444
      %v502 = vpack.c.b16 %v447, %v446
      %v503 = vpack.c.b16 %v449, %v448
      %v504 = vpack.c.b16 %v451, %v450
      %v505 = vpack.c.b16 %v453, %v452
      %v506 = vpack.c.b16 %v455, %v454
      %v507 = vpack.c.b16 %v457, %v456
      %v508 = vpack.c.b16 %v459, %v458
      %v509 = vpack.c.b16 %v461, %v460
      %v510 = vpack.c.b16 %v463, %v462
      %v511 = vpack.c.b16 %v465, %v464
      %v512 = vpack.c.b16 %v467, %v466
      %v513 = vpack.c.b16 %v469, %v468
      %v514 = vpack.c.b16 %v471, %v470
      %v515 = vpack.c.b16 %v473, %v472
      %v516 = vpack.c.b16 %v475, %v474
      %v517 = vpack.c.b16 %v477, %v476
      %v518 = vpack.c.b16 %v479, %v478
      %v519 = vpack.c.b16 %v481, %v480
      %v520 = vpack.c.b16 %v483, %v482
      %v521 = vpack.c.b16 %v485, %v484
      %v522 = vpack.c.b16 %v487, %v486
      %v523 = vpack.c.b16 %v489, %v488
      %v524 = vpack.c.b16 %v491, %v490
      %v525 = vpack.c.b16 %v493, %v492
      %558 = vmatpush.bf16.msra.mxu0 %v501
      %559 = vmatpush.bf16.msra.mxu0 %v500
      %560 = vmatpush.bf16.msra.mxu0 %v499
      %561 = vmatpush.bf16.msra.mxu0 %v498
      %562 = vmatpush.bf16.msra.mxu0 %v497
      %563 = vmatpush.bf16.msra.mxu0 %v496
      %564 = vmatpush.bf16.msra.mxu0 %v495
      %565 = vmatpush.bf16.msra.mxu0 %v494
      %566 = vmatmul.bf16.gmra.mxu0 %v358
      %v567 = vpop.f32.mrf.mxu0
      %v568 = vadd.f32 0.0, %v567
      %v569 = vpop.f32.mrf.mxu0
      %570 = vdwg.mxu0
      %571 = vmatpush.bf16.msra.mxu0 %v509
      %572 = vmatpush.bf16.msra.mxu0 %v508
      %573 = vmatpush.bf16.msra.mxu0 %v507
      %574 = vmatpush.bf16.msra.mxu0 %v506
      %575 = vmatpush.bf16.msra.mxu0 %v505
      %576 = vmatpush.bf16.msra.mxu0 %v504
      %577 = vmatpush.bf16.msra.mxu0 %v503
      %578 = vmatpush.bf16.msra.mxu0 %v502
      %579 = vmatmul.bf16.gmra.mxu0 %v359
      %v580 = vpop.f32.mrf.mxu0
      %v581 = vadd.f32 %v568, %v580
      %v582 = vpop.f32.mrf.mxu0
      %583 = vdwg.mxu0
      %584 = vmatpush.bf16.msra.mxu0 %v517
      %585 = vmatpush.bf16.msra.mxu0 %v516
      %586 = vmatpush.bf16.msra.mxu0 %v515
      %587 = vmatpush.bf16.msra.mxu0 %v514
      %588 = vmatpush.bf16.msra.mxu0 %v513
      %589 = vmatpush.bf16.msra.mxu0 %v512
      %590 = vmatpush.bf16.msra.mxu0 %v511
      %591 = vmatpush.bf16.msra.mxu0 %v510
      %592 = vmatmul.bf16.gmra.mxu0 %v360
      %v593 = vpop.f32.mrf.mxu0
      %v594 = vadd.f32 %v581, %v593
      %v595 = vpop.f32.mrf.mxu0
      %596 = vdwg.mxu0
      %597 = vmatpush.bf16.msra.mxu0 %v525
      %598 = vmatpush.bf16.msra.mxu0 %v524
      %599 = vmatpush.bf16.msra.mxu0 %v523
      %600 = vmatpush.bf16.msra.mxu0 %v522
      %601 = vmatpush.bf16.msra.mxu0 %v521
      %602 = vmatpush.bf16.msra.mxu0 %v520
      %603 = vmatpush.bf16.msra.mxu0 %v519
      %604 = vmatpush.bf16.msra.mxu0 %v518
      %605 = vmatmul.bf16.gmra.mxu0 %v361
      %v606 = vpop.f32.mrf.mxu0
      %v607 = vadd.f32 %v594, %v606
      %v608 = vpop.f32.mrf.mxu0
      %609 = vdwg.mxu0
      %v610 = vadd.f32 %v287, %v607
      %vm611 = vcmask 523264
      %612 = vst.msk [vmem:[%s260] sm:$0xff] %vm611, %v610
      %p613 = scmp.lt.s32.totalorder %s19, 0
      %s614 = scalar_select %p613, %s19, 0
      %p615 = scmp.lt.s32.totalorder %s20, 0
      %s616 = scalar_select %p615, %s20, 0
      %p617 = scmp.lt.s32.totalorder %s21, 0
      %s618 = scalar_select %p617, %s21, 0
      %s619 = sadd.s32 %s618, %s616
      %s620 = sadd.s32 %s619, %s614
      %s621 = smul.addr %s620, 8
      %s622 = scalar_lea.vmem %s2, %s621
      // Predicated region
      $region33: #{_lambda_.24} parent=27 // pred_check
        %p623 = pneg %p121
      $region34: #{_lambda_.24} parent=27 // pred_check_branch
        %625 = sbr.rel (%p623) target = $region36
      $region35: #{_lambda_.24} parent=27 // pred_region
        _
      $region36: #{_lambda_.24} parent=27 // pred_fallthru
        _
      // Predicated region
      $region37: #{_lambda_.24} parent=27 // pred_check
        %p626 = pneg %p121
      $region38: #{_lambda_.24} parent=27 // pred_check_branch
        %628 = sbr.rel (%p626) target = $region40
      $region39: #{_lambda_.24} parent=27 // pred_region
        %p629 = scmp.lt.s32.totalorder %s19, 0
        %s630 = scalar_select %p629, %s19, 0
        %p631 = scmp.lt.s32.totalorder %s20, 0
        %s632 = scalar_select %p631, %s20, 0
        %p633 = scmp.lt.s32.totalorder %s21, 0
        %s634 = scalar_select %p633, %s21, 0
        %s635 = sadd.s32 %s634, %s632
        %s636 = sadd.s32 %s635, %s630
        %s637 = smul.addr %s636, 8
        %s638 = scalar_lea.vmem %s2, %s637
      $region40: #{_lambda_.24} parent=27 // pred_fallthru
        _
    $region28: #{_lambda_.24} parent=5 // pred_fallthru
      _
    %p639 = scmp.le.s32.totalorder 2, %s8
    // Predicated region
    $region41: #{_lambda_.24} parent=5 // pred_check
      %p640 = pneg %p639
    $region42: #{_lambda_.24} parent=5 // pred_check_branch
      %642 = sbr.rel (%p640) target = $region44
    $region43: #{_lambda_.24} parent=5 // pred_region
      %s643 = ssub.s32 %s8, 2
    $region44: #{_lambda_.24} parent=5 // pred_fallthru
      _
  $region6: #{_lambda_.24} parent=0 // loop_footer
    %s12 = sadd.s32 1, %s8
  $region7: #{_lambda_.24} parent=0 // loop_footer_branch
    %7 = sbr.rel target = $region3
  $region8: #{_lambda_.24} parent=0 // loop_exit
    _

// kernel: _lambda_.25
$region0: #{_lambda_.25}
  #allocation0 [shape = 'u32[]', space=smem, size = 0x4, offset = 0x4, fixed_abs, tag = 'smem constant byte address 0x4 - core index']
  #allocation1 [shape = 'u32[72,128]{1,0:T(1,128)}', space=vmem, size = 0x9000, scoped, tag = 'internal scratch']
  %s0 = inlined_call_operand.vmem [shape: bf16[4,8,256], index: 0, kind: input, shape index: {}]
  %s1 = inlined_call_operand.vmem [shape: bf16[4,256,64], index: 1, kind: input, shape index: {}]
  %s2 = inlined_call_operand.vmem [shape: f32[4,8,64], index: 2, kind: output, shape index: {}]
  %s3 = sld [smem:[#allocation0]]
  $region45: #{_lambda_.25} parent=0
    _
  %s5 = ssub.s32 1, %s3
  %s6 = scalar_select 0, %s5, %s3
  loop: start=0, step=1, limit=6
  $region2: #{_lambda_.25} parent=0 // loop_pre_header
    _
  $region3: #{_lambda_.25} parent=0 // loop_header
    %s8 = sphi 0, %s12
    %p9 = scmp.ge.s32.totalorder %s8, 6
    %s15 = sphi 0, %s41
    %s16 = sphi 0, %s37
    %s17 = sphi 0, %s33
    %s18 = sphi 0, %s29
    %s19 = sphi 0, %s15
    %s20 = sphi 0, %s16
    %s21 = sphi 0, %s17
    %s22 = sphi 0, %s18
    %s23 = sphi 0, %s19
    %s24 = sphi 0, %s20
    %s25 = sphi 0, %s21
    %s26 = sphi 0, %s22
    %s48 = sphi 0, %s50
    %s51 = sphi 0, %s48
    %s52 = sphi 0, %s51
    %s68 = sphi 0, %s52
    %s78 = sphi 0, %s80
    %s81 = sphi 0, %s78
    %s82 = sphi 0, %s81
    %s98 = sphi 0, %s82
    %s108 = sphi 0, %s110
    %s111 = sphi 0, %s108
    %s112 = sphi 0, %s111
    %s128 = sphi 0, %s112
  $region4: #{_lambda_.25} parent=0 // loop_header_branch
    %11 = sbr.rel (%p9) target = $region8
  $region5: #{_lambda_.25} parent=0 // loop_body
    %s13 = ssub.s32 %s8, 1
    %s14 = ssub.s32 %s8, 2
    %s27 = sadd.s32 1, %s18
    %p28 = scmp.ge.s32.totalorder %s27, 1
    %s29 = scalar_select %p28, 0, %s27
    %s30 = sadd.s32 1, %s17
    %s31 = scalar_select %p28, %s30, %s17
    %p32 = scmp.ge.s32.totalorder %s31, 1
    %s33 = scalar_select %p32, 0, %s31
    %s34 = sadd.s32 1, %s16
    %s35 = scalar_select %p32, %s34, %s16
    %p36 = scmp.ge.s32.totalorder %s35, 1
    %s37 = scalar_select %p36, 0, %s35
    %s38 = sadd.s32 1, %s15
    %s39 = scalar_select %p36, %s38, %s15
    %p40 = scmp.ge.s32.totalorder %s39, 4
    %s41 = scalar_select %p40, 0, %s39
    %s42 = ssub.s32 %s15, %s41
    %s43 = ssub.s32 %s16, %s37
    %s44 = sor.u32 %s42, %s43
    %s45 = ssub.s32 %s18, %s29
    %s46 = sor.u32 %s44, %s45
    %p47 = scmp.eq.s32.totalorder %s46, 0
    %s49 = sadd.s32 %s48, 1
    %s50 = scalar_select %p47, %s48, %s49
    %p53 = pneg %p47
    %p54 = scmp.eq.s32.totalorder %s8, 3
    %p55 = por %p53, %p54
    %p56 = scmp.ne.s32.totalorder %s48, %s51
    %p57 = scmp.eq.s32.totalorder %s8, 0
    %p58 = por %p56, %p57
    %p59 = scmp.ne.s32.totalorder %s48, %s51
    %p60 = scmp.eq.s32.totalorder %s13, 3
    %p61 = por %p59, %p60
    %p62 = scmp.ne.s32.totalorder %s51, %s52
    %p63 = scmp.eq.s32.totalorder %s13, 0
    %p64 = por %p62, %p63
    %p65 = scmp.ne.s32.totalorder %s51, %s52
    %p66 = scmp.eq.s32.totalorder %s14, 3
    %p67 = por %p65, %p66
    %p69 = scmp.ne.s32.totalorder %s52, %s68
    %p70 = scmp.eq.s32.totalorder %s14, 0
    %p71 = por %p69, %p70
    %s72 = ssub.s32 %s15, %s41
    %s73 = ssub.s32 %s18, %s29
    %s74 = sor.u32 %s72, %s73
    %s75 = ssub.s32 %s17, %s33
    %s76 = sor.u32 %s74, %s75
    %p77 = scmp.eq.s32.totalorder %s76, 0
    %s79 = sadd.s32 %s78, 1
    %s80 = scalar_select %p77, %s78, %s79
    %p83 = pneg %p77
    %p84 = scmp.eq.s32.totalorder %s8, 3
    %p85 = por %p83, %p84
    %p86 = scmp.ne.s32.totalorder %s78, %s81
    %p87 = scmp.eq.s32.totalorder %s8, 0
    %p88 = por %p86, %p87
    %p89 = scmp.ne.s32.totalorder %s78, %s81
    %p90 = scmp.eq.s32.totalorder %s13, 3
    %p91 = por %p89, %p90
    %p92 = scmp.ne.s32.totalorder %s81, %s82
    %p93 = scmp.eq.s32.totalorder %s13, 0
    %p94 = por %p92, %p93
    %p95 = scmp.ne.s32.totalorder %s81, %s82
    %p96 = scmp.eq.s32.totalorder %s14, 3
    %p97 = por %p95, %p96
    %p99 = scmp.ne.s32.totalorder %s82, %s98
    %p100 = scmp.eq.s32.totalorder %s14, 0
    %p101 = por %p99, %p100
    %s102 = ssub.s32 %s15, %s41
    %s103 = ssub.s32 %s16, %s37
    %s104 = sor.u32 %s102, %s103
    %s105 = ssub.s32 %s17, %s33
    %s106 = sor.u32 %s104, %s105
    %p107 = scmp.eq.s32.totalorder %s106, 0
    %s109 = sadd.s32 %s108, 1
    %s110 = scalar_select %p107, %s108, %s109
    %p113 = pneg %p107
    %p114 = scmp.eq.s32.totalorder %s8, 3
    %p115 = por %p113, %p114
    %p116 = scmp.ne.s32.totalorder %s108, %s111
    %p117 = scmp.eq.s32.totalorder %s8, 0
    %p118 = por %p116, %p117
    %p119 = scmp.ne.s32.totalorder %s108, %s111
    %p120 = scmp.eq.s32.totalorder %s13, 3
    %p121 = por %p119, %p120
    %p122 = scmp.ne.s32.totalorder %s111, %s112
    %p123 = scmp.eq.s32.totalorder %s13, 0
    %p124 = por %p122, %p123
    %p125 = scmp.ne.s32.totalorder %s111, %s112
    %p126 = scmp.eq.s32.totalorder %s14, 3
    %p127 = por %p125, %p126
    %p129 = scmp.ne.s32.totalorder %s112, %s128
    %p130 = scmp.eq.s32.totalorder %s14, 0
    %p131 = por %p129, %p130
    %p132 = scmp.le.s32.totalorder 1, %s8
    %p133 = scmp.lt.s32.totalorder %s8, 5
    %p134 = pnand %p132, %p133
    %p135 = pneg %p134
    // Predicated region
    $region9: #{_lambda_.25} parent=5 // pred_check
      _
    $region10: #{_lambda_.25} parent=5 // pred_check_branch
      %137 = sbr.rel (%p134) target = $region12
    $region11: #{_lambda_.25} parent=5 // pred_region
      %s138 = ssub.s32 %s8, 1
    $region12: #{_lambda_.25} parent=5 // pred_fallthru
      _
    %p139 = scmp.lt.s32.totalorder %s8, 4
    // Predicated region
    $region13: #{_lambda_.25} parent=5 // pred_check
      %p140 = pneg %p139
    $region14: #{_lambda_.25} parent=5 // pred_check_branch
      %142 = sbr.rel (%p140) target = $region16
    $region15: #{_lambda_.25} parent=5 // pred_region
      // Predicated region
      $region17: #{_lambda_.25} parent=15 // pred_check
        %p143 = pneg %p58
      $region18: #{_lambda_.25} parent=15 // pred_check_branch
        %145 = sbr.rel (%p143) target = $region20
      $region19: #{_lambda_.25} parent=15 // pred_region
        %s146 = smul.u32 2, %s18
        %p147 = scmp.lt.s32.totalorder %s15, 3
        %s148 = scalar_select %p147, %s15, 3
        %p149 = scmp.lt.s32.totalorder %s16, 0
        %s150 = scalar_select %p149, %s16, 0
        %p151 = scmp.lt.s32.totalorder %s146, 1
        %s152 = scalar_select %p151, %s146, 1
        %s153 = smul.addr %s150, 2
        %s154 = sadd.s32 %s152, %s153
        %s155 = smul.addr %s148, 2
        %s156 = sadd.s32 %s154, %s155
        %s157 = smul.addr %s156, 4
        %s158 = scalar_lea.vmem %s0, %s157
        %s159 = smul.u32 2, %s18
      $region20: #{_lambda_.25} parent=15 // pred_fallthru
        _
      // Predicated region
      $region21: #{_lambda_.25} parent=15 // pred_check
        %p160 = pneg %p88
      $region22: #{_lambda_.25} parent=15 // pred_check_branch
        %162 = sbr.rel (%p160) target = $region24
      $region23: #{_lambda_.25} parent=15 // pred_region
        %s163 = smul.u32 32, %s18
        %p164 = scmp.lt.s32.totalorder %s15, 3
        %s165 = scalar_select %p164, %s15, 3
        %p166 = scmp.lt.s32.totalorder %s163, 31
        %s167 = scalar_select %p166, %s163, 31
        %p168 = scmp.lt.s32.totalorder %s17, 0
        %s169 = scalar_select %p168, %s17, 0
        %s170 = sadd.s32 %s169, %s167
        %s171 = smul.addr %s165, 32
        %s172 = sadd.s32 %s170, %s171
        %s173 = smul.addr %s172, 4
        %s174 = scalar_lea.vmem %s1, %s173
        %s175 = smul.u32 32, %s18
      $region24: #{_lambda_.25} parent=15 // pred_fallthru
        _
    $region16: #{_lambda_.25} parent=5 // pred_fallthru
      _
    %p176 = scmp.le.s32.totalorder 1, %s8
    %p177 = scmp.lt.s32.totalorder %s8, 5
    %p178 = pnand %p176, %p177
    %p179 = pneg %p178
    // Predicated region
    $region25: #{_lambda_.25} parent=5 // pred_check
      _
    $region26: #{_lambda_.25} parent=5 // pred_check_branch
      %181 = sbr.rel (%p178) target = $region28
    $region27: #{_lambda_.25} parent=5 // pred_region
      %s182 = ssub.s32 %s8, 1
      %s183 = smul.u32 2, %s22
      %p184 = scmp.lt.s32.totalorder %s19, 3
      %s185 = scalar_select %p184, %s19, 3
      %p186 = scmp.lt.s32.totalorder %s20, 0
      %s187 = scalar_select %p186, %s20, 0
      %p188 = scmp.lt.s32.totalorder %s183, 1
      %s189 = scalar_select %p188, %s183, 1
      %s190 = smul.addr %s187, 2
      %s191 = sadd.s32 %s189, %s190
      %s192 = smul.addr %s185, 2
      %s193 = sadd.s32 %s191, %s192
      %s194 = smul.addr %s193, 4
      %s195 = scalar_lea.vmem %s0, %s194
      %p196 = pneg %p64
      %p197 = pneg %p61
      %s198 = smul.u32 32, %s22
      %p199 = scmp.lt.s32.totalorder %s19, 3
      %s200 = scalar_select %p199, %s19, 3
      %p201 = scmp.lt.s32.totalorder %s198, 31
      %s202 = scalar_select %p201, %s198, 31
      %p203 = scmp.lt.s32.totalorder %s21, 0
      %s204 = scalar_select %p203, %s21, 0
      %s205 = sadd.s32 %s204, %s202
      %s206 = smul.addr %s200, 32
      %s207 = sadd.s32 %s205, %s206
      %s208 = smul.addr %s207, 4
      %s209 = scalar_lea.vmem %s1, %s208
      %p210 = pneg %p94
      %p211 = pneg %p91
      %p212 = pneg %p124
      %p213 = pneg %p121
      %p214 = scmp.lt.s32.totalorder %s19, 3
      %s215 = scalar_select %p214, %s19, 3
      %p216 = scmp.lt.s32.totalorder %s20, 0
      %s217 = scalar_select %p216, %s20, 0
      %p218 = scmp.lt.s32.totalorder %s21, 0
      %s219 = scalar_select %p218, %s21, 0
      %s220 = sadd.s32 %s219, %s217
      %s221 = sadd.s32 %s220, %s215
      %s222 = smul.addr %s221, 8
      %s223 = scalar_lea.vmem %s2, %s222
      %s224 = smul.u32 2, %s22
      %p225 = scmp.lt.s32.totalorder %s19, 3
      %s226 = scalar_select %p225, %s19, 3
      %p227 = scmp.lt.s32.totalorder %s20, 0
      %s228 = scalar_select %p227, %s20, 0
      %p229 = scmp.lt.s32.totalorder %s224, 1
      %s230 = scalar_select %p229, %s224, 1
      %s231 = smul.addr %s228, 2
      %s232 = sadd.s32 %s230, %s231
      %s233 = smul.addr %s226, 2
      %s234 = sadd.s32 %s232, %s233
      %s235 = smul.addr %s234, 4
      %s236 = scalar_lea.vmem %s0, %s235
      %s237 = smul.u32 2, %s22
      %s238 = smul.u32 32, %s22
      %p239 = scmp.lt.s32.totalorder %s19, 3
      %s240 = scalar_select %p239, %s19, 3
      %p241 = scmp.lt.s32.totalorder %s238, 31
      %s242 = scalar_select %p241, %s238, 31
      %p243 = scmp.lt.s32.totalorder %s21, 0
      %s244 = scalar_select %p243, %s21, 0
      %s245 = sadd.s32 %s244, %s242
      %s246 = smul.addr %s240, 32
      %s247 = sadd.s32 %s245, %s246
      %s248 = smul.addr %s247, 4
      %s249 = scalar_lea.vmem %s1, %s248
      %s250 = smul.u32 32, %s22
      %p251 = scmp.lt.s32.totalorder %s19, 3
      %s252 = scalar_select %p251, %s19, 3
      %p253 = scmp.lt.s32.totalorder %s20, 0
      %s254 = scalar_select %p253, %s20, 0
      %p255 = scmp.lt.s32.totalorder %s21, 0
      %s256 = scalar_select %p255, %s21, 0
      %s257 = sadd.s32 %s256, %s254
      %s258 = sadd.s32 %s257, %s252
      %s259 = smul.addr %s258, 8
      %s260 = scalar_lea.vmem %s2, %s259
      %p261 = scmp.eq.s32.totalorder %s22, 0
      // Predicated region
      $region29: #{_lambda_.25} parent=27 // pred_check
        %p262 = pneg %p261
      $region30: #{_lambda_.25} parent=27 // pred_check_branch
        %264 = sbr.rel (%p262) target = $region32
      $region31: #{_lambda_.25} parent=27 // pred_region
        %vm265 = vcmask 523264
        %266 = vst.msk [vmem:[%s260] sm:$0xff] %vm265, 0.0
      $region32: #{_lambda_.25} parent=27 // pred_fallthru
        _
      %v267 = vld [vmem:[%s236] sm:$0xff]
      %v268 = vunpack.c.l.bf16 %v267
      %v269 = vunpack.c.h.bf16 %v267
      %v270 = vmax.f32 %v268, 0.0
      %v271 = vmax.f32 %v269, 0.0
      %v272 = vpack.c.bf16 %v270, %v270
      %v273 = vpack.c.bf16 %v271, %v271
      %v274 = vld [vmem:[%s260] sm:$0xff]
      %v275 = vld [vmem:[%s249] sm:$0xf]
      %v276 = vld [vmem:[%s249 + $0x4] sm:$0xf]
      %v277 = vld [vmem:[%s249 + $0x8] sm:$0xf]
      %v278 = vld [vmem:[%s249 + $0xc] sm:$0xf]
      %v279 = vld [vmem:[%s249 + $0x10] sm:$0xf]
      %v280 = vld [vmem:[%s249 + $0x14] sm:$0xf]
      %v281 = vld [vmem:[%s249 + $0x18] sm:$0xf]
      %v282 = vld [vmem:[%s249 + $0x1c] sm:$0xf]
      %v283 = vld [vmem:[%s249 + $0x20] sm:$0xf]
      %v284 = vld [vmem:[%s249 + $0x24] sm:$0xf]
      %v285 = vld [vmem:[%s249 + $0x28] sm:$0xf]
      %v286 = vld [vmem:[%s249 + $0x2c] sm:$0xf]
      %v287 = vld [vmem:[%s249 + $0x30] sm:$0xf]
      %v288 = vld [vmem:[%s249 + $0x34] sm:$0xf]
      %v289 = vld [vmem:[%s249 + $0x38] sm:$0xf]
      %v290 = vld [vmem:[%s249 + $0x3c] sm:$0xf]
      %v291 = vld [vmem:[%s249 + $0x40] sm:$0xf]
      %v292 = vld [vmem:[%s249 + $0x44] sm:$0xf]
      %v293 = vld [vmem:[%s249 + $0x48] sm:$0xf]
      %v294 = vld [vmem:[%s249 + $0x4c] sm:$0xf]
      %v295 = vld [vmem:[%s249 + $0x50] sm:$0xf]
      %v296 = vld [vmem:[%s249 + $0x54] sm:$0xf]
      %v297 = vld [vmem:[%s249 + $0x58] sm:$0xf]
      %v298 = vld [vmem:[%s249 + $0x5c] sm:$0xf]
      %v299 = vld [vmem:[%s249 + $0x60] sm:$0xf]
      %v300 = vld [vmem:[%s249 + $0x64] sm:$0xf]
      %v301 = vld [vmem:[%s249 + $0x68] sm:$0xf]
      %v302 = vld [vmem:[%s249 + $0x6c] sm:$0xf]
      %v303 = vld [vmem:[%s249 + $0x70] sm:$0xf]
      %v304 = vld [vmem:[%s249 + $0x74] sm:$0xf]
      %v305 = vld [vmem:[%s249 + $0x78] sm:$0xf]
      %v306 = vld [vmem:[%s249 + $0x7c] sm:$0xf]
      %v339 = vunpack.c.l.b16 %v275
      %v340 = vunpack.c.l.b16 %v276
      %v341 = vunpack.c.l.b16 %v277
      %v342 = vunpack.c.l.b16 %v278
      %v343 = vunpack.c.l.b16 %v279
      %v344 = vunpack.c.l.b16 %v280
      %v345 = vunpack.c.l.b16 %v281
      %v346 = vunpack.c.l.b16 %v282
      %v347 = vunpack.c.l.b16 %v283
      %v348 = vunpack.c.l.b16 %v284
      %v349 = vunpack.c.l.b16 %v285
      %v350 = vunpack.c.l.b16 %v286
      %v351 = vunpack.c.l.b16 %v287
      %v352 = vunpack.c.l.b16 %v288
      %v353 = vunpack.c.l.b16 %v289
      %v354 = vunpack.c.l.b16 %v290
      %v355 = vunpack.c.l.b16 %v291
      %v356 = vunpack.c.l.b16 %v292
      %v357 = vunpack.c.l.b16 %v293
      %v358 = vunpack.c.l.b16 %v294
      %v359 = vunpack.c.l.b16 %v295
      %v360 = vunpack.c.l.b16 %v296
      %v361 = vunpack.c.l.b16 %v297
      %v362 = vunpack.c.l.b16 %v298
      %v363 = vunpack.c.l.b16 %v299
      %v364 = vunpack.c.l.b16 %v300
      %v365 = vunpack.c.l.b16 %v301
      %v366 = vunpack.c.l.b16 %v302
      %v367 = vunpack.c.l.b16 %v303
      %v368 = vunpack.c.l.b16 %v304
      %v369 = vunpack.c.l.b16 %v305
      %v370 = vunpack.c.l.b16 %v306
      %v371 = vpack.c.b16 %v340, %v339
      %v372 = vpack.c.b16 %v342, %v341
      %v373 = vpack.c.b16 %v344, %v343
      %v374 = vpack.c.b16 %v346, %v345
      %v375 = vpack.c.b16 %v348, %v347
      %v376 = vpack.c.b16 %v350, %v349
      %v377 = vpack.c.b16 %v352, %v351
      %v378 = vpack.c.b16 %v354, %v353
      %v379 = vpack.c.b16 %v356, %v355
      %v380 = vpack.c.b16 %v358, %v357
      %v381 = vpack.c.b16 %v360, %v359
      %v382 = vpack.c.b16 %v362, %v361
      %v383 = vpack.c.b16 %v364, %v363
      %v384 = vpack.c.b16 %v366, %v365
      %v385 = vpack.c.b16 %v368, %v367
      %v386 = vpack.c.b16 %v370, %v369
      %403 = vmatpush.bf16.msra.mxu0 %v378
      %404 = vmatpush.bf16.msra.mxu0 %v377
      %405 = vmatpush.bf16.msra.mxu0 %v376
      %406 = vmatpush.bf16.msra.mxu0 %v375
      %407 = vmatpush.bf16.msra.mxu0 %v374
      %408 = vmatpush.bf16.msra.mxu0 %v373
      %409 = vmatpush.bf16.msra.mxu0 %v372
      %410 = vmatpush.bf16.msra.mxu0 %v371
      %411 = vmatmul.bf16.gmra.mxu0 %v272
      %v412 = vpop.f32.mrf.mxu0
      %v413 = vadd.f32 0.0, %v412
      %v414 = vpop.f32.mrf.mxu0
      %415 = vdwg.mxu0
      %416 = vmatpush.bf16.msra.mxu0 %v386
      %417 = vmatpush.bf16.msra.mxu0 %v385
      %418 = vmatpush.bf16.msra.mxu0 %v384
      %419 = vmatpush.bf16.msra.mxu0 %v383
      %420 = vmatpush.bf16.msra.mxu0 %v382
      %421 = vmatpush.bf16.msra.mxu0 %v381
      %422 = vmatpush.bf16.msra.mxu0 %v380
      %423 = vmatpush.bf16.msra.mxu0 %v379
      %424 = vmatmul.bf16.gmra.mxu0 %v273
      %v425 = vpop.f32.mrf.mxu0
      %v426 = vadd.f32 %v413, %v425
      %v427 = vpop.f32.mrf.mxu0
      %428 = vdwg.mxu0
      %v429 = vadd.f32 %v274, %v426
      %vm430 = vcmask 523264
      %431 = vst.msk [vmem:[%s260] sm:$0xff] %vm430, %v429
      %p432 = scmp.lt.s32.totalorder %s19, 3
      %s433 = scalar_select %p432, %s19, 3
      %p434 = scmp.lt.s32.totalorder %s20, 0
      %s435 = scalar_select %p434, %s20, 0
      %p436 = scmp.lt.s32.totalorder %s21, 0
      %s437 = scalar_select %p436, %s21, 0
      %s438 = sadd.s32 %s437, %s435
      %s439 = sadd.s32 %s438, %s433
      %s440 = smul.addr %s439, 8
      %s441 = scalar_lea.vmem %s2, %s440
      // Predicated region
      $region33: #{_lambda_.25} parent=27 // pred_check
        %p442 = pneg %p121
      $region34: #{_lambda_.25} parent=27 // pred_check_branch
        %444 = sbr.rel (%p442) target = $region36
      $region35: #{_lambda_.25} parent=27 // pred_region
        _
      $region36: #{_lambda_.25} parent=27 // pred_fallthru
        _
    $region28: #{_lambda_.25} parent=5 // pred_fallthru
      _
    %p445 = scmp.le.s32.totalorder 2, %s8
    // Predicated region
    $region37: #{_lambda_.25} parent=5 // pred_check
      %p446 = pneg %p445
    $region38: #{_lambda_.25} parent=5 // pred_check_branch
      %448 = sbr.rel (%p446) target = $region40
    $region39: #{_lambda_.25} parent=5 // pred_region
      %s449 = ssub.s32 %s8, 2
      // Predicated region
      $region41: #{_lambda_.25} parent=39 // pred_check
        %p450 = pneg %p127
      $region42: #{_lambda_.25} parent=39 // pred_check_branch
        %452 = sbr.rel (%p450) target = $region44
      $region43: #{_lambda_.25} parent=39 // pred_region
        %p453 = scmp.lt.s32.totalorder %s23, 3
        %s454 = scalar_select %p453, %s23, 3
        %p455 = scmp.lt.s32.totalorder %s24, 0
        %s456 = scalar_select %p455, %s24, 0
        %p457 = scmp.lt.s32.totalorder %s25, 0
        %s458 = scalar_select %p457, %s25, 0
        %s459 = sadd.s32 %s458, %s456
        %s460 = sadd.s32 %s459, %s454
        %s461 = smul.addr %s460, 8
        %s462 = scalar_lea.vmem %s2, %s461
      $region44: #{_lambda_.25} parent=39 // pred_fallthru
        _
    $region40: #{_lambda_.25} parent=5 // pred_fallthru
      _
  $region6: #{_lambda_.25} parent=0 // loop_footer
    %s12 = sadd.s32 1, %s8
  $region7: #{_lambda_.25} parent=0 // loop_footer_branch
    %7 = sbr.rel target = $region3
  $region8: #{_lambda_.25} parent=0 // loop_exit
    _

// kernel: _lambda_.27
$region0: #{_lambda_.27}
  #allocation0 [shape = 'u32[]', space=smem, size = 0x4, offset = 0x4, fixed_abs, tag = 'smem constant byte address 0x4 - core index']
  #allocation1 [shape = 'u32[72,128]{1,0:T(1,128)}', space=vmem, size = 0x9000, scoped, tag = 'internal scratch']
  %s0 = inlined_call_operand.vmem [shape: bf16[4,8,512], index: 0, kind: input, shape index: {}]
  %s1 = inlined_call_operand.vmem [shape: bf16[4,512,32], index: 1, kind: input, shape index: {}]
  %s2 = inlined_call_operand.vmem [shape: f32[4,8,32], index: 2, kind: output, shape index: {}]
  %s3 = sld [smem:[#allocation0]]
  $region45: #{_lambda_.27} parent=0
    _
  %s5 = ssub.s32 1, %s3
  %s6 = scalar_select 0, %s5, %s3
  loop: start=0, step=1, limit=6
  $region2: #{_lambda_.27} parent=0 // loop_pre_header
    _
  $region3: #{_lambda_.27} parent=0 // loop_header
    %s8 = sphi 0, %s12
    %p9 = scmp.ge.s32.totalorder %s8, 6
    %s15 = sphi 0, %s41
    %s16 = sphi 0, %s37
    %s17 = sphi 0, %s33
    %s18 = sphi 0, %s29
    %s19 = sphi 0, %s15
    %s20 = sphi 0, %s16
    %s21 = sphi 0, %s17
    %s22 = sphi 0, %s18
    %s23 = sphi 0, %s19
    %s24 = sphi 0, %s20
    %s25 = sphi 0, %s21
    %s26 = sphi 0, %s22
    %s48 = sphi 0, %s50
    %s51 = sphi 0, %s48
    %s52 = sphi 0, %s51
    %s68 = sphi 0, %s52
    %s78 = sphi 0, %s80
    %s81 = sphi 0, %s78
    %s82 = sphi 0, %s81
    %s98 = sphi 0, %s82
    %s108 = sphi 0, %s110
    %s111 = sphi 0, %s108
    %s112 = sphi 0, %s111
    %s128 = sphi 0, %s112
  $region4: #{_lambda_.27} parent=0 // loop_header_branch
    %11 = sbr.rel (%p9) target = $region8
  $region5: #{_lambda_.27} parent=0 // loop_body
    %s13 = ssub.s32 %s8, 1
    %s14 = ssub.s32 %s8, 2
    %s27 = sadd.s32 1, %s18
    %p28 = scmp.ge.s32.totalorder %s27, 1
    %s29 = scalar_select %p28, 0, %s27
    %s30 = sadd.s32 1, %s17
    %s31 = scalar_select %p28, %s30, %s17
    %p32 = scmp.ge.s32.totalorder %s31, 1
    %s33 = scalar_select %p32, 0, %s31
    %s34 = sadd.s32 1, %s16
    %s35 = scalar_select %p32, %s34, %s16
    %p36 = scmp.ge.s32.totalorder %s35, 1
    %s37 = scalar_select %p36, 0, %s35
    %s38 = sadd.s32 1, %s15
    %s39 = scalar_select %p36, %s38, %s15
    %p40 = scmp.ge.s32.totalorder %s39, 4
    %s41 = scalar_select %p40, 0, %s39
    %s42 = ssub.s32 %s15, %s41
    %s43 = ssub.s32 %s16, %s37
    %s44 = sor.u32 %s42, %s43
    %s45 = ssub.s32 %s18, %s29
    %s46 = sor.u32 %s44, %s45
    %p47 = scmp.eq.s32.totalorder %s46, 0
    %s49 = sadd.s32 %s48, 1
    %s50 = scalar_select %p47, %s48, %s49
    %p53 = pneg %p47
    %p54 = scmp.eq.s32.totalorder %s8, 3
    %p55 = por %p53, %p54
    %p56 = scmp.ne.s32.totalorder %s48, %s51
    %p57 = scmp.eq.s32.totalorder %s8, 0
    %p58 = por %p56, %p57
    %p59 = scmp.ne.s32.totalorder %s48, %s51
    %p60 = scmp.eq.s32.totalorder %s13, 3
    %p61 = por %p59, %p60
    %p62 = scmp.ne.s32.totalorder %s51, %s52
    %p63 = scmp.eq.s32.totalorder %s13, 0
    %p64 = por %p62, %p63
    %p65 = scmp.ne.s32.totalorder %s51, %s52
    %p66 = scmp.eq.s32.totalorder %s14, 3
    %p67 = por %p65, %p66
    %p69 = scmp.ne.s32.totalorder %s52, %s68
    %p70 = scmp.eq.s32.totalorder %s14, 0
    %p71 = por %p69, %p70
    %s72 = ssub.s32 %s15, %s41
    %s73 = ssub.s32 %s18, %s29
    %s74 = sor.u32 %s72, %s73
    %s75 = ssub.s32 %s17, %s33
    %s76 = sor.u32 %s74, %s75
    %p77 = scmp.eq.s32.totalorder %s76, 0
    %s79 = sadd.s32 %s78, 1
    %s80 = scalar_select %p77, %s78, %s79
    %p83 = pneg %p77
    %p84 = scmp.eq.s32.totalorder %s8, 3
    %p85 = por %p83, %p84
    %p86 = scmp.ne.s32.totalorder %s78, %s81
    %p87 = scmp.eq.s32.totalorder %s8, 0
    %p88 = por %p86, %p87
    %p89 = scmp.ne.s32.totalorder %s78, %s81
    %p90 = scmp.eq.s32.totalorder %s13, 3
    %p91 = por %p89, %p90
    %p92 = scmp.ne.s32.totalorder %s81, %s82
    %p93 = scmp.eq.s32.totalorder %s13, 0
    %p94 = por %p92, %p93
    %p95 = scmp.ne.s32.totalorder %s81, %s82
    %p96 = scmp.eq.s32.totalorder %s14, 3
    %p97 = por %p95, %p96
    %p99 = scmp.ne.s32.totalorder %s82, %s98
    %p100 = scmp.eq.s32.totalorder %s14, 0
    %p101 = por %p99, %p100
    %s102 = ssub.s32 %s15, %s41
    %s103 = ssub.s32 %s16, %s37
    %s104 = sor.u32 %s102, %s103
    %s105 = ssub.s32 %s17, %s33
    %s106 = sor.u32 %s104, %s105
    %p107 = scmp.eq.s32.totalorder %s106, 0
    %s109 = sadd.s32 %s108, 1
    %s110 = scalar_select %p107, %s108, %s109
    %p113 = pneg %p107
    %p114 = scmp.eq.s32.totalorder %s8, 3
    %p115 = por %p113, %p114
    %p116 = scmp.ne.s32.totalorder %s108, %s111
    %p117 = scmp.eq.s32.totalorder %s8, 0
    %p118 = por %p116, %p117
    %p119 = scmp.ne.s32.totalorder %s108, %s111
    %p120 = scmp.eq.s32.totalorder %s13, 3
    %p121 = por %p119, %p120
    %p122 = scmp.ne.s32.totalorder %s111, %s112
    %p123 = scmp.eq.s32.totalorder %s13, 0
    %p124 = por %p122, %p123
    %p125 = scmp.ne.s32.totalorder %s111, %s112
    %p126 = scmp.eq.s32.totalorder %s14, 3
    %p127 = por %p125, %p126
    %p129 = scmp.ne.s32.totalorder %s112, %s128
    %p130 = scmp.eq.s32.totalorder %s14, 0
    %p131 = por %p129, %p130
    %p132 = scmp.le.s32.totalorder 1, %s8
    %p133 = scmp.lt.s32.totalorder %s8, 5
    %p134 = pnand %p132, %p133
    %p135 = pneg %p134
    // Predicated region
    $region9: #{_lambda_.27} parent=5 // pred_check
      _
    $region10: #{_lambda_.27} parent=5 // pred_check_branch
      %137 = sbr.rel (%p134) target = $region12
    $region11: #{_lambda_.27} parent=5 // pred_region
      %s138 = ssub.s32 %s8, 1
    $region12: #{_lambda_.27} parent=5 // pred_fallthru
      _
    %p139 = scmp.lt.s32.totalorder %s8, 4
    // Predicated region
    $region13: #{_lambda_.27} parent=5 // pred_check
      %p140 = pneg %p139
    $region14: #{_lambda_.27} parent=5 // pred_check_branch
      %142 = sbr.rel (%p140) target = $region16
    $region15: #{_lambda_.27} parent=5 // pred_region
      // Predicated region
      $region17: #{_lambda_.27} parent=15 // pred_check
        %p143 = pneg %p58
      $region18: #{_lambda_.27} parent=15 // pred_check_branch
        %145 = sbr.rel (%p143) target = $region20
      $region19: #{_lambda_.27} parent=15 // pred_region
        %s146 = smul.u32 4, %s18
        %p147 = scmp.lt.s32.totalorder %s15, 3
        %s148 = scalar_select %p147, %s15, 3
        %p149 = scmp.lt.s32.totalorder %s16, 0
        %s150 = scalar_select %p149, %s16, 0
        %p151 = scmp.lt.s32.totalorder %s146, 3
        %s152 = scalar_select %p151, %s146, 3
        %s153 = smul.addr %s150, 4
        %s154 = sadd.s32 %s152, %s153
        %s155 = smul.addr %s148, 4
        %s156 = sadd.s32 %s154, %s155
        %s157 = smul.addr %s156, 4
        %s158 = scalar_lea.vmem %s0, %s157
        %s159 = smul.u32 4, %s18
      $region20: #{_lambda_.27} parent=15 // pred_fallthru
        _
      // Predicated region
      $region21: #{_lambda_.27} parent=15 // pred_check
        %p160 = pneg %p88
      $region22: #{_lambda_.27} parent=15 // pred_check_branch
        %162 = sbr.rel (%p160) target = $region24
      $region23: #{_lambda_.27} parent=15 // pred_region
        %s163 = smul.u32 64, %s18
        %p164 = scmp.lt.s32.totalorder %s15, 3
        %s165 = scalar_select %p164, %s15, 3
        %p166 = scmp.lt.s32.totalorder %s163, 63
        %s167 = scalar_select %p166, %s163, 63
        %p168 = scmp.lt.s32.totalorder %s17, 0
        %s169 = scalar_select %p168, %s17, 0
        %s170 = sadd.s32 %s169, %s167
        %s171 = smul.addr %s165, 64
        %s172 = sadd.s32 %s170, %s171
        %s173 = smul.addr %s172, 4
        %s174 = scalar_lea.vmem %s1, %s173
        %s175 = smul.u32 64, %s18
      $region24: #{_lambda_.27} parent=15 // pred_fallthru
        _
    $region16: #{_lambda_.27} parent=5 // pred_fallthru
      _
    %p176 = scmp.le.s32.totalorder 1, %s8
    %p177 = scmp.lt.s32.totalorder %s8, 5
    %p178 = pnand %p176, %p177
    %p179 = pneg %p178
    // Predicated region
    $region25: #{_lambda_.27} parent=5 // pred_check
      _
    $region26: #{_lambda_.27} parent=5 // pred_check_branch
      %181 = sbr.rel (%p178) target = $region28
    $region27: #{_lambda_.27} parent=5 // pred_region
      %s182 = ssub.s32 %s8, 1
      %s183 = smul.u32 4, %s22
      %p184 = scmp.lt.s32.totalorder %s19, 3
      %s185 = scalar_select %p184, %s19, 3
      %p186 = scmp.lt.s32.totalorder %s20, 0
      %s187 = scalar_select %p186, %s20, 0
      %p188 = scmp.lt.s32.totalorder %s183, 3
      %s189 = scalar_select %p188, %s183, 3
      %s190 = smul.addr %s187, 4
      %s191 = sadd.s32 %s189, %s190
      %s192 = smul.addr %s185, 4
      %s193 = sadd.s32 %s191, %s192
      %s194 = smul.addr %s193, 4
      %s195 = scalar_lea.vmem %s0, %s194
      %p196 = pneg %p64
      %p197 = pneg %p61
      %s198 = smul.u32 64, %s22
      %p199 = scmp.lt.s32.totalorder %s19, 3
      %s200 = scalar_select %p199, %s19, 3
      %p201 = scmp.lt.s32.totalorder %s198, 63
      %s202 = scalar_select %p201, %s198, 63
      %p203 = scmp.lt.s32.totalorder %s21, 0
      %s204 = scalar_select %p203, %s21, 0
      %s205 = sadd.s32 %s204, %s202
      %s206 = smul.addr %s200, 64
      %s207 = sadd.s32 %s205, %s206
      %s208 = smul.addr %s207, 4
      %s209 = scalar_lea.vmem %s1, %s208
      %p210 = pneg %p94
      %p211 = pneg %p91
      %p212 = pneg %p124
      %p213 = pneg %p121
      %p214 = scmp.lt.s32.totalorder %s19, 3
      %s215 = scalar_select %p214, %s19, 3
      %p216 = scmp.lt.s32.totalorder %s20, 0
      %s217 = scalar_select %p216, %s20, 0
      %p218 = scmp.lt.s32.totalorder %s21, 0
      %s219 = scalar_select %p218, %s21, 0
      %s220 = sadd.s32 %s219, %s217
      %s221 = sadd.s32 %s220, %s215
      %s222 = smul.addr %s221, 8
      %s223 = scalar_lea.vmem %s2, %s222
      %s224 = smul.u32 4, %s22
      %p225 = scmp.lt.s32.totalorder %s19, 3
      %s226 = scalar_select %p225, %s19, 3
      %p227 = scmp.lt.s32.totalorder %s20, 0
      %s228 = scalar_select %p227, %s20, 0
      %p229 = scmp.lt.s32.totalorder %s224, 3
      %s230 = scalar_select %p229, %s224, 3
      %s231 = smul.addr %s228, 4
      %s232 = sadd.s32 %s230, %s231
      %s233 = smul.addr %s226, 4
      %s234 = sadd.s32 %s232, %s233
      %s235 = smul.addr %s234, 4
      %s236 = scalar_lea.vmem %s0, %s235
      %s237 = smul.u32 4, %s22
      %s238 = smul.u32 64, %s22
      %p239 = scmp.lt.s32.totalorder %s19, 3
      %s240 = scalar_select %p239, %s19, 3
      %p241 = scmp.lt.s32.totalorder %s238, 63
      %s242 = scalar_select %p241, %s238, 63
      %p243 = scmp.lt.s32.totalorder %s21, 0
      %s244 = scalar_select %p243, %s21, 0
      %s245 = sadd.s32 %s244, %s242
      %s246 = smul.addr %s240, 64
      %s247 = sadd.s32 %s245, %s246
      %s248 = smul.addr %s247, 4
      %s249 = scalar_lea.vmem %s1, %s248
      %s250 = smul.u32 64, %s22
      %p251 = scmp.lt.s32.totalorder %s19, 3
      %s252 = scalar_select %p251, %s19, 3
      %p253 = scmp.lt.s32.totalorder %s20, 0
      %s254 = scalar_select %p253, %s20, 0
      %p255 = scmp.lt.s32.totalorder %s21, 0
      %s256 = scalar_select %p255, %s21, 0
      %s257 = sadd.s32 %s256, %s254
      %s258 = sadd.s32 %s257, %s252
      %s259 = smul.addr %s258, 8
      %s260 = scalar_lea.vmem %s2, %s259
      %p261 = scmp.eq.s32.totalorder %s22, 0
      // Predicated region
      $region29: #{_lambda_.27} parent=27 // pred_check
        %p262 = pneg %p261
      $region30: #{_lambda_.27} parent=27 // pred_check_branch
        %264 = sbr.rel (%p262) target = $region32
      $region31: #{_lambda_.27} parent=27 // pred_region
        %vm265 = vcmask 261120
        %266 = vst.msk [vmem:[%s260] sm:$0xff] %vm265, 0.0
      $region32: #{_lambda_.27} parent=27 // pred_fallthru
        _
      %v267 = vld [vmem:[%s236] sm:$0xff]
      %v268 = vld [vmem:[%s236 + $0x8] sm:$0xff]
      %v269 = vunpack.c.l.bf16 %v267
      %v270 = vunpack.c.h.bf16 %v267
      %v271 = vunpack.c.l.bf16 %v268
      %v272 = vunpack.c.h.bf16 %v268
      %v273 = vmax.f32 %v269, 0.0
      %v274 = vmax.f32 %v270, 0.0
      %v275 = vmax.f32 %v271, 0.0
      %v276 = vmax.f32 %v272, 0.0
      %v277 = vpack.c.bf16 %v273, %v273
      %v278 = vpack.c.bf16 %v274, %v274
      %v279 = vpack.c.bf16 %v275, %v275
      %v280 = vpack.c.bf16 %v276, %v276
      %v281 = vld [vmem:[%s260] sm:$0xff]
      %v282 = vld [vmem:[%s249] sm:$0xf]
      %v283 = vld [vmem:[%s249 + $0x4] sm:$0xf]
      %v284 = vld [vmem:[%s249 + $0x8] sm:$0xf]
      %v285 = vld [vmem:[%s249 + $0xc] sm:$0xf]
      %v286 = vld [vmem:[%s249 + $0x10] sm:$0xf]
      %v287 = vld [vmem:[%s249 + $0x14] sm:$0xf]
      %v288 = vld [vmem:[%s249 + $0x18] sm:$0xf]
      %v289 = vld [vmem:[%s249 + $0x1c] sm:$0xf]
      %v290 = vld [vmem:[%s249 + $0x20] sm:$0xf]
      %v291 = vld [vmem:[%s249 + $0x24] sm:$0xf]
      %v292 = vld [vmem:[%s249 + $0x28] sm:$0xf]
      %v293 = vld [vmem:[%s249 + $0x2c] sm:$0xf]
      %v294 = vld [vmem:[%s249 + $0x30] sm:$0xf]
      %v295 = vld [vmem:[%s249 + $0x34] sm:$0xf]
      %v296 = vld [vmem:[%s249 + $0x38] sm:$0xf]
      %v297 = vld [vmem:[%s249 + $0x3c] sm:$0xf]
      %v298 = vld [vmem:[%s249 + $0x40] sm:$0xf]
      %v299 = vld [vmem:[%s249 + $0x44] sm:$0xf]
      %v300 = vld [vmem:[%s249 + $0x48] sm:$0xf]
      %v301 = vld [vmem:[%s249 + $0x4c] sm:$0xf]
      %v302 = vld [vmem:[%s249 + $0x50] sm:$0xf]
      %v303 = vld [vmem:[%s249 + $0x54] sm:$0xf]
      %v304 = vld [vmem:[%s249 + $0x58] sm:$0xf]
      %v305 = vld [vmem:[%s249 + $0x5c] sm:$0xf]
      %v306 = vld [vmem:[%s249 + $0x60] sm:$0xf]
      %v307 = vld [vmem:[%s249 + $0x64] sm:$0xf]
      %v308 = vld [vmem:[%s249 + $0x68] sm:$0xf]
      %v309 = vld [vmem:[%s249 + $0x6c] sm:$0xf]
      %v310 = vld [vmem:[%s249 + $0x70] sm:$0xf]
      %v311 = vld [vmem:[%s249 + $0x74] sm:$0xf]
      %v312 = vld [vmem:[%s249 + $0x78] sm:$0xf]
      %v313 = vld [vmem:[%s249 + $0x7c] sm:$0xf]
      %v314 = vld [vmem:[%s249 + $0x80] sm:$0xf]
      %v315 = vld [vmem:[%s249 + $0x84] sm:$0xf]
      %v316 = vld [vmem:[%s249 + $0x88] sm:$0xf]
      %v317 = vld [vmem:[%s249 + $0x8c] sm:$0xf]
      %v318 = vld [vmem:[%s249 + $0x90] sm:$0xf]
      %v319 = vld [vmem:[%s249 + $0x94] sm:$0xf]
      %v320 = vld [vmem:[%s249 + $0x98] sm:$0xf]
      %v321 = vld [vmem:[%s249 + $0x9c] sm:$0xf]
      %v322 = vld [vmem:[%s249 + $0xa0] sm:$0xf]
      %v323 = vld [vmem:[%s249 + $0xa4] sm:$0xf]
      %v324 = vld [vmem:[%s249 + $0xa8] sm:$0xf]
      %v325 = vld [vmem:[%s249 + $0xac] sm:$0xf]
      %v326 = vld [vmem:[%s249 + $0xb0] sm:$0xf]
      %v327 = vld [vmem:[%s249 + $0xb4] sm:$0xf]
      %v328 = vld [vmem:[%s249 + $0xb8] sm:$0xf]
      %v329 = vld [vmem:[%s249 + $0xbc] sm:$0xf]
      %v330 = vld [vmem:[%s249 + $0xc0] sm:$0xf]
      %v331 = vld [vmem:[%s249 + $0xc4] sm:$0xf]
      %v332 = vld [vmem:[%s249 + $0xc8] sm:$0xf]
      %v333 = vld [vmem:[%s249 + $0xcc] sm:$0xf]
      %v334 = vld [vmem:[%s249 + $0xd0] sm:$0xf]
      %v335 = vld [vmem:[%s249 + $0xd4] sm:$0xf]
      %v336 = vld [vmem:[%s249 + $0xd8] sm:$0xf]
      %v337 = vld [vmem:[%s249 + $0xdc] sm:$0xf]
      %v338 = vld [vmem:[%s249 + $0xe0] sm:$0xf]
      %v339 = vld [vmem:[%s249 + $0xe4] sm:$0xf]
      %v340 = vld [vmem:[%s249 + $0xe8] sm:$0xf]
      %v341 = vld [vmem:[%s249 + $0xec] sm:$0xf]
      %v342 = vld [vmem:[%s249 + $0xf0] sm:$0xf]
      %v343 = vld [vmem:[%s249 + $0xf4] sm:$0xf]
      %v344 = vld [vmem:[%s249 + $0xf8] sm:$0xf]
      %v345 = vld [vmem:[%s249 + $0xfc] sm:$0xf]
      %v410 = vunpack.c.l.b16 %v282
      %v411 = vunpack.c.l.b16 %v283
      %v412 = vunpack.c.l.b16 %v284
      %v413 = vunpack.c.l.b16 %v285
      %v414 = vunpack.c.l.b16 %v286
      %v415 = vunpack.c.l.b16 %v287
      %v416 = vunpack.c.l.b16 %v288
      %v417 = vunpack.c.l.b16 %v289
      %v418 = vunpack.c.l.b16 %v290
      %v419 = vunpack.c.l.b16 %v291
      %v420 = vunpack.c.l.b16 %v292
      %v421 = vunpack.c.l.b16 %v293
      %v422 = vunpack.c.l.b16 %v294
      %v423 = vunpack.c.l.b16 %v295
      %v424 = vunpack.c.l.b16 %v296
      %v425 = vunpack.c.l.b16 %v297
      %v426 = vunpack.c.l.b16 %v298
      %v427 = vunpack.c.l.b16 %v299
      %v428 = vunpack.c.l.b16 %v300
      %v429 = vunpack.c.l.b16 %v301
      %v430 = vunpack.c.l.b16 %v302
      %v431 = vunpack.c.l.b16 %v303
      %v432 = vunpack.c.l.b16 %v304
      %v433 = vunpack.c.l.b16 %v305
      %v434 = vunpack.c.l.b16 %v306
      %v435 = vunpack.c.l.b16 %v307
      %v436 = vunpack.c.l.b16 %v308
      %v437 = vunpack.c.l.b16 %v309
      %v438 = vunpack.c.l.b16 %v310
      %v439 = vunpack.c.l.b16 %v311
      %v440 = vunpack.c.l.b16 %v312
      %v441 = vunpack.c.l.b16 %v313
      %v442 = vunpack.c.l.b16 %v314
      %v443 = vunpack.c.l.b16 %v315
      %v444 = vunpack.c.l.b16 %v316
      %v445 = vunpack.c.l.b16 %v317
      %v446 = vunpack.c.l.b16 %v318
      %v447 = vunpack.c.l.b16 %v319
      %v448 = vunpack.c.l.b16 %v320
      %v449 = vunpack.c.l.b16 %v321
      %v450 = vunpack.c.l.b16 %v322
      %v451 = vunpack.c.l.b16 %v323
      %v452 = vunpack.c.l.b16 %v324
      %v453 = vunpack.c.l.b16 %v325
      %v454 = vunpack.c.l.b16 %v326
      %v455 = vunpack.c.l.b16 %v327
      %v456 = vunpack.c.l.b16 %v328
      %v457 = vunpack.c.l.b16 %v329
      %v458 = vunpack.c.l.b16 %v330
      %v459 = vunpack.c.l.b16 %v331
      %v460 = vunpack.c.l.b16 %v332
      %v461 = vunpack.c.l.b16 %v333
      %v462 = vunpack.c.l.b16 %v334
      %v463 = vunpack.c.l.b16 %v335
      %v464 = vunpack.c.l.b16 %v336
      %v465 = vunpack.c.l.b16 %v337
      %v466 = vunpack.c.l.b16 %v338
      %v467 = vunpack.c.l.b16 %v339
      %v468 = vunpack.c.l.b16 %v340
      %v469 = vunpack.c.l.b16 %v341
      %v470 = vunpack.c.l.b16 %v342
      %v471 = vunpack.c.l.b16 %v343
      %v472 = vunpack.c.l.b16 %v344
      %v473 = vunpack.c.l.b16 %v345
      %v474 = vpack.c.b16 %v411, %v410
      %v475 = vpack.c.b16 %v413, %v412
      %v476 = vpack.c.b16 %v415, %v414
      %v477 = vpack.c.b16 %v417, %v416
      %v478 = vpack.c.b16 %v419, %v418
      %v479 = vpack.c.b16 %v421, %v420
      %v480 = vpack.c.b16 %v423, %v422
      %v481 = vpack.c.b16 %v425, %v424
      %v482 = vpack.c.b16 %v427, %v426
      %v483 = vpack.c.b16 %v429, %v428
      %v484 = vpack.c.b16 %v431, %v430
      %v485 = vpack.c.b16 %v433, %v432
      %v486 = vpack.c.b16 %v435, %v434
      %v487 = vpack.c.b16 %v437, %v436
      %v488 = vpack.c.b16 %v439, %v438
      %v489 = vpack.c.b16 %v441, %v440
      %v490 = vpack.c.b16 %v443, %v442
      %v491 = vpack.c.b16 %v445, %v444
      %v492 = vpack.c.b16 %v447, %v446
      %v493 = vpack.c.b16 %v449, %v448
      %v494 = vpack.c.b16 %v451, %v450
      %v495 = vpack.c.b16 %v453, %v452
      %v496 = vpack.c.b16 %v455, %v454
      %v497 = vpack.c.b16 %v457, %v456
      %v498 = vpack.c.b16 %v459, %v458
      %v499 = vpack.c.b16 %v461, %v460
      %v500 = vpack.c.b16 %v463, %v462
      %v501 = vpack.c.b16 %v465, %v464
      %v502 = vpack.c.b16 %v467, %v466
      %v503 = vpack.c.b16 %v469, %v468
      %v504 = vpack.c.b16 %v471, %v470
      %v505 = vpack.c.b16 %v473, %v472
      %538 = vmatpush.bf16.msra.mxu0 %v481
      %539 = vmatpush.bf16.msra.mxu0 %v480
      %540 = vmatpush.bf16.msra.mxu0 %v479
      %541 = vmatpush.bf16.msra.mxu0 %v478
      %542 = vmatpush.bf16.msra.mxu0 %v477
      %543 = vmatpush.bf16.msra.mxu0 %v476
      %544 = vmatpush.bf16.msra.mxu0 %v475
      %545 = vmatpush.bf16.msra.mxu0 %v474
      %546 = vmatmul.bf16.gmra.mxu0 %v277
      %v547 = vpop.f32.mrf.mxu0
      %v548 = vadd.f32 0.0, %v547
      %v549 = vpop.f32.mrf.mxu0
      %550 = vdwg.mxu0
      %551 = vmatpush.bf16.msra.mxu0 %v489
      %552 = vmatpush.bf16.msra.mxu0 %v488
      %553 = vmatpush.bf16.msra.mxu0 %v487
      %554 = vmatpush.bf16.msra.mxu0 %v486
      %555 = vmatpush.bf16.msra.mxu0 %v485
      %556 = vmatpush.bf16.msra.mxu0 %v484
      %557 = vmatpush.bf16.msra.mxu0 %v483
      %558 = vmatpush.bf16.msra.mxu0 %v482
      %559 = vmatmul.bf16.gmra.mxu0 %v278
      %v560 = vpop.f32.mrf.mxu0
      %v561 = vadd.f32 %v548, %v560
      %v562 = vpop.f32.mrf.mxu0
      %563 = vdwg.mxu0
      %564 = vmatpush.bf16.msra.mxu0 %v497
      %565 = vmatpush.bf16.msra.mxu0 %v496
      %566 = vmatpush.bf16.msra.mxu0 %v495
      %567 = vmatpush.bf16.msra.mxu0 %v494
      %568 = vmatpush.bf16.msra.mxu0 %v493
      %569 = vmatpush.bf16.msra.mxu0 %v492
      %570 = vmatpush.bf16.msra.mxu0 %v491
      %571 = vmatpush.bf16.msra.mxu0 %v490
      %572 = vmatmul.bf16.gmra.mxu0 %v279
      %v573 = vpop.f32.mrf.mxu0
      %v574 = vadd.f32 %v561, %v573
      %v575 = vpop.f32.mrf.mxu0
      %576 = vdwg.mxu0
      %577 = vmatpush.bf16.msra.mxu0 %v505
      %578 = vmatpush.bf16.msra.mxu0 %v504
      %579 = vmatpush.bf16.msra.mxu0 %v503
      %580 = vmatpush.bf16.msra.mxu0 %v502
      %581 = vmatpush.bf16.msra.mxu0 %v501
      %582 = vmatpush.bf16.msra.mxu0 %v500
      %583 = vmatpush.bf16.msra.mxu0 %v499
      %584 = vmatpush.bf16.msra.mxu0 %v498
      %585 = vmatmul.bf16.gmra.mxu0 %v280
      %v586 = vpop.f32.mrf.mxu0
      %v587 = vadd.f32 %v574, %v586
      %v588 = vpop.f32.mrf.mxu0
      %589 = vdwg.mxu0
      %v590 = vadd.f32 %v281, %v587
      %vm591 = vcmask 261120
      %592 = vst.msk [vmem:[%s260] sm:$0xff] %vm591, %v590
      %p593 = scmp.lt.s32.totalorder %s19, 3
      %s594 = scalar_select %p593, %s19, 3
      %p595 = scmp.lt.s32.totalorder %s20, 0
      %s596 = scalar_select %p595, %s20, 0
      %p597 = scmp.lt.s32.totalorder %s21, 0
      %s598 = scalar_select %p597, %s21, 0
      %s599 = sadd.s32 %s598, %s596
      %s600 = sadd.s32 %s599, %s594
      %s601 = smul.addr %s600, 8
      %s602 = scalar_lea.vmem %s2, %s601
      // Predicated region
      $region33: #{_lambda_.27} parent=27 // pred_check
        %p603 = pneg %p121
      $region34: #{_lambda_.27} parent=27 // pred_check_branch
        %605 = sbr.rel (%p603) target = $region36
      $region35: #{_lambda_.27} parent=27 // pred_region
        _
      $region36: #{_lambda_.27} parent=27 // pred_fallthru
        _
    $region28: #{_lambda_.27} parent=5 // pred_fallthru
      _
    %p606 = scmp.le.s32.totalorder 2, %s8
    // Predicated region
    $region37: #{_lambda_.27} parent=5 // pred_check
      %p607 = pneg %p606
    $region38: #{_lambda_.27} parent=5 // pred_check_branch
      %609 = sbr.rel (%p607) target = $region40
    $region39: #{_lambda_.27} parent=5 // pred_region
      %s610 = ssub.s32 %s8, 2
      // Predicated region
      $region41: #{_lambda_.27} parent=39 // pred_check
        %p611 = pneg %p127
      $region42: #{_lambda_.27} parent=39 // pred_check_branch
        %613 = sbr.rel (%p611) target = $region44
      $region43: #{_lambda_.27} parent=39 // pred_region
        %p614 = scmp.lt.s32.totalorder %s23, 3
        %s615 = scalar_select %p614, %s23, 3
        %p616 = scmp.lt.s32.totalorder %s24, 0
        %s617 = scalar_select %p616, %s24, 0
        %p618 = scmp.lt.s32.totalorder %s25, 0
        %s619 = scalar_select %p618, %s25, 0
        %s620 = sadd.s32 %s619, %s617
        %s621 = sadd.s32 %s620, %s615
        %s622 = smul.addr %s621, 8
        %s623 = scalar_lea.vmem %s2, %s622
      $region44: #{_lambda_.27} parent=39 // pred_fallthru
        _
    $region40: #{_lambda_.27} parent=5 // pred_fallthru
      _
  $region6: #{_lambda_.27} parent=0 // loop_footer
    %s12 = sadd.s32 1, %s8
  $region7: #{_lambda_.27} parent=0 // loop_footer_branch
    %7 = sbr.rel target = $region3
  $region8: #{_lambda_.27} parent=0 // loop_exit
    _

// kernel: _lambda_.29
$region0: #{_lambda_.29}
  #allocation0 [shape = 'u32[]', space=smem, size = 0x4, offset = 0x4, fixed_abs, tag = 'smem constant byte address 0x4 - core index']
  #allocation1 [shape = 'u32[72,128]{1,0:T(1,128)}', space=vmem, size = 0x9000, scoped, tag = 'internal scratch']
  %s0 = inlined_call_operand.vmem [shape: bf16[4,32,256], index: 0, kind: input, shape index: {}]
  %s1 = inlined_call_operand.vmem [shape: bf16[4,256,16], index: 1, kind: input, shape index: {}]
  %s2 = inlined_call_operand.vmem [shape: f32[4,32,16], index: 2, kind: output, shape index: {}]
  %s3 = sld [smem:[#allocation0]]
  $region45: #{_lambda_.29} parent=0
    _
  %s5 = ssub.s32 1, %s3
  %s6 = scalar_select 0, %s5, %s3
  loop: start=0, step=1, limit=10
  $region2: #{_lambda_.29} parent=0 // loop_pre_header
    _
  $region3: #{_lambda_.29} parent=0 // loop_header
    %s8 = sphi 0, %s12
    %p9 = scmp.ge.s32.totalorder %s8, 10
    %s15 = sphi 0, %s41
    %s16 = sphi 0, %s37
    %s17 = sphi 0, %s33
    %s18 = sphi 0, %s29
    %s19 = sphi 0, %s15
    %s20 = sphi 0, %s16
    %s21 = sphi 0, %s17
    %s22 = sphi 0, %s18
    %s23 = sphi 0, %s19
    %s24 = sphi 0, %s20
    %s25 = sphi 0, %s21
    %s26 = sphi 0, %s22
    %s48 = sphi 0, %s50
    %s51 = sphi 0, %s48
    %s52 = sphi 0, %s51
    %s68 = sphi 0, %s52
    %s78 = sphi 0, %s80
    %s81 = sphi 0, %s78
    %s82 = sphi 0, %s81
    %s98 = sphi 0, %s82
    %s108 = sphi 0, %s110
    %s111 = sphi 0, %s108
    %s112 = sphi 0, %s111
    %s128 = sphi 0, %s112
  $region4: #{_lambda_.29} parent=0 // loop_header_branch
    %11 = sbr.rel (%p9) target = $region8
  $region5: #{_lambda_.29} parent=0 // loop_body
    %s13 = ssub.s32 %s8, 1
    %s14 = ssub.s32 %s8, 2
    %s27 = sadd.s32 1, %s18
    %p28 = scmp.ge.s32.totalorder %s27, 1
    %s29 = scalar_select %p28, 0, %s27
    %s30 = sadd.s32 1, %s17
    %s31 = scalar_select %p28, %s30, %s17
    %p32 = scmp.ge.s32.totalorder %s31, 1
    %s33 = scalar_select %p32, 0, %s31
    %s34 = sadd.s32 1, %s16
    %s35 = scalar_select %p32, %s34, %s16
    %p36 = scmp.ge.s32.totalorder %s35, 2
    %s37 = scalar_select %p36, 0, %s35
    %s38 = sadd.s32 1, %s15
    %s39 = scalar_select %p36, %s38, %s15
    %p40 = scmp.ge.s32.totalorder %s39, 4
    %s41 = scalar_select %p40, 0, %s39
    %s42 = ssub.s32 %s15, %s41
    %s43 = ssub.s32 %s16, %s37
    %s44 = sor.u32 %s42, %s43
    %s45 = ssub.s32 %s18, %s29
    %s46 = sor.u32 %s44, %s45
    %p47 = scmp.eq.s32.totalorder %s46, 0
    %s49 = sadd.s32 %s48, 1
    %s50 = scalar_select %p47, %s48, %s49
    %p53 = pneg %p47
    %p54 = scmp.eq.s32.totalorder %s8, 7
    %p55 = por %p53, %p54
    %p56 = scmp.ne.s32.totalorder %s48, %s51
    %p57 = scmp.eq.s32.totalorder %s8, 0
    %p58 = por %p56, %p57
    %p59 = scmp.ne.s32.totalorder %s48, %s51
    %p60 = scmp.eq.s32.totalorder %s13, 7
    %p61 = por %p59, %p60
    %p62 = scmp.ne.s32.totalorder %s51, %s52
    %p63 = scmp.eq.s32.totalorder %s13, 0
    %p64 = por %p62, %p63
    %p65 = scmp.ne.s32.totalorder %s51, %s52
    %p66 = scmp.eq.s32.totalorder %s14, 7
    %p67 = por %p65, %p66
    %p69 = scmp.ne.s32.totalorder %s52, %s68
    %p70 = scmp.eq.s32.totalorder %s14, 0
    %p71 = por %p69, %p70
    %s72 = ssub.s32 %s15, %s41
    %s73 = ssub.s32 %s18, %s29
    %s74 = sor.u32 %s72, %s73
    %s75 = ssub.s32 %s17, %s33
    %s76 = sor.u32 %s74, %s75
    %p77 = scmp.eq.s32.totalorder %s76, 0
    %s79 = sadd.s32 %s78, 1
    %s80 = scalar_select %p77, %s78, %s79
    %p83 = pneg %p77
    %p84 = scmp.eq.s32.totalorder %s8, 7
    %p85 = por %p83, %p84
    %p86 = scmp.ne.s32.totalorder %s78, %s81
    %p87 = scmp.eq.s32.totalorder %s8, 0
    %p88 = por %p86, %p87
    %p89 = scmp.ne.s32.totalorder %s78, %s81
    %p90 = scmp.eq.s32.totalorder %s13, 7
    %p91 = por %p89, %p90
    %p92 = scmp.ne.s32.totalorder %s81, %s82
    %p93 = scmp.eq.s32.totalorder %s13, 0
    %p94 = por %p92, %p93
    %p95 = scmp.ne.s32.totalorder %s81, %s82
    %p96 = scmp.eq.s32.totalorder %s14, 7
    %p97 = por %p95, %p96
    %p99 = scmp.ne.s32.totalorder %s82, %s98
    %p100 = scmp.eq.s32.totalorder %s14, 0
    %p101 = por %p99, %p100
    %s102 = ssub.s32 %s15, %s41
    %s103 = ssub.s32 %s16, %s37
    %s104 = sor.u32 %s102, %s103
    %s105 = ssub.s32 %s17, %s33
    %s106 = sor.u32 %s104, %s105
    %p107 = scmp.eq.s32.totalorder %s106, 0
    %s109 = sadd.s32 %s108, 1
    %s110 = scalar_select %p107, %s108, %s109
    %p113 = pneg %p107
    %p114 = scmp.eq.s32.totalorder %s8, 7
    %p115 = por %p113, %p114
    %p116 = scmp.ne.s32.totalorder %s108, %s111
    %p117 = scmp.eq.s32.totalorder %s8, 0
    %p118 = por %p116, %p117
    %p119 = scmp.ne.s32.totalorder %s108, %s111
    %p120 = scmp.eq.s32.totalorder %s13, 7
    %p121 = por %p119, %p120
    %p122 = scmp.ne.s32.totalorder %s111, %s112
    %p123 = scmp.eq.s32.totalorder %s13, 0
    %p124 = por %p122, %p123
    %p125 = scmp.ne.s32.totalorder %s111, %s112
    %p126 = scmp.eq.s32.totalorder %s14, 7
    %p127 = por %p125, %p126
    %p129 = scmp.ne.s32.totalorder %s112, %s128
    %p130 = scmp.eq.s32.totalorder %s14, 0
    %p131 = por %p129, %p130
    %p132 = scmp.le.s32.totalorder 1, %s8
    %p133 = scmp.lt.s32.totalorder %s8, 9
    %p134 = pnand %p132, %p133
    %p135 = pneg %p134
    // Predicated region
    $region9: #{_lambda_.29} parent=5 // pred_check
      _
    $region10: #{_lambda_.29} parent=5 // pred_check_branch
      %137 = sbr.rel (%p134) target = $region12
    $region11: #{_lambda_.29} parent=5 // pred_region
      %s138 = ssub.s32 %s8, 1
    $region12: #{_lambda_.29} parent=5 // pred_fallthru
      _
    %p139 = scmp.lt.s32.totalorder %s8, 8
    // Predicated region
    $region13: #{_lambda_.29} parent=5 // pred_check
      %p140 = pneg %p139
    $region14: #{_lambda_.29} parent=5 // pred_check_branch
      %142 = sbr.rel (%p140) target = $region16
    $region15: #{_lambda_.29} parent=5 // pred_region
      // Predicated region
      $region17: #{_lambda_.29} parent=15 // pred_check
        %p143 = pneg %p58
      $region18: #{_lambda_.29} parent=15 // pred_check_branch
        %145 = sbr.rel (%p143) target = $region20
      $region19: #{_lambda_.29} parent=15 // pred_region
        %s146 = smul.u32 2, %s16
        %s147 = smul.u32 2, %s18
        %p148 = scmp.lt.s32.totalorder %s15, 3
        %s149 = scalar_select %p148, %s15, 3
        %p150 = scmp.lt.s32.totalorder %s146, 3
        %s151 = scalar_select %p150, %s146, 3
        %p152 = scmp.lt.s32.totalorder %s147, 1
        %s153 = scalar_select %p152, %s147, 1
        %s154 = smul.addr %s151, 2
        %s155 = sadd.s32 %s153, %s154
        %s156 = smul.addr %s149, 8
        %s157 = sadd.s32 %s155, %s156
        %s158 = smul.addr %s157, 4
        %s159 = scalar_lea.vmem %s0, %s158
        %s160 = smul.u32 2, %s16
        %s161 = smul.u32 2, %s18
      $region20: #{_lambda_.29} parent=15 // pred_fallthru
        _
      // Predicated region
      $region21: #{_lambda_.29} parent=15 // pred_check
        %p162 = pneg %p88
      $region22: #{_lambda_.29} parent=15 // pred_check_branch
        %164 = sbr.rel (%p162) target = $region24
      $region23: #{_lambda_.29} parent=15 // pred_region
        %s165 = smul.u32 32, %s18
        %p166 = scmp.lt.s32.totalorder %s15, 3
        %s167 = scalar_select %p166, %s15, 3
        %p168 = scmp.lt.s32.totalorder %s165, 31
        %s169 = scalar_select %p168, %s165, 31
        %p170 = scmp.lt.s32.totalorder %s17, 0
        %s171 = scalar_select %p170, %s17, 0
        %s172 = sadd.s32 %s171, %s169
        %s173 = smul.addr %s167, 32
        %s174 = sadd.s32 %s172, %s173
        %s175 = smul.addr %s174, 4
        %s176 = scalar_lea.vmem %s1, %s175
        %s177 = smul.u32 32, %s18
      $region24: #{_lambda_.29} parent=15 // pred_fallthru
        _
    $region16: #{_lambda_.29} parent=5 // pred_fallthru
      _
    %p178 = scmp.le.s32.totalorder 1, %s8
    %p179 = scmp.lt.s32.totalorder %s8, 9
    %p180 = pnand %p178, %p179
    %p181 = pneg %p180
    // Predicated region
    $region25: #{_lambda_.29} parent=5 // pred_check
      _
    $region26: #{_lambda_.29} parent=5 // pred_check_branch
      %183 = sbr.rel (%p180) target = $region28
    $region27: #{_lambda_.29} parent=5 // pred_region
      %s184 = ssub.s32 %s8, 1
      %s185 = smul.u32 2, %s20
      %s186 = smul.u32 2, %s22
      %p187 = scmp.lt.s32.totalorder %s19, 3
      %s188 = scalar_select %p187, %s19, 3
      %p189 = scmp.lt.s32.totalorder %s185, 3
      %s190 = scalar_select %p189, %s185, 3
      %p191 = scmp.lt.s32.totalorder %s186, 1
      %s192 = scalar_select %p191, %s186, 1
      %s193 = smul.addr %s190, 2
      %s194 = sadd.s32 %s192, %s193
      %s195 = smul.addr %s188, 8
      %s196 = sadd.s32 %s194, %s195
      %s197 = smul.addr %s196, 4
      %s198 = scalar_lea.vmem %s0, %s197
      %p199 = pneg %p64
      %p200 = pneg %p61
      %s201 = smul.u32 32, %s22
      %p202 = scmp.lt.s32.totalorder %s19, 3
      %s203 = scalar_select %p202, %s19, 3
      %p204 = scmp.lt.s32.totalorder %s201, 31
      %s205 = scalar_select %p204, %s201, 31
      %p206 = scmp.lt.s32.totalorder %s21, 0
      %s207 = scalar_select %p206, %s21, 0
      %s208 = sadd.s32 %s207, %s205
      %s209 = smul.addr %s203, 32
      %s210 = sadd.s32 %s208, %s209
      %s211 = smul.addr %s210, 4
      %s212 = scalar_lea.vmem %s1, %s211
      %p213 = pneg %p94
      %p214 = pneg %p91
      %p215 = pneg %p124
      %p216 = pneg %p121
      %s217 = smul.u32 2, %s20
      %p218 = scmp.lt.s32.totalorder %s19, 3
      %s219 = scalar_select %p218, %s19, 3
      %p220 = scmp.lt.s32.totalorder %s217, 3
      %s221 = scalar_select %p220, %s217, 3
      %p222 = scmp.lt.s32.totalorder %s21, 0
      %s223 = scalar_select %p222, %s21, 0
      %s224 = sadd.s32 %s223, %s221
      %s225 = smul.addr %s219, 4
      %s226 = sadd.s32 %s224, %s225
      %s227 = smul.addr %s226, 8
      %s228 = scalar_lea.vmem %s2, %s227
      %s229 = smul.u32 2, %s20
      %s230 = smul.u32 2, %s22
      %p231 = scmp.lt.s32.totalorder %s19, 3
      %s232 = scalar_select %p231, %s19, 3
      %p233 = scmp.lt.s32.totalorder %s229, 3
      %s234 = scalar_select %p233, %s229, 3
      %p235 = scmp.lt.s32.totalorder %s230, 1
      %s236 = scalar_select %p235, %s230, 1
      %s237 = smul.addr %s234, 2
      %s238 = sadd.s32 %s236, %s237
      %s239 = smul.addr %s232, 8
      %s240 = sadd.s32 %s238, %s239
      %s241 = smul.addr %s240, 4
      %s242 = scalar_lea.vmem %s0, %s241
      %s243 = smul.u32 2, %s20
      %s244 = smul.u32 2, %s22
      %s245 = smul.u32 32, %s22
      %p246 = scmp.lt.s32.totalorder %s19, 3
      %s247 = scalar_select %p246, %s19, 3
      %p248 = scmp.lt.s32.totalorder %s245, 31
      %s249 = scalar_select %p248, %s245, 31
      %p250 = scmp.lt.s32.totalorder %s21, 0
      %s251 = scalar_select %p250, %s21, 0
      %s252 = sadd.s32 %s251, %s249
      %s253 = smul.addr %s247, 32
      %s254 = sadd.s32 %s252, %s253
      %s255 = smul.addr %s254, 4
      %s256 = scalar_lea.vmem %s1, %s255
      %s257 = smul.u32 32, %s22
      %s258 = smul.u32 2, %s20
      %p259 = scmp.lt.s32.totalorder %s19, 3
      %s260 = scalar_select %p259, %s19, 3
      %p261 = scmp.lt.s32.totalorder %s258, 3
      %s262 = scalar_select %p261, %s258, 3
      %p263 = scmp.lt.s32.totalorder %s21, 0
      %s264 = scalar_select %p263, %s21, 0
      %s265 = sadd.s32 %s264, %s262
      %s266 = smul.addr %s260, 4
      %s267 = sadd.s32 %s265, %s266
      %s268 = smul.addr %s267, 8
      %s269 = scalar_lea.vmem %s2, %s268
      %s270 = smul.u32 2, %s20
      %p271 = scmp.eq.s32.totalorder %s22, 0
      // Predicated region
      $region29: #{_lambda_.29} parent=27 // pred_check
        %p272 = pneg %p271
      $region30: #{_lambda_.29} parent=27 // pred_check_branch
        %274 = sbr.rel (%p272) target = $region32
      $region31: #{_lambda_.29} parent=27 // pred_region
        %vm275 = vcmask 130048
        %276 = vst.msk [vmem:[%s269] sm:$0xff] %vm275, 0.0
        %277 = vst.msk [vmem:[%s269 + $0x8] sm:$0xff] %vm275, 0.0
      $region32: #{_lambda_.29} parent=27 // pred_fallthru
        _
      %v278 = vld [vmem:[%s242] sm:$0xff]
      %v279 = vld [vmem:[%s242 + $0x8] sm:$0xff]
      %v280 = vunpack.c.l.bf16 %v278
      %v281 = vunpack.c.h.bf16 %v278
      %v282 = vunpack.c.l.bf16 %v279
      %v283 = vunpack.c.h.bf16 %v279
      %v284 = vmax.f32 %v280, 0.0
      %v285 = vmax.f32 %v281, 0.0
      %v286 = vmax.f32 %v282, 0.0
      %v287 = vmax.f32 %v283, 0.0
      %v288 = vpack.c.bf16 %v286, %v284
      %v289 = vpack.c.bf16 %v287, %v285
      %v290 = vld [vmem:[%s269] sm:$0xff]
      %v291 = vld [vmem:[%s269 + $0x8] sm:$0xff]
      %v292 = vld [vmem:[%s256] sm:$0xf]
      %v293 = vld [vmem:[%s256 + $0x4] sm:$0xf]
      %v294 = vld [vmem:[%s256 + $0x8] sm:$0xf]
      %v295 = vld [vmem:[%s256 + $0xc] sm:$0xf]
      %v296 = vld [vmem:[%s256 + $0x10] sm:$0xf]
      %v297 = vld [vmem:[%s256 + $0x14] sm:$0xf]
      %v298 = vld [vmem:[%s256 + $0x18] sm:$0xf]
      %v299 = vld [vmem:[%s256 + $0x1c] sm:$0xf]
      %v300 = vld [vmem:[%s256 + $0x20] sm:$0xf]
      %v301 = vld [vmem:[%s256 + $0x24] sm:$0xf]
      %v302 = vld [vmem:[%s256 + $0x28] sm:$0xf]
      %v303 = vld [vmem:[%s256 + $0x2c] sm:$0xf]
      %v304 = vld [vmem:[%s256 + $0x30] sm:$0xf]
      %v305 = vld [vmem:[%s256 + $0x34] sm:$0xf]
      %v306 = vld [vmem:[%s256 + $0x38] sm:$0xf]
      %v307 = vld [vmem:[%s256 + $0x3c] sm:$0xf]
      %v308 = vld [vmem:[%s256 + $0x40] sm:$0xf]
      %v309 = vld [vmem:[%s256 + $0x44] sm:$0xf]
      %v310 = vld [vmem:[%s256 + $0x48] sm:$0xf]
      %v311 = vld [vmem:[%s256 + $0x4c] sm:$0xf]
      %v312 = vld [vmem:[%s256 + $0x50] sm:$0xf]
      %v313 = vld [vmem:[%s256 + $0x54] sm:$0xf]
      %v314 = vld [vmem:[%s256 + $0x58] sm:$0xf]
      %v315 = vld [vmem:[%s256 + $0x5c] sm:$0xf]
      %v316 = vld [vmem:[%s256 + $0x60] sm:$0xf]
      %v317 = vld [vmem:[%s256 + $0x64] sm:$0xf]
      %v318 = vld [vmem:[%s256 + $0x68] sm:$0xf]
      %v319 = vld [vmem:[%s256 + $0x6c] sm:$0xf]
      %v320 = vld [vmem:[%s256 + $0x70] sm:$0xf]
      %v321 = vld [vmem:[%s256 + $0x74] sm:$0xf]
      %v322 = vld [vmem:[%s256 + $0x78] sm:$0xf]
      %v323 = vld [vmem:[%s256 + $0x7c] sm:$0xf]
      %v356 = vunpack.c.l.b16 %v292
      %v357 = vunpack.c.l.b16 %v293
      %v358 = vunpack.c.l.b16 %v294
      %v359 = vunpack.c.l.b16 %v295
      %v360 = vunpack.c.l.b16 %v296
      %v361 = vunpack.c.l.b16 %v297
      %v362 = vunpack.c.l.b16 %v298
      %v363 = vunpack.c.l.b16 %v299
      %v364 = vunpack.c.l.b16 %v300
      %v365 = vunpack.c.l.b16 %v301
      %v366 = vunpack.c.l.b16 %v302
      %v367 = vunpack.c.l.b16 %v303
      %v368 = vunpack.c.l.b16 %v304
      %v369 = vunpack.c.l.b16 %v305
      %v370 = vunpack.c.l.b16 %v306
      %v371 = vunpack.c.l.b16 %v307
      %v372 = vunpack.c.l.b16 %v308
      %v373 = vunpack.c.l.b16 %v309
      %v374 = vunpack.c.l.b16 %v310
      %v375 = vunpack.c.l.b16 %v311
      %v376 = vunpack.c.l.b16 %v312
      %v377 = vunpack.c.l.b16 %v313
      %v378 = vunpack.c.l.b16 %v314
      %v379 = vunpack.c.l.b16 %v315
      %v380 = vunpack.c.l.b16 %v316
      %v381 = vunpack.c.l.b16 %v317
      %v382 = vunpack.c.l.b16 %v318
      %v383 = vunpack.c.l.b16 %v319
      %v384 = vunpack.c.l.b16 %v320
      %v385 = vunpack.c.l.b16 %v321
      %v386 = vunpack.c.l.b16 %v322
      %v387 = vunpack.c.l.b16 %v323
      %v388 = vpack.c.b16 %v357, %v356
      %v389 = vpack.c.b16 %v359, %v358
      %v390 = vpack.c.b16 %v361, %v360
      %v391 = vpack.c.b16 %v363, %v362
      %v392 = vpack.c.b16 %v365, %v364
      %v393 = vpack.c.b16 %v367, %v366
      %v394 = vpack.c.b16 %v369, %v368
      %v395 = vpack.c.b16 %v371, %v370
      %v396 = vpack.c.b16 %v373, %v372
      %v397 = vpack.c.b16 %v375, %v374
      %v398 = vpack.c.b16 %v377, %v376
      %v399 = vpack.c.b16 %v379, %v378
      %v400 = vpack.c.b16 %v381, %v380
      %v401 = vpack.c.b16 %v383, %v382
      %v402 = vpack.c.b16 %v385, %v384
      %v403 = vpack.c.b16 %v387, %v386
      %420 = vmatpush.bf16.msra.mxu0 %v395
      %421 = vmatpush.bf16.msra.mxu0 %v394
      %422 = vmatpush.bf16.msra.mxu0 %v393
      %423 = vmatpush.bf16.msra.mxu0 %v392
      %424 = vmatpush.bf16.msra.mxu0 %v391
      %425 = vmatpush.bf16.msra.mxu0 %v390
      %426 = vmatpush.bf16.msra.mxu0 %v389
      %427 = vmatpush.bf16.msra.mxu0 %v388
      %428 = vmatmul.bf16.gmra.mxu0 %v288
      %v429 = vpop.f32.mrf.mxu0
      %v430 = vadd.f32 0.0, %v429
      %v431 = vpop.f32.mrf.mxu0
      %v432 = vadd.f32 0.0, %v431
      %433 = vdwg.mxu0
      %434 = vmatpush.bf16.msra.mxu0 %v403
      %435 = vmatpush.bf16.msra.mxu0 %v402
      %436 = vmatpush.bf16.msra.mxu0 %v401
      %437 = vmatpush.bf16.msra.mxu0 %v400
      %438 = vmatpush.bf16.msra.mxu0 %v399
      %439 = vmatpush.bf16.msra.mxu0 %v398
      %440 = vmatpush.bf16.msra.mxu0 %v397
      %441 = vmatpush.bf16.msra.mxu0 %v396
      %442 = vmatmul.bf16.gmra.mxu0 %v289
      %v443 = vpop.f32.mrf.mxu0
      %v444 = vadd.f32 %v430, %v443
      %v445 = vpop.f32.mrf.mxu0
      %v446 = vadd.f32 %v432, %v445
      %447 = vdwg.mxu0
      %v448 = vadd.f32 %v290, %v444
      %v449 = vadd.f32 %v291, %v446
      %vm450 = vcmask 130048
      %451 = vst.msk [vmem:[%s269] sm:$0xff] %vm450, %v448
      %452 = vst.msk [vmem:[%s269 + $0x8] sm:$0xff] %vm450, %v449
      %s453 = smul.u32 2, %s20
      %p454 = scmp.lt.s32.totalorder %s19, 3
      %s455 = scalar_select %p454, %s19, 3
      %p456 = scmp.lt.s32.totalorder %s453, 3
      %s457 = scalar_select %p456, %s453, 3
      %p458 = scmp.lt.s32.totalorder %s21, 0
      %s459 = scalar_select %p458, %s21, 0
      %s460 = sadd.s32 %s459, %s457
      %s461 = smul.addr %s455, 4
      %s462 = sadd.s32 %s460, %s461
      %s463 = smul.addr %s462, 8
      %s464 = scalar_lea.vmem %s2, %s463
      // Predicated region
      $region33: #{_lambda_.29} parent=27 // pred_check
        %p465 = pneg %p121
      $region34: #{_lambda_.29} parent=27 // pred_check_branch
        %467 = sbr.rel (%p465) target = $region36
      $region35: #{_lambda_.29} parent=27 // pred_region
        %s468 = smul.u32 2, %s20
      $region36: #{_lambda_.29} parent=27 // pred_fallthru
        _
    $region28: #{_lambda_.29} parent=5 // pred_fallthru
      _
    %p469 = scmp.le.s32.totalorder 2, %s8
    // Predicated region
    $region37: #{_lambda_.29} parent=5 // pred_check
      %p470 = pneg %p469
    $region38: #{_lambda_.29} parent=5 // pred_check_branch
      %472 = sbr.rel (%p470) target = $region40
    $region39: #{_lambda_.29} parent=5 // pred_region
      %s473 = ssub.s32 %s8, 2
      // Predicated region
      $region41: #{_lambda_.29} parent=39 // pred_check
        %p474 = pneg %p127
      $region42: #{_lambda_.29} parent=39 // pred_check_branch
        %476 = sbr.rel (%p474) target = $region44
      $region43: #{_lambda_.29} parent=39 // pred_region
        %s477 = smul.u32 2, %s24
        %p478 = scmp.lt.s32.totalorder %s23, 3
        %s479 = scalar_select %p478, %s23, 3
        %p480 = scmp.lt.s32.totalorder %s477, 3
        %s481 = scalar_select %p480, %s477, 3
        %p482 = scmp.lt.s32.totalorder %s25, 0
        %s483 = scalar_select %p482, %s25, 0
        %s484 = sadd.s32 %s483, %s481
        %s485 = smul.addr %s479, 4
        %s486 = sadd.s32 %s484, %s485
        %s487 = smul.addr %s486, 8
        %s488 = scalar_lea.vmem %s2, %s487
      $region44: #{_lambda_.29} parent=39 // pred_fallthru
        _
    $region40: #{_lambda_.29} parent=5 // pred_fallthru
      _
  $region6: #{_lambda_.29} parent=0 // loop_footer
    %s12 = sadd.s32 1, %s8
  $region7: #{_lambda_.29} parent=0 // loop_footer_branch
    %7 = sbr.rel target = $region3
  $region8: #{_lambda_.29} parent=0 // loop_exit
    _

// kernel: _lambda_.31
$region0: #{_lambda_.31}
  #allocation0 [shape = 'u32[]', space=smem, size = 0x4, offset = 0x4, fixed_abs, tag = 'smem constant byte address 0x4 - core index']
  #allocation1 [shape = 'u32[72,128]{1,0:T(1,128)}', space=vmem, size = 0x9000, scoped, tag = 'internal scratch']
  %s0 = inlined_call_operand.vmem [shape: bf16[4,128,128], index: 0, kind: input, shape index: {}]
  %s1 = inlined_call_operand.vmem [shape: bf16[4,128,8], index: 1, kind: input, shape index: {}]
  %s2 = inlined_call_operand.vmem [shape: f32[4,128,8], index: 2, kind: output, shape index: {}]
  %s3 = sld [smem:[#allocation0]]
  $region45: #{_lambda_.31} parent=0
    _
  %s5 = ssub.s32 1, %s3
  %s6 = scalar_select 0, %s5, %s3
  loop: start=0, step=1, limit=10
  $region2: #{_lambda_.31} parent=0 // loop_pre_header
    _
  $region3: #{_lambda_.31} parent=0 // loop_header
    %s8 = sphi 0, %s12
    %p9 = scmp.ge.s32.totalorder %s8, 10
    %s15 = sphi 0, %s41
    %s16 = sphi 0, %s37
    %s17 = sphi 0, %s33
    %s18 = sphi 0, %s29
    %s19 = sphi 0, %s15
    %s20 = sphi 0, %s16
    %s21 = sphi 0, %s17
    %s22 = sphi 0, %s18
    %s23 = sphi 0, %s19
    %s24 = sphi 0, %s20
    %s25 = sphi 0, %s21
    %s26 = sphi 0, %s22
    %s48 = sphi 0, %s50
    %s51 = sphi 0, %s48
    %s52 = sphi 0, %s51
    %s68 = sphi 0, %s52
    %s78 = sphi 0, %s80
    %s81 = sphi 0, %s78
    %s82 = sphi 0, %s81
    %s98 = sphi 0, %s82
    %s108 = sphi 0, %s110
    %s111 = sphi 0, %s108
    %s112 = sphi 0, %s111
    %s128 = sphi 0, %s112
  $region4: #{_lambda_.31} parent=0 // loop_header_branch
    %11 = sbr.rel (%p9) target = $region8
  $region5: #{_lambda_.31} parent=0 // loop_body
    %s13 = ssub.s32 %s8, 1
    %s14 = ssub.s32 %s8, 2
    %s27 = sadd.s32 1, %s18
    %p28 = scmp.ge.s32.totalorder %s27, 1
    %s29 = scalar_select %p28, 0, %s27
    %s30 = sadd.s32 1, %s17
    %s31 = scalar_select %p28, %s30, %s17
    %p32 = scmp.ge.s32.totalorder %s31, 1
    %s33 = scalar_select %p32, 0, %s31
    %s34 = sadd.s32 1, %s16
    %s35 = scalar_select %p32, %s34, %s16
    %p36 = scmp.ge.s32.totalorder %s35, 2
    %s37 = scalar_select %p36, 0, %s35
    %s38 = sadd.s32 1, %s15
    %s39 = scalar_select %p36, %s38, %s15
    %p40 = scmp.ge.s32.totalorder %s39, 4
    %s41 = scalar_select %p40, 0, %s39
    %s42 = ssub.s32 %s15, %s41
    %s43 = ssub.s32 %s16, %s37
    %s44 = sor.u32 %s42, %s43
    %s45 = ssub.s32 %s18, %s29
    %s46 = sor.u32 %s44, %s45
    %p47 = scmp.eq.s32.totalorder %s46, 0
    %s49 = sadd.s32 %s48, 1
    %s50 = scalar_select %p47, %s48, %s49
    %p53 = pneg %p47
    %p54 = scmp.eq.s32.totalorder %s8, 7
    %p55 = por %p53, %p54
    %p56 = scmp.ne.s32.totalorder %s48, %s51
    %p57 = scmp.eq.s32.totalorder %s8, 0
    %p58 = por %p56, %p57
    %p59 = scmp.ne.s32.totalorder %s48, %s51
    %p60 = scmp.eq.s32.totalorder %s13, 7
    %p61 = por %p59, %p60
    %p62 = scmp.ne.s32.totalorder %s51, %s52
    %p63 = scmp.eq.s32.totalorder %s13, 0
    %p64 = por %p62, %p63
    %p65 = scmp.ne.s32.totalorder %s51, %s52
    %p66 = scmp.eq.s32.totalorder %s14, 7
    %p67 = por %p65, %p66
    %p69 = scmp.ne.s32.totalorder %s52, %s68
    %p70 = scmp.eq.s32.totalorder %s14, 0
    %p71 = por %p69, %p70
    %s72 = ssub.s32 %s15, %s41
    %s73 = ssub.s32 %s18, %s29
    %s74 = sor.u32 %s72, %s73
    %s75 = ssub.s32 %s17, %s33
    %s76 = sor.u32 %s74, %s75
    %p77 = scmp.eq.s32.totalorder %s76, 0
    %s79 = sadd.s32 %s78, 1
    %s80 = scalar_select %p77, %s78, %s79
    %p83 = pneg %p77
    %p84 = scmp.eq.s32.totalorder %s8, 7
    %p85 = por %p83, %p84
    %p86 = scmp.ne.s32.totalorder %s78, %s81
    %p87 = scmp.eq.s32.totalorder %s8, 0
    %p88 = por %p86, %p87
    %p89 = scmp.ne.s32.totalorder %s78, %s81
    %p90 = scmp.eq.s32.totalorder %s13, 7
    %p91 = por %p89, %p90
    %p92 = scmp.ne.s32.totalorder %s81, %s82
    %p93 = scmp.eq.s32.totalorder %s13, 0
    %p94 = por %p92, %p93
    %p95 = scmp.ne.s32.totalorder %s81, %s82
    %p96 = scmp.eq.s32.totalorder %s14, 7
    %p97 = por %p95, %p96
    %p99 = scmp.ne.s32.totalorder %s82, %s98
    %p100 = scmp.eq.s32.totalorder %s14, 0
    %p101 = por %p99, %p100
    %s102 = ssub.s32 %s15, %s41
    %s103 = ssub.s32 %s16, %s37
    %s104 = sor.u32 %s102, %s103
    %s105 = ssub.s32 %s17, %s33
    %s106 = sor.u32 %s104, %s105
    %p107 = scmp.eq.s32.totalorder %s106, 0
    %s109 = sadd.s32 %s108, 1
    %s110 = scalar_select %p107, %s108, %s109
    %p113 = pneg %p107
    %p114 = scmp.eq.s32.totalorder %s8, 7
    %p115 = por %p113, %p114
    %p116 = scmp.ne.s32.totalorder %s108, %s111
    %p117 = scmp.eq.s32.totalorder %s8, 0
    %p118 = por %p116, %p117
    %p119 = scmp.ne.s32.totalorder %s108, %s111
    %p120 = scmp.eq.s32.totalorder %s13, 7
    %p121 = por %p119, %p120
    %p122 = scmp.ne.s32.totalorder %s111, %s112
    %p123 = scmp.eq.s32.totalorder %s13, 0
    %p124 = por %p122, %p123
    %p125 = scmp.ne.s32.totalorder %s111, %s112
    %p126 = scmp.eq.s32.totalorder %s14, 7
    %p127 = por %p125, %p126
    %p129 = scmp.ne.s32.totalorder %s112, %s128
    %p130 = scmp.eq.s32.totalorder %s14, 0
    %p131 = por %p129, %p130
    %p132 = scmp.le.s32.totalorder 1, %s8
    %p133 = scmp.lt.s32.totalorder %s8, 9
    %p134 = pnand %p132, %p133
    %p135 = pneg %p134
    // Predicated region
    $region9: #{_lambda_.31} parent=5 // pred_check
      _
    $region10: #{_lambda_.31} parent=5 // pred_check_branch
      %137 = sbr.rel (%p134) target = $region12
    $region11: #{_lambda_.31} parent=5 // pred_region
      %s138 = ssub.s32 %s8, 1
    $region12: #{_lambda_.31} parent=5 // pred_fallthru
      _
    %p139 = scmp.lt.s32.totalorder %s8, 8
    // Predicated region
    $region13: #{_lambda_.31} parent=5 // pred_check
      %p140 = pneg %p139
    $region14: #{_lambda_.31} parent=5 // pred_check_branch
      %142 = sbr.rel (%p140) target = $region16
    $region15: #{_lambda_.31} parent=5 // pred_region
      // Predicated region
      $region17: #{_lambda_.31} parent=15 // pred_check
        %p143 = pneg %p58
      $region18: #{_lambda_.31} parent=15 // pred_check_branch
        %145 = sbr.rel (%p143) target = $region20
      $region19: #{_lambda_.31} parent=15 // pred_region
        %s146 = smul.u32 8, %s16
        %p147 = scmp.lt.s32.totalorder %s15, 3
        %s148 = scalar_select %p147, %s15, 3
        %p149 = scmp.lt.s32.totalorder %s146, 15
        %s150 = scalar_select %p149, %s146, 15
        %p151 = scmp.lt.s32.totalorder %s18, 0
        %s152 = scalar_select %p151, %s18, 0
        %s153 = sadd.s32 %s152, %s150
        %s154 = smul.addr %s148, 16
        %s155 = sadd.s32 %s153, %s154
        %s156 = smul.addr %s155, 4
        %s157 = scalar_lea.vmem %s0, %s156
        %s158 = smul.u32 8, %s16
      $region20: #{_lambda_.31} parent=15 // pred_fallthru
        _
      // Predicated region
      $region21: #{_lambda_.31} parent=15 // pred_check
        %p159 = pneg %p88
      $region22: #{_lambda_.31} parent=15 // pred_check_branch
        %161 = sbr.rel (%p159) target = $region24
      $region23: #{_lambda_.31} parent=15 // pred_region
        %s162 = smul.u32 16, %s18
        %p163 = scmp.lt.s32.totalorder %s15, 3
        %s164 = scalar_select %p163, %s15, 3
        %p165 = scmp.lt.s32.totalorder %s162, 15
        %s166 = scalar_select %p165, %s162, 15
        %p167 = scmp.lt.s32.totalorder %s17, 0
        %s168 = scalar_select %p167, %s17, 0
        %s169 = sadd.s32 %s168, %s166
        %s170 = smul.addr %s164, 16
        %s171 = sadd.s32 %s169, %s170
        %s172 = smul.addr %s171, 4
        %s173 = scalar_lea.vmem %s1, %s172
        %s174 = smul.u32 16, %s18
      $region24: #{_lambda_.31} parent=15 // pred_fallthru
        _
    $region16: #{_lambda_.31} parent=5 // pred_fallthru
      _
    %p175 = scmp.le.s32.totalorder 1, %s8
    %p176 = scmp.lt.s32.totalorder %s8, 9
    %p177 = pnand %p175, %p176
    %p178 = pneg %p177
    // Predicated region
    $region25: #{_lambda_.31} parent=5 // pred_check
      _
    $region26: #{_lambda_.31} parent=5 // pred_check_branch
      %180 = sbr.rel (%p177) target = $region28
    $region27: #{_lambda_.31} parent=5 // pred_region
      %s181 = ssub.s32 %s8, 1
      %s182 = smul.u32 8, %s20
      %p183 = scmp.lt.s32.totalorder %s19, 3
      %s184 = scalar_select %p183, %s19, 3
      %p185 = scmp.lt.s32.totalorder %s182, 15
      %s186 = scalar_select %p185, %s182, 15
      %p187 = scmp.lt.s32.totalorder %s22, 0
      %s188 = scalar_select %p187, %s22, 0
      %s189 = sadd.s32 %s188, %s186
      %s190 = smul.addr %s184, 16
      %s191 = sadd.s32 %s189, %s190
      %s192 = smul.addr %s191, 4
      %s193 = scalar_lea.vmem %s0, %s192
      %p194 = pneg %p64
      %p195 = pneg %p61
      %s196 = smul.u32 16, %s22
      %p197 = scmp.lt.s32.totalorder %s19, 3
      %s198 = scalar_select %p197, %s19, 3
      %p199 = scmp.lt.s32.totalorder %s196, 15
      %s200 = scalar_select %p199, %s196, 15
      %p201 = scmp.lt.s32.totalorder %s21, 0
      %s202 = scalar_select %p201, %s21, 0
      %s203 = sadd.s32 %s202, %s200
      %s204 = smul.addr %s198, 16
      %s205 = sadd.s32 %s203, %s204
      %s206 = smul.addr %s205, 4
      %s207 = scalar_lea.vmem %s1, %s206
      %p208 = pneg %p94
      %p209 = pneg %p91
      %p210 = pneg %p124
      %p211 = pneg %p121
      %s212 = smul.u32 8, %s20
      %p213 = scmp.lt.s32.totalorder %s19, 3
      %s214 = scalar_select %p213, %s19, 3
      %p215 = scmp.lt.s32.totalorder %s212, 15
      %s216 = scalar_select %p215, %s212, 15
      %p217 = scmp.lt.s32.totalorder %s21, 0
      %s218 = scalar_select %p217, %s21, 0
      %s219 = sadd.s32 %s218, %s216
      %s220 = smul.addr %s214, 16
      %s221 = sadd.s32 %s219, %s220
      %s222 = smul.addr %s221, 8
      %s223 = scalar_lea.vmem %s2, %s222
      %s224 = smul.u32 8, %s20
      %p225 = scmp.lt.s32.totalorder %s19, 3
      %s226 = scalar_select %p225, %s19, 3
      %p227 = scmp.lt.s32.totalorder %s224, 15
      %s228 = scalar_select %p227, %s224, 15
      %p229 = scmp.lt.s32.totalorder %s22, 0
      %s230 = scalar_select %p229, %s22, 0
      %s231 = sadd.s32 %s230, %s228
      %s232 = smul.addr %s226, 16
      %s233 = sadd.s32 %s231, %s232
      %s234 = smul.addr %s233, 4
      %s235 = scalar_lea.vmem %s0, %s234
      %s236 = smul.u32 8, %s20
      %s237 = smul.u32 16, %s22
      %p238 = scmp.lt.s32.totalorder %s19, 3
      %s239 = scalar_select %p238, %s19, 3
      %p240 = scmp.lt.s32.totalorder %s237, 15
      %s241 = scalar_select %p240, %s237, 15
      %p242 = scmp.lt.s32.totalorder %s21, 0
      %s243 = scalar_select %p242, %s21, 0
      %s244 = sadd.s32 %s243, %s241
      %s245 = smul.addr %s239, 16
      %s246 = sadd.s32 %s244, %s245
      %s247 = smul.addr %s246, 4
      %s248 = scalar_lea.vmem %s1, %s247
      %s249 = smul.u32 16, %s22
      %s250 = smul.u32 8, %s20
      %p251 = scmp.lt.s32.totalorder %s19, 3
      %s252 = scalar_select %p251, %s19, 3
      %p253 = scmp.lt.s32.totalorder %s250, 15
      %s254 = scalar_select %p253, %s250, 15
      %p255 = scmp.lt.s32.totalorder %s21, 0
      %s256 = scalar_select %p255, %s21, 0
      %s257 = sadd.s32 %s256, %s254
      %s258 = smul.addr %s252, 16
      %s259 = sadd.s32 %s257, %s258
      %s260 = smul.addr %s259, 8
      %s261 = scalar_lea.vmem %s2, %s260
      %s262 = smul.u32 8, %s20
      %p263 = scmp.eq.s32.totalorder %s22, 0
      // Predicated region
      $region29: #{_lambda_.31} parent=27 // pred_check
        %p264 = pneg %p263
      $region30: #{_lambda_.31} parent=27 // pred_check_branch
        %266 = sbr.rel (%p264) target = $region32
      $region31: #{_lambda_.31} parent=27 // pred_region
        %vm267 = vcmask 64512
        %268 = vst.msk [vmem:[%s261] sm:$0xff] %vm267, 0.0
        %269 = vst.msk [vmem:[%s261 + $0x8] sm:$0xff] %vm267, 0.0
        %270 = vst.msk [vmem:[%s261 + $0x10] sm:$0xff] %vm267, 0.0
        %271 = vst.msk [vmem:[%s261 + $0x18] sm:$0xff] %vm267, 0.0
        %272 = vst.msk [vmem:[%s261 + $0x20] sm:$0xff] %vm267, 0.0
        %273 = vst.msk [vmem:[%s261 + $0x28] sm:$0xff] %vm267, 0.0
        %274 = vst.msk [vmem:[%s261 + $0x30] sm:$0xff] %vm267, 0.0
        %275 = vst.msk [vmem:[%s261 + $0x38] sm:$0xff] %vm267, 0.0
      $region32: #{_lambda_.31} parent=27 // pred_fallthru
        _
      %v276 = vld [vmem:[%s235] sm:$0xf]
      %v277 = vld [vmem:[%s235 + $0x4] sm:$0xf]
      %v278 = vld [vmem:[%s235 + $0x8] sm:$0xf]
      %v279 = vld [vmem:[%s235 + $0xc] sm:$0xf]
      %v280 = vld [vmem:[%s235 + $0x10] sm:$0xf]
      %v281 = vld [vmem:[%s235 + $0x14] sm:$0xf]
      %v282 = vld [vmem:[%s235 + $0x18] sm:$0xf]
      %v283 = vld [vmem:[%s235 + $0x1c] sm:$0xf]
      %v284 = vunpack.c.l.bf16 %v276
      %v285 = vunpack.c.l.bf16 %v277
      %v286 = vunpack.c.l.bf16 %v278
      %v287 = vunpack.c.l.bf16 %v279
      %v288 = vunpack.c.l.bf16 %v280
      %v289 = vunpack.c.l.bf16 %v281
      %v290 = vunpack.c.l.bf16 %v282
      %v291 = vunpack.c.l.bf16 %v283
      %v292 = vmax.f32 %v284, 0.0
      %v293 = vmax.f32 %v285, 0.0
      %v294 = vmax.f32 %v286, 0.0
      %v295 = vmax.f32 %v287, 0.0
      %v296 = vmax.f32 %v288, 0.0
      %v297 = vmax.f32 %v289, 0.0
      %v298 = vmax.f32 %v290, 0.0
      %v299 = vmax.f32 %v291, 0.0
      %v300 = vpack.c.bf16 %v293, %v292
      %v301 = vpack.c.bf16 %v295, %v294
      %v302 = vpack.c.bf16 %v297, %v296
      %v303 = vpack.c.bf16 %v299, %v298
      %v304 = vld [vmem:[%s261] sm:$0xff]
      %v305 = vld [vmem:[%s261 + $0x8] sm:$0xff]
      %v306 = vld [vmem:[%s261 + $0x10] sm:$0xff]
      %v307 = vld [vmem:[%s261 + $0x18] sm:$0xff]
      %v308 = vld [vmem:[%s261 + $0x20] sm:$0xff]
      %v309 = vld [vmem:[%s261 + $0x28] sm:$0xff]
      %v310 = vld [vmem:[%s261 + $0x30] sm:$0xff]
      %v311 = vld [vmem:[%s261 + $0x38] sm:$0xff]
      %v312 = vld [vmem:[%s248] sm:$0xf]
      %v313 = vld [vmem:[%s248 + $0x4] sm:$0xf]
      %v314 = vld [vmem:[%s248 + $0x8] sm:$0xf]
      %v315 = vld [vmem:[%s248 + $0xc] sm:$0xf]
      %v316 = vld [vmem:[%s248 + $0x10] sm:$0xf]
      %v317 = vld [vmem:[%s248 + $0x14] sm:$0xf]
      %v318 = vld [vmem:[%s248 + $0x18] sm:$0xf]
      %v319 = vld [vmem:[%s248 + $0x1c] sm:$0xf]
      %v320 = vld [vmem:[%s248 + $0x20] sm:$0xf]
      %v321 = vld [vmem:[%s248 + $0x24] sm:$0xf]
      %v322 = vld [vmem:[%s248 + $0x28] sm:$0xf]
      %v323 = vld [vmem:[%s248 + $0x2c] sm:$0xf]
      %v324 = vld [vmem:[%s248 + $0x30] sm:$0xf]
      %v325 = vld [vmem:[%s248 + $0x34] sm:$0xf]
      %v326 = vld [vmem:[%s248 + $0x38] sm:$0xf]
      %v327 = vld [vmem:[%s248 + $0x3c] sm:$0xf]
      %v344 = vunpack.c.l.b16 %v312
      %v345 = vunpack.c.l.b16 %v313
      %v346 = vunpack.c.l.b16 %v314
      %v347 = vunpack.c.l.b16 %v315
      %v348 = vunpack.c.l.b16 %v316
      %v349 = vunpack.c.l.b16 %v317
      %v350 = vunpack.c.l.b16 %v318
      %v351 = vunpack.c.l.b16 %v319
      %v352 = vunpack.c.l.b16 %v320
      %v353 = vunpack.c.l.b16 %v321
      %v354 = vunpack.c.l.b16 %v322
      %v355 = vunpack.c.l.b16 %v323
      %v356 = vunpack.c.l.b16 %v324
      %v357 = vunpack.c.l.b16 %v325
      %v358 = vunpack.c.l.b16 %v326
      %v359 = vunpack.c.l.b16 %v327
      %v360 = vpack.c.b16 %v345, %v344
      %v361 = vpack.c.b16 %v347, %v346
      %v362 = vpack.c.b16 %v349, %v348
      %v363 = vpack.c.b16 %v351, %v350
      %v364 = vpack.c.b16 %v353, %v352
      %v365 = vpack.c.b16 %v355, %v354
      %v366 = vpack.c.b16 %v357, %v356
      %v367 = vpack.c.b16 %v359, %v358
      %376 = vmatpush.bf16.msra.mxu0 %v367
      %377 = vmatpush.bf16.msra.mxu0 %v366
      %378 = vmatpush.bf16.msra.mxu0 %v365
      %379 = vmatpush.bf16.msra.mxu0 %v364
      %380 = vmatpush.bf16.msra.mxu0 %v363
      %381 = vmatpush.bf16.msra.mxu0 %v362
      %382 = vmatpush.bf16.msra.mxu0 %v361
      %383 = vmatpush.bf16.msra.mxu0 %v360
      %384 = vmatmul.bf16.gmra.mxu0 %v300
      %v385 = vpop.f32.mrf.mxu0
      %v386 = vadd.f32 0.0, %v385
      %v387 = vpop.f32.mrf.mxu0
      %v388 = vadd.f32 0.0, %v387
      %389 = vmatmul.bf16.gmra.mxu0 %v301
      %v390 = vpop.f32.mrf.mxu0
      %v391 = vadd.f32 0.0, %v390
      %v392 = vpop.f32.mrf.mxu0
      %v393 = vadd.f32 0.0, %v392
      %394 = vmatmul.bf16.gmra.mxu0 %v302
      %v395 = vpop.f32.mrf.mxu0
      %v396 = vadd.f32 0.0, %v395
      %v397 = vpop.f32.mrf.mxu0
      %v398 = vadd.f32 0.0, %v397
      %399 = vmatmul.bf16.gmra.mxu0 %v303
      %v400 = vpop.f32.mrf.mxu0
      %v401 = vadd.f32 0.0, %v400
      %v402 = vpop.f32.mrf.mxu0
      %v403 = vadd.f32 0.0, %v402
      %404 = vdwg.mxu0
      %v405 = vadd.f32 %v304, %v386
      %v406 = vadd.f32 %v305, %v388
      %v407 = vadd.f32 %v306, %v391
      %v408 = vadd.f32 %v307, %v393
      %v409 = vadd.f32 %v308, %v396
      %v410 = vadd.f32 %v309, %v398
      %v411 = vadd.f32 %v310, %v401
      %v412 = vadd.f32 %v311, %v403
      %vm413 = vcmask 64512
      %414 = vst.msk [vmem:[%s261] sm:$0xff] %vm413, %v405
      %415 = vst.msk [vmem:[%s261 + $0x8] sm:$0xff] %vm413, %v406
      %416 = vst.msk [vmem:[%s261 + $0x10] sm:$0xff] %vm413, %v407
      %417 = vst.msk [vmem:[%s261 + $0x18] sm:$0xff] %vm413, %v408
      %418 = vst.msk [vmem:[%s261 + $0x20] sm:$0xff] %vm413, %v409
      %419 = vst.msk [vmem:[%s261 + $0x28] sm:$0xff] %vm413, %v410
      %420 = vst.msk [vmem:[%s261 + $0x30] sm:$0xff] %vm413, %v411
      %421 = vst.msk [vmem:[%s261 + $0x38] sm:$0xff] %vm413, %v412
      %s422 = smul.u32 8, %s20
      %p423 = scmp.lt.s32.totalorder %s19, 3
      %s424 = scalar_select %p423, %s19, 3
      %p425 = scmp.lt.s32.totalorder %s422, 15
      %s426 = scalar_select %p425, %s422, 15
      %p427 = scmp.lt.s32.totalorder %s21, 0
      %s428 = scalar_select %p427, %s21, 0
      %s429 = sadd.s32 %s428, %s426
      %s430 = smul.addr %s424, 16
      %s431 = sadd.s32 %s429, %s430
      %s432 = smul.addr %s431, 8
      %s433 = scalar_lea.vmem %s2, %s432
      // Predicated region
      $region33: #{_lambda_.31} parent=27 // pred_check
        %p434 = pneg %p121
      $region34: #{_lambda_.31} parent=27 // pred_check_branch
        %436 = sbr.rel (%p434) target = $region36
      $region35: #{_lambda_.31} parent=27 // pred_region
        %s437 = smul.u32 8, %s20
      $region36: #{_lambda_.31} parent=27 // pred_fallthru
        _
    $region28: #{_lambda_.31} parent=5 // pred_fallthru
      _
    %p438 = scmp.le.s32.totalorder 2, %s8
    // Predicated region
    $region37: #{_lambda_.31} parent=5 // pred_check
      %p439 = pneg %p438
    $region38: #{_lambda_.31} parent=5 // pred_check_branch
      %441 = sbr.rel (%p439) target = $region40
    $region39: #{_lambda_.31} parent=5 // pred_region
      %s442 = ssub.s32 %s8, 2
      // Predicated region
      $region41: #{_lambda_.31} parent=39 // pred_check
        %p443 = pneg %p127
      $region42: #{_lambda_.31} parent=39 // pred_check_branch
        %445 = sbr.rel (%p443) target = $region44
      $region43: #{_lambda_.31} parent=39 // pred_region
        %s446 = smul.u32 8, %s24
        %p447 = scmp.lt.s32.totalorder %s23, 3
        %s448 = scalar_select %p447, %s23, 3
        %p449 = scmp.lt.s32.totalorder %s446, 15
        %s450 = scalar_select %p449, %s446, 15
        %p451 = scmp.lt.s32.totalorder %s25, 0
        %s452 = scalar_select %p451, %s25, 0
        %s453 = sadd.s32 %s452, %s450
        %s454 = smul.addr %s448, 16
        %s455 = sadd.s32 %s453, %s454
        %s456 = smul.addr %s455, 8
        %s457 = scalar_lea.vmem %s2, %s456
      $region44: #{_lambda_.31} parent=39 // pred_fallthru
        _
    $region40: #{_lambda_.31} parent=5 // pred_fallthru
      _
  $region6: #{_lambda_.31} parent=0 // loop_footer
    %s12 = sadd.s32 1, %s8
  $region7: #{_lambda_.31} parent=0 // loop_footer_branch
    %7 = sbr.rel target = $region3
  $region8: #{_lambda_.31} parent=0 // loop_exit
    _

// kernel: _lambda_.32
$region0: #{_lambda_.32}
  #allocation0 [shape = 'u32[]', space=smem, size = 0x4, offset = 0x4, fixed_abs, tag = 'smem constant byte address 0x4 - core index']
  #allocation1 [shape = 'u32[72,128]{1,0:T(1,128)}', space=vmem, size = 0x9000, scoped, tag = 'internal scratch']
  #allocation2 [shape = 'f32[1,8]{1,0:T(1,128)}', space=vmem, size = 0x200, scoped, tag = 'scratch operand']
  #allocation3 [shape = 'f32[1,8]{1,0:T(1,128)}', space=vmem, size = 0x200, scoped, tag = 'scratch operand']
  %s0 = inlined_call_operand.vmem [shape: f32[512,8], index: 0, kind: input, shape index: {}]
  %s1 = inlined_call_operand.vmem [shape: f32[1,8], index: 1, kind: input, shape index: {}]
  %s2 = inlined_call_operand.vmem [shape: f32[1,8], index: 2, kind: input, shape index: {}]
  %s3 = inlined_call_operand.vmem [shape: f32[1,8], index: 3, kind: output, shape index: {0}]
  %s4 = inlined_call_operand.vmem [shape: f32[1,8], index: 4, kind: output, shape index: {1}]
  %5 = xla_tuple %s3, %s4
  %s6 = sld [smem:[#allocation0]]
  $region38: #{_lambda_.32} parent=0
    _
  %s8 = ssub.s32 1, %s6
  %s9 = scalar_select 0, %s8, %s6
  // Predicated region
  $region2: #{_lambda_.32} parent=0 // pred_check
    _
  $region3: #{_lambda_.32} parent=0 // pred_check_branch
    %11 = sbr.rel (0) target = $region5
  $region4: #{_lambda_.32} parent=0 // pred_region
    _
  $region5: #{_lambda_.32} parent=0 // pred_fallthru
    _
  // Predicated region
  $region6: #{_lambda_.32} parent=0 // pred_check
    _
  $region7: #{_lambda_.32} parent=0 // pred_check_branch
    %13 = sbr.rel (0) target = $region9
  $region8: #{_lambda_.32} parent=0 // pred_region
    _
  $region9: #{_lambda_.32} parent=0 // pred_fallthru
    _
  // Predicated region
  $region10: #{_lambda_.32} parent=0 // pred_check
    _
  $region11: #{_lambda_.32} parent=0 // pred_check_branch
    %15 = sbr.rel (0) target = $region13
  $region12: #{_lambda_.32} parent=0 // pred_region
    _
  $region13: #{_lambda_.32} parent=0 // pred_fallthru
    _
  %p16 = scmp.eq.s32.totalorder 0, 0
  // Predicated region
  $region14: #{_lambda_.32} parent=0 // pred_check
    %p17 = pneg %p16
  $region15: #{_lambda_.32} parent=0 // pred_check_branch
    %19 = sbr.rel (%p17) target = $region17
  $region16: #{_lambda_.32} parent=0 // pred_region
    %vm20 = vcmask 57344
    %21 = vst.msk [vmem:[#allocation2] sm:$0x1] %vm20, 0.0
    %22 = vst.msk [vmem:[#allocation3] sm:$0x1] %vm20, 0.0
  $region17: #{_lambda_.32} parent=0 // pred_fallthru
    _
  %v23 = vld [vmem:[%s0] sm:$0xff]
  %v24 = vld [vmem:[%s0 + $0x8] sm:$0xff]
  %v25 = vld [vmem:[%s0 + $0x10] sm:$0xff]
  %v26 = vld [vmem:[%s0 + $0x18] sm:$0xff]
  %v27 = vld [vmem:[%s0 + $0x20] sm:$0xff]
  %v28 = vld [vmem:[%s0 + $0x28] sm:$0xff]
  %v29 = vld [vmem:[%s0 + $0x30] sm:$0xff]
  %v30 = vld [vmem:[%s0 + $0x38] sm:$0xff]
  %v31 = vld [vmem:[%s0 + $0x40] sm:$0xff]
  %v32 = vld [vmem:[%s0 + $0x48] sm:$0xff]
  %v33 = vld [vmem:[%s0 + $0x50] sm:$0xff]
  %v34 = vld [vmem:[%s0 + $0x58] sm:$0xff]
  %v35 = vld [vmem:[%s0 + $0x60] sm:$0xff]
  %v36 = vld [vmem:[%s0 + $0x68] sm:$0xff]
  %v37 = vld [vmem:[%s0 + $0x70] sm:$0xff]
  %v38 = vld [vmem:[%s0 + $0x78] sm:$0xff]
  %v39 = vld [vmem:[%s0 + $0x80] sm:$0xff]
  %v40 = vld [vmem:[%s0 + $0x88] sm:$0xff]
  %v41 = vld [vmem:[%s0 + $0x90] sm:$0xff]
  %v42 = vld [vmem:[%s0 + $0x98] sm:$0xff]
  %v43 = vld [vmem:[%s0 + $0xa0] sm:$0xff]
  %v44 = vld [vmem:[%s0 + $0xa8] sm:$0xff]
  %v45 = vld [vmem:[%s0 + $0xb0] sm:$0xff]
  %v46 = vld [vmem:[%s0 + $0xb8] sm:$0xff]
  %v47 = vld [vmem:[%s0 + $0xc0] sm:$0xff]
  %v48 = vld [vmem:[%s0 + $0xc8] sm:$0xff]
  %v49 = vld [vmem:[%s0 + $0xd0] sm:$0xff]
  %v50 = vld [vmem:[%s0 + $0xd8] sm:$0xff]
  %v51 = vld [vmem:[%s0 + $0xe0] sm:$0xff]
  %v52 = vld [vmem:[%s0 + $0xe8] sm:$0xff]
  %v53 = vld [vmem:[%s0 + $0xf0] sm:$0xff]
  %v54 = vld [vmem:[%s0 + $0xf8] sm:$0xff]
  %v55 = vld [vmem:[%s0 + $0x100] sm:$0xff]
  %v56 = vld [vmem:[%s0 + $0x108] sm:$0xff]
  %v57 = vld [vmem:[%s0 + $0x110] sm:$0xff]
  %v58 = vld [vmem:[%s0 + $0x118] sm:$0xff]
  %v59 = vld [vmem:[%s0 + $0x120] sm:$0xff]
  %v60 = vld [vmem:[%s0 + $0x128] sm:$0xff]
  %v61 = vld [vmem:[%s0 + $0x130] sm:$0xff]
  %v62 = vld [vmem:[%s0 + $0x138] sm:$0xff]
  %v63 = vld [vmem:[%s0 + $0x140] sm:$0xff]
  %v64 = vld [vmem:[%s0 + $0x148] sm:$0xff]
  %v65 = vld [vmem:[%s0 + $0x150] sm:$0xff]
  %v66 = vld [vmem:[%s0 + $0x158] sm:$0xff]
  %v67 = vld [vmem:[%s0 + $0x160] sm:$0xff]
  %v68 = vld [vmem:[%s0 + $0x168] sm:$0xff]
  %v69 = vld [vmem:[%s0 + $0x170] sm:$0xff]
  %v70 = vld [vmem:[%s0 + $0x178] sm:$0xff]
  %v71 = vld [vmem:[%s0 + $0x180] sm:$0xff]
  %v72 = vld [vmem:[%s0 + $0x188] sm:$0xff]
  %v73 = vld [vmem:[%s0 + $0x190] sm:$0xff]
  %v74 = vld [vmem:[%s0 + $0x198] sm:$0xff]
  %v75 = vld [vmem:[%s0 + $0x1a0] sm:$0xff]
  %v76 = vld [vmem:[%s0 + $0x1a8] sm:$0xff]
  %v77 = vld [vmem:[%s0 + $0x1b0] sm:$0xff]
  %v78 = vld [vmem:[%s0 + $0x1b8] sm:$0xff]
  %v79 = vld [vmem:[%s0 + $0x1c0] sm:$0xff]
  %v80 = vld [vmem:[%s0 + $0x1c8] sm:$0xff]
  %v81 = vld [vmem:[%s0 + $0x1d0] sm:$0xff]
  %v82 = vld [vmem:[%s0 + $0x1d8] sm:$0xff]
  %v83 = vld [vmem:[%s0 + $0x1e0] sm:$0xff]
  %v84 = vld [vmem:[%s0 + $0x1e8] sm:$0xff]
  %v85 = vld [vmem:[%s0 + $0x1f0] sm:$0xff]
  %v86 = vld [vmem:[%s0 + $0x1f8] sm:$0xff]
  %v87 = vld [vmem:[#allocation2] sm:$0x1]
  %vm88 = vcmask 64512
  %v89 = vsel %vm88, %v23, 0.0
  %v90 = vsel %vm88, %v24, 0.0
  %v91 = vadd.f32 %v89, %v90
  %v92 = vsel %vm88, %v25, 0.0
  %v93 = vadd.f32 %v91, %v92
  %v94 = vsel %vm88, %v26, 0.0
  %v95 = vadd.f32 %v93, %v94
  %v96 = vsel %vm88, %v27, 0.0
  %v97 = vadd.f32 %v95, %v96
  %v98 = vsel %vm88, %v28, 0.0
  %v99 = vadd.f32 %v97, %v98
  %v100 = vsel %vm88, %v29, 0.0
  %v101 = vadd.f32 %v99, %v100
  %v102 = vsel %vm88, %v30, 0.0
  %v103 = vadd.f32 %v101, %v102
  %v104 = vsel %vm88, %v31, 0.0
  %v105 = vadd.f32 %v103, %v104
  %v106 = vsel %vm88, %v32, 0.0
  %v107 = vadd.f32 %v105, %v106
  %v108 = vsel %vm88, %v33, 0.0
  %v109 = vadd.f32 %v107, %v108
  %v110 = vsel %vm88, %v34, 0.0
  %v111 = vadd.f32 %v109, %v110
  %v112 = vsel %vm88, %v35, 0.0
  %v113 = vadd.f32 %v111, %v112
  %v114 = vsel %vm88, %v36, 0.0
  %v115 = vadd.f32 %v113, %v114
  %v116 = vsel %vm88, %v37, 0.0
  %v117 = vadd.f32 %v115, %v116
  %v118 = vsel %vm88, %v38, 0.0
  %v119 = vadd.f32 %v117, %v118
  %v120 = vsel %vm88, %v39, 0.0
  %v121 = vadd.f32 %v119, %v120
  %v122 = vsel %vm88, %v40, 0.0
  %v123 = vadd.f32 %v121, %v122
  %v124 = vsel %vm88, %v41, 0.0
  %v125 = vadd.f32 %v123, %v124
  %v126 = vsel %vm88, %v42, 0.0
  %v127 = vadd.f32 %v125, %v126
  %v128 = vsel %vm88, %v43, 0.0
  %v129 = vadd.f32 %v127, %v128
  %v130 = vsel %vm88, %v44, 0.0
  %v131 = vadd.f32 %v129, %v130
  %v132 = vsel %vm88, %v45, 0.0
  %v133 = vadd.f32 %v131, %v132
  %v134 = vsel %vm88, %v46, 0.0
  %v135 = vadd.f32 %v133, %v134
  %v136 = vsel %vm88, %v47, 0.0
  %v137 = vadd.f32 %v135, %v136
  %v138 = vsel %vm88, %v48, 0.0
  %v139 = vadd.f32 %v137, %v138
  %v140 = vsel %vm88, %v49, 0.0
  %v141 = vadd.f32 %v139, %v140
  %v142 = vsel %vm88, %v50, 0.0
  %v143 = vadd.f32 %v141, %v142
  %v144 = vsel %vm88, %v51, 0.0
  %v145 = vadd.f32 %v143, %v144
  %v146 = vsel %vm88, %v52, 0.0
  %v147 = vadd.f32 %v145, %v146
  %v148 = vsel %vm88, %v53, 0.0
  %v149 = vadd.f32 %v147, %v148
  %v150 = vsel %vm88, %v54, 0.0
  %v151 = vadd.f32 %v149, %v150
  %v152 = vsel %vm88, %v55, 0.0
  %v153 = vadd.f32 %v151, %v152
  %v154 = vsel %vm88, %v56, 0.0
  %v155 = vadd.f32 %v153, %v154
  %v156 = vsel %vm88, %v57, 0.0
  %v157 = vadd.f32 %v155, %v156
  %v158 = vsel %vm88, %v58, 0.0
  %v159 = vadd.f32 %v157, %v158
  %v160 = vsel %vm88, %v59, 0.0
  %v161 = vadd.f32 %v159, %v160
  %v162 = vsel %vm88, %v60, 0.0
  %v163 = vadd.f32 %v161, %v162
  %v164 = vsel %vm88, %v61, 0.0
  %v165 = vadd.f32 %v163, %v164
  %v166 = vsel %vm88, %v62, 0.0
  %v167 = vadd.f32 %v165, %v166
  %v168 = vsel %vm88, %v63, 0.0
  %v169 = vadd.f32 %v167, %v168
  %v170 = vsel %vm88, %v64, 0.0
  %v171 = vadd.f32 %v169, %v170
  %v172 = vsel %vm88, %v65, 0.0
  %v173 = vadd.f32 %v171, %v172
  %v174 = vsel %vm88, %v66, 0.0
  %v175 = vadd.f32 %v173, %v174
  %v176 = vsel %vm88, %v67, 0.0
  %v177 = vadd.f32 %v175, %v176
  %v178 = vsel %vm88, %v68, 0.0
  %v179 = vadd.f32 %v177, %v178
  %v180 = vsel %vm88, %v69, 0.0
  %v181 = vadd.f32 %v179, %v180
  %v182 = vsel %vm88, %v70, 0.0
  %v183 = vadd.f32 %v181, %v182
  %v184 = vsel %vm88, %v71, 0.0
  %v185 = vadd.f32 %v183, %v184
  %v186 = vsel %vm88, %v72, 0.0
  %v187 = vadd.f32 %v185, %v186
  %v188 = vsel %vm88, %v73, 0.0
  %v189 = vadd.f32 %v187, %v188
  %v190 = vsel %vm88, %v74, 0.0
  %v191 = vadd.f32 %v189, %v190
  %v192 = vsel %vm88, %v75, 0.0
  %v193 = vadd.f32 %v191, %v192
  %v194 = vsel %vm88, %v76, 0.0
  %v195 = vadd.f32 %v193, %v194
  %v196 = vsel %vm88, %v77, 0.0
  %v197 = vadd.f32 %v195, %v196
  %v198 = vsel %vm88, %v78, 0.0
  %v199 = vadd.f32 %v197, %v198
  %v200 = vsel %vm88, %v79, 0.0
  %v201 = vadd.f32 %v199, %v200
  %v202 = vsel %vm88, %v80, 0.0
  %v203 = vadd.f32 %v201, %v202
  %v204 = vsel %vm88, %v81, 0.0
  %v205 = vadd.f32 %v203, %v204
  %v206 = vsel %vm88, %v82, 0.0
  %v207 = vadd.f32 %v205, %v206
  %v208 = vsel %vm88, %v83, 0.0
  %v209 = vadd.f32 %v207, %v208
  %v210 = vsel %vm88, %v84, 0.0
  %v211 = vadd.f32 %v209, %v210
  %v212 = vsel %vm88, %v85, 0.0
  %v213 = vadd.f32 %v211, %v212
  %v214 = vsel %vm88, %v86, 0.0
  %v215 = vadd.f32 %v213, %v214
  %v216 = vrot.slane %v215, 4
  %v217 = vadd.f32 %v215, %v216
  %v218 = vrot.slane %v217, 2
  %v219 = vadd.f32 %v217, %v218
  %v220 = vrot.slane %v219, 1
  %v221 = vadd.f32 %v219, %v220
  %v222 = vadd.f32 %v87, %v221
  %vm223 = vcmask 57344
  %224 = vst.msk [vmem:[#allocation2] sm:$0x1] %vm223, %v222
  %v225 = vld [vmem:[#allocation3] sm:$0x1]
  %v226 = vmul.f32 %v23, %v23
  %v227 = vmul.f32 %v24, %v24
  %v228 = vmul.f32 %v25, %v25
  %v229 = vmul.f32 %v26, %v26
  %v230 = vmul.f32 %v27, %v27
  %v231 = vmul.f32 %v28, %v28
  %v232 = vmul.f32 %v29, %v29
  %v233 = vmul.f32 %v30, %v30
  %v234 = vmul.f32 %v31, %v31
  %v235 = vmul.f32 %v32, %v32
  %v236 = vmul.f32 %v33, %v33
  %v237 = vmul.f32 %v34, %v34
  %v238 = vmul.f32 %v35, %v35
  %v239 = vmul.f32 %v36, %v36
  %v240 = vmul.f32 %v37, %v37
  %v241 = vmul.f32 %v38, %v38
  %v242 = vmul.f32 %v39, %v39
  %v243 = vmul.f32 %v40, %v40
  %v244 = vmul.f32 %v41, %v41
  %v245 = vmul.f32 %v42, %v42
  %v246 = vmul.f32 %v43, %v43
  %v247 = vmul.f32 %v44, %v44
  %v248 = vmul.f32 %v45, %v45
  %v249 = vmul.f32 %v46, %v46
  %v250 = vmul.f32 %v47, %v47
  %v251 = vmul.f32 %v48, %v48
  %v252 = vmul.f32 %v49, %v49
  %v253 = vmul.f32 %v50, %v50
  %v254 = vmul.f32 %v51, %v51
  %v255 = vmul.f32 %v52, %v52
  %v256 = vmul.f32 %v53, %v53
  %v257 = vmul.f32 %v54, %v54
  %v258 = vmul.f32 %v55, %v55
  %v259 = vmul.f32 %v56, %v56
  %v260 = vmul.f32 %v57, %v57
  %v261 = vmul.f32 %v58, %v58
  %v262 = vmul.f32 %v59, %v59
  %v263 = vmul.f32 %v60, %v60
  %v264 = vmul.f32 %v61, %v61
  %v265 = vmul.f32 %v62, %v62
  %v266 = vmul.f32 %v63, %v63
  %v267 = vmul.f32 %v64, %v64
  %v268 = vmul.f32 %v65, %v65
  %v269 = vmul.f32 %v66, %v66
  %v270 = vmul.f32 %v67, %v67
  %v271 = vmul.f32 %v68, %v68
  %v272 = vmul.f32 %v69, %v69
  %v273 = vmul.f32 %v70, %v70
  %v274 = vmul.f32 %v71, %v71
  %v275 = vmul.f32 %v72, %v72
  %v276 = vmul.f32 %v73, %v73
  %v277 = vmul.f32 %v74, %v74
  %v278 = vmul.f32 %v75, %v75
  %v279 = vmul.f32 %v76, %v76
  %v280 = vmul.f32 %v77, %v77
  %v281 = vmul.f32 %v78, %v78
  %v282 = vmul.f32 %v79, %v79
  %v283 = vmul.f32 %v80, %v80
  %v284 = vmul.f32 %v81, %v81
  %v285 = vmul.f32 %v82, %v82
  %v286 = vmul.f32 %v83, %v83
  %v287 = vmul.f32 %v84, %v84
  %v288 = vmul.f32 %v85, %v85
  %v289 = vmul.f32 %v86, %v86
  %v290 = vsel %vm88, %v226, 0.0
  %v291 = vsel %vm88, %v227, 0.0
  %v292 = vadd.f32 %v290, %v291
  %v293 = vsel %vm88, %v228, 0.0
  %v294 = vadd.f32 %v292, %v293
  %v295 = vsel %vm88, %v229, 0.0
  %v296 = vadd.f32 %v294, %v295
  %v297 = vsel %vm88, %v230, 0.0
  %v298 = vadd.f32 %v296, %v297
  %v299 = vsel %vm88, %v231, 0.0
  %v300 = vadd.f32 %v298, %v299
  %v301 = vsel %vm88, %v232, 0.0
  %v302 = vadd.f32 %v300, %v301
  %v303 = vsel %vm88, %v233, 0.0
  %v304 = vadd.f32 %v302, %v303
  %v305 = vsel %vm88, %v234, 0.0
  %v306 = vadd.f32 %v304, %v305
  %v307 = vsel %vm88, %v235, 0.0
  %v308 = vadd.f32 %v306, %v307
  %v309 = vsel %vm88, %v236, 0.0
  %v310 = vadd.f32 %v308, %v309
  %v311 = vsel %vm88, %v237, 0.0
  %v312 = vadd.f32 %v310, %v311
  %v313 = vsel %vm88, %v238, 0.0
  %v314 = vadd.f32 %v312, %v313
  %v315 = vsel %vm88, %v239, 0.0
  %v316 = vadd.f32 %v314, %v315
  %v317 = vsel %vm88, %v240, 0.0
  %v318 = vadd.f32 %v316, %v317
  %v319 = vsel %vm88, %v241, 0.0
  %v320 = vadd.f32 %v318, %v319
  %v321 = vsel %vm88, %v242, 0.0
  %v322 = vadd.f32 %v320, %v321
  %v323 = vsel %vm88, %v243, 0.0
  %v324 = vadd.f32 %v322, %v323
  %v325 = vsel %vm88, %v244, 0.0
  %v326 = vadd.f32 %v324, %v325
  %v327 = vsel %vm88, %v245, 0.0
  %v328 = vadd.f32 %v326, %v327
  %v329 = vsel %vm88, %v246, 0.0
  %v330 = vadd.f32 %v328, %v329
  %v331 = vsel %vm88, %v247, 0.0
  %v332 = vadd.f32 %v330, %v331
  %v333 = vsel %vm88, %v248, 0.0
  %v334 = vadd.f32 %v332, %v333
  %v335 = vsel %vm88, %v249, 0.0
  %v336 = vadd.f32 %v334, %v335
  %v337 = vsel %vm88, %v250, 0.0
  %v338 = vadd.f32 %v336, %v337
  %v339 = vsel %vm88, %v251, 0.0
  %v340 = vadd.f32 %v338, %v339
  %v341 = vsel %vm88, %v252, 0.0
  %v342 = vadd.f32 %v340, %v341
  %v343 = vsel %vm88, %v253, 0.0
  %v344 = vadd.f32 %v342, %v343
  %v345 = vsel %vm88, %v254, 0.0
  %v346 = vadd.f32 %v344, %v345
  %v347 = vsel %vm88, %v255, 0.0
  %v348 = vadd.f32 %v346, %v347
  %v349 = vsel %vm88, %v256, 0.0
  %v350 = vadd.f32 %v348, %v349
  %v351 = vsel %vm88, %v257, 0.0
  %v352 = vadd.f32 %v350, %v351
  %v353 = vsel %vm88, %v258, 0.0
  %v354 = vadd.f32 %v352, %v353
  %v355 = vsel %vm88, %v259, 0.0
  %v356 = vadd.f32 %v354, %v355
  %v357 = vsel %vm88, %v260, 0.0
  %v358 = vadd.f32 %v356, %v357
  %v359 = vsel %vm88, %v261, 0.0
  %v360 = vadd.f32 %v358, %v359
  %v361 = vsel %vm88, %v262, 0.0
  %v362 = vadd.f32 %v360, %v361
  %v363 = vsel %vm88, %v263, 0.0
  %v364 = vadd.f32 %v362, %v363
  %v365 = vsel %vm88, %v264, 0.0
  %v366 = vadd.f32 %v364, %v365
  %v367 = vsel %vm88, %v265, 0.0
  %v368 = vadd.f32 %v366, %v367
  %v369 = vsel %vm88, %v266, 0.0
  %v370 = vadd.f32 %v368, %v369
  %v371 = vsel %vm88, %v267, 0.0
  %v372 = vadd.f32 %v370, %v371
  %v373 = vsel %vm88, %v268, 0.0
  %v374 = vadd.f32 %v372, %v373
  %v375 = vsel %vm88, %v269, 0.0
  %v376 = vadd.f32 %v374, %v375
  %v377 = vsel %vm88, %v270, 0.0
  %v378 = vadd.f32 %v376, %v377
  %v379 = vsel %vm88, %v271, 0.0
  %v380 = vadd.f32 %v378, %v379
  %v381 = vsel %vm88, %v272, 0.0
  %v382 = vadd.f32 %v380, %v381
  %v383 = vsel %vm88, %v273, 0.0
  %v384 = vadd.f32 %v382, %v383
  %v385 = vsel %vm88, %v274, 0.0
  %v386 = vadd.f32 %v384, %v385
  %v387 = vsel %vm88, %v275, 0.0
  %v388 = vadd.f32 %v386, %v387
  %v389 = vsel %vm88, %v276, 0.0
  %v390 = vadd.f32 %v388, %v389
  %v391 = vsel %vm88, %v277, 0.0
  %v392 = vadd.f32 %v390, %v391
  %v393 = vsel %vm88, %v278, 0.0
  %v394 = vadd.f32 %v392, %v393
  %v395 = vsel %vm88, %v279, 0.0
  %v396 = vadd.f32 %v394, %v395
  %v397 = vsel %vm88, %v280, 0.0
  %v398 = vadd.f32 %v396, %v397
  %v399 = vsel %vm88, %v281, 0.0
  %v400 = vadd.f32 %v398, %v399
  %v401 = vsel %vm88, %v282, 0.0
  %v402 = vadd.f32 %v400, %v401
  %v403 = vsel %vm88, %v283, 0.0
  %v404 = vadd.f32 %v402, %v403
  %v405 = vsel %vm88, %v284, 0.0
  %v406 = vadd.f32 %v404, %v405
  %v407 = vsel %vm88, %v285, 0.0
  %v408 = vadd.f32 %v406, %v407
  %v409 = vsel %vm88, %v286, 0.0
  %v410 = vadd.f32 %v408, %v409
  %v411 = vsel %vm88, %v287, 0.0
  %v412 = vadd.f32 %v410, %v411
  %v413 = vsel %vm88, %v288, 0.0
  %v414 = vadd.f32 %v412, %v413
  %v415 = vsel %vm88, %v289, 0.0
  %v416 = vadd.f32 %v414, %v415
  %v417 = vrot.slane %v416, 4
  %v418 = vadd.f32 %v416, %v417
  %v419 = vrot.slane %v418, 2
  %v420 = vadd.f32 %v418, %v419
  %v421 = vrot.slane %v420, 1
  %v422 = vadd.f32 %v420, %v421
  %v423 = vadd.f32 %v225, %v422
  %424 = vst.msk [vmem:[#allocation3] sm:$0x1] %vm223, %v423
  // Predicated region
  $region18: #{_lambda_.32} parent=0 // pred_check
    %p425 = pneg %p16
  $region19: #{_lambda_.32} parent=0 // pred_check_branch
    %427 = sbr.rel (%p425) target = $region21
  $region20: #{_lambda_.32} parent=0 // pred_region
    %v428 = vld [vmem:[#allocation2] sm:$0x1]
    %v429 = vmul.f32 %v428, 0.001953125
    %v430 = vld [vmem:[#allocation3] sm:$0x1]
    %v431 = vmul.f32 %v430, 0.001953125
    %v432 = vmul.f32 %v429, %v429
    %v433 = vsub.f32 %v431, %v432
    %v434 = vmax.f32 %v433, 0.0
    %v435 = vld [vmem:[%s1] sm:$0x1]
    %v436 = vadd.f32 %v434, 1e-05
    %v437 = vrsqrt.pop %v436
    %v438 = vmul.f32 %v437, %v436
    %v439 = vmul.f32 %v438, %v437
    %v440 = vmul.f32 0.5, %v439
    %v441 = vsub.f32 1.5, %v440
    %v442 = vmul.f32 %v437, %v441
    %vm443 = vweird.f32 %v436
    %vm444 = vweird.f32 %v437
    %vm445 = vmor %vm443, %vm444
    %v446 = vsel %vm445, %v437, %v442
    %v447 = vmul.f32 %v435, %v446
    %448 = vst.msk [vmem:[%s3] sm:$0x1] %vm223, %v447
    %v449 = vld [vmem:[%s2] sm:$0x1]
    %v450 = vmul.f32 %v429, %v447
    %v451 = vsub.f32 %v449, %v450
    %452 = vst.msk [vmem:[%s4] sm:$0x1] %vm223, %v451
  $region21: #{_lambda_.32} parent=0 // pred_fallthru
    _
  // Predicated region
  $region22: #{_lambda_.32} parent=0 // pred_check
    _
  $region23: #{_lambda_.32} parent=0 // pred_check_branch
    %454 = sbr.rel (0) target = $region25
  $region24: #{_lambda_.32} parent=0 // pred_region
    _
  $region25: #{_lambda_.32} parent=0 // pred_fallthru
    _
  // Predicated region
  $region26: #{_lambda_.32} parent=0 // pred_check
    _
  $region27: #{_lambda_.32} parent=0 // pred_check_branch
    %456 = sbr.rel (0) target = $region29
  $region28: #{_lambda_.32} parent=0 // pred_region
    _
  $region29: #{_lambda_.32} parent=0 // pred_fallthru
    _
  // Predicated region
  $region30: #{_lambda_.32} parent=0 // pred_check
    _
  $region31: #{_lambda_.32} parent=0 // pred_check_branch
    %458 = sbr.rel (0) target = $region33
  $region32: #{_lambda_.32} parent=0 // pred_region
    _
  $region33: #{_lambda_.32} parent=0 // pred_fallthru
    _
  // Predicated region
  $region34: #{_lambda_.32} parent=0 // pred_check
    _
  $region35: #{_lambda_.32} parent=0 // pred_check_branch
    %460 = sbr.rel (0) target = $region37
  $region36: #{_lambda_.32} parent=0 // pred_region
    _
  $region37: #{_lambda_.32} parent=0 // pred_fallthru
    _

// kernel: _lambda_.33
$region0: #{_lambda_.33}
  #allocation0 [shape = 'u32[]', space=smem, size = 0x4, offset = 0x4, fixed_abs, tag = 'smem constant byte address 0x4 - core index']
  #allocation1 [shape = 'u32[72,128]{1,0:T(1,128)}', space=vmem, size = 0x9000, scoped, tag = 'internal scratch']
  %s0 = inlined_call_operand.vmem [shape: bf16[4,512,64], index: 0, kind: input, shape index: {}]
  %s1 = inlined_call_operand.vmem [shape: bf16[4,64,2], index: 1, kind: input, shape index: {}]
  %s2 = inlined_call_operand.vmem [shape: f32[1,2], index: 2, kind: input, shape index: {}]
  %s3 = inlined_call_operand.vmem [shape: f32[4,512,2], index: 3, kind: output, shape index: {}]
  %s4 = sld [smem:[#allocation0]]
  $region53: #{_lambda_.33} parent=0
    _
  %s6 = ssub.s32 1, %s4
  %s7 = scalar_select 0, %s6, %s4
  loop: start=0, step=1, limit=10
  $region2: #{_lambda_.33} parent=0 // loop_pre_header
    _
  $region3: #{_lambda_.33} parent=0 // loop_header
    %s9 = sphi 0, %s13
    %p10 = scmp.ge.s32.totalorder %s9, 10
    %s16 = sphi 0, %s42
    %s17 = sphi 0, %s38
    %s18 = sphi 0, %s34
    %s19 = sphi 0, %s30
    %s20 = sphi 0, %s16
    %s21 = sphi 0, %s17
    %s22 = sphi 0, %s18
    %s23 = sphi 0, %s19
    %s24 = sphi 0, %s20
    %s25 = sphi 0, %s21
    %s26 = sphi 0, %s22
    %s27 = sphi 0, %s23
    %s49 = sphi 0, %s51
    %s52 = sphi 0, %s49
    %s53 = sphi 0, %s52
    %s69 = sphi 0, %s53
    %s79 = sphi 0, %s81
    %s82 = sphi 0, %s79
    %s83 = sphi 0, %s82
    %s99 = sphi 0, %s83
    %s105 = sphi 0, %s107
    %s108 = sphi 0, %s105
    %s109 = sphi 0, %s108
    %s125 = sphi 0, %s109
    %s135 = sphi 0, %s137
    %s138 = sphi 0, %s135
    %s139 = sphi 0, %s138
    %s155 = sphi 0, %s139
  $region4: #{_lambda_.33} parent=0 // loop_header_branch
    %12 = sbr.rel (%p10) target = $region8
  $region5: #{_lambda_.33} parent=0 // loop_body
    %s14 = ssub.s32 %s9, 1
    %s15 = ssub.s32 %s9, 2
    %s28 = sadd.s32 1, %s19
    %p29 = scmp.ge.s32.totalorder %s28, 1
    %s30 = scalar_select %p29, 0, %s28
    %s31 = sadd.s32 1, %s18
    %s32 = scalar_select %p29, %s31, %s18
    %p33 = scmp.ge.s32.totalorder %s32, 1
    %s34 = scalar_select %p33, 0, %s32
    %s35 = sadd.s32 1, %s17
    %s36 = scalar_select %p33, %s35, %s17
    %p37 = scmp.ge.s32.totalorder %s36, 2
    %s38 = scalar_select %p37, 0, %s36
    %s39 = sadd.s32 1, %s16
    %s40 = scalar_select %p37, %s39, %s16
    %p41 = scmp.ge.s32.totalorder %s40, 4
    %s42 = scalar_select %p41, 0, %s40
    %s43 = ssub.s32 %s16, %s42
    %s44 = ssub.s32 %s17, %s38
    %s45 = sor.u32 %s43, %s44
    %s46 = ssub.s32 %s19, %s30
    %s47 = sor.u32 %s45, %s46
    %p48 = scmp.eq.s32.totalorder %s47, 0
    %s50 = sadd.s32 %s49, 1
    %s51 = scalar_select %p48, %s49, %s50
    %p54 = pneg %p48
    %p55 = scmp.eq.s32.totalorder %s9, 7
    %p56 = por %p54, %p55
    %p57 = scmp.ne.s32.totalorder %s49, %s52
    %p58 = scmp.eq.s32.totalorder %s9, 0
    %p59 = por %p57, %p58
    %p60 = scmp.ne.s32.totalorder %s49, %s52
    %p61 = scmp.eq.s32.totalorder %s14, 7
    %p62 = por %p60, %p61
    %p63 = scmp.ne.s32.totalorder %s52, %s53
    %p64 = scmp.eq.s32.totalorder %s14, 0
    %p65 = por %p63, %p64
    %p66 = scmp.ne.s32.totalorder %s52, %s53
    %p67 = scmp.eq.s32.totalorder %s15, 7
    %p68 = por %p66, %p67
    %p70 = scmp.ne.s32.totalorder %s53, %s69
    %p71 = scmp.eq.s32.totalorder %s15, 0
    %p72 = por %p70, %p71
    %s73 = ssub.s32 %s16, %s42
    %s74 = ssub.s32 %s19, %s30
    %s75 = sor.u32 %s73, %s74
    %s76 = ssub.s32 %s18, %s34
    %s77 = sor.u32 %s75, %s76
    %p78 = scmp.eq.s32.totalorder %s77, 0
    %s80 = sadd.s32 %s79, 1
    %s81 = scalar_select %p78, %s79, %s80
    %p84 = pneg %p78
    %p85 = scmp.eq.s32.totalorder %s9, 7
    %p86 = por %p84, %p85
    %p87 = scmp.ne.s32.totalorder %s79, %s82
    %p88 = scmp.eq.s32.totalorder %s9, 0
    %p89 = por %p87, %p88
    %p90 = scmp.ne.s32.totalorder %s79, %s82
    %p91 = scmp.eq.s32.totalorder %s14, 7
    %p92 = por %p90, %p91
    %p93 = scmp.ne.s32.totalorder %s82, %s83
    %p94 = scmp.eq.s32.totalorder %s14, 0
    %p95 = por %p93, %p94
    %p96 = scmp.ne.s32.totalorder %s82, %s83
    %p97 = scmp.eq.s32.totalorder %s15, 7
    %p98 = por %p96, %p97
    %p100 = scmp.ne.s32.totalorder %s83, %s99
    %p101 = scmp.eq.s32.totalorder %s15, 0
    %p102 = por %p100, %p101
    %s103 = ssub.s32 %s18, %s34
    %p104 = scmp.eq.s32.totalorder %s103, 0
    %s106 = sadd.s32 %s105, 1
    %s107 = scalar_select %p104, %s105, %s106
    %p110 = pneg %p104
    %p111 = scmp.eq.s32.totalorder %s9, 7
    %p112 = por %p110, %p111
    %p113 = scmp.ne.s32.totalorder %s105, %s108
    %p114 = scmp.eq.s32.totalorder %s9, 0
    %p115 = por %p113, %p114
    %p116 = scmp.ne.s32.totalorder %s105, %s108
    %p117 = scmp.eq.s32.totalorder %s14, 7
    %p118 = por %p116, %p117
    %p119 = scmp.ne.s32.totalorder %s108, %s109
    %p120 = scmp.eq.s32.totalorder %s14, 0
    %p121 = por %p119, %p120
    %p122 = scmp.ne.s32.totalorder %s108, %s109
    %p123 = scmp.eq.s32.totalorder %s15, 7
    %p124 = por %p122, %p123
    %p126 = scmp.ne.s32.totalorder %s109, %s125
    %p127 = scmp.eq.s32.totalorder %s15, 0
    %p128 = por %p126, %p127
    %s129 = ssub.s32 %s16, %s42
    %s130 = ssub.s32 %s17, %s38
    %s131 = sor.u32 %s129, %s130
    %s132 = ssub.s32 %s18, %s34
    %s133 = sor.u32 %s131, %s132
    %p134 = scmp.eq.s32.totalorder %s133, 0
    %s136 = sadd.s32 %s135, 1
    %s137 = scalar_select %p134, %s135, %s136
    %p140 = pneg %p134
    %p141 = scmp.eq.s32.totalorder %s9, 7
    %p142 = por %p140, %p141
    %p143 = scmp.ne.s32.totalorder %s135, %s138
    %p144 = scmp.eq.s32.totalorder %s9, 0
    %p145 = por %p143, %p144
    %p146 = scmp.ne.s32.totalorder %s135, %s138
    %p147 = scmp.eq.s32.totalorder %s14, 7
    %p148 = por %p146, %p147
    %p149 = scmp.ne.s32.totalorder %s138, %s139
    %p150 = scmp.eq.s32.totalorder %s14, 0
    %p151 = por %p149, %p150
    %p152 = scmp.ne.s32.totalorder %s138, %s139
    %p153 = scmp.eq.s32.totalorder %s15, 7
    %p154 = por %p152, %p153
    %p156 = scmp.ne.s32.totalorder %s139, %s155
    %p157 = scmp.eq.s32.totalorder %s15, 0
    %p158 = por %p156, %p157
    %p159 = scmp.le.s32.totalorder 1, %s9
    %p160 = scmp.lt.s32.totalorder %s9, 9
    %p161 = pnand %p159, %p160
    %p162 = pneg %p161
    // Predicated region
    $region9: #{_lambda_.33} parent=5 // pred_check
      _
    $region10: #{_lambda_.33} parent=5 // pred_check_branch
      %164 = sbr.rel (%p161) target = $region12
    $region11: #{_lambda_.33} parent=5 // pred_region
      %s165 = ssub.s32 %s9, 1
      // Predicated region
      $region13: #{_lambda_.33} parent=11 // pred_check
        %p166 = pneg %p121
      $region14: #{_lambda_.33} parent=11 // pred_check_branch
        %168 = sbr.rel (%p166) target = $region16
      $region15: #{_lambda_.33} parent=11 // pred_region
        %p169 = scmp.lt.s32.totalorder %s22, 0
        %s170 = scalar_select %p169, %s22, 0
        %s171 = scalar_lea.vmem %s2, %s170
      $region16: #{_lambda_.33} parent=11 // pred_fallthru
        _
    $region12: #{_lambda_.33} parent=5 // pred_fallthru
      _
    %p172 = scmp.lt.s32.totalorder %s9, 8
    // Predicated region
    $region17: #{_lambda_.33} parent=5 // pred_check
      %p173 = pneg %p172
    $region18: #{_lambda_.33} parent=5 // pred_check_branch
      %175 = sbr.rel (%p173) target = $region20
    $region19: #{_lambda_.33} parent=5 // pred_region
      // Predicated region
      $region21: #{_lambda_.33} parent=19 // pred_check
        %p176 = pneg %p59
      $region22: #{_lambda_.33} parent=19 // pred_check_branch
        %178 = sbr.rel (%p176) target = $region24
      $region23: #{_lambda_.33} parent=19 // pred_region
        %s179 = smul.u32 32, %s17
        %p180 = scmp.lt.s32.totalorder %s16, 3
        %s181 = scalar_select %p180, %s16, 3
        %p182 = scmp.lt.s32.totalorder %s179, 63
        %s183 = scalar_select %p182, %s179, 63
        %p184 = scmp.lt.s32.totalorder %s19, 0
        %s185 = scalar_select %p184, %s19, 0
        %s186 = sadd.s32 %s185, %s183
        %s187 = smul.addr %s181, 64
        %s188 = sadd.s32 %s186, %s187
        %s189 = smul.addr %s188, 4
        %s190 = scalar_lea.vmem %s0, %s189
        %s191 = smul.u32 32, %s17
      $region24: #{_lambda_.33} parent=19 // pred_fallthru
        _
      // Predicated region
      $region25: #{_lambda_.33} parent=19 // pred_check
        %p192 = pneg %p89
      $region26: #{_lambda_.33} parent=19 // pred_check_branch
        %194 = sbr.rel (%p192) target = $region28
      $region27: #{_lambda_.33} parent=19 // pred_region
        %s195 = smul.u32 8, %s19
        %p196 = scmp.lt.s32.totalorder %s16, 3
        %s197 = scalar_select %p196, %s16, 3
        %p198 = scmp.lt.s32.totalorder %s195, 7
        %s199 = scalar_select %p198, %s195, 7
        %p200 = scmp.lt.s32.totalorder %s18, 0
        %s201 = scalar_select %p200, %s18, 0
        %s202 = sadd.s32 %s201, %s199
        %s203 = smul.addr %s197, 8
        %s204 = sadd.s32 %s202, %s203
        %s205 = smul.addr %s204, 4
        %s206 = scalar_lea.vmem %s1, %s205
        %s207 = smul.u32 8, %s19
      $region28: #{_lambda_.33} parent=19 // pred_fallthru
        _
    $region20: #{_lambda_.33} parent=5 // pred_fallthru
      _
    %p208 = scmp.le.s32.totalorder 1, %s9
    %p209 = scmp.lt.s32.totalorder %s9, 9
    %p210 = pnand %p208, %p209
    %p211 = pneg %p210
    // Predicated region
    $region29: #{_lambda_.33} parent=5 // pred_check
      _
    $region30: #{_lambda_.33} parent=5 // pred_check_branch
      %213 = sbr.rel (%p210) target = $region32
    $region31: #{_lambda_.33} parent=5 // pred_region
      %s214 = ssub.s32 %s9, 1
      %s215 = smul.u32 32, %s21
      %p216 = scmp.lt.s32.totalorder %s20, 3
      %s217 = scalar_select %p216, %s20, 3
      %p218 = scmp.lt.s32.totalorder %s215, 63
      %s219 = scalar_select %p218, %s215, 63
      %p220 = scmp.lt.s32.totalorder %s23, 0
      %s221 = scalar_select %p220, %s23, 0
      %s222 = sadd.s32 %s221, %s219
      %s223 = smul.addr %s217, 64
      %s224 = sadd.s32 %s222, %s223
      %s225 = smul.addr %s224, 4
      %s226 = scalar_lea.vmem %s0, %s225
      %p227 = pneg %p65
      %p228 = pneg %p62
      %s229 = smul.u32 8, %s23
      %p230 = scmp.lt.s32.totalorder %s20, 3
      %s231 = scalar_select %p230, %s20, 3
      %p232 = scmp.lt.s32.totalorder %s229, 7
      %s233 = scalar_select %p232, %s229, 7
      %p234 = scmp.lt.s32.totalorder %s22, 0
      %s235 = scalar_select %p234, %s22, 0
      %s236 = sadd.s32 %s235, %s233
      %s237 = smul.addr %s231, 8
      %s238 = sadd.s32 %s236, %s237
      %s239 = smul.addr %s238, 4
      %s240 = scalar_lea.vmem %s1, %s239
      %p241 = pneg %p95
      %p242 = pneg %p92
      %p243 = scmp.lt.s32.totalorder %s22, 0
      %s244 = scalar_select %p243, %s22, 0
      %s245 = scalar_lea.vmem %s2, %s244
      %p246 = pneg %p121
      %p247 = pneg %p118
      %p248 = pneg %p151
      %p249 = pneg %p148
      %s250 = smul.u32 32, %s21
      %p251 = scmp.lt.s32.totalorder %s20, 3
      %s252 = scalar_select %p251, %s20, 3
      %p253 = scmp.lt.s32.totalorder %s250, 63
      %s254 = scalar_select %p253, %s250, 63
      %p255 = scmp.lt.s32.totalorder %s22, 0
      %s256 = scalar_select %p255, %s22, 0
      %s257 = sadd.s32 %s256, %s254
      %s258 = smul.addr %s252, 64
      %s259 = sadd.s32 %s257, %s258
      %s260 = smul.addr %s259, 8
      %s261 = scalar_lea.vmem %s3, %s260
      %s262 = smul.u32 32, %s21
      %p263 = scmp.lt.s32.totalorder %s20, 3
      %s264 = scalar_select %p263, %s20, 3
      %p265 = scmp.lt.s32.totalorder %s262, 63
      %s266 = scalar_select %p265, %s262, 63
      %p267 = scmp.lt.s32.totalorder %s23, 0
      %s268 = scalar_select %p267, %s23, 0
      %s269 = sadd.s32 %s268, %s266
      %s270 = smul.addr %s264, 64
      %s271 = sadd.s32 %s269, %s270
      %s272 = smul.addr %s271, 4
      %s273 = scalar_lea.vmem %s0, %s272
      %s274 = smul.u32 32, %s21
      %s275 = smul.u32 8, %s23
      %p276 = scmp.lt.s32.totalorder %s20, 3
      %s277 = scalar_select %p276, %s20, 3
      %p278 = scmp.lt.s32.totalorder %s275, 7
      %s279 = scalar_select %p278, %s275, 7
      %p280 = scmp.lt.s32.totalorder %s22, 0
      %s281 = scalar_select %p280, %s22, 0
      %s282 = sadd.s32 %s281, %s279
      %s283 = smul.addr %s277, 8
      %s284 = sadd.s32 %s282, %s283
      %s285 = smul.addr %s284, 4
      %s286 = scalar_lea.vmem %s1, %s285
      %s287 = smul.u32 8, %s23
      %p288 = scmp.lt.s32.totalorder %s22, 0
      %s289 = scalar_select %p288, %s22, 0
      %s290 = scalar_lea.vmem %s2, %s289
      %s291 = smul.u32 32, %s21
      %p292 = scmp.lt.s32.totalorder %s20, 3
      %s293 = scalar_select %p292, %s20, 3
      %p294 = scmp.lt.s32.totalorder %s291, 63
      %s295 = scalar_select %p294, %s291, 63
      %p296 = scmp.lt.s32.totalorder %s22, 0
      %s297 = scalar_select %p296, %s22, 0
      %s298 = sadd.s32 %s297, %s295
      %s299 = smul.addr %s293, 64
      %s300 = sadd.s32 %s298, %s299
      %s301 = smul.addr %s300, 8
      %s302 = scalar_lea.vmem %s3, %s301
      %s303 = smul.u32 32, %s21
      %p305 = scmp.eq.s32.totalorder %s23, 0
      // Predicated region
      $region33: #{_lambda_.33} parent=31 // pred_check
        %p306 = pneg %p305
      $region34: #{_lambda_.33} parent=31 // pred_check_branch
        %308 = sbr.rel (%p306) target = $region36
      $region35: #{_lambda_.33} parent=31 // pred_region
        %vm309 = vcmask 15360
        %310 = vst.msk [vmem:[%s302] sm:$0xff] %vm309, 0.0
        %311 = vst.msk [vmem:[%s302 + $0x8] sm:$0xff] %vm309, 0.0
        %312 = vst.msk [vmem:[%s302 + $0x10] sm:$0xff] %vm309, 0.0
        %313 = vst.msk [vmem:[%s302 + $0x18] sm:$0xff] %vm309, 0.0
        %314 = vst.msk [vmem:[%s302 + $0x20] sm:$0xff] %vm309, 0.0
        %315 = vst.msk [vmem:[%s302 + $0x28] sm:$0xff] %vm309, 0.0
        %316 = vst.msk [vmem:[%s302 + $0x30] sm:$0xff] %vm309, 0.0
        %317 = vst.msk [vmem:[%s302 + $0x38] sm:$0xff] %vm309, 0.0
        %318 = vst.msk [vmem:[%s302 + $0x40] sm:$0xff] %vm309, 0.0
        %319 = vst.msk [vmem:[%s302 + $0x48] sm:$0xff] %vm309, 0.0
        %320 = vst.msk [vmem:[%s302 + $0x50] sm:$0xff] %vm309, 0.0
        %321 = vst.msk [vmem:[%s302 + $0x58] sm:$0xff] %vm309, 0.0
        %322 = vst.msk [vmem:[%s302 + $0x60] sm:$0xff] %vm309, 0.0
        %323 = vst.msk [vmem:[%s302 + $0x68] sm:$0xff] %vm309, 0.0
        %324 = vst.msk [vmem:[%s302 + $0x70] sm:$0xff] %vm309, 0.0
        %325 = vst.msk [vmem:[%s302 + $0x78] sm:$0xff] %vm309, 0.0
        %326 = vst.msk [vmem:[%s302 + $0x80] sm:$0xff] %vm309, 0.0
        %327 = vst.msk [vmem:[%s302 + $0x88] sm:$0xff] %vm309, 0.0
        %328 = vst.msk [vmem:[%s302 + $0x90] sm:$0xff] %vm309, 0.0
        %329 = vst.msk [vmem:[%s302 + $0x98] sm:$0xff] %vm309, 0.0
        %330 = vst.msk [vmem:[%s302 + $0xa0] sm:$0xff] %vm309, 0.0
        %331 = vst.msk [vmem:[%s302 + $0xa8] sm:$0xff] %vm309, 0.0
        %332 = vst.msk [vmem:[%s302 + $0xb0] sm:$0xff] %vm309, 0.0
        %333 = vst.msk [vmem:[%s302 + $0xb8] sm:$0xff] %vm309, 0.0
        %334 = vst.msk [vmem:[%s302 + $0xc0] sm:$0xff] %vm309, 0.0
        %335 = vst.msk [vmem:[%s302 + $0xc8] sm:$0xff] %vm309, 0.0
        %336 = vst.msk [vmem:[%s302 + $0xd0] sm:$0xff] %vm309, 0.0
        %337 = vst.msk [vmem:[%s302 + $0xd8] sm:$0xff] %vm309, 0.0
        %338 = vst.msk [vmem:[%s302 + $0xe0] sm:$0xff] %vm309, 0.0
        %339 = vst.msk [vmem:[%s302 + $0xe8] sm:$0xff] %vm309, 0.0
        %340 = vst.msk [vmem:[%s302 + $0xf0] sm:$0xff] %vm309, 0.0
        %341 = vst.msk [vmem:[%s302 + $0xf8] sm:$0xff] %vm309, 0.0
      $region36: #{_lambda_.33} parent=31 // pred_fallthru
        _
      %v342 = vld [vmem:[%s273] sm:$0xf]
      %v343 = vld [vmem:[%s273 + $0x4] sm:$0xf]
      %v344 = vld [vmem:[%s273 + $0x8] sm:$0xf]
      %v345 = vld [vmem:[%s273 + $0xc] sm:$0xf]
      %v346 = vld [vmem:[%s273 + $0x10] sm:$0xf]
      %v347 = vld [vmem:[%s273 + $0x14] sm:$0xf]
      %v348 = vld [vmem:[%s273 + $0x18] sm:$0xf]
      %v349 = vld [vmem:[%s273 + $0x1c] sm:$0xf]
      %v350 = vld [vmem:[%s273 + $0x20] sm:$0xf]
      %v351 = vld [vmem:[%s273 + $0x24] sm:$0xf]
      %v352 = vld [vmem:[%s273 + $0x28] sm:$0xf]
      %v353 = vld [vmem:[%s273 + $0x2c] sm:$0xf]
      %v354 = vld [vmem:[%s273 + $0x30] sm:$0xf]
      %v355 = vld [vmem:[%s273 + $0x34] sm:$0xf]
      %v356 = vld [vmem:[%s273 + $0x38] sm:$0xf]
      %v357 = vld [vmem:[%s273 + $0x3c] sm:$0xf]
      %v358 = vld [vmem:[%s273 + $0x40] sm:$0xf]
      %v359 = vld [vmem:[%s273 + $0x44] sm:$0xf]
      %v360 = vld [vmem:[%s273 + $0x48] sm:$0xf]
      %v361 = vld [vmem:[%s273 + $0x4c] sm:$0xf]
      %v362 = vld [vmem:[%s273 + $0x50] sm:$0xf]
      %v363 = vld [vmem:[%s273 + $0x54] sm:$0xf]
      %v364 = vld [vmem:[%s273 + $0x58] sm:$0xf]
      %v365 = vld [vmem:[%s273 + $0x5c] sm:$0xf]
      %v366 = vld [vmem:[%s273 + $0x60] sm:$0xf]
      %v367 = vld [vmem:[%s273 + $0x64] sm:$0xf]
      %v368 = vld [vmem:[%s273 + $0x68] sm:$0xf]
      %v369 = vld [vmem:[%s273 + $0x6c] sm:$0xf]
      %v370 = vld [vmem:[%s273 + $0x70] sm:$0xf]
      %v371 = vld [vmem:[%s273 + $0x74] sm:$0xf]
      %v372 = vld [vmem:[%s273 + $0x78] sm:$0xf]
      %v373 = vld [vmem:[%s273 + $0x7c] sm:$0xf]
      %v374 = vunpack.c.l.bf16 %v342
      %v375 = vunpack.c.l.bf16 %v343
      %v376 = vunpack.c.l.bf16 %v344
      %v377 = vunpack.c.l.bf16 %v345
      %v378 = vunpack.c.l.bf16 %v346
      %v379 = vunpack.c.l.bf16 %v347
      %v380 = vunpack.c.l.bf16 %v348
      %v381 = vunpack.c.l.bf16 %v349
      %v382 = vunpack.c.l.bf16 %v350
      %v383 = vunpack.c.l.bf16 %v351
      %v384 = vunpack.c.l.bf16 %v352
      %v385 = vunpack.c.l.bf16 %v353
      %v386 = vunpack.c.l.bf16 %v354
      %v387 = vunpack.c.l.bf16 %v355
      %v388 = vunpack.c.l.bf16 %v356
      %v389 = vunpack.c.l.bf16 %v357
      %v390 = vunpack.c.l.bf16 %v358
      %v391 = vunpack.c.l.bf16 %v359
      %v392 = vunpack.c.l.bf16 %v360
      %v393 = vunpack.c.l.bf16 %v361
      %v394 = vunpack.c.l.bf16 %v362
      %v395 = vunpack.c.l.bf16 %v363
      %v396 = vunpack.c.l.bf16 %v364
      %v397 = vunpack.c.l.bf16 %v365
      %v398 = vunpack.c.l.bf16 %v366
      %v399 = vunpack.c.l.bf16 %v367
      %v400 = vunpack.c.l.bf16 %v368
      %v401 = vunpack.c.l.bf16 %v369
      %v402 = vunpack.c.l.bf16 %v370
      %v403 = vunpack.c.l.bf16 %v371
      %v404 = vunpack.c.l.bf16 %v372
      %v405 = vunpack.c.l.bf16 %v373
      %v406 = vmax.f32 %v374, 0.0
      %v407 = vmax.f32 %v375, 0.0
      %v408 = vmax.f32 %v376, 0.0
      %v409 = vmax.f32 %v377, 0.0
      %v410 = vmax.f32 %v378, 0.0
      %v411 = vmax.f32 %v379, 0.0
      %v412 = vmax.f32 %v380, 0.0
      %v413 = vmax.f32 %v381, 0.0
      %v414 = vmax.f32 %v382, 0.0
      %v415 = vmax.f32 %v383, 0.0
      %v416 = vmax.f32 %v384, 0.0
      %v417 = vmax.f32 %v385, 0.0
      %v418 = vmax.f32 %v386, 0.0
      %v419 = vmax.f32 %v387, 0.0
      %v420 = vmax.f32 %v388, 0.0
      %v421 = vmax.f32 %v389, 0.0
      %v422 = vmax.f32 %v390, 0.0
      %v423 = vmax.f32 %v391, 0.0
      %v424 = vmax.f32 %v392, 0.0
      %v425 = vmax.f32 %v393, 0.0
      %v426 = vmax.f32 %v394, 0.0
      %v427 = vmax.f32 %v395, 0.0
      %v428 = vmax.f32 %v396, 0.0
      %v429 = vmax.f32 %v397, 0.0
      %v430 = vmax.f32 %v398, 0.0
      %v431 = vmax.f32 %v399, 0.0
      %v432 = vmax.f32 %v400, 0.0
      %v433 = vmax.f32 %v401, 0.0
      %v434 = vmax.f32 %v402, 0.0
      %v435 = vmax.f32 %v403, 0.0
      %v436 = vmax.f32 %v404, 0.0
      %v437 = vmax.f32 %v405, 0.0
      %v438 = vpack.c.bf16 %v407, %v406
      %v439 = vpack.c.bf16 %v409, %v408
      %v440 = vpack.c.bf16 %v411, %v410
      %v441 = vpack.c.bf16 %v413, %v412
      %v442 = vpack.c.bf16 %v415, %v414
      %v443 = vpack.c.bf16 %v417, %v416
      %v444 = vpack.c.bf16 %v419, %v418
      %v445 = vpack.c.bf16 %v421, %v420
      %v446 = vpack.c.bf16 %v423, %v422
      %v447 = vpack.c.bf16 %v425, %v424
      %v448 = vpack.c.bf16 %v427, %v426
      %v449 = vpack.c.bf16 %v429, %v428
      %v450 = vpack.c.bf16 %v431, %v430
      %v451 = vpack.c.bf16 %v433, %v432
      %v452 = vpack.c.bf16 %v435, %v434
      %v453 = vpack.c.bf16 %v437, %v436
      %v454 = vld [vmem:[%s302] sm:$0xff]
      %v455 = vld [vmem:[%s302 + $0x8] sm:$0xff]
      %v456 = vld [vmem:[%s302 + $0x10] sm:$0xff]
      %v457 = vld [vmem:[%s302 + $0x18] sm:$0xff]
      %v458 = vld [vmem:[%s302 + $0x20] sm:$0xff]
      %v459 = vld [vmem:[%s302 + $0x28] sm:$0xff]
      %v460 = vld [vmem:[%s302 + $0x30] sm:$0xff]
      %v461 = vld [vmem:[%s302 + $0x38] sm:$0xff]
      %v462 = vld [vmem:[%s302 + $0x40] sm:$0xff]
      %v463 = vld [vmem:[%s302 + $0x48] sm:$0xff]
      %v464 = vld [vmem:[%s302 + $0x50] sm:$0xff]
      %v465 = vld [vmem:[%s302 + $0x58] sm:$0xff]
      %v466 = vld [vmem:[%s302 + $0x60] sm:$0xff]
      %v467 = vld [vmem:[%s302 + $0x68] sm:$0xff]
      %v468 = vld [vmem:[%s302 + $0x70] sm:$0xff]
      %v469 = vld [vmem:[%s302 + $0x78] sm:$0xff]
      %v470 = vld [vmem:[%s302 + $0x80] sm:$0xff]
      %v471 = vld [vmem:[%s302 + $0x88] sm:$0xff]
      %v472 = vld [vmem:[%s302 + $0x90] sm:$0xff]
      %v473 = vld [vmem:[%s302 + $0x98] sm:$0xff]
      %v474 = vld [vmem:[%s302 + $0xa0] sm:$0xff]
      %v475 = vld [vmem:[%s302 + $0xa8] sm:$0xff]
      %v476 = vld [vmem:[%s302 + $0xb0] sm:$0xff]
      %v477 = vld [vmem:[%s302 + $0xb8] sm:$0xff]
      %v478 = vld [vmem:[%s302 + $0xc0] sm:$0xff]
      %v479 = vld [vmem:[%s302 + $0xc8] sm:$0xff]
      %v480 = vld [vmem:[%s302 + $0xd0] sm:$0xff]
      %v481 = vld [vmem:[%s302 + $0xd8] sm:$0xff]
      %v482 = vld [vmem:[%s302 + $0xe0] sm:$0xff]
      %v483 = vld [vmem:[%s302 + $0xe8] sm:$0xff]
      %v484 = vld [vmem:[%s302 + $0xf0] sm:$0xff]
      %v485 = vld [vmem:[%s302 + $0xf8] sm:$0xff]
      %v486 = vld [vmem:[%s286] sm:$0xf]
      %v487 = vld [vmem:[%s286 + $0x4] sm:$0xf]
      %v488 = vld [vmem:[%s286 + $0x8] sm:$0xf]
      %v489 = vld [vmem:[%s286 + $0xc] sm:$0xf]
      %v490 = vld [vmem:[%s286 + $0x10] sm:$0xf]
      %v491 = vld [vmem:[%s286 + $0x14] sm:$0xf]
      %v492 = vld [vmem:[%s286 + $0x18] sm:$0xf]
      %v493 = vld [vmem:[%s286 + $0x1c] sm:$0xf]
      %v502 = vunpack.c.l.b16 %v486
      %v503 = vunpack.c.l.b16 %v487
      %v504 = vunpack.c.l.b16 %v488
      %v505 = vunpack.c.l.b16 %v489
      %v506 = vunpack.c.l.b16 %v490
      %v507 = vunpack.c.l.b16 %v491
      %v508 = vunpack.c.l.b16 %v492
      %v509 = vunpack.c.l.b16 %v493
      %v510 = vpack.c.b16 %v503, %v502
      %v511 = vpack.c.b16 %v505, %v504
      %v512 = vpack.c.b16 %v507, %v506
      %v513 = vpack.c.b16 %v509, %v508
      %vm518 = vcmask 523264
      %v520 = vsel %vm518, %v438, 0
      %v523 = vsel %vm518, %v439, 0
      %v526 = vsel %vm518, %v440, 0
      %v529 = vsel %vm518, %v441, 0
      %v532 = vsel %vm518, %v442, 0
      %v535 = vsel %vm518, %v443, 0
      %v538 = vsel %vm518, %v444, 0
      %v541 = vsel %vm518, %v445, 0
      %v544 = vsel %vm518, %v446, 0
      %v547 = vsel %vm518, %v447, 0
      %v550 = vsel %vm518, %v448, 0
      %v553 = vsel %vm518, %v449, 0
      %v556 = vsel %vm518, %v450, 0
      %v559 = vsel %vm518, %v451, 0
      %v562 = vsel %vm518, %v452, 0
      %v565 = vsel %vm518, %v453, 0
      %567 = vmatpush.bf16.msra.mxu0 0
      %568 = vmatpush.bf16.msra.mxu0 0
      %569 = vmatpush.bf16.msra.mxu0 0
      %570 = vmatpush.bf16.msra.mxu0 0
      %571 = vmatpush.bf16.msra.mxu0 %v513
      %572 = vmatpush.bf16.msra.mxu0 %v512
      %573 = vmatpush.bf16.msra.mxu0 %v511
      %574 = vmatpush.bf16.msra.mxu0 %v510
      %575 = vmatmul.bf16.gmra.mxu0 %v520
      %v576 = vpop.f32.mrf.mxu0
      %v577 = vadd.f32 0.0, %v576
      %v578 = vpop.f32.mrf.mxu0
      %v579 = vadd.f32 0.0, %v578
      %580 = vmatmul.bf16.gmra.mxu0 %v523
      %v581 = vpop.f32.mrf.mxu0
      %v582 = vadd.f32 0.0, %v581
      %v583 = vpop.f32.mrf.mxu0
      %v584 = vadd.f32 0.0, %v583
      %585 = vmatmul.bf16.gmra.mxu0 %v526
      %v586 = vpop.f32.mrf.mxu0
      %v587 = vadd.f32 0.0, %v586
      %v588 = vpop.f32.mrf.mxu0
      %v589 = vadd.f32 0.0, %v588
      %590 = vmatmul.bf16.gmra.mxu0 %v529
      %v591 = vpop.f32.mrf.mxu0
      %v592 = vadd.f32 0.0, %v591
      %v593 = vpop.f32.mrf.mxu0
      %v594 = vadd.f32 0.0, %v593
      %595 = vmatmul.bf16.gmra.mxu0 %v532
      %v596 = vpop.f32.mrf.mxu0
      %v597 = vadd.f32 0.0, %v596
      %v598 = vpop.f32.mrf.mxu0
      %v599 = vadd.f32 0.0, %v598
      %600 = vmatmul.bf16.gmra.mxu0 %v535
      %v601 = vpop.f32.mrf.mxu0
      %v602 = vadd.f32 0.0, %v601
      %v603 = vpop.f32.mrf.mxu0
      %v604 = vadd.f32 0.0, %v603
      %605 = vmatmul.bf16.gmra.mxu0 %v538
      %v606 = vpop.f32.mrf.mxu0
      %v607 = vadd.f32 0.0, %v606
      %v608 = vpop.f32.mrf.mxu0
      %v609 = vadd.f32 0.0, %v608
      %610 = vmatmul.bf16.gmra.mxu0 %v541
      %v611 = vpop.f32.mrf.mxu0
      %v612 = vadd.f32 0.0, %v611
      %v613 = vpop.f32.mrf.mxu0
      %v614 = vadd.f32 0.0, %v613
      %615 = vmatmul.bf16.gmra.mxu0 %v544
      %v616 = vpop.f32.mrf.mxu0
      %v617 = vadd.f32 0.0, %v616
      %v618 = vpop.f32.mrf.mxu0
      %v619 = vadd.f32 0.0, %v618
      %620 = vmatmul.bf16.gmra.mxu0 %v547
      %v621 = vpop.f32.mrf.mxu0
      %v622 = vadd.f32 0.0, %v621
      %v623 = vpop.f32.mrf.mxu0
      %v624 = vadd.f32 0.0, %v623
      %625 = vmatmul.bf16.gmra.mxu0 %v550
      %v626 = vpop.f32.mrf.mxu0
      %v627 = vadd.f32 0.0, %v626
      %v628 = vpop.f32.mrf.mxu0
      %v629 = vadd.f32 0.0, %v628
      %630 = vmatmul.bf16.gmra.mxu0 %v553
      %v631 = vpop.f32.mrf.mxu0
      %v632 = vadd.f32 0.0, %v631
      %v633 = vpop.f32.mrf.mxu0
      %v634 = vadd.f32 0.0, %v633
      %635 = vmatmul.bf16.gmra.mxu0 %v556
      %v636 = vpop.f32.mrf.mxu0
      %v637 = vadd.f32 0.0, %v636
      %v638 = vpop.f32.mrf.mxu0
      %v639 = vadd.f32 0.0, %v638
      %640 = vmatmul.bf16.gmra.mxu0 %v559
      %v641 = vpop.f32.mrf.mxu0
      %v642 = vadd.f32 0.0, %v641
      %v643 = vpop.f32.mrf.mxu0
      %v644 = vadd.f32 0.0, %v643
      %645 = vmatmul.bf16.gmra.mxu0 %v562
      %v646 = vpop.f32.mrf.mxu0
      %v647 = vadd.f32 0.0, %v646
      %v648 = vpop.f32.mrf.mxu0
      %v649 = vadd.f32 0.0, %v648
      %650 = vmatmul.bf16.gmra.mxu0 %v565
      %v651 = vpop.f32.mrf.mxu0
      %v652 = vadd.f32 0.0, %v651
      %v653 = vpop.f32.mrf.mxu0
      %v654 = vadd.f32 0.0, %v653
      %655 = vdwg.mxu0
      %v656 = vadd.f32 %v454, %v577
      %v657 = vadd.f32 %v455, %v579
      %v658 = vadd.f32 %v456, %v582
      %v659 = vadd.f32 %v457, %v584
      %v660 = vadd.f32 %v458, %v587
      %v661 = vadd.f32 %v459, %v589
      %v662 = vadd.f32 %v460, %v592
      %v663 = vadd.f32 %v461, %v594
      %v664 = vadd.f32 %v462, %v597
      %v665 = vadd.f32 %v463, %v599
      %v666 = vadd.f32 %v464, %v602
      %v667 = vadd.f32 %v465, %v604
      %v668 = vadd.f32 %v466, %v607
      %v669 = vadd.f32 %v467, %v609
      %v670 = vadd.f32 %v468, %v612
      %v671 = vadd.f32 %v469, %v614
      %v672 = vadd.f32 %v470, %v617
      %v673 = vadd.f32 %v471, %v619
      %v674 = vadd.f32 %v472, %v622
      %v675 = vadd.f32 %v473, %v624
      %v676 = vadd.f32 %v474, %v627
      %v677 = vadd.f32 %v475, %v629
      %v678 = vadd.f32 %v476, %v632
      %v679 = vadd.f32 %v477, %v634
      %v680 = vadd.f32 %v478, %v637
      %v681 = vadd.f32 %v479, %v639
      %v682 = vadd.f32 %v480, %v642
      %v683 = vadd.f32 %v481, %v644
      %v684 = vadd.f32 %v482, %v647
      %v685 = vadd.f32 %v483, %v649
      %v686 = vadd.f32 %v484, %v652
      %v687 = vadd.f32 %v485, %v654
      %vm688 = vcmask 15360
      %689 = vst.msk [vmem:[%s302] sm:$0xff] %vm688, %v656
      %690 = vst.msk [vmem:[%s302 + $0x8] sm:$0xff] %vm688, %v657
      %691 = vst.msk [vmem:[%s302 + $0x10] sm:$0xff] %vm688, %v658
      %692 = vst.msk [vmem:[%s302 + $0x18] sm:$0xff] %vm688, %v659
      %693 = vst.msk [vmem:[%s302 + $0x20] sm:$0xff] %vm688, %v660
      %694 = vst.msk [vmem:[%s302 + $0x28] sm:$0xff] %vm688, %v661
      %695 = vst.msk [vmem:[%s302 + $0x30] sm:$0xff] %vm688, %v662
      %696 = vst.msk [vmem:[%s302 + $0x38] sm:$0xff] %vm688, %v663
      %697 = vst.msk [vmem:[%s302 + $0x40] sm:$0xff] %vm688, %v664
      %698 = vst.msk [vmem:[%s302 + $0x48] sm:$0xff] %vm688, %v665
      %699 = vst.msk [vmem:[%s302 + $0x50] sm:$0xff] %vm688, %v666
      %700 = vst.msk [vmem:[%s302 + $0x58] sm:$0xff] %vm688, %v667
      %701 = vst.msk [vmem:[%s302 + $0x60] sm:$0xff] %vm688, %v668
      %702 = vst.msk [vmem:[%s302 + $0x68] sm:$0xff] %vm688, %v669
      %703 = vst.msk [vmem:[%s302 + $0x70] sm:$0xff] %vm688, %v670
      %704 = vst.msk [vmem:[%s302 + $0x78] sm:$0xff] %vm688, %v671
      %705 = vst.msk [vmem:[%s302 + $0x80] sm:$0xff] %vm688, %v672
      %706 = vst.msk [vmem:[%s302 + $0x88] sm:$0xff] %vm688, %v673
      %707 = vst.msk [vmem:[%s302 + $0x90] sm:$0xff] %vm688, %v674
      %708 = vst.msk [vmem:[%s302 + $0x98] sm:$0xff] %vm688, %v675
      %709 = vst.msk [vmem:[%s302 + $0xa0] sm:$0xff] %vm688, %v676
      %710 = vst.msk [vmem:[%s302 + $0xa8] sm:$0xff] %vm688, %v677
      %711 = vst.msk [vmem:[%s302 + $0xb0] sm:$0xff] %vm688, %v678
      %712 = vst.msk [vmem:[%s302 + $0xb8] sm:$0xff] %vm688, %v679
      %713 = vst.msk [vmem:[%s302 + $0xc0] sm:$0xff] %vm688, %v680
      %714 = vst.msk [vmem:[%s302 + $0xc8] sm:$0xff] %vm688, %v681
      %715 = vst.msk [vmem:[%s302 + $0xd0] sm:$0xff] %vm688, %v682
      %716 = vst.msk [vmem:[%s302 + $0xd8] sm:$0xff] %vm688, %v683
      %717 = vst.msk [vmem:[%s302 + $0xe0] sm:$0xff] %vm688, %v684
      %718 = vst.msk [vmem:[%s302 + $0xe8] sm:$0xff] %vm688, %v685
      %719 = vst.msk [vmem:[%s302 + $0xf0] sm:$0xff] %vm688, %v686
      %720 = vst.msk [vmem:[%s302 + $0xf8] sm:$0xff] %vm688, %v687
      // Predicated region
      $region37: #{_lambda_.33} parent=31 // pred_check
        %p721 = pneg %p305
      $region38: #{_lambda_.33} parent=31 // pred_check_branch
        %723 = sbr.rel (%p721) target = $region40
      $region39: #{_lambda_.33} parent=31 // pred_region
        %v724 = vld [vmem:[%s302] sm:$0xff]
        %v725 = vld [vmem:[%s302 + $0x8] sm:$0xff]
        %v726 = vld [vmem:[%s302 + $0x10] sm:$0xff]
        %v727 = vld [vmem:[%s302 + $0x18] sm:$0xff]
        %v728 = vld [vmem:[%s302 + $0x20] sm:$0xff]
        %v729 = vld [vmem:[%s302 + $0x28] sm:$0xff]
        %v730 = vld [vmem:[%s302 + $0x30] sm:$0xff]
        %v731 = vld [vmem:[%s302 + $0x38] sm:$0xff]
        %v732 = vld [vmem:[%s302 + $0x40] sm:$0xff]
        %v733 = vld [vmem:[%s302 + $0x48] sm:$0xff]
        %v734 = vld [vmem:[%s302 + $0x50] sm:$0xff]
        %v735 = vld [vmem:[%s302 + $0x58] sm:$0xff]
        %v736 = vld [vmem:[%s302 + $0x60] sm:$0xff]
        %v737 = vld [vmem:[%s302 + $0x68] sm:$0xff]
        %v738 = vld [vmem:[%s302 + $0x70] sm:$0xff]
        %v739 = vld [vmem:[%s302 + $0x78] sm:$0xff]
        %v740 = vld [vmem:[%s302 + $0x80] sm:$0xff]
        %v741 = vld [vmem:[%s302 + $0x88] sm:$0xff]
        %v742 = vld [vmem:[%s302 + $0x90] sm:$0xff]
        %v743 = vld [vmem:[%s302 + $0x98] sm:$0xff]
        %v744 = vld [vmem:[%s302 + $0xa0] sm:$0xff]
        %v745 = vld [vmem:[%s302 + $0xa8] sm:$0xff]
        %v746 = vld [vmem:[%s302 + $0xb0] sm:$0xff]
        %v747 = vld [vmem:[%s302 + $0xb8] sm:$0xff]
        %v748 = vld [vmem:[%s302 + $0xc0] sm:$0xff]
        %v749 = vld [vmem:[%s302 + $0xc8] sm:$0xff]
        %v750 = vld [vmem:[%s302 + $0xd0] sm:$0xff]
        %v751 = vld [vmem:[%s302 + $0xd8] sm:$0xff]
        %v752 = vld [vmem:[%s302 + $0xe0] sm:$0xff]
        %v753 = vld [vmem:[%s302 + $0xe8] sm:$0xff]
        %v754 = vld [vmem:[%s302 + $0xf0] sm:$0xff]
        %v755 = vld [vmem:[%s302 + $0xf8] sm:$0xff]
        %v756 = vld [vmem:[%s290] sm:$0x1]
        %v758 = vperm.slane %v756, 0
        %v760 = vadd.f32 %v724, %v758
        %v761 = vadd.f32 %v725, %v758
        %v762 = vadd.f32 %v726, %v758
        %v763 = vadd.f32 %v727, %v758
        %v764 = vadd.f32 %v728, %v758
        %v765 = vadd.f32 %v729, %v758
        %v766 = vadd.f32 %v730, %v758
        %v767 = vadd.f32 %v731, %v758
        %v768 = vadd.f32 %v732, %v758
        %v769 = vadd.f32 %v733, %v758
        %v770 = vadd.f32 %v734, %v758
        %v771 = vadd.f32 %v735, %v758
        %v772 = vadd.f32 %v736, %v758
        %v773 = vadd.f32 %v737, %v758
        %v774 = vadd.f32 %v738, %v758
        %v775 = vadd.f32 %v739, %v758
        %v776 = vadd.f32 %v740, %v758
        %v777 = vadd.f32 %v741, %v758
        %v778 = vadd.f32 %v742, %v758
        %v779 = vadd.f32 %v743, %v758
        %v780 = vadd.f32 %v744, %v758
        %v781 = vadd.f32 %v745, %v758
        %v782 = vadd.f32 %v746, %v758
        %v783 = vadd.f32 %v747, %v758
        %v784 = vadd.f32 %v748, %v758
        %v785 = vadd.f32 %v749, %v758
        %v786 = vadd.f32 %v750, %v758
        %v787 = vadd.f32 %v751, %v758
        %v788 = vadd.f32 %v752, %v758
        %v789 = vadd.f32 %v753, %v758
        %v790 = vadd.f32 %v754, %v758
        %v791 = vadd.f32 %v755, %v758
        %v792 = vtanh.pop %v760
        %v793 = vtanh.pop %v761
        %v794 = vtanh.pop %v762
        %v795 = vtanh.pop %v763
        %v796 = vtanh.pop %v764
        %v797 = vtanh.pop %v765
        %v798 = vtanh.pop %v766
        %v799 = vtanh.pop %v767
        %v800 = vtanh.pop %v768
        %v801 = vtanh.pop %v769
        %v802 = vtanh.pop %v770
        %v803 = vtanh.pop %v771
        %v804 = vtanh.pop %v772
        %v805 = vtanh.pop %v773
        %v806 = vtanh.pop %v774
        %v807 = vtanh.pop %v775
        %v808 = vtanh.pop %v776
        %v809 = vtanh.pop %v777
        %v810 = vtanh.pop %v778
        %v811 = vtanh.pop %v779
        %v812 = vtanh.pop %v780
        %v813 = vtanh.pop %v781
        %v814 = vtanh.pop %v782
        %v815 = vtanh.pop %v783
        %v816 = vtanh.pop %v784
        %v817 = vtanh.pop %v785
        %v818 = vtanh.pop %v786
        %v819 = vtanh.pop %v787
        %v820 = vtanh.pop %v788
        %v821 = vtanh.pop %v789
        %v822 = vtanh.pop %v790
        %v823 = vtanh.pop %v791
        %824 = vst.msk [vmem:[%s302] sm:$0xff] %vm688, %v792
        %825 = vst.msk [vmem:[%s302 + $0x8] sm:$0xff] %vm688, %v793
        %826 = vst.msk [vmem:[%s302 + $0x10] sm:$0xff] %vm688, %v794
        %827 = vst.msk [vmem:[%s302 + $0x18] sm:$0xff] %vm688, %v795
        %828 = vst.msk [vmem:[%s302 + $0x20] sm:$0xff] %vm688, %v796
        %829 = vst.msk [vmem:[%s302 + $0x28] sm:$0xff] %vm688, %v797
        %830 = vst.msk [vmem:[%s302 + $0x30] sm:$0xff] %vm688, %v798
        %831 = vst.msk [vmem:[%s302 + $0x38] sm:$0xff] %vm688, %v799
        %832 = vst.msk [vmem:[%s302 + $0x40] sm:$0xff] %vm688, %v800
        %833 = vst.msk [vmem:[%s302 + $0x48] sm:$0xff] %vm688, %v801
        %834 = vst.msk [vmem:[%s302 + $0x50] sm:$0xff] %vm688, %v802
        %835 = vst.msk [vmem:[%s302 + $0x58] sm:$0xff] %vm688, %v803
        %836 = vst.msk [vmem:[%s302 + $0x60] sm:$0xff] %vm688, %v804
        %837 = vst.msk [vmem:[%s302 + $0x68] sm:$0xff] %vm688, %v805
        %838 = vst.msk [vmem:[%s302 + $0x70] sm:$0xff] %vm688, %v806
        %839 = vst.msk [vmem:[%s302 + $0x78] sm:$0xff] %vm688, %v807
        %840 = vst.msk [vmem:[%s302 + $0x80] sm:$0xff] %vm688, %v808
        %841 = vst.msk [vmem:[%s302 + $0x88] sm:$0xff] %vm688, %v809
        %842 = vst.msk [vmem:[%s302 + $0x90] sm:$0xff] %vm688, %v810
        %843 = vst.msk [vmem:[%s302 + $0x98] sm:$0xff] %vm688, %v811
        %844 = vst.msk [vmem:[%s302 + $0xa0] sm:$0xff] %vm688, %v812
        %845 = vst.msk [vmem:[%s302 + $0xa8] sm:$0xff] %vm688, %v813
        %846 = vst.msk [vmem:[%s302 + $0xb0] sm:$0xff] %vm688, %v814
        %847 = vst.msk [vmem:[%s302 + $0xb8] sm:$0xff] %vm688, %v815
        %848 = vst.msk [vmem:[%s302 + $0xc0] sm:$0xff] %vm688, %v816
        %849 = vst.msk [vmem:[%s302 + $0xc8] sm:$0xff] %vm688, %v817
        %850 = vst.msk [vmem:[%s302 + $0xd0] sm:$0xff] %vm688, %v818
        %851 = vst.msk [vmem:[%s302 + $0xd8] sm:$0xff] %vm688, %v819
        %852 = vst.msk [vmem:[%s302 + $0xe0] sm:$0xff] %vm688, %v820
        %853 = vst.msk [vmem:[%s302 + $0xe8] sm:$0xff] %vm688, %v821
        %854 = vst.msk [vmem:[%s302 + $0xf0] sm:$0xff] %vm688, %v822
        %855 = vst.msk [vmem:[%s302 + $0xf8] sm:$0xff] %vm688, %v823
      $region40: #{_lambda_.33} parent=31 // pred_fallthru
        _
      %s856 = smul.u32 32, %s21
      %p857 = scmp.lt.s32.totalorder %s20, 3
      %s858 = scalar_select %p857, %s20, 3
      %p859 = scmp.lt.s32.totalorder %s856, 63
      %s860 = scalar_select %p859, %s856, 63
      %p861 = scmp.lt.s32.totalorder %s22, 0
      %s862 = scalar_select %p861, %s22, 0
      %s863 = sadd.s32 %s862, %s860
      %s864 = smul.addr %s858, 64
      %s865 = sadd.s32 %s863, %s864
      %s866 = smul.addr %s865, 8
      %s867 = scalar_lea.vmem %s3, %s866
      // Predicated region
      $region41: #{_lambda_.33} parent=31 // pred_check
        %p868 = pneg %p148
      $region42: #{_lambda_.33} parent=31 // pred_check_branch
        %870 = sbr.rel (%p868) target = $region44
      $region43: #{_lambda_.33} parent=31 // pred_region
        %s871 = smul.u32 32, %s21
      $region44: #{_lambda_.33} parent=31 // pred_fallthru
        _
    $region32: #{_lambda_.33} parent=5 // pred_fallthru
      _
    %p872 = scmp.le.s32.totalorder 2, %s9
    // Predicated region
    $region45: #{_lambda_.33} parent=5 // pred_check
      %p873 = pneg %p872
    $region46: #{_lambda_.33} parent=5 // pred_check_branch
      %875 = sbr.rel (%p873) target = $region48
    $region47: #{_lambda_.33} parent=5 // pred_region
      %s876 = ssub.s32 %s9, 2
      // Predicated region
      $region49: #{_lambda_.33} parent=47 // pred_check
        %p877 = pneg %p154
      $region50: #{_lambda_.33} parent=47 // pred_check_branch
        %879 = sbr.rel (%p877) target = $region52
      $region51: #{_lambda_.33} parent=47 // pred_region
        %s880 = smul.u32 32, %s25
        %p881 = scmp.lt.s32.totalorder %s24, 3
        %s882 = scalar_select %p881, %s24, 3
        %p883 = scmp.lt.s32.totalorder %s880, 63
        %s884 = scalar_select %p883, %s880, 63
        %p885 = scmp.lt.s32.totalorder %s26, 0
        %s886 = scalar_select %p885, %s26, 0
        %s887 = sadd.s32 %s886, %s884
        %s888 = smul.addr %s882, 64
        %s889 = sadd.s32 %s887, %s888
        %s890 = smul.addr %s889, 8
        %s891 = scalar_lea.vmem %s3, %s890
      $region52: #{_lambda_.33} parent=47 // pred_fallthru
        _
    $region48: #{_lambda_.33} parent=5 // pred_fallthru
      _
  $region6: #{_lambda_.33} parent=0 // loop_footer
    %s13 = sadd.s32 1, %s9
  $region7: #{_lambda_.33} parent=0 // loop_footer_branch
    %8 = sbr.rel target = $region3
  $region8: #{_lambda_.33} parent=0 // loop_exit
    _

</llo_original>
